<compile_context>
chip_gen: v5e
topology: v5e:2x2
jax: 0.10.0
libtpu: 0.0.40
codegen_flags: <defaults>
</compile_context>

<pallas_src>
import jax
import jax.numpy as jnp
from jax.experimental import pallas as pl
from jax.experimental.pallas import tpu as pltpu


# ----------------------------------------------------------------------------
# Fused Pallas kernel: the whole ResidualGroup in one pallas_call
# ----------------------------------------------------------------------------
def _residual_group_kernel(
    # batch tile of the input feature map, (Bt, H, W*C) f32
    x_ref,
    # per-RCAB-block weights (block selected by grid axis 1); mats bf16, biases f32
    wb1_ref, b1_ref, wb2_ref, b2_ref,
    sq0_ref, bs0_ref, sq1_ref, bs1_ref, sq2_ref, bs2_ref, sq3_ref, bs3_ref,
    pmtc_ref, bmt_ref,
    # shared extractor / pooling / broadcast / tail weights
    e0w_ref, e0b_ref, m1w_ref, m1b_ref, m2w_ref, m2b_ref, m3w_ref, m3b_ref,
    ph0_ref, ph1_ref, ph2_ref,
    gp0_ref, gp1_ref, gp2_ref, gp3_ref,
    bcast_ref,
    wt_ref, bt_ref,
    # output (Bt, H, W*C)
    o_ref,
    # scratch: f32 residual carried across the RCAB block axis
    res_ref,
):
    bf16, f32 = jnp.bfloat16, jnp.float32
    r = pl.program_id(1)
    bt, h, wc = x_ref.shape
    m = bt * h                                     # batch-stacked row count

    # Image-boundary masks for the batch-stacked (Bt*H, W*C) row layout: the
    # same-pad 3x3 conv uses sublane rolls (XLU) + masks instead of
    # materializing an (M+2, W*C) zero-padded copy per conv, and the masks keep
    # the row band from reading across image boundaries.
    rows = jax.lax.broadcasted_iota(jnp.int32, (m, 1), 0) % h
    top_mask = (rows != 0).astype(f32)
    bot_mask = (rows != h - 1).astype(f32)

    def conv3x3(v, w0, w1, w2, brow):
        """Same-pad 3x3 conv in the stacked (M, W*Cin) row layout.

        w0/w1/w2 are (W*Cin, W*Cout) kron-banded bf16 matrices for kernel rows
        dy=0,1,2; brow is the f32 bias tiled over W.
        """
        up = (pltpu.roll(v, 1, axis=0) * top_mask).astype(bf16)      # row above
        dn = (pltpu.roll(v, m - 1, axis=0) * bot_mask).astype(bf16)  # row below
        acc = jnp.dot(up, w0, preferred_element_type=f32)
        acc = acc + jnp.dot(v.astype(bf16), w1, preferred_element_type=f32)
        acc = acc + jnp.dot(dn, w2, preferred_element_type=f32)
        return acc + brow

    def conv1x1_relu(v, w_ref, b_ref):
        return jnp.maximum(
            jnp.dot(v.astype(bf16), w_ref[...], preferred_element_type=f32)
            + b_ref[...], 0.0)

    @pl.when(r == 0)
    def _init():
        res_ref[...] = x_ref[...].astype(f32).reshape(m, wc)

    res = res_ref[...]                                           # (M, W*C) f32

    # --- RCAB body: conv3x3 -> ReLU -> conv3x3 ------------------------------
    h1 = jnp.maximum(
        conv3x3(res, wb1_ref[0, 0], wb1_ref[0, 1], wb1_ref[0, 2], b1_ref[0]),
        0.0)
    h2 = conv3x3(h1, wb2_ref[0, 0], wb2_ref[0, 1], wb2_ref[0, 2], b2_ref[0])

    # --- extractor: 1x1 conv + ReLU per level; levels 1..3 avg-pool 2x2 first
    #     (H half of the pool as a row matmul ph*, W half folded into m*w).
    e0 = conv1x1_relu(h2, e0w_ref, e0b_ref)                      # (M,    ewp0)
    r1 = jnp.dot(ph0_ref[...], e0.astype(bf16), preferred_element_type=f32)
    e1 = conv1x1_relu(r1, m1w_ref, m1b_ref)                      # (M/2,  ewp1)
    r2 = jnp.dot(ph1_ref[...], e1.astype(bf16), preferred_element_type=f32)
    e2 = conv1x1_relu(r2, m2w_ref, m2b_ref)                      # (M/4,  ewp2)
    r3 = jnp.dot(ph2_ref[...], e2.astype(bf16), preferred_element_type=f32)
    e3 = conv1x1_relu(r3, m3w_ref, m3b_ref)                      # (M/8,  ewp3)

    # --- StackChannelAttention: squeeze 1x1 + ReLU, per-image global average
    #     (gp*), then ONE fused merge matmul over the lane-aligned concat.
    cms = []
    for e, sq_r, bs_r, gp_r in ((e0, sq0_ref, bs0_ref, gp0_ref),
                                (e1, sq1_ref, bs1_ref, gp1_ref),
                                (e2, sq2_ref, bs2_ref, gp2_ref),
                                (e3, sq3_ref, bs3_ref, gp3_ref)):
        s = jnp.maximum(
            jnp.dot(e.astype(bf16), sq_r[0], preferred_element_type=f32)
            + bs_r[0], 0.0)
        cms.append(jnp.dot(gp_r[...], s.astype(bf16),
                           preferred_element_type=f32))
    cm = jnp.concatenate(cms, axis=-1)                           # (Bt, sum_l)
    att = jnp.dot(cm.astype(bf16), pmtc_ref[0],
                  preferred_element_type=f32) + bmt_ref[0]       # (Bt, W*C)
    att_rows = jnp.dot(bcast_ref[...], att.astype(bf16),
                       preferred_element_type=f32)               # (M, W*C)

    # RCAB residual (carried in the f32 VMEM scratch)
    res_new = res + h2 * att_rows
    res_ref[...] = res_new

    # --- tail conv3x3 + outer residual, after the last RCAB block -----------
    @pl.when(r == pl.num_programs(1) - 1)
    def _finalize():
        out = conv3x3(res_new, wt_ref[0], wt_ref[1], wt_ref[2], bt_ref[...])
        out = out + x_ref[...].astype(f32).reshape(m, wc)
        o_ref[...] = out.reshape(bt, h, wc).astype(o_ref.dtype)


# ----------------------------------------------------------------------------
# Host-side weight expansion (kron-banded conv mats, fused pooling, bf16 cast)
# ----------------------------------------------------------------------------
def _expand_conv3x3(w, b, W):
    """(3,3,Cin,Cout) same-pad conv -> 3 banded bf16 (W*Cin,W*Cout) mats + f32 bias."""
    mats = []
    for dy in range(3):
        mat = 0.0
        for dx in range(3):
            mat = mat + jnp.kron(jnp.eye(W, k=1 - dx, dtype=jnp.float32),
                                 w[dy, dx])
        mats.append(mat)
    return (jnp.stack(mats).astype(jnp.bfloat16),
            jnp.tile(b, W)[None, :].astype(jnp.float32))


def _pool_pairs(n):
    """(n//2, n) matrix averaging adjacent pairs (2x avg-pool along one axis)."""
    mat = jnp.zeros((n // 2, n), jnp.float32)
    i = jnp.arange(n // 2)
    mat = mat.at[i, 2 * i].set(0.5)
    mat = mat.at[i, 2 * i + 1].set(0.5)
    return mat


def _prepare_fused_params(params, H, W, C, Bt):
    """Expand conv / attention weights into lane-dense bf16 matmul operands."""
    bf16, f32 = jnp.bfloat16, jnp.float32
    LANE = 128
    pad_lane = lambda n: -(-n // LANE) * LANE

    def pad2(a, rows, cols):
        return jnp.pad(a, ((0, rows - a.shape[0]), (0, cols - a.shape[1])))

    eye = lambda n: jnp.eye(n, dtype=f32)
    blocks = params["blocks"]
    ext_ws, ext_bs = params["extractor"]["ws"], params["extractor"]["bs"]
    Ws = [W, W // 2, W // 4, W // 8]
    Hs = [H, H // 2, H // 4, H // 8]
    Cs = [wl.shape[1] for wl in ext_ws]          # extractor output channels
    ew = [Ws[l] * Cs[l] for l in range(4)]       # e_l lane widths
    ewp = [pad_lane(n) for n in ew]              # lane-padded (mult. of 128)

    shared = {}
    # level 0: plain 1x1 conv on h2
    shared["e0w"] = pad2(jnp.kron(eye(W), ext_ws[0]), W * C, ewp[0]).astype(bf16)
    shared["e0b"] = pad2(jnp.tile(ext_bs[0], Ws[0])[None, :], 1,
                         ewp[0]).astype(f32)
    # levels 1..3: W half of the 2x2 avg-pool folded into the 1x1 conv matrix
    for l, name in ((1, "m1"), (2, "m2"), (3, "m3")):
        mat = jnp.kron(_pool_pairs(Ws[l - 1]).T, ext_ws[l])
        shared[name + "w"] = pad2(mat, ewp[l - 1], ewp[l]).astype(bf16)
        shared[name + "b"] = pad2(jnp.tile(ext_bs[l], Ws[l])[None, :], 1,
                                  ewp[l]).astype(f32)
    # H half of the 2x2 avg-pool over the batch-stacked row axis (image heights
    # are even, so row pairs never straddle image boundaries)
    shared["ph0"] = _pool_pairs(Bt * Hs[0]).astype(bf16)
    shared["ph1"] = _pool_pairs(Bt * Hs[1]).astype(bf16)
    shared["ph2"] = _pool_pairs(Bt * Hs[2]).astype(bf16)
    # per-image global row-average (Bt, Bt*H_l) and per-image row broadcast
    for l in range(4):
        shared[f"gp{l}"] = jnp.kron(
            eye(Bt), jnp.full((1, Hs[l]), 1.0 / Hs[l], f32)).astype(bf16)
    shared["bcast"] = jnp.kron(eye(Bt), jnp.ones((H, 1), f32)).astype(bf16)
    shared["wt"], shared["bt"] = _expand_conv3x3(params["tail_w"],
                                                 params["tail_b"], W)

    tile_c = jnp.kron(jnp.ones((1, W), f32), eye(C))             # (C, W*C)
    per = {k: [] for k in ("wb1", "b1", "wb2", "b2", "pmtc", "bmt")}
    sq = [[] for _ in range(4)]
    bs = [[] for _ in range(4)]
    for blk in blocks:
        wb1, b1 = _expand_conv3x3(blk["w1"], blk["b1"], W)
        wb2, b2 = _expand_conv3x3(blk["w2"], blk["b2"], W)
        per["wb1"].append(wb1)
        per["b1"].append(b1)
        per["wb2"].append(wb2)
        per["b2"].append(b2)
        per["bmt"].append(jnp.tile(blk["bm"], W)[None, :].astype(f32))
        pmts = []
        for l in range(4):
            wl, cs = Ws[l], blk["sq_w"][l].shape[1]
            swp = pad_lane(wl * cs)              # lane-padded squeeze width
            sq[l].append(pad2(jnp.kron(eye(wl), blk["sq_w"][l]),
                              ewp[l], swp).astype(bf16))
            bs[l].append(pad2(jnp.tile(blk["sq_b"][l], wl)[None, :], 1,
                              swp).astype(f32))
            avg = jnp.kron(jnp.full((wl, 1), 1.0 / wl, f32), eye(cs))
            pmts.append(pad2(avg @ blk["wm"][l] @ tile_c, swp, W * C))
        # fused merge matrix: one matmul for the 4 attention levels
        per["pmtc"].append(jnp.concatenate(pmts, axis=0).astype(bf16))
    per = {k: jnp.stack(v) for k, v in per.items()}
    per["sq"] = [jnp.stack(v) for v in sq]
    per["bs"] = [jnp.stack(v) for v in bs]
    return per, shared


# ----------------------------------------------------------------------------
# Fused forward
# ----------------------------------------------------------------------------
def residual_group_forward(x, params, *, batch_tile=None):
    """x: (B, H, W, C) NHWC -> (B, H, W, C).  Whole ResidualGroup, one pallas_call.

    batch_tile: images per grid step (default: whole batch -> weights fetched
    once, M = B*H).  On v7x set batch_tile = B // 2 to spread the parallel grid
    axis over both TensorCores.
    """
    B, H, W, C = x.shape
    WC = W * C
    Bt = B if batch_tile is None else batch_tile
    assert B % Bt == 0
    assert H % 8 == 0 and W % 8 == 0   # stacked-row tiling + 3-level 2x2 pools

    per, shared = _prepare_fused_params(params, H, W, C, Bt)
    nb = per["wb1"].shape[0]
    x2 = x.reshape(B, H, WC)

    per_args = [per["wb1"], per["b1"], per["wb2"], per["b2"],
                per["sq"][0], per["bs"][0], per["sq"][1], per["bs"][1],
                per["sq"][2], per["bs"][2], per["sq"][3], per["bs"][3],
                per["pmtc"], per["bmt"]]
    shared_args = [shared["e0w"], shared["e0b"], shared["m1w"], shared["m1b"],
                   shared["m2w"], shared["m2b"], shared["m3w"], shared["m3b"],
                   shared["ph0"], shared["ph1"], shared["ph2"],
                   shared["gp0"], shared["gp1"], shared["gp2"], shared["gp3"],
                   shared["bcast"], shared["wt"], shared["bt"]]

    def per_spec(a):
        zeros = (0,) * (a.ndim - 1)

        def imap(b, r):
            return (r,) + zeros
        # TODO(synk): on v5e, if the per-block weight stream is still exposed
        # after the bf16 cast, add pipeline_mode=pl.Buffered(3) here and sweep.
        return pl.BlockSpec((1,) + a.shape[1:], imap)

    def shared_spec(a):
        zeros = (0,) * a.ndim

        def imap(b, r):
            return zeros
        return pl.BlockSpec(a.shape, imap)

    in_specs = ([pl.BlockSpec((Bt, H, WC), lambda b, r: (b, 0, 0))]
                + [per_spec(a) for a in per_args]
                + [shared_spec(a) for a in shared_args])

    out = pl.pallas_call(
        _residual_group_kernel,
        out_shape=jax.ShapeDtypeStruct((B, H, WC), x.dtype),
        grid=(B // Bt, nb),
        in_specs=in_specs,
        out_specs=pl.BlockSpec((Bt, H, WC), lambda b, r: (b, 0, 0)),
        scratch_shapes=[pltpu.VMEM((Bt * H, WC), jnp.float32)],
        compiler_params=pltpu.CompilerParams(
            dimension_semantics=("parallel", "arbitrary"),
            vmem_limit_bytes=32 * 1024 * 1024,
        ),
    )(x2, *per_args, *shared_args)
    return out.reshape(B, H, W, C)


# ----------------------------------------------------------------------------
# Pure-JAX reference (independent formulation: lax convs, NHWC, f32)
# ----------------------------------------------------------------------------
def _ref_conv3x3(x, w, b):
    y = jax.lax.conv_general_dilated(
        x, w, window_strides=(1, 1), padding="SAME",
        dimension_numbers=("NHWC", "HWIO", "NHWC"),
        precision=jax.lax.Precision.HIGHEST)
    return y + b


def _ref_conv1x1(x, w, b):
    return jnp.einsum("bhwc,cd->bhwd", x, w,
                      precision=jax.lax.Precision.HIGHEST) + b


def _ref_avgpool2x2(x):
    B, H, W, C = x.shape
    return x.reshape(B, H // 2, 2, W // 2, 2, C).mean(axis=(2, 4))


def reference_forward(x, params):
    C = x.shape[-1]
    res = x
    for blk in params["blocks"]:
        h = jax.nn.relu(_ref_conv3x3(res, blk["w1"], blk["b1"]))
        h = _ref_conv3x3(h, blk["w2"], blk["b2"])
        feats, cur = [], h
        for l, (we, be) in enumerate(zip(params["extractor"]["ws"],
                                         params["extractor"]["bs"])):
            if l > 0:
                cur = _ref_avgpool2x2(cur)
            cur = jax.nn.relu(_ref_conv1x1(cur, we, be))
            feats.append(cur)
        pooled = []
        for f, ws, bsq in zip(feats, blk["sq_w"], blk["sq_b"]):
            s = jax.nn.relu(_ref_conv1x1(f, ws, bsq))
            pooled.append(s.mean(axis=(1, 2)))
        pooled = jnp.concatenate(pooled, axis=-1)               # (B, 4*C)
        attn = pooled @ blk["wm"].reshape(-1, C) + blk["bm"]    # (B, C)
        res = res + h * attn[:, None, None, :]
    res = _ref_conv3x3(res, params["tail_w"], params["tail_b"])
    return res + x


# ----------------------------------------------------------------------------
# Parameters
# ----------------------------------------------------------------------------
def init_params(key, n_feat, channels, reduction, n_resblocks):
    def nrm(k, shape, scale=0.05):
        return scale * jax.random.normal(k, shape, jnp.float32)

    keys = jax.random.split(key, 2 + n_resblocks)
    params = {}

    ek = jax.random.split(keys[0], 2 * len(channels))
    in_chs = [n_feat] + list(channels[:-1])
    params["extractor"] = {
        "ws": [nrm(ek[2 * l], (in_chs[l], channels[l])) for l in range(4)],
        "bs": [nrm(ek[2 * l + 1], (channels[l],)) for l in range(4)],
    }

    tk = jax.random.split(keys[1], 2)
    params["tail_w"] = nrm(tk[0], (3, 3, n_feat, n_feat))
    params["tail_b"] = nrm(tk[1], (n_feat,))

    blocks = []
    for r in range(n_resblocks):
        bk = jax.random.split(keys[2 + r], 14)
        blocks.append({
            "w1": nrm(bk[0], (3, 3, n_feat, n_feat)),
            "b1": nrm(bk[1], (n_feat,)),
            "w2": nrm(bk[2], (3, 3, n_feat, n_feat)),
            "b2": nrm(bk[3], (n_feat,)),
            "sq_w": [nrm(bk[4 + l], (channels[l], channels[l] // reduction[l]))
                     for l in range(4)],
            "sq_b": [nrm(bk[8 + l], (channels[l] // reduction[l],))
                     for l in range(4)],
            # merge 1x1 conv (4*n_feat -> n_feat) stored as 4 (n_feat,n_feat) blocks
            "wm": nrm(bk[12], (4, n_feat, n_feat)),
            "bm": nrm(bk[13], (n_feat,)),
        })
    params["blocks"] = blocks
    return params


if __name__ == "__main__":
    key = jax.random.PRNGKey(0)
    B, H, W = 2, 16, 16
    n_feat = 16
    channels = [16, 32, 32, 32]      # per-level extractor channels
    reduction = [1, 2, 2, 2]         # sum(channels[l]//reduction[l]) == 4*n_feat
    n_resblocks = 2

    k_x, k_p = jax.random.split(key)
    x = jax.random.normal(k_x, (B, H, W, n_feat), jnp.float32)   # NHWC
    params = init_params(k_p, n_feat, channels, reduction, n_resblocks)

    fwd = jax.jit(residual_group_forward)
    out = jax.block_until_ready(fwd(x, params))
    assert out.shape == x.shape and out.dtype == x.dtype

    ref = jax.block_until_ready(reference_forward(x, params))
    abs_err = float(jnp.max(jnp.abs(out - ref)))
    scale = float(jnp.max(jnp.abs(ref)))
    rel_err = abs_err / scale
    assert rel_err < 3e-2, f"rel err vs reference: {rel_err} (abs {abs_err})"
    print("KERNEL_OK")
</pallas_src>

<mosaic_0001>
module attributes {stable_mosaic.version = 11 : i64} {
  func.func @_residual_group_kernel(%arg0: i32, %arg1: i32, %arg2: memref<2x16x256xf32, #tpu.memory_space<vmem>>, %arg3: memref<1x3x256x256xbf16, #tpu.memory_space<vmem>>, %arg4: memref<1x1x256xf32, #tpu.memory_space<vmem>>, %arg5: memref<1x3x256x256xbf16, #tpu.memory_space<vmem>>, %arg6: memref<1x1x256xf32, #tpu.memory_space<vmem>>, %arg7: memref<1x256x256xbf16, #tpu.memory_space<vmem>>, %arg8: memref<1x1x256xf32, #tpu.memory_space<vmem>>, %arg9: memref<1x256x128xbf16, #tpu.memory_space<vmem>>, %arg10: memref<1x1x128xf32, #tpu.memory_space<vmem>>, %arg11: memref<1x128x128xbf16, #tpu.memory_space<vmem>>, %arg12: memref<1x1x128xf32, #tpu.memory_space<vmem>>, %arg13: memref<1x128x128xbf16, #tpu.memory_space<vmem>>, %arg14: memref<1x1x128xf32, #tpu.memory_space<vmem>>, %arg15: memref<1x640x256xbf16, #tpu.memory_space<vmem>>, %arg16: memref<1x1x256xf32, #tpu.memory_space<vmem>>, %arg17: memref<256x256xbf16, #tpu.memory_space<vmem>>, %arg18: memref<1x256xf32, #tpu.memory_space<vmem>>, %arg19: memref<256x256xbf16, #tpu.memory_space<vmem>>, %arg20: memref<1x256xf32, #tpu.memory_space<vmem>>, %arg21: memref<256x128xbf16, #tpu.memory_space<vmem>>, %arg22: memref<1x128xf32, #tpu.memory_space<vmem>>, %arg23: memref<128x128xbf16, #tpu.memory_space<vmem>>, %arg24: memref<1x128xf32, #tpu.memory_space<vmem>>, %arg25: memref<16x32xbf16, #tpu.memory_space<vmem>>, %arg26: memref<8x16xbf16, #tpu.memory_space<vmem>>, %arg27: memref<4x8xbf16, #tpu.memory_space<vmem>>, %arg28: memref<2x32xbf16, #tpu.memory_space<vmem>>, %arg29: memref<2x16xbf16, #tpu.memory_space<vmem>>, %arg30: memref<2x8xbf16, #tpu.memory_space<vmem>>, %arg31: memref<2x4xbf16, #tpu.memory_space<vmem>>, %arg32: memref<32x2xbf16, #tpu.memory_space<vmem>>, %arg33: memref<3x256x256xbf16, #tpu.memory_space<vmem>>, %arg34: memref<1x256xf32, #tpu.memory_space<vmem>>, %arg35: memref<2x16x256xf32, #tpu.memory_space<vmem>>, %arg36: memref<32x256xf32, #tpu.memory_space<vmem>>) attributes {dimension_semantics = [#tpu.dimension_semantics<parallel>, #tpu.dimension_semantics<arbitrary>], iteration_bounds = array<i64: 1, 2>, scalar_prefetch = 0 : i64, scratch_operands = 1 : i64, tpu.core_type = #tpu.core_type<tc>, window_params = [{transform_indices = @transform_0, window_bounds = array<i64: 2, 16, 256>}, {transform_indices = @transform_1, window_bounds = array<i64: 1, 3, 256, 256>}, {transform_indices = @transform_2, window_bounds = array<i64: 1, 1, 256>}, {transform_indices = @transform_3, window_bounds = array<i64: 1, 3, 256, 256>}, {transform_indices = @transform_4, window_bounds = array<i64: 1, 1, 256>}, {transform_indices = @transform_5, window_bounds = array<i64: 1, 256, 256>}, {transform_indices = @transform_6, window_bounds = array<i64: 1, 1, 256>}, {transform_indices = @transform_7, window_bounds = array<i64: 1, 256, 128>}, {transform_indices = @transform_8, window_bounds = array<i64: 1, 1, 128>}, {transform_indices = @transform_9, window_bounds = array<i64: 1, 128, 128>}, {transform_indices = @transform_10, window_bounds = array<i64: 1, 1, 128>}, {transform_indices = @transform_11, window_bounds = array<i64: 1, 128, 128>}, {transform_indices = @transform_12, window_bounds = array<i64: 1, 1, 128>}, {transform_indices = @transform_13, window_bounds = array<i64: 1, 640, 256>}, {transform_indices = @transform_14, window_bounds = array<i64: 1, 1, 256>}, {pipeline_mode = #tpu.pipeline_mode<synchronous>, transform_indices = @transform_15, window_bounds = array<i64: 256, 256>}, {pipeline_mode = #tpu.pipeline_mode<synchronous>, transform_indices = @transform_16, window_bounds = array<i64: 1, 256>}, {pipeline_mode = #tpu.pipeline_mode<synchronous>, transform_indices = @transform_17, window_bounds = array<i64: 256, 256>}, {pipeline_mode = #tpu.pipeline_mode<synchronous>, transform_indices = @transform_18, window_bounds = array<i64: 1, 256>}, {pipeline_mode = #tpu.pipeline_mode<synchronous>, transform_indices = @transform_19, window_bounds = array<i64: 256, 128>}, {pipeline_mode = #tpu.pipeline_mode<synchronous>, transform_indices = @transform_20, window_bounds = array<i64: 1, 128>}, {pipeline_mode = #tpu.pipeline_mode<synchronous>, transform_indices = @transform_21, window_bounds = array<i64: 128, 128>}, {pipeline_mode = #tpu.pipeline_mode<synchronous>, transform_indices = @transform_22, window_bounds = array<i64: 1, 128>}, {pipeline_mode = #tpu.pipeline_mode<synchronous>, transform_indices = @transform_23, window_bounds = array<i64: 16, 32>}, {pipeline_mode = #tpu.pipeline_mode<synchronous>, transform_indices = @transform_24, window_bounds = array<i64: 8, 16>}, {pipeline_mode = #tpu.pipeline_mode<synchronous>, transform_indices = @transform_25, window_bounds = array<i64: 4, 8>}, {pipeline_mode = #tpu.pipeline_mode<synchronous>, transform_indices = @transform_26, window_bounds = array<i64: 2, 32>}, {pipeline_mode = #tpu.pipeline_mode<synchronous>, transform_indices = @transform_27, window_bounds = array<i64: 2, 16>}, {pipeline_mode = #tpu.pipeline_mode<synchronous>, transform_indices = @transform_28, window_bounds = array<i64: 2, 8>}, {pipeline_mode = #tpu.pipeline_mode<synchronous>, transform_indices = @transform_29, window_bounds = array<i64: 2, 4>}, {pipeline_mode = #tpu.pipeline_mode<synchronous>, transform_indices = @transform_30, window_bounds = array<i64: 32, 2>}, {pipeline_mode = #tpu.pipeline_mode<synchronous>, transform_indices = @transform_31, window_bounds = array<i64: 3, 256, 256>}, {pipeline_mode = #tpu.pipeline_mode<synchronous>, transform_indices = @transform_32, window_bounds = array<i64: 1, 256>}, {transform_indices = @transform_33, window_bounds = array<i64: 2, 16, 256>}]} {
    %0 = tpu.iota {dimensions = array<i32: 0>} : vector<32x1xi32>
    %c16_i32 = arith.constant 16 : i32
    %c0_i32 = arith.constant 0 : i32
    %1 = arith.cmpi eq, %c16_i32, %c0_i32 : i32
    %c1_i32 = arith.constant 1 : i32
    %2 = arith.select %1, %c1_i32, %c16_i32 : i32
    %3 = vector.broadcast %2 : i32 to vector<32x1xi32>
    %4 = arith.remsi %0, %3 : vector<32x1xi32>
    %c0_i32_0 = arith.constant 0 : i32
    %5 = vector.broadcast %c0_i32_0 : i32 to vector<32x1xi32>
    %6 = arith.cmpi ne, %4, %5 : vector<32x1xi32>
    %c0_i32_1 = arith.constant 0 : i32
    %7 = vector.broadcast %c0_i32_1 : i32 to vector<32x1xi32>
    %8 = arith.cmpi slt, %4, %7 : vector<32x1xi32>
    %c0_i32_2 = arith.constant 0 : i32
    %9 = arith.cmpi slt, %2, %c0_i32_2 : i32
    %10 = vector.broadcast %9 : i1 to vector<32x1xi1>
    %11 = vector.broadcast %10 : vector<32x1xi1> to vector<32x1xi1>
    %12 = arith.xori %8, %11 : vector<32x1xi1>
    %13 = arith.andi %12, %6 : vector<32x1xi1>
    %14 = vector.broadcast %2 : i32 to vector<32x1xi32>
    %15 = arith.addi %4, %14 : vector<32x1xi32>
    %16 = arith.select %13, %15, %4 : vector<32x1xi1>, vector<32x1xi32>
    %c0_i32_3 = arith.constant 0 : i32
    %17 = vector.broadcast %c0_i32_3 : i32 to vector<32x1xi32>
    %18 = arith.cmpi ne, %16, %17 : vector<32x1xi32>
    %19 = arith.extui %18 : vector<32x1xi1> to vector<32x1xi32>
    %20 = arith.sitofp %19 : vector<32x1xi32> to vector<32x1xf32>
    %c15_i32 = arith.constant 15 : i32
    %21 = vector.broadcast %c15_i32 : i32 to vector<32x1xi32>
    %22 = arith.cmpi ne, %16, %21 : vector<32x1xi32>
    %23 = arith.extui %22 : vector<32x1xi1> to vector<32x1xi32>
    %24 = arith.sitofp %23 : vector<32x1xi32> to vector<32x1xf32>
    %c0_i32_4 = arith.constant 0 : i32
    %25 = arith.cmpi eq, %arg1, %c0_i32_4 : i32
    %26 = arith.extui %25 : i1 to i32
    %c0_i32_5 = arith.constant 0 : i32
    %27 = arith.cmpi ne, %26, %c0_i32_5 : i32
    scf.if %27 {
      %c0_135 = arith.constant 0 : index
      %c0_136 = arith.constant 0 : index
      %c0_137 = arith.constant 0 : index
      %190 = vector.load %arg2[%c0_135, %c0_136, %c0_137] : memref<2x16x256xf32, #tpu.memory_space<vmem>>, vector<2x16x256xf32>
      %191 = vector.shape_cast %190 : vector<2x16x256xf32> to vector<32x256xf32>
      %c0_138 = arith.constant 0 : index
      %c0_139 = arith.constant 0 : index
      %192 = vector.load %arg36[%c0_138, %c0_139] : memref<32x256xf32, #tpu.memory_space<vmem>>, vector<32x256xf32>
      tpu.vector_store %arg36[%c0_138, %c0_139], %191 {strides = array<i32>} : memref<32x256xf32, #tpu.memory_space<vmem>>, vector<32x256xf32>,
    } else {
    }
    %c0 = arith.constant 0 : index
    %c0_6 = arith.constant 0 : index
    %28 = vector.load %arg36[%c0, %c0_6] : memref<32x256xf32, #tpu.memory_space<vmem>>, vector<32x256xf32>
    %c0_7 = arith.constant 0 : index
    %c0_8 = arith.constant 0 : index
    %c0_9 = arith.constant 0 : index
    %c0_10 = arith.constant 0 : index
    %29 = vector.load %arg3[%c0_7, %c0_8, %c0_9, %c0_10] : memref<1x3x256x256xbf16, #tpu.memory_space<vmem>>, vector<1x1x256x256xbf16>
    %30 = vector.shape_cast %29 : vector<1x1x256x256xbf16> to vector<256x256xbf16>
    %c0_11 = arith.constant 0 : index
    %c1 = arith.constant 1 : index
    %c0_12 = arith.constant 0 : index
    %c0_13 = arith.constant 0 : index
    %31 = vector.load %arg3[%c0_11, %c1, %c0_12, %c0_13] : memref<1x3x256x256xbf16, #tpu.memory_space<vmem>>, vector<1x1x256x256xbf16>
    %32 = vector.shape_cast %31 : vector<1x1x256x256xbf16> to vector<256x256xbf16>
    %c0_14 = arith.constant 0 : index
    %c2 = arith.constant 2 : index
    %c0_15 = arith.constant 0 : index
    %c0_16 = arith.constant 0 : index
    %33 = vector.load %arg3[%c0_14, %c2, %c0_15, %c0_16] : memref<1x3x256x256xbf16, #tpu.memory_space<vmem>>, vector<1x1x256x256xbf16>
    %34 = vector.shape_cast %33 : vector<1x1x256x256xbf16> to vector<256x256xbf16>
    %c0_17 = arith.constant 0 : index
    %c0_18 = arith.constant 0 : index
    %c0_19 = arith.constant 0 : index
    %35 = vector.load %arg4[%c0_17, %c0_18, %c0_19] : memref<1x1x256xf32, #tpu.memory_space<vmem>>, vector<1x1x256xf32>
    %36 = vector.shape_cast %35 : vector<1x1x256xf32> to vector<1x256xf32>
    %c1_i32_20 = arith.constant 1 : i32
    %37 = tpu.dynamic_rotate %28 by %c1_i32_20 dim 0 : vector<32x256xf32>, i32 -> vector<32x256xf32>
    %38 = vector.broadcast %20 : vector<32x1xf32> to vector<32x256xf32>
    %39 = arith.mulf %37, %38 : vector<32x256xf32>
    %40 = arith.truncf %39 : vector<32x256xf32> to vector<32x256xbf16>
    %c31_i32 = arith.constant 31 : i32
    %41 = tpu.dynamic_rotate %28 by %c31_i32 dim 0 : vector<32x256xf32>, i32 -> vector<32x256xf32>
    %42 = vector.broadcast %24 : vector<32x1xf32> to vector<32x256xf32>
    %43 = arith.mulf %41, %42 : vector<32x256xf32>
    %44 = arith.truncf %43 : vector<32x256xf32> to vector<32x256xbf16>
    %cst = arith.constant dense<0.000000e+00> : vector<32x256xf32>
    %45 = tpu.matmul %40, %30, %cst {dimension_numbers = #tpu.dot_dimension_numbers<[1], [0], [0], [1], [0, 0, 1, 1], [], []>} : vector<32x256xbf16>, vector<256x256xbf16>, vector<32x256xf32> -> vector<32x256xf32>
    %46 = arith.truncf %28 : vector<32x256xf32> to vector<32x256xbf16>
    %cst_21 = arith.constant dense<0.000000e+00> : vector<32x256xf32>
    %47 = tpu.matmul %46, %32, %cst_21 {dimension_numbers = #tpu.dot_dimension_numbers<[1], [0], [0], [1], [0, 0, 1, 1], [], []>} : vector<32x256xbf16>, vector<256x256xbf16>, vector<32x256xf32> -> vector<32x256xf32>
    %48 = arith.addf %45, %47 : vector<32x256xf32>
    %cst_22 = arith.constant dense<0.000000e+00> : vector<32x256xf32>
    %49 = tpu.matmul %44, %34, %cst_22 {dimension_numbers = #tpu.dot_dimension_numbers<[1], [0], [0], [1], [0, 0, 1, 1], [], []>} : vector<32x256xbf16>, vector<256x256xbf16>, vector<32x256xf32> -> vector<32x256xf32>
    %50 = arith.addf %48, %49 : vector<32x256xf32>
    %51 = vector.broadcast %36 : vector<1x256xf32> to vector<32x256xf32>
    %52 = arith.addf %50, %51 : vector<32x256xf32>
    %cst_23 = arith.constant 0.000000e+00 : f32
    %53 = vector.broadcast %cst_23 : f32 to vector<32x256xf32>
    %54 = arith.maximumf %52, %53 : vector<32x256xf32>
    %c0_24 = arith.constant 0 : index
    %c0_25 = arith.constant 0 : index
    %c0_26 = arith.constant 0 : index
    %c0_27 = arith.constant 0 : index
    %55 = vector.load %arg5[%c0_24, %c0_25, %c0_26, %c0_27] : memref<1x3x256x256xbf16, #tpu.memory_space<vmem>>, vector<1x1x256x256xbf16>
    %56 = vector.shape_cast %55 : vector<1x1x256x256xbf16> to vector<256x256xbf16>
    %c0_28 = arith.constant 0 : index
    %c1_29 = arith.constant 1 : index
    %c0_30 = arith.constant 0 : index
    %c0_31 = arith.constant 0 : index
    %57 = vector.load %arg5[%c0_28, %c1_29, %c0_30, %c0_31] : memref<1x3x256x256xbf16, #tpu.memory_space<vmem>>, vector<1x1x256x256xbf16>
    %58 = vector.shape_cast %57 : vector<1x1x256x256xbf16> to vector<256x256xbf16>
    %c0_32 = arith.constant 0 : index
    %c2_33 = arith.constant 2 : index
    %c0_34 = arith.constant 0 : index
    %c0_35 = arith.constant 0 : index
    %59 = vector.load %arg5[%c0_32, %c2_33, %c0_34, %c0_35] : memref<1x3x256x256xbf16, #tpu.memory_space<vmem>>, vector<1x1x256x256xbf16>
    %60 = vector.shape_cast %59 : vector<1x1x256x256xbf16> to vector<256x256xbf16>
    %c0_36 = arith.constant 0 : index
    %c0_37 = arith.constant 0 : index
    %c0_38 = arith.constant 0 : index
    %61 = vector.load %arg6[%c0_36, %c0_37, %c0_38] : memref<1x1x256xf32, #tpu.memory_space<vmem>>, vector<1x1x256xf32>
    %62 = vector.shape_cast %61 : vector<1x1x256xf32> to vector<1x256xf32>
    %c1_i32_39 = arith.constant 1 : i32
    %63 = tpu.dynamic_rotate %54 by %c1_i32_39 dim 0 : vector<32x256xf32>, i32 -> vector<32x256xf32>
    %64 = vector.broadcast %20 : vector<32x1xf32> to vector<32x256xf32>
    %65 = arith.mulf %63, %64 : vector<32x256xf32>
    %66 = arith.truncf %65 : vector<32x256xf32> to vector<32x256xbf16>
    %c31_i32_40 = arith.constant 31 : i32
    %67 = tpu.dynamic_rotate %54 by %c31_i32_40 dim 0 : vector<32x256xf32>, i32 -> vector<32x256xf32>
    %68 = vector.broadcast %24 : vector<32x1xf32> to vector<32x256xf32>
    %69 = arith.mulf %67, %68 : vector<32x256xf32>
    %70 = arith.truncf %69 : vector<32x256xf32> to vector<32x256xbf16>
    %cst_41 = arith.constant dense<0.000000e+00> : vector<32x256xf32>
    %71 = tpu.matmul %66, %56, %cst_41 {dimension_numbers = #tpu.dot_dimension_numbers<[1], [0], [0], [1], [0, 0, 1, 1], [], []>} : vector<32x256xbf16>, vector<256x256xbf16>, vector<32x256xf32> -> vector<32x256xf32>
    %72 = arith.truncf %54 : vector<32x256xf32> to vector<32x256xbf16>
    %cst_42 = arith.constant dense<0.000000e+00> : vector<32x256xf32>
    %73 = tpu.matmul %72, %58, %cst_42 {dimension_numbers = #tpu.dot_dimension_numbers<[1], [0], [0], [1], [0, 0, 1, 1], [], []>} : vector<32x256xbf16>, vector<256x256xbf16>, vector<32x256xf32> -> vector<32x256xf32>
    %74 = arith.addf %71, %73 : vector<32x256xf32>
    %cst_43 = arith.constant dense<0.000000e+00> : vector<32x256xf32>
    %75 = tpu.matmul %70, %60, %cst_43 {dimension_numbers = #tpu.dot_dimension_numbers<[1], [0], [0], [1], [0, 0, 1, 1], [], []>} : vector<32x256xbf16>, vector<256x256xbf16>, vector<32x256xf32> -> vector<32x256xf32>
    %76 = arith.addf %74, %75 : vector<32x256xf32>
    %77 = vector.broadcast %62 : vector<1x256xf32> to vector<32x256xf32>
    %78 = arith.addf %76, %77 : vector<32x256xf32>
    %79 = arith.truncf %78 : vector<32x256xf32> to vector<32x256xbf16>
    %c0_44 = arith.constant 0 : index
    %c0_45 = arith.constant 0 : index
    %80 = vector.load %arg17[%c0_44, %c0_45] : memref<256x256xbf16, #tpu.memory_space<vmem>>, vector<256x256xbf16>
    %cst_46 = arith.constant dense<0.000000e+00> : vector<32x256xf32>
    %81 = tpu.matmul %79, %80, %cst_46 {dimension_numbers = #tpu.dot_dimension_numbers<[1], [0], [0], [1], [0, 0, 1, 1], [], []>} : vector<32x256xbf16>, vector<256x256xbf16>, vector<32x256xf32> -> vector<32x256xf32>
    %c0_47 = arith.constant 0 : index
    %c0_48 = arith.constant 0 : index
    %82 = vector.load %arg18[%c0_47, %c0_48] : memref<1x256xf32, #tpu.memory_space<vmem>>, vector<1x256xf32>
    %83 = vector.broadcast %82 : vector<1x256xf32> to vector<32x256xf32>
    %84 = arith.addf %81, %83 : vector<32x256xf32>
    %cst_49 = arith.constant 0.000000e+00 : f32
    %85 = vector.broadcast %cst_49 : f32 to vector<32x256xf32>
    %86 = arith.maximumf %84, %85 : vector<32x256xf32>
    %c0_50 = arith.constant 0 : index
    %c0_51 = arith.constant 0 : index
    %87 = vector.load %arg25[%c0_50, %c0_51] : memref<16x32xbf16, #tpu.memory_space<vmem>>, vector<16x32xbf16>
    %88 = arith.truncf %86 : vector<32x256xf32> to vector<32x256xbf16>
    %cst_52 = arith.constant dense<0.000000e+00> : vector<16x256xf32>
    %89 = tpu.matmul %87, %88, %cst_52 {dimension_numbers = #tpu.dot_dimension_numbers<[1], [0], [0], [1], [0, 0, 1, 1], [], []>} : vector<16x32xbf16>, vector<32x256xbf16>, vector<16x256xf32> -> vector<16x256xf32>
    %90 = arith.truncf %89 : vector<16x256xf32> to vector<16x256xbf16>
    %c0_53 = arith.constant 0 : index
    %c0_54 = arith.constant 0 : index
    %91 = vector.load %arg19[%c0_53, %c0_54] : memref<256x256xbf16, #tpu.memory_space<vmem>>, vector<256x256xbf16>
    %cst_55 = arith.constant dense<0.000000e+00> : vector<16x256xf32>
    %92 = tpu.matmul %90, %91, %cst_55 {dimension_numbers = #tpu.dot_dimension_numbers<[1], [0], [0], [1], [0, 0, 1, 1], [], []>} : vector<16x256xbf16>, vector<256x256xbf16>, vector<16x256xf32> -> vector<16x256xf32>
    %c0_56 = arith.constant 0 : index
    %c0_57 = arith.constant 0 : index
    %93 = vector.load %arg20[%c0_56, %c0_57] : memref<1x256xf32, #tpu.memory_space<vmem>>, vector<1x256xf32>
    %94 = vector.broadcast %93 : vector<1x256xf32> to vector<16x256xf32>
    %95 = arith.addf %92, %94 : vector<16x256xf32>
    %cst_58 = arith.constant 0.000000e+00 : f32
    %96 = vector.broadcast %cst_58 : f32 to vector<16x256xf32>
    %97 = arith.maximumf %95, %96 : vector<16x256xf32>
    %c0_59 = arith.constant 0 : index
    %c0_60 = arith.constant 0 : index
    %98 = vector.load %arg26[%c0_59, %c0_60] : memref<8x16xbf16, #tpu.memory_space<vmem>>, vector<8x16xbf16>
    %99 = arith.truncf %97 : vector<16x256xf32> to vector<16x256xbf16>
    %cst_61 = arith.constant dense<0.000000e+00> : vector<8x256xf32>
    %100 = tpu.matmul %98, %99, %cst_61 {dimension_numbers = #tpu.dot_dimension_numbers<[1], [0], [0], [1], [0, 0, 1, 1], [], []>} : vector<8x16xbf16>, vector<16x256xbf16>, vector<8x256xf32> -> vector<8x256xf32>
    %101 = arith.truncf %100 : vector<8x256xf32> to vector<8x256xbf16>
    %c0_62 = arith.constant 0 : index
    %c0_63 = arith.constant 0 : index
    %102 = vector.load %arg21[%c0_62, %c0_63] : memref<256x128xbf16, #tpu.memory_space<vmem>>, vector<256x128xbf16>
    %cst_64 = arith.constant dense<0.000000e+00> : vector<8x128xf32>
    %103 = tpu.matmul %101, %102, %cst_64 {dimension_numbers = #tpu.dot_dimension_numbers<[1], [0], [0], [1], [0, 0, 1, 1], [], []>} : vector<8x256xbf16>, vector<256x128xbf16>, vector<8x128xf32> -> vector<8x128xf32>
    %c0_65 = arith.constant 0 : index
    %c0_66 = arith.constant 0 : index
    %104 = vector.load %arg22[%c0_65, %c0_66] : memref<1x128xf32, #tpu.memory_space<vmem>>, vector<1x128xf32>
    %105 = vector.broadcast %104 : vector<1x128xf32> to vector<8x128xf32>
    %106 = arith.addf %103, %105 : vector<8x128xf32>
    %cst_67 = arith.constant 0.000000e+00 : f32
    %107 = vector.broadcast %cst_67 : f32 to vector<8x128xf32>
    %108 = arith.maximumf %106, %107 : vector<8x128xf32>
    %c0_68 = arith.constant 0 : index
    %c0_69 = arith.constant 0 : index
    %109 = vector.load %arg27[%c0_68, %c0_69] : memref<4x8xbf16, #tpu.memory_space<vmem>>, vector<4x8xbf16>
    %110 = arith.truncf %108 : vector<8x128xf32> to vector<8x128xbf16>
    %cst_70 = arith.constant dense<0.000000e+00> : vector<4x128xf32>
    %111 = tpu.matmul %109, %110, %cst_70 {dimension_numbers = #tpu.dot_dimension_numbers<[1], [0], [0], [1], [0, 0, 1, 1], [], []>} : vector<4x8xbf16>, vector<8x128xbf16>, vector<4x128xf32> -> vector<4x128xf32>
    %112 = arith.truncf %111 : vector<4x128xf32> to vector<4x128xbf16>
    %c0_71 = arith.constant 0 : index
    %c0_72 = arith.constant 0 : index
    %113 = vector.load %arg23[%c0_71, %c0_72] : memref<128x128xbf16, #tpu.memory_space<vmem>>, vector<128x128xbf16>
    %cst_73 = arith.constant dense<0.000000e+00> : vector<4x128xf32>
    %114 = tpu.matmul %112, %113, %cst_73 {dimension_numbers = #tpu.dot_dimension_numbers<[1], [0], [0], [1], [0, 0, 1, 1], [], []>} : vector<4x128xbf16>, vector<128x128xbf16>, vector<4x128xf32> -> vector<4x128xf32>
    %c0_74 = arith.constant 0 : index
    %c0_75 = arith.constant 0 : index
    %115 = vector.load %arg24[%c0_74, %c0_75] : memref<1x128xf32, #tpu.memory_space<vmem>>, vector<1x128xf32>
    %116 = vector.broadcast %115 : vector<1x128xf32> to vector<4x128xf32>
    %117 = arith.addf %114, %116 : vector<4x128xf32>
    %cst_76 = arith.constant 0.000000e+00 : f32
    %118 = vector.broadcast %cst_76 : f32 to vector<4x128xf32>
    %119 = arith.maximumf %117, %118 : vector<4x128xf32>
    %120 = arith.truncf %86 : vector<32x256xf32> to vector<32x256xbf16>
    %c0_77 = arith.constant 0 : index
    %c0_78 = arith.constant 0 : index
    %c0_79 = arith.constant 0 : index
    %121 = vector.load %arg7[%c0_77, %c0_78, %c0_79] : memref<1x256x256xbf16, #tpu.memory_space<vmem>>, vector<1x256x256xbf16>
    %122 = vector.shape_cast %121 : vector<1x256x256xbf16> to vector<256x256xbf16>
    %cst_80 = arith.constant dense<0.000000e+00> : vector<32x256xf32>
    %123 = tpu.matmul %120, %122, %cst_80 {dimension_numbers = #tpu.dot_dimension_numbers<[1], [0], [0], [1], [0, 0, 1, 1], [], []>} : vector<32x256xbf16>, vector<256x256xbf16>, vector<32x256xf32> -> vector<32x256xf32>
    %c0_81 = arith.constant 0 : index
    %c0_82 = arith.constant 0 : index
    %c0_83 = arith.constant 0 : index
    %124 = vector.load %arg8[%c0_81, %c0_82, %c0_83] : memref<1x1x256xf32, #tpu.memory_space<vmem>>, vector<1x1x256xf32>
    %125 = vector.shape_cast %124 : vector<1x1x256xf32> to vector<1x256xf32>
    %126 = vector.broadcast %125 : vector<1x256xf32> to vector<32x256xf32>
    %127 = arith.addf %123, %126 : vector<32x256xf32>
    %cst_84 = arith.constant 0.000000e+00 : f32
    %128 = vector.broadcast %cst_84 : f32 to vector<32x256xf32>
    %129 = arith.maximumf %127, %128 : vector<32x256xf32>
    %c0_85 = arith.constant 0 : index
    %c0_86 = arith.constant 0 : index
    %130 = vector.load %arg28[%c0_85, %c0_86] : memref<2x32xbf16, #tpu.memory_space<vmem>>, vector<2x32xbf16>
    %131 = arith.truncf %129 : vector<32x256xf32> to vector<32x256xbf16>
    %cst_87 = arith.constant dense<0.000000e+00> : vector<2x256xf32>
    %132 = tpu.matmul %130, %131, %cst_87 {dimension_numbers = #tpu.dot_dimension_numbers<[1], [0], [0], [1], [0, 0, 1, 1], [], []>} : vector<2x32xbf16>, vector<32x256xbf16>, vector<2x256xf32> -> vector<2x256xf32>
    %133 = arith.truncf %97 : vector<16x256xf32> to vector<16x256xbf16>
    %c0_88 = arith.constant 0 : index
    %c0_89 = arith.constant 0 : index
    %c0_90 = arith.constant 0 : index
    %134 = vector.load %arg9[%c0_88, %c0_89, %c0_90] : memref<1x256x128xbf16, #tpu.memory_space<vmem>>, vector<1x256x128xbf16>
    %135 = vector.shape_cast %134 : vector<1x256x128xbf16> to vector<256x128xbf16>
    %cst_91 = arith.constant dense<0.000000e+00> : vector<16x128xf32>
    %136 = tpu.matmul %133, %135, %cst_91 {dimension_numbers = #tpu.dot_dimension_numbers<[1], [0], [0], [1], [0, 0, 1, 1], [], []>} : vector<16x256xbf16>, vector<256x128xbf16>, vector<16x128xf32> -> vector<16x128xf32>
    %c0_92 = arith.constant 0 : index
    %c0_93 = arith.constant 0 : index
    %c0_94 = arith.constant 0 : index
    %137 = vector.load %arg10[%c0_92, %c0_93, %c0_94] : memref<1x1x128xf32, #tpu.memory_space<vmem>>, vector<1x1x128xf32>
    %138 = vector.shape_cast %137 : vector<1x1x128xf32> to vector<1x128xf32>
    %139 = vector.broadcast %138 : vector<1x128xf32> to vector<16x128xf32>
    %140 = arith.addf %136, %139 : vector<16x128xf32>
    %cst_95 = arith.constant 0.000000e+00 : f32
    %141 = vector.broadcast %cst_95 : f32 to vector<16x128xf32>
    %142 = arith.maximumf %140, %141 : vector<16x128xf32>
    %c0_96 = arith.constant 0 : index
    %c0_97 = arith.constant 0 : index
    %143 = vector.load %arg29[%c0_96, %c0_97] : memref<2x16xbf16, #tpu.memory_space<vmem>>, vector<2x16xbf16>
    %144 = arith.truncf %142 : vector<16x128xf32> to vector<16x128xbf16>
    %cst_98 = arith.constant dense<0.000000e+00> : vector<2x128xf32>
    %145 = tpu.matmul %143, %144, %cst_98 {dimension_numbers = #tpu.dot_dimension_numbers<[1], [0], [0], [1], [0, 0, 1, 1], [], []>} : vector<2x16xbf16>, vector<16x128xbf16>, vector<2x128xf32> -> vector<2x128xf32>
    %146 = arith.truncf %108 : vector<8x128xf32> to vector<8x128xbf16>
    %c0_99 = arith.constant 0 : index
    %c0_100 = arith.constant 0 : index
    %c0_101 = arith.constant 0 : index
    %147 = vector.load %arg11[%c0_99, %c0_100, %c0_101] : memref<1x128x128xbf16, #tpu.memory_space<vmem>>, vector<1x128x128xbf16>
    %148 = vector.shape_cast %147 : vector<1x128x128xbf16> to vector<128x128xbf16>
    %cst_102 = arith.constant dense<0.000000e+00> : vector<8x128xf32>
    %149 = tpu.matmul %146, %148, %cst_102 {dimension_numbers = #tpu.dot_dimension_numbers<[1], [0], [0], [1], [0, 0, 1, 1], [], []>} : vector<8x128xbf16>, vector<128x128xbf16>, vector<8x128xf32> -> vector<8x128xf32>
    %c0_103 = arith.constant 0 : index
    %c0_104 = arith.constant 0 : index
    %c0_105 = arith.constant 0 : index
    %150 = vector.load %arg12[%c0_103, %c0_104, %c0_105] : memref<1x1x128xf32, #tpu.memory_space<vmem>>, vector<1x1x128xf32>
    %151 = vector.shape_cast %150 : vector<1x1x128xf32> to vector<1x128xf32>
    %152 = vector.broadcast %151 : vector<1x128xf32> to vector<8x128xf32>
    %153 = arith.addf %149, %152 : vector<8x128xf32>
    %cst_106 = arith.constant 0.000000e+00 : f32
    %154 = vector.broadcast %cst_106 : f32 to vector<8x128xf32>
    %155 = arith.maximumf %153, %154 : vector<8x128xf32>
    %c0_107 = arith.constant 0 : index
    %c0_108 = arith.constant 0 : index
    %156 = vector.load %arg30[%c0_107, %c0_108] : memref<2x8xbf16, #tpu.memory_space<vmem>>, vector<2x8xbf16>
    %157 = arith.truncf %155 : vector<8x128xf32> to vector<8x128xbf16>
    %cst_109 = arith.constant dense<0.000000e+00> : vector<2x128xf32>
    %158 = tpu.matmul %156, %157, %cst_109 {dimension_numbers = #tpu.dot_dimension_numbers<[1], [0], [0], [1], [0, 0, 1, 1], [], []>} : vector<2x8xbf16>, vector<8x128xbf16>, vector<2x128xf32> -> vector<2x128xf32>
    %159 = arith.truncf %119 : vector<4x128xf32> to vector<4x128xbf16>
    %c0_110 = arith.constant 0 : index
    %c0_111 = arith.constant 0 : index
    %c0_112 = arith.constant 0 : index
    %160 = vector.load %arg13[%c0_110, %c0_111, %c0_112] : memref<1x128x128xbf16, #tpu.memory_space<vmem>>, vector<1x128x128xbf16>
    %161 = vector.shape_cast %160 : vector<1x128x128xbf16> to vector<128x128xbf16>
    %cst_113 = arith.constant dense<0.000000e+00> : vector<4x128xf32>
    %162 = tpu.matmul %159, %161, %cst_113 {dimension_numbers = #tpu.dot_dimension_numbers<[1], [0], [0], [1], [0, 0, 1, 1], [], []>} : vector<4x128xbf16>, vector<128x128xbf16>, vector<4x128xf32> -> vector<4x128xf32>
    %c0_114 = arith.constant 0 : index
    %c0_115 = arith.constant 0 : index
    %c0_116 = arith.constant 0 : index
    %163 = vector.load %arg14[%c0_114, %c0_115, %c0_116] : memref<1x1x128xf32, #tpu.memory_space<vmem>>, vector<1x1x128xf32>
    %164 = vector.shape_cast %163 : vector<1x1x128xf32> to vector<1x128xf32>
    %165 = vector.broadcast %164 : vector<1x128xf32> to vector<4x128xf32>
    %166 = arith.addf %162, %165 : vector<4x128xf32>
    %cst_117 = arith.constant 0.000000e+00 : f32
    %167 = vector.broadcast %cst_117 : f32 to vector<4x128xf32>
    %168 = arith.maximumf %166, %167 : vector<4x128xf32>
    %c0_118 = arith.constant 0 : index
    %c0_119 = arith.constant 0 : index
    %169 = vector.load %arg31[%c0_118, %c0_119] : memref<2x4xbf16, #tpu.memory_space<vmem>>, vector<2x4xbf16>
    %170 = arith.truncf %168 : vector<4x128xf32> to vector<4x128xbf16>
    %cst_120 = arith.constant dense<0.000000e+00> : vector<2x128xf32>
    %171 = tpu.matmul %169, %170, %cst_120 {dimension_numbers = #tpu.dot_dimension_numbers<[1], [0], [0], [1], [0, 0, 1, 1], [], []>} : vector<2x4xbf16>, vector<4x128xbf16>, vector<2x128xf32> -> vector<2x128xf32>
    %172 = tpu.concatenate %132, %145, %158, %171 in 1 : vector<2x256xf32>, vector<2x128xf32>, vector<2x128xf32>, vector<2x128xf32> -> vector<2x640xf32>
    %173 = arith.truncf %172 : vector<2x640xf32> to vector<2x640xbf16>
    %c0_121 = arith.constant 0 : index
    %c0_122 = arith.constant 0 : index
    %c0_123 = arith.constant 0 : index
    %174 = vector.load %arg15[%c0_121, %c0_122, %c0_123] : memref<1x640x256xbf16, #tpu.memory_space<vmem>>, vector<1x640x256xbf16>
    %175 = vector.shape_cast %174 : vector<1x640x256xbf16> to vector<640x256xbf16>
    %cst_124 = arith.constant dense<0.000000e+00> : vector<2x256xf32>
    %176 = tpu.matmul %173, %175, %cst_124 {dimension_numbers = #tpu.dot_dimension_numbers<[1], [0], [0], [1], [0, 0, 1, 1], [], []>} : vector<2x640xbf16>, vector<640x256xbf16>, vector<2x256xf32> -> vector<2x256xf32>
    %c0_125 = arith.constant 0 : index
    %c0_126 = arith.constant 0 : index
    %c0_127 = arith.constant 0 : index
    %177 = vector.load %arg16[%c0_125, %c0_126, %c0_127] : memref<1x1x256xf32, #tpu.memory_space<vmem>>, vector<1x1x256xf32>
    %178 = vector.shape_cast %177 : vector<1x1x256xf32> to vector<1x256xf32>
    %179 = vector.broadcast %178 : vector<1x256xf32> to vector<2x256xf32>
    %180 = arith.addf %176, %179 : vector<2x256xf32>
    %c0_128 = arith.constant 0 : index
    %c0_129 = arith.constant 0 : index
    %181 = vector.load %arg32[%c0_128, %c0_129] : memref<32x2xbf16, #tpu.memory_space<vmem>>, vector<32x2xbf16>
    %182 = arith.truncf %180 : vector<2x256xf32> to vector<2x256xbf16>
    %cst_130 = arith.constant dense<0.000000e+00> : vector<32x256xf32>
    %183 = tpu.matmul %181, %182, %cst_130 {dimension_numbers = #tpu.dot_dimension_numbers<[1], [0], [0], [1], [0, 0, 1, 1], [], []>} : vector<32x2xbf16>, vector<2x256xbf16>, vector<32x256xf32> -> vector<32x256xf32>
    %184 = arith.mulf %78, %183 : vector<32x256xf32>
    %185 = arith.addf %28, %184 : vector<32x256xf32>
    %c0_131 = arith.constant 0 : index
    %c0_132 = arith.constant 0 : index
    %186 = vector.load %arg36[%c0_131, %c0_132] : memref<32x256xf32, #tpu.memory_space<vmem>>, vector<32x256xf32>
    tpu.vector_store %arg36[%c0_131, %c0_132], %185 {strides = array<i32>} : memref<32x256xf32, #tpu.memory_space<vmem>>, vector<32x256xf32>,
    %c1_i32_133 = arith.constant 1 : i32
    %187 = arith.cmpi eq, %arg1, %c1_i32_133 : i32
    %188 = arith.extui %187 : i1 to i32
    %c0_i32_134 = arith.constant 0 : i32
    %189 = arith.cmpi ne, %188, %c0_i32_134 : i32
    scf.if %189 {
      %c0_135 = arith.constant 0 : index
      %c0_136 = arith.constant 0 : index
      %c0_137 = arith.constant 0 : index
      %190 = vector.load %arg33[%c0_135, %c0_136, %c0_137] : memref<3x256x256xbf16, #tpu.memory_space<vmem>>, vector<1x256x256xbf16>
      %191 = vector.shape_cast %190 : vector<1x256x256xbf16> to vector<256x256xbf16>
      %c1_138 = arith.constant 1 : index
      %c0_139 = arith.constant 0 : index
      %c0_140 = arith.constant 0 : index
      %192 = vector.load %arg33[%c1_138, %c0_139, %c0_140] : memref<3x256x256xbf16, #tpu.memory_space<vmem>>, vector<1x256x256xbf16>
      %193 = vector.shape_cast %192 : vector<1x256x256xbf16> to vector<256x256xbf16>
      %c2_141 = arith.constant 2 : index
      %c0_142 = arith.constant 0 : index
      %c0_143 = arith.constant 0 : index
      %194 = vector.load %arg33[%c2_141, %c0_142, %c0_143] : memref<3x256x256xbf16, #tpu.memory_space<vmem>>, vector<1x256x256xbf16>
      %195 = vector.shape_cast %194 : vector<1x256x256xbf16> to vector<256x256xbf16>
      %c0_144 = arith.constant 0 : index
      %c0_145 = arith.constant 0 : index
      %196 = vector.load %arg34[%c0_144, %c0_145] : memref<1x256xf32, #tpu.memory_space<vmem>>, vector<1x256xf32>
      %c1_i32_146 = arith.constant 1 : i32
      %197 = tpu.dynamic_rotate %185 by %c1_i32_146 dim 0 : vector<32x256xf32>, i32 -> vector<32x256xf32>
      %198 = vector.broadcast %20 : vector<32x1xf32> to vector<32x256xf32>
      %199 = arith.mulf %197, %198 : vector<32x256xf32>
      %200 = arith.truncf %199 : vector<32x256xf32> to vector<32x256xbf16>
      %c31_i32_147 = arith.constant 31 : i32
      %201 = tpu.dynamic_rotate %185 by %c31_i32_147 dim 0 : vector<32x256xf32>, i32 -> vector<32x256xf32>
      %202 = vector.broadcast %24 : vector<32x1xf32> to vector<32x256xf32>
      %203 = arith.mulf %201, %202 : vector<32x256xf32>
      %204 = arith.truncf %203 : vector<32x256xf32> to vector<32x256xbf16>
      %cst_148 = arith.constant dense<0.000000e+00> : vector<32x256xf32>
      %205 = tpu.matmul %200, %191, %cst_148 {dimension_numbers = #tpu.dot_dimension_numbers<[1], [0], [0], [1], [0, 0, 1, 1], [], []>} : vector<32x256xbf16>, vector<256x256xbf16>, vector<32x256xf32> -> vector<32x256xf32>
      %206 = arith.truncf %185 : vector<32x256xf32> to vector<32x256xbf16>
      %cst_149 = arith.constant dense<0.000000e+00> : vector<32x256xf32>
      %207 = tpu.matmul %206, %193, %cst_149 {dimension_numbers = #tpu.dot_dimension_numbers<[1], [0], [0], [1], [0, 0, 1, 1], [], []>} : vector<32x256xbf16>, vector<256x256xbf16>, vector<32x256xf32> -> vector<32x256xf32>
      %208 = arith.addf %205, %207 : vector<32x256xf32>
      %cst_150 = arith.constant dense<0.000000e+00> : vector<32x256xf32>
      %209 = tpu.matmul %204, %195, %cst_150 {dimension_numbers = #tpu.dot_dimension_numbers<[1], [0], [0], [1], [0, 0, 1, 1], [], []>} : vector<32x256xbf16>, vector<256x256xbf16>, vector<32x256xf32> -> vector<32x256xf32>
      %210 = arith.addf %208, %209 : vector<32x256xf32>
      %211 = vector.broadcast %196 : vector<1x256xf32> to vector<32x256xf32>
      %212 = arith.addf %210, %211 : vector<32x256xf32>
      %c0_151 = arith.constant 0 : index
      %c0_152 = arith.constant 0 : index
      %c0_153 = arith.constant 0 : index
      %213 = vector.load %arg2[%c0_151, %c0_152, %c0_153] : memref<2x16x256xf32, #tpu.memory_space<vmem>>, vector<2x16x256xf32>
      %214 = vector.shape_cast %213 : vector<2x16x256xf32> to vector<32x256xf32>
      %215 = arith.addf %212, %214 : vector<32x256xf32>
      %216 = vector.shape_cast %215 : vector<32x256xf32> to vector<2x16x256xf32>
      %c0_154 = arith.constant 0 : index
      %c0_155 = arith.constant 0 : index
      %c0_156 = arith.constant 0 : index
      %217 = vector.load %arg35[%c0_154, %c0_155, %c0_156] : memref<2x16x256xf32, #tpu.memory_space<vmem>>, vector<2x16x256xf32>
      tpu.vector_store %arg35[%c0_154, %c0_155, %c0_156], %216 {strides = array<i32>} : memref<2x16x256xf32, #tpu.memory_space<vmem>>, vector<2x16x256xf32>,
    } else {
    }
    return
  }
  func.func @transform_0(%arg0: i32, %arg1: i32) -> (i32, i32, i32) {
    %c0_i32 = arith.constant 0 : i32
    %c0_i32_0 = arith.constant 0 : i32
    %c0_i32_1 = arith.constant 0 : i32
    return %arg0, %c0_i32, %c0_i32_0 : i32, i32, i32
  }
  func.func @transform_1(%arg0: i32, %arg1: i32) -> (i32, i32, i32, i32) {
    %c0_i32 = arith.constant 0 : i32
    %c0_i32_0 = arith.constant 0 : i32
    %c0_i32_1 = arith.constant 0 : i32
    %c0_i32_2 = arith.constant 0 : i32
    return %arg1, %c0_i32, %c0_i32_0, %c0_i32_1 : i32, i32, i32, i32
  }
  func.func @transform_2(%arg0: i32, %arg1: i32) -> (i32, i32, i32) {
    %c0_i32 = arith.constant 0 : i32
    %c0_i32_0 = arith.constant 0 : i32
    %c0_i32_1 = arith.constant 0 : i32
    return %arg1, %c0_i32, %c0_i32_0 : i32, i32, i32
  }
  func.func @transform_3(%arg0: i32, %arg1: i32) -> (i32, i32, i32, i32) {
    %c0_i32 = arith.constant 0 : i32
    %c0_i32_0 = arith.constant 0 : i32
    %c0_i32_1 = arith.constant 0 : i32
    %c0_i32_2 = arith.constant 0 : i32
    return %arg1, %c0_i32, %c0_i32_0, %c0_i32_1 : i32, i32, i32, i32
  }
  func.func @transform_4(%arg0: i32, %arg1: i32) -> (i32, i32, i32) {
    %c0_i32 = arith.constant 0 : i32
    %c0_i32_0 = arith.constant 0 : i32
    %c0_i32_1 = arith.constant 0 : i32
    return %arg1, %c0_i32, %c0_i32_0 : i32, i32, i32
  }
  func.func @transform_5(%arg0: i32, %arg1: i32) -> (i32, i32, i32) {
    %c0_i32 = arith.constant 0 : i32
    %c0_i32_0 = arith.constant 0 : i32
    %c0_i32_1 = arith.constant 0 : i32
    return %arg1, %c0_i32, %c0_i32_0 : i32, i32, i32
  }
  func.func @transform_6(%arg0: i32, %arg1: i32) -> (i32, i32, i32) {
    %c0_i32 = arith.constant 0 : i32
    %c0_i32_0 = arith.constant 0 : i32
    %c0_i32_1 = arith.constant 0 : i32
    return %arg1, %c0_i32, %c0_i32_0 : i32, i32, i32
  }
  func.func @transform_7(%arg0: i32, %arg1: i32) -> (i32, i32, i32) {
    %c0_i32 = arith.constant 0 : i32
    %c0_i32_0 = arith.constant 0 : i32
    %c0_i32_1 = arith.constant 0 : i32
    return %arg1, %c0_i32, %c0_i32_0 : i32, i32, i32
  }
  func.func @transform_8(%arg0: i32, %arg1: i32) -> (i32, i32, i32) {
    %c0_i32 = arith.constant 0 : i32
    %c0_i32_0 = arith.constant 0 : i32
    %c0_i32_1 = arith.constant 0 : i32
    return %arg1, %c0_i32, %c0_i32_0 : i32, i32, i32
  }
  func.func @transform_9(%arg0: i32, %arg1: i32) -> (i32, i32, i32) {
    %c0_i32 = arith.constant 0 : i32
    %c0_i32_0 = arith.constant 0 : i32
    %c0_i32_1 = arith.constant 0 : i32
    return %arg1, %c0_i32, %c0_i32_0 : i32, i32, i32
  }
  func.func @transform_10(%arg0: i32, %arg1: i32) -> (i32, i32, i32) {
    %c0_i32 = arith.constant 0 : i32
    %c0_i32_0 = arith.constant 0 : i32
    %c0_i32_1 = arith.constant 0 : i32
    return %arg1, %c0_i32, %c0_i32_0 : i32, i32, i32
  }
  func.func @transform_11(%arg0: i32, %arg1: i32) -> (i32, i32, i32) {
    %c0_i32 = arith.constant 0 : i32
    %c0_i32_0 = arith.constant 0 : i32
    %c0_i32_1 = arith.constant 0 : i32
    return %arg1, %c0_i32, %c0_i32_0 : i32, i32, i32
  }
  func.func @transform_12(%arg0: i32, %arg1: i32) -> (i32, i32, i32) {
    %c0_i32 = arith.constant 0 : i32
    %c0_i32_0 = arith.constant 0 : i32
    %c0_i32_1 = arith.constant 0 : i32
    return %arg1, %c0_i32, %c0_i32_0 : i32, i32, i32
  }
  func.func @transform_13(%arg0: i32, %arg1: i32) -> (i32, i32, i32) {
    %c0_i32 = arith.constant 0 : i32
    %c0_i32_0 = arith.constant 0 : i32
    %c0_i32_1 = arith.constant 0 : i32
    return %arg1, %c0_i32, %c0_i32_0 : i32, i32, i32
  }
  func.func @transform_14(%arg0: i32, %arg1: i32) -> (i32, i32, i32) {
    %c0_i32 = arith.constant 0 : i32
    %c0_i32_0 = arith.constant 0 : i32
    %c0_i32_1 = arith.constant 0 : i32
    return %arg1, %c0_i32, %c0_i32_0 : i32, i32, i32
  }
  func.func @transform_15(%arg0: i32, %arg1: i32) -> (i32, i32) {
    %c0_i32 = arith.constant 0 : i32
    %c0_i32_0 = arith.constant 0 : i32
    %c0_i32_1 = arith.constant 0 : i32
    return %c0_i32, %c0_i32_0 : i32, i32
  }
  func.func @transform_16(%arg0: i32, %arg1: i32) -> (i32, i32) {
    %c0_i32 = arith.constant 0 : i32
    %c0_i32_0 = arith.constant 0 : i32
    %c0_i32_1 = arith.constant 0 : i32
    return %c0_i32, %c0_i32_0 : i32, i32
  }
  func.func @transform_17(%arg0: i32, %arg1: i32) -> (i32, i32) {
    %c0_i32 = arith.constant 0 : i32
    %c0_i32_0 = arith.constant 0 : i32
    %c0_i32_1 = arith.constant 0 : i32
    return %c0_i32, %c0_i32_0 : i32, i32
  }
  func.func @transform_18(%arg0: i32, %arg1: i32) -> (i32, i32) {
    %c0_i32 = arith.constant 0 : i32
    %c0_i32_0 = arith.constant 0 : i32
    %c0_i32_1 = arith.constant 0 : i32
    return %c0_i32, %c0_i32_0 : i32, i32
  }
  func.func @transform_19(%arg0: i32, %arg1: i32) -> (i32, i32) {
    %c0_i32 = arith.constant 0 : i32
    %c0_i32_0 = arith.constant 0 : i32
    %c0_i32_1 = arith.constant 0 : i32
    return %c0_i32, %c0_i32_0 : i32, i32
  }
  func.func @transform_20(%arg0: i32, %arg1: i32) -> (i32, i32) {
    %c0_i32 = arith.constant 0 : i32
    %c0_i32_0 = arith.constant 0 : i32
    %c0_i32_1 = arith.constant 0 : i32
    return %c0_i32, %c0_i32_0 : i32, i32
  }
  func.func @transform_21(%arg0: i32, %arg1: i32) -> (i32, i32) {
    %c0_i32 = arith.constant 0 : i32
    %c0_i32_0 = arith.constant 0 : i32
    %c0_i32_1 = arith.constant 0 : i32
    return %c0_i32, %c0_i32_0 : i32, i32
  }
  func.func @transform_22(%arg0: i32, %arg1: i32) -> (i32, i32) {
    %c0_i32 = arith.constant 0 : i32
    %c0_i32_0 = arith.constant 0 : i32
    %c0_i32_1 = arith.constant 0 : i32
    return %c0_i32, %c0_i32_0 : i32, i32
  }
  func.func @transform_23(%arg0: i32, %arg1: i32) -> (i32, i32) {
    %c0_i32 = arith.constant 0 : i32
    %c0_i32_0 = arith.constant 0 : i32
    %c0_i32_1 = arith.constant 0 : i32
    return %c0_i32, %c0_i32_0 : i32, i32
  }
  func.func @transform_24(%arg0: i32, %arg1: i32) -> (i32, i32) {
    %c0_i32 = arith.constant 0 : i32
    %c0_i32_0 = arith.constant 0 : i32
    %c0_i32_1 = arith.constant 0 : i32
    return %c0_i32, %c0_i32_0 : i32, i32
  }
  func.func @transform_25(%arg0: i32, %arg1: i32) -> (i32, i32) {
    %c0_i32 = arith.constant 0 : i32
    %c0_i32_0 = arith.constant 0 : i32
    %c0_i32_1 = arith.constant 0 : i32
    return %c0_i32, %c0_i32_0 : i32, i32
  }
  func.func @transform_26(%arg0: i32, %arg1: i32) -> (i32, i32) {
    %c0_i32 = arith.constant 0 : i32
    %c0_i32_0 = arith.constant 0 : i32
    %c0_i32_1 = arith.constant 0 : i32
    return %c0_i32, %c0_i32_0 : i32, i32
  }
  func.func @transform_27(%arg0: i32, %arg1: i32) -> (i32, i32) {
    %c0_i32 = arith.constant 0 : i32
    %c0_i32_0 = arith.constant 0 : i32
    %c0_i32_1 = arith.constant 0 : i32
    return %c0_i32, %c0_i32_0 : i32, i32
  }
  func.func @transform_28(%arg0: i32, %arg1: i32) -> (i32, i32) {
    %c0_i32 = arith.constant 0 : i32
    %c0_i32_0 = arith.constant 0 : i32
    %c0_i32_1 = arith.constant 0 : i32
    return %c0_i32, %c0_i32_0 : i32, i32
  }
  func.func @transform_29(%arg0: i32, %arg1: i32) -> (i32, i32) {
    %c0_i32 = arith.constant 0 : i32
    %c0_i32_0 = arith.constant 0 : i32
    %c0_i32_1 = arith.constant 0 : i32
    return %c0_i32, %c0_i32_0 : i32, i32
  }
  func.func @transform_30(%arg0: i32, %arg1: i32) -> (i32, i32) {
    %c0_i32 = arith.constant 0 : i32
    %c0_i32_0 = arith.constant 0 : i32
    %c0_i32_1 = arith.constant 0 : i32
    return %c0_i32, %c0_i32_0 : i32, i32
  }
  func.func @transform_31(%arg0: i32, %arg1: i32) -> (i32, i32, i32) {
    %c0_i32 = arith.constant 0 : i32
    %c0_i32_0 = arith.constant 0 : i32
    %c0_i32_1 = arith.constant 0 : i32
    %c0_i32_2 = arith.constant 0 : i32
    return %c0_i32, %c0_i32_0, %c0_i32_1 : i32, i32, i32
  }
  func.func @transform_32(%arg0: i32, %arg1: i32) -> (i32, i32) {
    %c0_i32 = arith.constant 0 : i32
    %c0_i32_0 = arith.constant 0 : i32
    %c0_i32_1 = arith.constant 0 : i32
    return %c0_i32, %c0_i32_0 : i32, i32
  }
  func.func @transform_33(%arg0: i32, %arg1: i32) -> (i32, i32, i32) {
    %c0_i32 = arith.constant 0 : i32
    %c0_i32_0 = arith.constant 0 : i32
    %c0_i32_1 = arith.constant 0 : i32
    return %arg0, %c0_i32, %c0_i32_0 : i32, i32, i32
  }
}

</mosaic_0001>

<llo_original>
// kernel: tile.151
$region0: #{tile.151}
  %s0 = inlined_call_operand.vmem [shape: f32[2,16], index: 0, kind: input, shape index: {}]
  %s1 = inlined_call_operand.vmem [shape: f32[1,32], index: 1, kind: output, shape index: {}]
  $region1: #{tile.151} parent=0
    #allocation0 [shape = 'u8[4096]{0}', space=vmem, size = 0x1000, scoped, tag = 'scoped mem for output reshape']
    #allocation1 [shape = 'u8[4096]{0}', space=vmem, size = 0x1000, scoped, tag = 'scoped mem for input reshape']
    %s3 = ssub.s32 4, 1
    %v4 = vld [vmem:[%s0] sm:%s3]
    %5 = vst [vmem:[#allocation1] sm:%s3] %v4
    %v6 = vld [vmem:[#allocation1] sm:$0x1]
    %vm7 = vcmask 130048
    %8 = vst.msk [vmem:[#allocation0] sm:$0x1] %vm7, %v6
    %s9 = scalar_lea.vmem [#allocation1], 1
    %v10 = vld [vmem:[%s9] sm:$0x1]
    %11 = vrot.lane.b32.xlu0 %v10, 16
    %v12 = vpop.permute.xlu0 %11
    %vm13 = vcmask 261248
    %14 = vst.msk [vmem:[#allocation0] sm:$0x1] %vm13, %v12
    %s16 = ssub.s32 2, 1
    %v17 = vld [vmem:[#allocation0] sm:%s16]
    %s19 = ssub.s32 2, 1
    %20 = vst [vmem:[%s1] sm:%s19] %v17

// kernel: tile.150
$region0: #{tile.150}
  #allocation2 [shape = 's32[1]{0}', space=sflag, size = 0x4, scoped, tag = 'scoped memory for tile.150']
  %s0 = inlined_call_operand.hbm [shape: f32[16], index: 0, kind: input, shape index: {}]
  %s1 = inlined_call_operand.vmem [shape: f32[2,16], index: 1, kind: output, shape index: {}]
  $region1: #{tile.150} parent=0
    #allocation0 [shape = 'u8[512]{0}', space=vmem, size = 0x400, scoped, tag = 'operand span for operand 0']
    #allocation1 [shape = 's32[1]{0}', space=sflag, size = 0x4, scoped, tag = 'scoped memory for tile.150']
    %2 = vsyncpa [#allocation1], 0
    // Predicated region
    $region2: #{tile.150} parent=1 // pred_check
      _
    $region3: #{tile.150} parent=1 // pred_check_branch
      %4 = sbr.rel (0) target = $region5
    $region4: #{tile.150} parent=1 // pred_region
      %6 = vsyncadd [#allocation1], 0
      %s8 = sshll.u32 %s0, 4
      %s9 = int_to_ptr.hbm [resolvable:$true] %s8
      %s10 = sshll.u32 [#allocation0], 4
      %s11 = int_to_ptr.vmem [resolvable:$true] %s10
      %13 = dma.hbm_to_vmem [thread:$0]  %s9, 16, %s11, [#allocation1]
    $region5: #{tile.150} parent=1 // pred_fallthru
      _
    // Predicated region
    $region6: #{tile.150} parent=1 // pred_check
      _
    $region7: #{tile.150} parent=1 // pred_check_branch
      %15 = sbr.rel (0) target = $region9
    $region8: #{tile.150} parent=1 // pred_region
      %17 = dma.done [#allocation1], 16
    $region9: #{tile.150} parent=1 // pred_fallthru
      _
    %v18 = vld [vmem:[#allocation0] ss:$0 sm:$0xff]
    %19 = vst [vmem:[%s1] sm:$0x3] %v18
    %20 = vsyncpa [#allocation1], 1

// kernel: tile.114
$region0: #{tile.114}
  %s0 = inlined_call_operand.vmem [shape: f32[2,32], index: 0, kind: input, shape index: {}]
  %s1 = inlined_call_operand.vmem [shape: f32[1,64], index: 1, kind: output, shape index: {}]
  $region1: #{tile.114} parent=0
    #allocation0 [shape = 'u8[4096]{0}', space=vmem, size = 0x1000, scoped, tag = 'scoped mem for output reshape']
    #allocation1 [shape = 'u8[4096]{0}', space=vmem, size = 0x1000, scoped, tag = 'scoped mem for input reshape']
    %s3 = ssub.s32 4, 1
    %v4 = vld [vmem:[%s0] sm:%s3]
    %5 = vst [vmem:[#allocation1] sm:%s3] %v4
    %v6 = vld [vmem:[#allocation1] sm:$0x1]
    %vm7 = vcmask 261120
    %8 = vst.msk [vmem:[#allocation0] sm:$0x1] %vm7, %v6
    %s9 = scalar_lea.vmem [#allocation1], 1
    %v10 = vld [vmem:[%s9] sm:$0x1]
    %11 = vrot.lane.b32.xlu0 %v10, 32
    %v12 = vpop.permute.xlu0 %11
    %vm13 = vcmask 523520
    %14 = vst.msk [vmem:[#allocation0] sm:$0x1] %vm13, %v12
    %s16 = ssub.s32 2, 1
    %v17 = vld [vmem:[#allocation0] sm:%s16]
    %s19 = ssub.s32 2, 1
    %20 = vst [vmem:[%s1] sm:%s19] %v17

// kernel: tile.113
$region0: #{tile.113}
  #allocation2 [shape = 's32[1]{0}', space=sflag, size = 0x4, scoped, tag = 'scoped memory for tile.113']
  %s0 = inlined_call_operand.hbm [shape: f32[32], index: 0, kind: input, shape index: {}]
  %s1 = inlined_call_operand.vmem [shape: f32[2,32], index: 1, kind: output, shape index: {}]
  $region1: #{tile.113} parent=0
    #allocation0 [shape = 'u8[512]{0}', space=vmem, size = 0x400, scoped, tag = 'operand span for operand 0']
    #allocation1 [shape = 's32[1]{0}', space=sflag, size = 0x4, scoped, tag = 'scoped memory for tile.113']
    %2 = vsyncpa [#allocation1], 0
    // Predicated region
    $region2: #{tile.113} parent=1 // pred_check
      _
    $region3: #{tile.113} parent=1 // pred_check_branch
      %4 = sbr.rel (0) target = $region5
    $region4: #{tile.113} parent=1 // pred_region
      %6 = vsyncadd [#allocation1], 0
      %s8 = sshll.u32 %s0, 4
      %s9 = int_to_ptr.hbm [resolvable:$true] %s8
      %s10 = sshll.u32 [#allocation0], 4
      %s11 = int_to_ptr.vmem [resolvable:$true] %s10
      %13 = dma.hbm_to_vmem [thread:$0]  %s9, 16, %s11, [#allocation1]
    $region5: #{tile.113} parent=1 // pred_fallthru
      _
    // Predicated region
    $region6: #{tile.113} parent=1 // pred_check
      _
    $region7: #{tile.113} parent=1 // pred_check_branch
      %15 = sbr.rel (0) target = $region9
    $region8: #{tile.113} parent=1 // pred_region
      %17 = dma.done [#allocation1], 16
    $region9: #{tile.113} parent=1 // pred_fallthru
      _
    %v18 = vld [vmem:[#allocation0] ss:$0 sm:$0xff]
    %19 = vst [vmem:[%s1] sm:$0x3] %v18
    %20 = vsyncpa [#allocation1], 1

// kernel: tile.145
$region0: #{tile.145}
  #allocation0 [shape = 's32[1]{0}', space=sflag, size = 0x4, scoped, tag = 'scoped memory for tile.145']
  %s0 = inlined_call_operand.vmem [shape: f32[16], index: 0, kind: input, shape index: {}]
  %s1 = inlined_call_operand.vmem [shape: f32[4,16], index: 1, kind: output, shape index: {}]
  // Predicated region
  $region2: #{tile.145} parent=0 // pred_check
    _
  $region3: #{tile.145} parent=0 // pred_check_branch
    %3 = sbr.rel (0) target = $region5
  $region4: #{tile.145} parent=0 // pred_region
    _
  $region5: #{tile.145} parent=0 // pred_fallthru
    _
  %v4 = vld [vmem:[%s0] ss:$0 sm:$0xff]
  %5 = vst [vmem:[%s1] sm:$0xf] %v4

// kernel: tile.146
$region0: #{tile.146}
  %s0 = inlined_call_operand.vmem [shape: f32[4,16], index: 0, kind: input, shape index: {}]
  %s1 = inlined_call_operand.vmem [shape: f32[1,64], index: 1, kind: output, shape index: {}]
  $region1: #{tile.146} parent=0
    #allocation0 [shape = 'u8[4096]{0}', space=vmem, size = 0x1000, scoped, tag = 'scoped mem for output reshape']
    #allocation1 [shape = 'u8[4096]{0}', space=vmem, size = 0x1000, scoped, tag = 'scoped mem for input reshape']
    %s3 = ssub.s32 16, 1
    %v4 = vld [vmem:[%s0] sm:%s3]
    %5 = vst [vmem:[#allocation1] sm:%s3] %v4
    %v6 = vld [vmem:[#allocation1] sm:$0x1]
    %vm7 = vcmask 130048
    %8 = vst.msk [vmem:[#allocation0] sm:$0x1] %vm7, %v6
    %s9 = scalar_lea.vmem [#allocation1], 3
    %v10 = vld [vmem:[%s9] sm:$0x1]
    %11 = vrot.lane.b32.xlu0 %v10, 48
    %v12 = vpop.permute.xlu0 %11
    %vm13 = vcmask 523648
    %14 = vst.msk [vmem:[#allocation0] sm:$0x1] %vm13, %v12
    %s15 = scalar_lea.vmem [#allocation1], 2
    %v16 = vld [vmem:[%s15] sm:$0x1]
    %17 = vrot.lane.b32.xlu0 %v16, 32
    %v18 = vpop.permute.xlu0 %17
    %vm19 = vcmask 392448
    %20 = vst.msk [vmem:[#allocation0] sm:$0x1] %vm19, %v18
    %s21 = scalar_lea.vmem [#allocation1], 1
    %v22 = vld [vmem:[%s21] sm:$0x1]
    %23 = vrot.lane.b32.xlu0 %v22, 16
    %v24 = vpop.permute.xlu0 %23
    %vm25 = vcmask 261248
    %26 = vst.msk [vmem:[#allocation0] sm:$0x1] %vm25, %v24
    %s28 = ssub.s32 2, 1
    %v29 = vld [vmem:[#allocation0] sm:%s28]
    %s31 = ssub.s32 2, 1
    %32 = vst [vmem:[%s1] sm:%s31] %v29

// kernel: tile.108
$region0: #{tile.108}
  #allocation0 [shape = 's32[1]{0}', space=sflag, size = 0x4, scoped, tag = 'scoped memory for tile.108']
  %s0 = inlined_call_operand.vmem [shape: f32[32], index: 0, kind: input, shape index: {}]
  %s1 = inlined_call_operand.vmem [shape: f32[4,32], index: 1, kind: output, shape index: {}]
  // Predicated region
  $region2: #{tile.108} parent=0 // pred_check
    _
  $region3: #{tile.108} parent=0 // pred_check_branch
    %3 = sbr.rel (0) target = $region5
  $region4: #{tile.108} parent=0 // pred_region
    _
  $region5: #{tile.108} parent=0 // pred_fallthru
    _
  %v4 = vld [vmem:[%s0] ss:$0 sm:$0xff]
  %5 = vst [vmem:[%s1] sm:$0xf] %v4

// kernel: tile.109
$region0: #{tile.109}
  %s0 = inlined_call_operand.vmem [shape: f32[4,32], index: 0, kind: input, shape index: {}]
  %s1 = inlined_call_operand.vmem [shape: f32[1,128], index: 1, kind: output, shape index: {}]
  $region1: #{tile.109} parent=0
    #allocation0 [shape = 'u8[4096]{0}', space=vmem, size = 0x1000, scoped, tag = 'scoped mem for output reshape']
    #allocation1 [shape = 'u8[4096]{0}', space=vmem, size = 0x1000, scoped, tag = 'scoped mem for input reshape']
    %s3 = ssub.s32 16, 1
    %v4 = vld [vmem:[%s0] sm:%s3]
    %5 = vst [vmem:[#allocation1] sm:%s3] %v4
    %v6 = vld [vmem:[#allocation1] sm:$0x1]
    %vm7 = vcmask 261120
    %8 = vst.msk [vmem:[#allocation0] sm:$0x1] %vm7, %v6
    %s9 = scalar_lea.vmem [#allocation1], 3
    %v10 = vld [vmem:[%s9] sm:$0x1]
    %11 = vrot.lane.b32.xlu0 %v10, 96
    %v12 = vpop.permute.xlu0 %11
    %vm13 = vcmask 1048320
    %14 = vst.msk [vmem:[#allocation0] sm:$0x1] %vm13, %v12
    %s15 = scalar_lea.vmem [#allocation1], 2
    %v16 = vld [vmem:[%s15] sm:$0x1]
    %17 = vrot.lane.b32.xlu0 %v16, 64
    %v18 = vpop.permute.xlu0 %17
    %vm19 = vcmask 785920
    %20 = vst.msk [vmem:[#allocation0] sm:$0x1] %vm19, %v18
    %s21 = scalar_lea.vmem [#allocation1], 1
    %v22 = vld [vmem:[%s21] sm:$0x1]
    %23 = vrot.lane.b32.xlu0 %v22, 32
    %v24 = vpop.permute.xlu0 %23
    %vm25 = vcmask 523520
    %26 = vst.msk [vmem:[#allocation0] sm:$0x1] %vm25, %v24
    %s28 = ssub.s32 2, 1
    %v29 = vld [vmem:[#allocation0] sm:%s28]
    %s31 = ssub.s32 2, 1
    %32 = vst [vmem:[%s1] sm:%s31] %v29

// kernel: tile.140
$region0: #{tile.140}
  #allocation0 [shape = 's32[1]{0}', space=sflag, size = 0x4, scoped, tag = 'scoped memory for tile.140']
  %s0 = inlined_call_operand.vmem [shape: f32[16], index: 0, kind: input, shape index: {}]
  %s1 = inlined_call_operand.vmem [shape: f32[8,16], index: 1, kind: output, shape index: {}]
  // Predicated region
  $region2: #{tile.140} parent=0 // pred_check
    _
  $region3: #{tile.140} parent=0 // pred_check_branch
    %3 = sbr.rel (0) target = $region5
  $region4: #{tile.140} parent=0 // pred_region
    _
  $region5: #{tile.140} parent=0 // pred_fallthru
    _
  %v4 = vld [vmem:[%s0] ss:$0 sm:$0xff]
  %5 = vst [vmem:[%s1] sm:$0xff] %v4

// kernel: tile.103
$region0: #{tile.103}
  #allocation0 [shape = 's32[1]{0}', space=sflag, size = 0x4, scoped, tag = 'scoped memory for tile.103']
  %s0 = inlined_call_operand.vmem [shape: f32[32], index: 0, kind: input, shape index: {}]
  %s1 = inlined_call_operand.vmem [shape: f32[8,32], index: 1, kind: output, shape index: {}]
  // Predicated region
  $region2: #{tile.103} parent=0 // pred_check
    _
  $region3: #{tile.103} parent=0 // pred_check_branch
    %3 = sbr.rel (0) target = $region5
  $region4: #{tile.103} parent=0 // pred_region
    _
  $region5: #{tile.103} parent=0 // pred_fallthru
    _
  %v4 = vld [vmem:[%s0] ss:$0 sm:$0xff]
  %5 = vst [vmem:[%s1] sm:$0xff] %v4

// kernel: tile.104
$region0: #{tile.104}
  %s0 = inlined_call_operand.vmem [shape: f32[8,32], index: 0, kind: input, shape index: {}]
  %s1 = inlined_call_operand.vmem [shape: f32[1,256], index: 1, kind: output, shape index: {}]
  $region1: #{tile.104} parent=0
    #allocation0 [shape = 'u8[8192]{0}', space=vmem, size = 0x2000, scoped, tag = 'scoped mem for output reshape']
    %s2 = smov 3
    %v3 = vld [vmem:[%s0] ss:$4 sm:%s2]
    %vm4 = vcmask 261120
    %5 = vst.msk [vmem:[#allocation0] ss:$8 sm:$0x3] %vm4, %v3
    %s6 = scalar_lea.vmem %s0, 3
    %s7 = smov 3
    %v8 = vld [vmem:[%s6] ss:$4 sm:%s7]
    %9 = vrot.lane.b32.xlu0 %v8, 96
    %v10 = vpop.permute.xlu0 %9
    %vm11 = vcmask 1048320
    %12 = vst.msk [vmem:[#allocation0] ss:$8 sm:$0x3] %vm11, %v10
    %s13 = scalar_lea.vmem %s0, 2
    %s14 = smov 3
    %v15 = vld [vmem:[%s13] ss:$4 sm:%s14]
    %16 = vrot.lane.b32.xlu0 %v15, 64
    %v17 = vpop.permute.xlu0 %16
    %vm18 = vcmask 785920
    %19 = vst.msk [vmem:[#allocation0] ss:$8 sm:$0x3] %vm18, %v17
    %s20 = scalar_lea.vmem %s0, 1
    %s21 = smov 3
    %v22 = vld [vmem:[%s20] ss:$4 sm:%s21]
    %23 = vrot.lane.b32.xlu0 %v22, 32
    %v24 = vpop.permute.xlu0 %23
    %vm25 = vcmask 523520
    %26 = vst.msk [vmem:[#allocation0] ss:$8 sm:$0x3] %vm25, %v24
    %s28 = ssub.s32 2, 1
    %v29 = vld [vmem:[#allocation0] sm:%s28]
    %s31 = ssub.s32 2, 1
    %32 = vst [vmem:[%s1] sm:%s31] %v29
    %s33 = scalar_lea.vmem [#allocation0], 8
    %v34 = vld [vmem:[%s33] sm:%s28]
    %s36 = ssub.s32 2, 1
    %s37 = scalar_lea.vmem %s1, 1
    %38 = vst [vmem:[%s37] sm:%s36] %v34

// kernel: tile.123
$region0: #{tile.123}
  #allocation0 [shape = 's32[1]{0}', space=sflag, size = 0x4, scoped, tag = 'scoped memory for tile.123']
  %s0 = inlined_call_operand.vmem [shape: f32[16], index: 0, kind: input, shape index: {}]
  %s1 = inlined_call_operand.vmem [shape: f32[16,16], index: 1, kind: output, shape index: {}]
  // Predicated region
  $region2: #{tile.123} parent=0 // pred_check
    _
  $region3: #{tile.123} parent=0 // pred_check_branch
    %3 = sbr.rel (0) target = $region5
  $region4: #{tile.123} parent=0 // pred_region
    _
  $region5: #{tile.123} parent=0 // pred_fallthru
    _
  %v4 = vld [vmem:[%s0] ss:$0 sm:$0xff]
  %5 = vst [vmem:[%s1] sm:$0xff] %v4
  %s6 = scalar_lea.vmem %s1, 8
  %7 = vst [vmem:[%s6] sm:$0xff] %v4

// kernel: tile.184
$region0: #{tile.184}
  %s0 = inlined_call_operand.vmem [shape: f32[16,16], index: 0, kind: input, shape index: {}]
  %s1 = inlined_call_operand.vmem [shape: f32[1,1,256], index: 1, kind: output, shape index: {}]
  $region1: #{tile.184} parent=0
    #allocation0 [shape = 'u8[8192]{0}', space=vmem, size = 0x2000, scoped, tag = 'scoped mem for output reshape']
    %s2 = smov 3
    %v3 = vld [vmem:[%s0] ss:$8 sm:%s2]
    %vm4 = vcmask 130048
    %5 = vst.msk [vmem:[#allocation0] ss:$8 sm:$0x3] %vm4, %v3
    %s6 = scalar_lea.vmem %s0, 7
    %s7 = smov 3
    %v8 = vld [vmem:[%s6] ss:$8 sm:%s7]
    %9 = vrot.lane.b32.xlu0 %v8, 112
    %v10 = vpop.permute.xlu0 %9
    %vm11 = vcmask 1048448
    %12 = vst.msk [vmem:[#allocation0] ss:$8 sm:$0x3] %vm11, %v10
    %s13 = scalar_lea.vmem %s0, 6
    %s14 = smov 3
    %v15 = vld [vmem:[%s13] ss:$8 sm:%s14]
    %16 = vrot.lane.b32.xlu0 %v15, 96
    %v17 = vpop.permute.xlu0 %16
    %vm18 = vcmask 917248
    %19 = vst.msk [vmem:[#allocation0] ss:$8 sm:$0x3] %vm18, %v17
    %s20 = scalar_lea.vmem %s0, 5
    %s21 = smov 3
    %v22 = vld [vmem:[%s20] ss:$8 sm:%s21]
    %23 = vrot.lane.b32.xlu0 %v22, 80
    %v24 = vpop.permute.xlu0 %23
    %vm25 = vcmask 786048
    %26 = vst.msk [vmem:[#allocation0] ss:$8 sm:$0x3] %vm25, %v24
    %s27 = scalar_lea.vmem %s0, 4
    %s28 = smov 3
    %v29 = vld [vmem:[%s27] ss:$8 sm:%s28]
    %30 = vrot.lane.b32.xlu0 %v29, 64
    %v31 = vpop.permute.xlu0 %30
    %vm32 = vcmask 654848
    %33 = vst.msk [vmem:[#allocation0] ss:$8 sm:$0x3] %vm32, %v31
    %s34 = scalar_lea.vmem %s0, 3
    %s35 = smov 3
    %v36 = vld [vmem:[%s34] ss:$8 sm:%s35]
    %37 = vrot.lane.b32.xlu0 %v36, 48
    %v38 = vpop.permute.xlu0 %37
    %vm39 = vcmask 523648
    %40 = vst.msk [vmem:[#allocation0] ss:$8 sm:$0x3] %vm39, %v38
    %s41 = scalar_lea.vmem %s0, 2
    %s42 = smov 3
    %v43 = vld [vmem:[%s41] ss:$8 sm:%s42]
    %44 = vrot.lane.b32.xlu0 %v43, 32
    %v45 = vpop.permute.xlu0 %44
    %vm46 = vcmask 392448
    %47 = vst.msk [vmem:[#allocation0] ss:$8 sm:$0x3] %vm46, %v45
    %s48 = scalar_lea.vmem %s0, 1
    %s49 = smov 3
    %v50 = vld [vmem:[%s48] ss:$8 sm:%s49]
    %51 = vrot.lane.b32.xlu0 %v50, 16
    %v52 = vpop.permute.xlu0 %51
    %vm53 = vcmask 261248
    %54 = vst.msk [vmem:[#allocation0] ss:$8 sm:$0x3] %vm53, %v52
    %s56 = ssub.s32 2, 1
    %v57 = vld [vmem:[#allocation0] sm:%s56]
    %s59 = ssub.s32 2, 1
    %60 = vst [vmem:[%s1] sm:%s59] %v57
    %s61 = scalar_lea.vmem [#allocation0], 8
    %v62 = vld [vmem:[%s61] sm:%s56]
    %s64 = ssub.s32 2, 1
    %s65 = scalar_lea.vmem %s1, 1
    %66 = vst [vmem:[%s65] sm:%s64] %v62

// kernel: tile.99
$region0: #{tile.99}
  %s0 = inlined_call_operand.vmem [shape: f32[16,16], index: 0, kind: input, shape index: {}]
  %s1 = inlined_call_operand.vmem [shape: f32[1,256], index: 1, kind: output, shape index: {}]
  $region1: #{tile.99} parent=0
    #allocation0 [shape = 'u8[8192]{0}', space=vmem, size = 0x2000, scoped, tag = 'scoped mem for output reshape']
    %s2 = smov 3
    %v3 = vld [vmem:[%s0] ss:$8 sm:%s2]
    %vm4 = vcmask 130048
    %5 = vst.msk [vmem:[#allocation0] ss:$8 sm:$0x3] %vm4, %v3
    %s6 = scalar_lea.vmem %s0, 7
    %s7 = smov 3
    %v8 = vld [vmem:[%s6] ss:$8 sm:%s7]
    %9 = vrot.lane.b32.xlu0 %v8, 112
    %v10 = vpop.permute.xlu0 %9
    %vm11 = vcmask 1048448
    %12 = vst.msk [vmem:[#allocation0] ss:$8 sm:$0x3] %vm11, %v10
    %s13 = scalar_lea.vmem %s0, 6
    %s14 = smov 3
    %v15 = vld [vmem:[%s13] ss:$8 sm:%s14]
    %16 = vrot.lane.b32.xlu0 %v15, 96
    %v17 = vpop.permute.xlu0 %16
    %vm18 = vcmask 917248
    %19 = vst.msk [vmem:[#allocation0] ss:$8 sm:$0x3] %vm18, %v17
    %s20 = scalar_lea.vmem %s0, 5
    %s21 = smov 3
    %v22 = vld [vmem:[%s20] ss:$8 sm:%s21]
    %23 = vrot.lane.b32.xlu0 %v22, 80
    %v24 = vpop.permute.xlu0 %23
    %vm25 = vcmask 786048
    %26 = vst.msk [vmem:[#allocation0] ss:$8 sm:$0x3] %vm25, %v24
    %s27 = scalar_lea.vmem %s0, 4
    %s28 = smov 3
    %v29 = vld [vmem:[%s27] ss:$8 sm:%s28]
    %30 = vrot.lane.b32.xlu0 %v29, 64
    %v31 = vpop.permute.xlu0 %30
    %vm32 = vcmask 654848
    %33 = vst.msk [vmem:[#allocation0] ss:$8 sm:$0x3] %vm32, %v31
    %s34 = scalar_lea.vmem %s0, 3
    %s35 = smov 3
    %v36 = vld [vmem:[%s34] ss:$8 sm:%s35]
    %37 = vrot.lane.b32.xlu0 %v36, 48
    %v38 = vpop.permute.xlu0 %37
    %vm39 = vcmask 523648
    %40 = vst.msk [vmem:[#allocation0] ss:$8 sm:$0x3] %vm39, %v38
    %s41 = scalar_lea.vmem %s0, 2
    %s42 = smov 3
    %v43 = vld [vmem:[%s41] ss:$8 sm:%s42]
    %44 = vrot.lane.b32.xlu0 %v43, 32
    %v45 = vpop.permute.xlu0 %44
    %vm46 = vcmask 392448
    %47 = vst.msk [vmem:[#allocation0] ss:$8 sm:$0x3] %vm46, %v45
    %s48 = scalar_lea.vmem %s0, 1
    %s49 = smov 3
    %v50 = vld [vmem:[%s48] ss:$8 sm:%s49]
    %51 = vrot.lane.b32.xlu0 %v50, 16
    %v52 = vpop.permute.xlu0 %51
    %vm53 = vcmask 261248
    %54 = vst.msk [vmem:[#allocation0] ss:$8 sm:$0x3] %vm53, %v52
    %s56 = ssub.s32 2, 1
    %v57 = vld [vmem:[#allocation0] sm:%s56]
    %s59 = ssub.s32 2, 1
    %60 = vst [vmem:[%s1] sm:%s59] %v57
    %s61 = scalar_lea.vmem [#allocation0], 8
    %v62 = vld [vmem:[%s61] sm:%s56]
    %s64 = ssub.s32 2, 1
    %s65 = scalar_lea.vmem %s1, 1
    %66 = vst [vmem:[%s65] sm:%s64] %v62

// kernel: residual_group_forward.1
$region0: #{residual_group_forward.1}
  #allocation0 [shape = 'u32[]', space=smem, size = 0x4, offset = 0x4, fixed_abs, tag = 'smem constant byte address 0x4 - core index']
  #allocation1 [shape = 'u32[72,128]{1,0:T(1,128)}', space=vmem, size = 0x9000, scoped, tag = 'internal scratch']
  #allocation2 [shape = 'f32[32,256]{1,0:T(8,128)}', space=vmem, size = 0x8000, scoped, tag = 'scratch operand']
  %s0 = inlined_call_operand.smem [shape: u32[34], index: -1, kind: input, shape index: {}]
  %s1 = sld [smem:[%s0]]
  %s2 = scalar_lea.smem %s0, 1
  %s3 = sld [smem:[%s2]]
  %s4 = scalar_lea.smem %s0, 2
  %s5 = sld [smem:[%s4]]
  %s6 = scalar_lea.smem %s0, 3
  %s7 = sld [smem:[%s6]]
  %s8 = scalar_lea.smem %s0, 4
  %s9 = sld [smem:[%s8]]
  %s10 = scalar_lea.smem %s0, 5
  %s11 = sld [smem:[%s10]]
  %s12 = scalar_lea.smem %s0, 6
  %s13 = sld [smem:[%s12]]
  %s14 = scalar_lea.smem %s0, 7
  %s15 = sld [smem:[%s14]]
  %s16 = scalar_lea.smem %s0, 8
  %s17 = sld [smem:[%s16]]
  %s18 = scalar_lea.smem %s0, 9
  %s19 = sld [smem:[%s18]]
  %s20 = scalar_lea.smem %s0, 10
  %s21 = sld [smem:[%s20]]
  %s22 = scalar_lea.smem %s0, 11
  %s23 = sld [smem:[%s22]]
  %s24 = scalar_lea.smem %s0, 12
  %s25 = sld [smem:[%s24]]
  %s26 = scalar_lea.smem %s0, 13
  %s27 = sld [smem:[%s26]]
  %s28 = scalar_lea.smem %s0, 14
  %s29 = sld [smem:[%s28]]
  %s30 = scalar_lea.smem %s0, 15
  %s31 = sld [smem:[%s30]]
  %s32 = scalar_lea.smem %s0, 16
  %s33 = sld [smem:[%s32]]
  %s34 = scalar_lea.smem %s0, 17
  %s35 = sld [smem:[%s34]]
  %s36 = scalar_lea.smem %s0, 18
  %s37 = sld [smem:[%s36]]
  %s38 = scalar_lea.smem %s0, 19
  %s39 = sld [smem:[%s38]]
  %s40 = scalar_lea.smem %s0, 20
  %s41 = sld [smem:[%s40]]
  %s42 = scalar_lea.smem %s0, 21
  %s43 = sld [smem:[%s42]]
  %s44 = scalar_lea.smem %s0, 22
  %s45 = sld [smem:[%s44]]
  %s46 = scalar_lea.smem %s0, 23
  %s47 = sld [smem:[%s46]]
  %s48 = scalar_lea.smem %s0, 24
  %s49 = sld [smem:[%s48]]
  %s50 = scalar_lea.smem %s0, 25
  %s51 = sld [smem:[%s50]]
  %s52 = scalar_lea.smem %s0, 26
  %s53 = sld [smem:[%s52]]
  %s54 = scalar_lea.smem %s0, 27
  %s55 = sld [smem:[%s54]]
  %s56 = scalar_lea.smem %s0, 28
  %s57 = sld [smem:[%s56]]
  %s58 = scalar_lea.smem %s0, 29
  %s59 = sld [smem:[%s58]]
  %s60 = scalar_lea.smem %s0, 30
  %s61 = sld [smem:[%s60]]
  %s62 = scalar_lea.smem %s0, 31
  %s63 = sld [smem:[%s62]]
  %s64 = scalar_lea.smem %s0, 32
  %s65 = sld [smem:[%s64]]
  %s66 = scalar_lea.smem %s0, 33
  %s67 = sld [smem:[%s66]]
  %s68 = sld [smem:[#allocation0]]
  $region173: #{residual_group_forward.1} parent=0
    _
  %s70 = ssub.s32 1, %s68
  %s71 = scalar_select 0, %s70, %s68
  loop: start=0, step=1, limit=4
  $region2: #{residual_group_forward.1} parent=0 // loop_pre_header
    _
  $region3: #{residual_group_forward.1} parent=0 // loop_header
    %s73 = sphi 0, %s77
    %p74 = scmp.ge.s32.totalorder %s73, 4
    %s80 = sphi 0, %s92
    %s81 = sphi 0, %s88
    %s82 = sphi 0, %s80
    %s83 = sphi 0, %s81
    %s84 = sphi 0, %s82
    %s85 = sphi 0, %s83
    %s95 = sphi 0, %s97
    %s98 = sphi 0, %s95
    %s99 = sphi 0, %s98
    %s115 = sphi 0, %s99
    %s121 = sphi 0, %s123
    %s124 = sphi 0, %s121
    %s125 = sphi 0, %s124
    %s141 = sphi 0, %s125
    %s147 = sphi 0, %s149
    %s150 = sphi 0, %s147
    %s151 = sphi 0, %s150
    %s167 = sphi 0, %s151
    %s173 = sphi 0, %s175
    %s176 = sphi 0, %s173
    %s177 = sphi 0, %s176
    %s193 = sphi 0, %s177
    %s199 = sphi 0, %s201
    %s202 = sphi 0, %s199
    %s203 = sphi 0, %s202
    %s219 = sphi 0, %s203
    %s225 = sphi 0, %s227
    %s228 = sphi 0, %s225
    %s229 = sphi 0, %s228
    %s245 = sphi 0, %s229
    %s251 = sphi 0, %s253
    %s254 = sphi 0, %s251
    %s255 = sphi 0, %s254
    %s271 = sphi 0, %s255
    %s277 = sphi 0, %s279
    %s280 = sphi 0, %s277
    %s281 = sphi 0, %s280
    %s297 = sphi 0, %s281
    %s303 = sphi 0, %s305
    %s306 = sphi 0, %s303
    %s307 = sphi 0, %s306
    %s323 = sphi 0, %s307
    %s329 = sphi 0, %s331
    %s332 = sphi 0, %s329
    %s333 = sphi 0, %s332
    %s349 = sphi 0, %s333
    %s355 = sphi 0, %s357
    %s358 = sphi 0, %s355
    %s359 = sphi 0, %s358
    %s375 = sphi 0, %s359
    %s381 = sphi 0, %s383
    %s384 = sphi 0, %s381
    %s385 = sphi 0, %s384
    %s401 = sphi 0, %s385
    %s407 = sphi 0, %s409
    %s410 = sphi 0, %s407
    %s411 = sphi 0, %s410
    %s427 = sphi 0, %s411
    %s433 = sphi 0, %s435
    %s436 = sphi 0, %s433
    %s437 = sphi 0, %s436
    %s453 = sphi 0, %s437
    %s459 = sphi 0, %s461
    %s462 = sphi 0, %s459
    %s463 = sphi 0, %s462
    %s479 = sphi 0, %s463
    %s483 = sphi 0, %s483
    %s485 = sphi 0, %s483
    %s486 = sphi 0, %s485
    %s500 = sphi 0, %s486
    %s504 = sphi 0, %s504
    %s506 = sphi 0, %s504
    %s507 = sphi 0, %s506
    %s521 = sphi 0, %s507
    %s525 = sphi 0, %s525
    %s527 = sphi 0, %s525
    %s528 = sphi 0, %s527
    %s542 = sphi 0, %s528
    %s546 = sphi 0, %s546
    %s548 = sphi 0, %s546
    %s549 = sphi 0, %s548
    %s563 = sphi 0, %s549
    %s567 = sphi 0, %s567
    %s569 = sphi 0, %s567
    %s570 = sphi 0, %s569
    %s584 = sphi 0, %s570
    %s588 = sphi 0, %s588
    %s590 = sphi 0, %s588
    %s591 = sphi 0, %s590
    %s605 = sphi 0, %s591
    %s609 = sphi 0, %s609
    %s611 = sphi 0, %s609
    %s612 = sphi 0, %s611
    %s626 = sphi 0, %s612
    %s630 = sphi 0, %s630
    %s632 = sphi 0, %s630
    %s633 = sphi 0, %s632
    %s647 = sphi 0, %s633
    %s651 = sphi 0, %s651
    %s653 = sphi 0, %s651
    %s654 = sphi 0, %s653
    %s668 = sphi 0, %s654
    %s672 = sphi 0, %s672
    %s674 = sphi 0, %s672
    %s675 = sphi 0, %s674
    %s689 = sphi 0, %s675
    %s693 = sphi 0, %s693
    %s695 = sphi 0, %s693
    %s696 = sphi 0, %s695
    %s710 = sphi 0, %s696
    %s714 = sphi 0, %s714
    %s716 = sphi 0, %s714
    %s717 = sphi 0, %s716
    %s731 = sphi 0, %s717
    %s735 = sphi 0, %s735
    %s737 = sphi 0, %s735
    %s738 = sphi 0, %s737
    %s752 = sphi 0, %s738
    %s756 = sphi 0, %s756
    %s758 = sphi 0, %s756
    %s759 = sphi 0, %s758
    %s773 = sphi 0, %s759
    %s777 = sphi 0, %s777
    %s779 = sphi 0, %s777
    %s780 = sphi 0, %s779
    %s794 = sphi 0, %s780
    %s798 = sphi 0, %s798
    %s800 = sphi 0, %s798
    %s801 = sphi 0, %s800
    %s815 = sphi 0, %s801
    %s819 = sphi 0, %s819
    %s821 = sphi 0, %s819
    %s822 = sphi 0, %s821
    %s836 = sphi 0, %s822
    %s840 = sphi 0, %s840
    %s842 = sphi 0, %s840
    %s843 = sphi 0, %s842
    %s857 = sphi 0, %s843
    %s863 = sphi 0, %s865
    %s866 = sphi 0, %s863
    %s867 = sphi 0, %s866
    %s883 = sphi 0, %s867
  $region4: #{residual_group_forward.1} parent=0 // loop_header_branch
    %76 = sbr.rel (%p74) target = $region8
  $region5: #{residual_group_forward.1} parent=0 // loop_body
    %s78 = ssub.s32 %s73, 1
    %s79 = ssub.s32 %s73, 2
    %s86 = sadd.s32 1, %s81
    %p87 = scmp.ge.s32.totalorder %s86, 2
    %s88 = scalar_select %p87, 0, %s86
    %s89 = sadd.s32 1, %s80
    %s90 = scalar_select %p87, %s89, %s80
    %p91 = scmp.ge.s32.totalorder %s90, 1
    %s92 = scalar_select %p91, 0, %s90
    %s93 = ssub.s32 %s80, %s92
    %p94 = scmp.eq.s32.totalorder %s93, 0
    %s96 = sadd.s32 %s95, 1
    %s97 = scalar_select %p94, %s95, %s96
    %p100 = pneg %p94
    %p101 = scmp.eq.s32.totalorder %s73, 1
    %p102 = por %p100, %p101
    %p103 = scmp.ne.s32.totalorder %s95, %s98
    %p104 = scmp.eq.s32.totalorder %s73, 0
    %p105 = por %p103, %p104
    %p106 = scmp.ne.s32.totalorder %s95, %s98
    %p107 = scmp.eq.s32.totalorder %s78, 1
    %p108 = por %p106, %p107
    %p109 = scmp.ne.s32.totalorder %s98, %s99
    %p110 = scmp.eq.s32.totalorder %s78, 0
    %p111 = por %p109, %p110
    %p112 = scmp.ne.s32.totalorder %s98, %s99
    %p113 = scmp.eq.s32.totalorder %s79, 1
    %p114 = por %p112, %p113
    %p116 = scmp.ne.s32.totalorder %s99, %s115
    %p117 = scmp.eq.s32.totalorder %s79, 0
    %p118 = por %p116, %p117
    %s119 = ssub.s32 %s81, %s88
    %p120 = scmp.eq.s32.totalorder %s119, 0
    %s122 = sadd.s32 %s121, 1
    %s123 = scalar_select %p120, %s121, %s122
    %p126 = pneg %p120
    %p127 = scmp.eq.s32.totalorder %s73, 1
    %p128 = por %p126, %p127
    %p129 = scmp.ne.s32.totalorder %s121, %s124
    %p130 = scmp.eq.s32.totalorder %s73, 0
    %p131 = por %p129, %p130
    %p132 = scmp.ne.s32.totalorder %s121, %s124
    %p133 = scmp.eq.s32.totalorder %s78, 1
    %p134 = por %p132, %p133
    %p135 = scmp.ne.s32.totalorder %s124, %s125
    %p136 = scmp.eq.s32.totalorder %s78, 0
    %p137 = por %p135, %p136
    %p138 = scmp.ne.s32.totalorder %s124, %s125
    %p139 = scmp.eq.s32.totalorder %s79, 1
    %p140 = por %p138, %p139
    %p142 = scmp.ne.s32.totalorder %s125, %s141
    %p143 = scmp.eq.s32.totalorder %s79, 0
    %p144 = por %p142, %p143
    %s145 = ssub.s32 %s81, %s88
    %p146 = scmp.eq.s32.totalorder %s145, 0
    %s148 = sadd.s32 %s147, 1
    %s149 = scalar_select %p146, %s147, %s148
    %p152 = pneg %p146
    %p153 = scmp.eq.s32.totalorder %s73, 1
    %p154 = por %p152, %p153
    %p155 = scmp.ne.s32.totalorder %s147, %s150
    %p156 = scmp.eq.s32.totalorder %s73, 0
    %p157 = por %p155, %p156
    %p158 = scmp.ne.s32.totalorder %s147, %s150
    %p159 = scmp.eq.s32.totalorder %s78, 1
    %p160 = por %p158, %p159
    %p161 = scmp.ne.s32.totalorder %s150, %s151
    %p162 = scmp.eq.s32.totalorder %s78, 0
    %p163 = por %p161, %p162
    %p164 = scmp.ne.s32.totalorder %s150, %s151
    %p165 = scmp.eq.s32.totalorder %s79, 1
    %p166 = por %p164, %p165
    %p168 = scmp.ne.s32.totalorder %s151, %s167
    %p169 = scmp.eq.s32.totalorder %s79, 0
    %p170 = por %p168, %p169
    %s171 = ssub.s32 %s81, %s88
    %p172 = scmp.eq.s32.totalorder %s171, 0
    %s174 = sadd.s32 %s173, 1
    %s175 = scalar_select %p172, %s173, %s174
    %p178 = pneg %p172
    %p179 = scmp.eq.s32.totalorder %s73, 1
    %p180 = por %p178, %p179
    %p181 = scmp.ne.s32.totalorder %s173, %s176
    %p182 = scmp.eq.s32.totalorder %s73, 0
    %p183 = por %p181, %p182
    %p184 = scmp.ne.s32.totalorder %s173, %s176
    %p185 = scmp.eq.s32.totalorder %s78, 1
    %p186 = por %p184, %p185
    %p187 = scmp.ne.s32.totalorder %s176, %s177
    %p188 = scmp.eq.s32.totalorder %s78, 0
    %p189 = por %p187, %p188
    %p190 = scmp.ne.s32.totalorder %s176, %s177
    %p191 = scmp.eq.s32.totalorder %s79, 1
    %p192 = por %p190, %p191
    %p194 = scmp.ne.s32.totalorder %s177, %s193
    %p195 = scmp.eq.s32.totalorder %s79, 0
    %p196 = por %p194, %p195
    %s197 = ssub.s32 %s81, %s88
    %p198 = scmp.eq.s32.totalorder %s197, 0
    %s200 = sadd.s32 %s199, 1
    %s201 = scalar_select %p198, %s199, %s200
    %p204 = pneg %p198
    %p205 = scmp.eq.s32.totalorder %s73, 1
    %p206 = por %p204, %p205
    %p207 = scmp.ne.s32.totalorder %s199, %s202
    %p208 = scmp.eq.s32.totalorder %s73, 0
    %p209 = por %p207, %p208
    %p210 = scmp.ne.s32.totalorder %s199, %s202
    %p211 = scmp.eq.s32.totalorder %s78, 1
    %p212 = por %p210, %p211
    %p213 = scmp.ne.s32.totalorder %s202, %s203
    %p214 = scmp.eq.s32.totalorder %s78, 0
    %p215 = por %p213, %p214
    %p216 = scmp.ne.s32.totalorder %s202, %s203
    %p217 = scmp.eq.s32.totalorder %s79, 1
    %p218 = por %p216, %p217
    %p220 = scmp.ne.s32.totalorder %s203, %s219
    %p221 = scmp.eq.s32.totalorder %s79, 0
    %p222 = por %p220, %p221
    %s223 = ssub.s32 %s81, %s88
    %p224 = scmp.eq.s32.totalorder %s223, 0
    %s226 = sadd.s32 %s225, 1
    %s227 = scalar_select %p224, %s225, %s226
    %p230 = pneg %p224
    %p231 = scmp.eq.s32.totalorder %s73, 1
    %p232 = por %p230, %p231
    %p233 = scmp.ne.s32.totalorder %s225, %s228
    %p234 = scmp.eq.s32.totalorder %s73, 0
    %p235 = por %p233, %p234
    %p236 = scmp.ne.s32.totalorder %s225, %s228
    %p237 = scmp.eq.s32.totalorder %s78, 1
    %p238 = por %p236, %p237
    %p239 = scmp.ne.s32.totalorder %s228, %s229
    %p240 = scmp.eq.s32.totalorder %s78, 0
    %p241 = por %p239, %p240
    %p242 = scmp.ne.s32.totalorder %s228, %s229
    %p243 = scmp.eq.s32.totalorder %s79, 1
    %p244 = por %p242, %p243
    %p246 = scmp.ne.s32.totalorder %s229, %s245
    %p247 = scmp.eq.s32.totalorder %s79, 0
    %p248 = por %p246, %p247
    %s249 = ssub.s32 %s81, %s88
    %p250 = scmp.eq.s32.totalorder %s249, 0
    %s252 = sadd.s32 %s251, 1
    %s253 = scalar_select %p250, %s251, %s252
    %p256 = pneg %p250
    %p257 = scmp.eq.s32.totalorder %s73, 1
    %p258 = por %p256, %p257
    %p259 = scmp.ne.s32.totalorder %s251, %s254
    %p260 = scmp.eq.s32.totalorder %s73, 0
    %p261 = por %p259, %p260
    %p262 = scmp.ne.s32.totalorder %s251, %s254
    %p263 = scmp.eq.s32.totalorder %s78, 1
    %p264 = por %p262, %p263
    %p265 = scmp.ne.s32.totalorder %s254, %s255
    %p266 = scmp.eq.s32.totalorder %s78, 0
    %p267 = por %p265, %p266
    %p268 = scmp.ne.s32.totalorder %s254, %s255
    %p269 = scmp.eq.s32.totalorder %s79, 1
    %p270 = por %p268, %p269
    %p272 = scmp.ne.s32.totalorder %s255, %s271
    %p273 = scmp.eq.s32.totalorder %s79, 0
    %p274 = por %p272, %p273
    %s275 = ssub.s32 %s81, %s88
    %p276 = scmp.eq.s32.totalorder %s275, 0
    %s278 = sadd.s32 %s277, 1
    %s279 = scalar_select %p276, %s277, %s278
    %p282 = pneg %p276
    %p283 = scmp.eq.s32.totalorder %s73, 1
    %p284 = por %p282, %p283
    %p285 = scmp.ne.s32.totalorder %s277, %s280
    %p286 = scmp.eq.s32.totalorder %s73, 0
    %p287 = por %p285, %p286
    %p288 = scmp.ne.s32.totalorder %s277, %s280
    %p289 = scmp.eq.s32.totalorder %s78, 1
    %p290 = por %p288, %p289
    %p291 = scmp.ne.s32.totalorder %s280, %s281
    %p292 = scmp.eq.s32.totalorder %s78, 0
    %p293 = por %p291, %p292
    %p294 = scmp.ne.s32.totalorder %s280, %s281
    %p295 = scmp.eq.s32.totalorder %s79, 1
    %p296 = por %p294, %p295
    %p298 = scmp.ne.s32.totalorder %s281, %s297
    %p299 = scmp.eq.s32.totalorder %s79, 0
    %p300 = por %p298, %p299
    %s301 = ssub.s32 %s81, %s88
    %p302 = scmp.eq.s32.totalorder %s301, 0
    %s304 = sadd.s32 %s303, 1
    %s305 = scalar_select %p302, %s303, %s304
    %p308 = pneg %p302
    %p309 = scmp.eq.s32.totalorder %s73, 1
    %p310 = por %p308, %p309
    %p311 = scmp.ne.s32.totalorder %s303, %s306
    %p312 = scmp.eq.s32.totalorder %s73, 0
    %p313 = por %p311, %p312
    %p314 = scmp.ne.s32.totalorder %s303, %s306
    %p315 = scmp.eq.s32.totalorder %s78, 1
    %p316 = por %p314, %p315
    %p317 = scmp.ne.s32.totalorder %s306, %s307
    %p318 = scmp.eq.s32.totalorder %s78, 0
    %p319 = por %p317, %p318
    %p320 = scmp.ne.s32.totalorder %s306, %s307
    %p321 = scmp.eq.s32.totalorder %s79, 1
    %p322 = por %p320, %p321
    %p324 = scmp.ne.s32.totalorder %s307, %s323
    %p325 = scmp.eq.s32.totalorder %s79, 0
    %p326 = por %p324, %p325
    %s327 = ssub.s32 %s81, %s88
    %p328 = scmp.eq.s32.totalorder %s327, 0
    %s330 = sadd.s32 %s329, 1
    %s331 = scalar_select %p328, %s329, %s330
    %p334 = pneg %p328
    %p335 = scmp.eq.s32.totalorder %s73, 1
    %p336 = por %p334, %p335
    %p337 = scmp.ne.s32.totalorder %s329, %s332
    %p338 = scmp.eq.s32.totalorder %s73, 0
    %p339 = por %p337, %p338
    %p340 = scmp.ne.s32.totalorder %s329, %s332
    %p341 = scmp.eq.s32.totalorder %s78, 1
    %p342 = por %p340, %p341
    %p343 = scmp.ne.s32.totalorder %s332, %s333
    %p344 = scmp.eq.s32.totalorder %s78, 0
    %p345 = por %p343, %p344
    %p346 = scmp.ne.s32.totalorder %s332, %s333
    %p347 = scmp.eq.s32.totalorder %s79, 1
    %p348 = por %p346, %p347
    %p350 = scmp.ne.s32.totalorder %s333, %s349
    %p351 = scmp.eq.s32.totalorder %s79, 0
    %p352 = por %p350, %p351
    %s353 = ssub.s32 %s81, %s88
    %p354 = scmp.eq.s32.totalorder %s353, 0
    %s356 = sadd.s32 %s355, 1
    %s357 = scalar_select %p354, %s355, %s356
    %p360 = pneg %p354
    %p361 = scmp.eq.s32.totalorder %s73, 1
    %p362 = por %p360, %p361
    %p363 = scmp.ne.s32.totalorder %s355, %s358
    %p364 = scmp.eq.s32.totalorder %s73, 0
    %p365 = por %p363, %p364
    %p366 = scmp.ne.s32.totalorder %s355, %s358
    %p367 = scmp.eq.s32.totalorder %s78, 1
    %p368 = por %p366, %p367
    %p369 = scmp.ne.s32.totalorder %s358, %s359
    %p370 = scmp.eq.s32.totalorder %s78, 0
    %p371 = por %p369, %p370
    %p372 = scmp.ne.s32.totalorder %s358, %s359
    %p373 = scmp.eq.s32.totalorder %s79, 1
    %p374 = por %p372, %p373
    %p376 = scmp.ne.s32.totalorder %s359, %s375
    %p377 = scmp.eq.s32.totalorder %s79, 0
    %p378 = por %p376, %p377
    %s379 = ssub.s32 %s81, %s88
    %p380 = scmp.eq.s32.totalorder %s379, 0
    %s382 = sadd.s32 %s381, 1
    %s383 = scalar_select %p380, %s381, %s382
    %p386 = pneg %p380
    %p387 = scmp.eq.s32.totalorder %s73, 1
    %p388 = por %p386, %p387
    %p389 = scmp.ne.s32.totalorder %s381, %s384
    %p390 = scmp.eq.s32.totalorder %s73, 0
    %p391 = por %p389, %p390
    %p392 = scmp.ne.s32.totalorder %s381, %s384
    %p393 = scmp.eq.s32.totalorder %s78, 1
    %p394 = por %p392, %p393
    %p395 = scmp.ne.s32.totalorder %s384, %s385
    %p396 = scmp.eq.s32.totalorder %s78, 0
    %p397 = por %p395, %p396
    %p398 = scmp.ne.s32.totalorder %s384, %s385
    %p399 = scmp.eq.s32.totalorder %s79, 1
    %p400 = por %p398, %p399
    %p402 = scmp.ne.s32.totalorder %s385, %s401
    %p403 = scmp.eq.s32.totalorder %s79, 0
    %p404 = por %p402, %p403
    %s405 = ssub.s32 %s81, %s88
    %p406 = scmp.eq.s32.totalorder %s405, 0
    %s408 = sadd.s32 %s407, 1
    %s409 = scalar_select %p406, %s407, %s408
    %p412 = pneg %p406
    %p413 = scmp.eq.s32.totalorder %s73, 1
    %p414 = por %p412, %p413
    %p415 = scmp.ne.s32.totalorder %s407, %s410
    %p416 = scmp.eq.s32.totalorder %s73, 0
    %p417 = por %p415, %p416
    %p418 = scmp.ne.s32.totalorder %s407, %s410
    %p419 = scmp.eq.s32.totalorder %s78, 1
    %p420 = por %p418, %p419
    %p421 = scmp.ne.s32.totalorder %s410, %s411
    %p422 = scmp.eq.s32.totalorder %s78, 0
    %p423 = por %p421, %p422
    %p424 = scmp.ne.s32.totalorder %s410, %s411
    %p425 = scmp.eq.s32.totalorder %s79, 1
    %p426 = por %p424, %p425
    %p428 = scmp.ne.s32.totalorder %s411, %s427
    %p429 = scmp.eq.s32.totalorder %s79, 0
    %p430 = por %p428, %p429
    %s431 = ssub.s32 %s81, %s88
    %p432 = scmp.eq.s32.totalorder %s431, 0
    %s434 = sadd.s32 %s433, 1
    %s435 = scalar_select %p432, %s433, %s434
    %p438 = pneg %p432
    %p439 = scmp.eq.s32.totalorder %s73, 1
    %p440 = por %p438, %p439
    %p441 = scmp.ne.s32.totalorder %s433, %s436
    %p442 = scmp.eq.s32.totalorder %s73, 0
    %p443 = por %p441, %p442
    %p444 = scmp.ne.s32.totalorder %s433, %s436
    %p445 = scmp.eq.s32.totalorder %s78, 1
    %p446 = por %p444, %p445
    %p447 = scmp.ne.s32.totalorder %s436, %s437
    %p448 = scmp.eq.s32.totalorder %s78, 0
    %p449 = por %p447, %p448
    %p450 = scmp.ne.s32.totalorder %s436, %s437
    %p451 = scmp.eq.s32.totalorder %s79, 1
    %p452 = por %p450, %p451
    %p454 = scmp.ne.s32.totalorder %s437, %s453
    %p455 = scmp.eq.s32.totalorder %s79, 0
    %p456 = por %p454, %p455
    %s457 = ssub.s32 %s81, %s88
    %p458 = scmp.eq.s32.totalorder %s457, 0
    %s460 = sadd.s32 %s459, 1
    %s461 = scalar_select %p458, %s459, %s460
    %p464 = pneg %p458
    %p465 = scmp.eq.s32.totalorder %s73, 1
    %p466 = por %p464, %p465
    %p467 = scmp.ne.s32.totalorder %s459, %s462
    %p468 = scmp.eq.s32.totalorder %s73, 0
    %p469 = por %p467, %p468
    %p470 = scmp.ne.s32.totalorder %s459, %s462
    %p471 = scmp.eq.s32.totalorder %s78, 1
    %p472 = por %p470, %p471
    %p473 = scmp.ne.s32.totalorder %s462, %s463
    %p474 = scmp.eq.s32.totalorder %s78, 0
    %p475 = por %p473, %p474
    %p476 = scmp.ne.s32.totalorder %s462, %s463
    %p477 = scmp.eq.s32.totalorder %s79, 1
    %p478 = por %p476, %p477
    %p480 = scmp.ne.s32.totalorder %s463, %s479
    %p481 = scmp.eq.s32.totalorder %s79, 0
    %p482 = por %p480, %p481
    %s484 = sadd.s32 %s483, 1
    %p487 = scmp.eq.s32.totalorder %s73, 1
    %p488 = scmp.ne.s32.totalorder %s483, %s485
    %p489 = scmp.eq.s32.totalorder %s73, 0
    %p490 = por %p488, %p489
    %p491 = scmp.ne.s32.totalorder %s483, %s485
    %p492 = scmp.eq.s32.totalorder %s78, 1
    %p493 = por %p491, %p492
    %p494 = scmp.ne.s32.totalorder %s485, %s486
    %p495 = scmp.eq.s32.totalorder %s78, 0
    %p496 = por %p494, %p495
    %p497 = scmp.ne.s32.totalorder %s485, %s486
    %p498 = scmp.eq.s32.totalorder %s79, 1
    %p499 = por %p497, %p498
    %p501 = scmp.ne.s32.totalorder %s486, %s500
    %p502 = scmp.eq.s32.totalorder %s79, 0
    %p503 = por %p501, %p502
    %s505 = sadd.s32 %s504, 1
    %p508 = scmp.eq.s32.totalorder %s73, 1
    %p509 = scmp.ne.s32.totalorder %s504, %s506
    %p510 = scmp.eq.s32.totalorder %s73, 0
    %p511 = por %p509, %p510
    %p512 = scmp.ne.s32.totalorder %s504, %s506
    %p513 = scmp.eq.s32.totalorder %s78, 1
    %p514 = por %p512, %p513
    %p515 = scmp.ne.s32.totalorder %s506, %s507
    %p516 = scmp.eq.s32.totalorder %s78, 0
    %p517 = por %p515, %p516
    %p518 = scmp.ne.s32.totalorder %s506, %s507
    %p519 = scmp.eq.s32.totalorder %s79, 1
    %p520 = por %p518, %p519
    %p522 = scmp.ne.s32.totalorder %s507, %s521
    %p523 = scmp.eq.s32.totalorder %s79, 0
    %p524 = por %p522, %p523
    %s526 = sadd.s32 %s525, 1
    %p529 = scmp.eq.s32.totalorder %s73, 1
    %p530 = scmp.ne.s32.totalorder %s525, %s527
    %p531 = scmp.eq.s32.totalorder %s73, 0
    %p532 = por %p530, %p531
    %p533 = scmp.ne.s32.totalorder %s525, %s527
    %p534 = scmp.eq.s32.totalorder %s78, 1
    %p535 = por %p533, %p534
    %p536 = scmp.ne.s32.totalorder %s527, %s528
    %p537 = scmp.eq.s32.totalorder %s78, 0
    %p538 = por %p536, %p537
    %p539 = scmp.ne.s32.totalorder %s527, %s528
    %p540 = scmp.eq.s32.totalorder %s79, 1
    %p541 = por %p539, %p540
    %p543 = scmp.ne.s32.totalorder %s528, %s542
    %p544 = scmp.eq.s32.totalorder %s79, 0
    %p545 = por %p543, %p544
    %s547 = sadd.s32 %s546, 1
    %p550 = scmp.eq.s32.totalorder %s73, 1
    %p551 = scmp.ne.s32.totalorder %s546, %s548
    %p552 = scmp.eq.s32.totalorder %s73, 0
    %p553 = por %p551, %p552
    %p554 = scmp.ne.s32.totalorder %s546, %s548
    %p555 = scmp.eq.s32.totalorder %s78, 1
    %p556 = por %p554, %p555
    %p557 = scmp.ne.s32.totalorder %s548, %s549
    %p558 = scmp.eq.s32.totalorder %s78, 0
    %p559 = por %p557, %p558
    %p560 = scmp.ne.s32.totalorder %s548, %s549
    %p561 = scmp.eq.s32.totalorder %s79, 1
    %p562 = por %p560, %p561
    %p564 = scmp.ne.s32.totalorder %s549, %s563
    %p565 = scmp.eq.s32.totalorder %s79, 0
    %p566 = por %p564, %p565
    %s568 = sadd.s32 %s567, 1
    %p571 = scmp.eq.s32.totalorder %s73, 1
    %p572 = scmp.ne.s32.totalorder %s567, %s569
    %p573 = scmp.eq.s32.totalorder %s73, 0
    %p574 = por %p572, %p573
    %p575 = scmp.ne.s32.totalorder %s567, %s569
    %p576 = scmp.eq.s32.totalorder %s78, 1
    %p577 = por %p575, %p576
    %p578 = scmp.ne.s32.totalorder %s569, %s570
    %p579 = scmp.eq.s32.totalorder %s78, 0
    %p580 = por %p578, %p579
    %p581 = scmp.ne.s32.totalorder %s569, %s570
    %p582 = scmp.eq.s32.totalorder %s79, 1
    %p583 = por %p581, %p582
    %p585 = scmp.ne.s32.totalorder %s570, %s584
    %p586 = scmp.eq.s32.totalorder %s79, 0
    %p587 = por %p585, %p586
    %s589 = sadd.s32 %s588, 1
    %p592 = scmp.eq.s32.totalorder %s73, 1
    %p593 = scmp.ne.s32.totalorder %s588, %s590
    %p594 = scmp.eq.s32.totalorder %s73, 0
    %p595 = por %p593, %p594
    %p596 = scmp.ne.s32.totalorder %s588, %s590
    %p597 = scmp.eq.s32.totalorder %s78, 1
    %p598 = por %p596, %p597
    %p599 = scmp.ne.s32.totalorder %s590, %s591
    %p600 = scmp.eq.s32.totalorder %s78, 0
    %p601 = por %p599, %p600
    %p602 = scmp.ne.s32.totalorder %s590, %s591
    %p603 = scmp.eq.s32.totalorder %s79, 1
    %p604 = por %p602, %p603
    %p606 = scmp.ne.s32.totalorder %s591, %s605
    %p607 = scmp.eq.s32.totalorder %s79, 0
    %p608 = por %p606, %p607
    %s610 = sadd.s32 %s609, 1
    %p613 = scmp.eq.s32.totalorder %s73, 1
    %p614 = scmp.ne.s32.totalorder %s609, %s611
    %p615 = scmp.eq.s32.totalorder %s73, 0
    %p616 = por %p614, %p615
    %p617 = scmp.ne.s32.totalorder %s609, %s611
    %p618 = scmp.eq.s32.totalorder %s78, 1
    %p619 = por %p617, %p618
    %p620 = scmp.ne.s32.totalorder %s611, %s612
    %p621 = scmp.eq.s32.totalorder %s78, 0
    %p622 = por %p620, %p621
    %p623 = scmp.ne.s32.totalorder %s611, %s612
    %p624 = scmp.eq.s32.totalorder %s79, 1
    %p625 = por %p623, %p624
    %p627 = scmp.ne.s32.totalorder %s612, %s626
    %p628 = scmp.eq.s32.totalorder %s79, 0
    %p629 = por %p627, %p628
    %s631 = sadd.s32 %s630, 1
    %p634 = scmp.eq.s32.totalorder %s73, 1
    %p635 = scmp.ne.s32.totalorder %s630, %s632
    %p636 = scmp.eq.s32.totalorder %s73, 0
    %p637 = por %p635, %p636
    %p638 = scmp.ne.s32.totalorder %s630, %s632
    %p639 = scmp.eq.s32.totalorder %s78, 1
    %p640 = por %p638, %p639
    %p641 = scmp.ne.s32.totalorder %s632, %s633
    %p642 = scmp.eq.s32.totalorder %s78, 0
    %p643 = por %p641, %p642
    %p644 = scmp.ne.s32.totalorder %s632, %s633
    %p645 = scmp.eq.s32.totalorder %s79, 1
    %p646 = por %p644, %p645
    %p648 = scmp.ne.s32.totalorder %s633, %s647
    %p649 = scmp.eq.s32.totalorder %s79, 0
    %p650 = por %p648, %p649
    %s652 = sadd.s32 %s651, 1
    %p655 = scmp.eq.s32.totalorder %s73, 1
    %p656 = scmp.ne.s32.totalorder %s651, %s653
    %p657 = scmp.eq.s32.totalorder %s73, 0
    %p658 = por %p656, %p657
    %p659 = scmp.ne.s32.totalorder %s651, %s653
    %p660 = scmp.eq.s32.totalorder %s78, 1
    %p661 = por %p659, %p660
    %p662 = scmp.ne.s32.totalorder %s653, %s654
    %p663 = scmp.eq.s32.totalorder %s78, 0
    %p664 = por %p662, %p663
    %p665 = scmp.ne.s32.totalorder %s653, %s654
    %p666 = scmp.eq.s32.totalorder %s79, 1
    %p667 = por %p665, %p666
    %p669 = scmp.ne.s32.totalorder %s654, %s668
    %p670 = scmp.eq.s32.totalorder %s79, 0
    %p671 = por %p669, %p670
    %s673 = sadd.s32 %s672, 1
    %p676 = scmp.eq.s32.totalorder %s73, 1
    %p677 = scmp.ne.s32.totalorder %s672, %s674
    %p678 = scmp.eq.s32.totalorder %s73, 0
    %p679 = por %p677, %p678
    %p680 = scmp.ne.s32.totalorder %s672, %s674
    %p681 = scmp.eq.s32.totalorder %s78, 1
    %p682 = por %p680, %p681
    %p683 = scmp.ne.s32.totalorder %s674, %s675
    %p684 = scmp.eq.s32.totalorder %s78, 0
    %p685 = por %p683, %p684
    %p686 = scmp.ne.s32.totalorder %s674, %s675
    %p687 = scmp.eq.s32.totalorder %s79, 1
    %p688 = por %p686, %p687
    %p690 = scmp.ne.s32.totalorder %s675, %s689
    %p691 = scmp.eq.s32.totalorder %s79, 0
    %p692 = por %p690, %p691
    %s694 = sadd.s32 %s693, 1
    %p697 = scmp.eq.s32.totalorder %s73, 1
    %p698 = scmp.ne.s32.totalorder %s693, %s695
    %p699 = scmp.eq.s32.totalorder %s73, 0
    %p700 = por %p698, %p699
    %p701 = scmp.ne.s32.totalorder %s693, %s695
    %p702 = scmp.eq.s32.totalorder %s78, 1
    %p703 = por %p701, %p702
    %p704 = scmp.ne.s32.totalorder %s695, %s696
    %p705 = scmp.eq.s32.totalorder %s78, 0
    %p706 = por %p704, %p705
    %p707 = scmp.ne.s32.totalorder %s695, %s696
    %p708 = scmp.eq.s32.totalorder %s79, 1
    %p709 = por %p707, %p708
    %p711 = scmp.ne.s32.totalorder %s696, %s710
    %p712 = scmp.eq.s32.totalorder %s79, 0
    %p713 = por %p711, %p712
    %s715 = sadd.s32 %s714, 1
    %p718 = scmp.eq.s32.totalorder %s73, 1
    %p719 = scmp.ne.s32.totalorder %s714, %s716
    %p720 = scmp.eq.s32.totalorder %s73, 0
    %p721 = por %p719, %p720
    %p722 = scmp.ne.s32.totalorder %s714, %s716
    %p723 = scmp.eq.s32.totalorder %s78, 1
    %p724 = por %p722, %p723
    %p725 = scmp.ne.s32.totalorder %s716, %s717
    %p726 = scmp.eq.s32.totalorder %s78, 0
    %p727 = por %p725, %p726
    %p728 = scmp.ne.s32.totalorder %s716, %s717
    %p729 = scmp.eq.s32.totalorder %s79, 1
    %p730 = por %p728, %p729
    %p732 = scmp.ne.s32.totalorder %s717, %s731
    %p733 = scmp.eq.s32.totalorder %s79, 0
    %p734 = por %p732, %p733
    %s736 = sadd.s32 %s735, 1
    %p739 = scmp.eq.s32.totalorder %s73, 1
    %p740 = scmp.ne.s32.totalorder %s735, %s737
    %p741 = scmp.eq.s32.totalorder %s73, 0
    %p742 = por %p740, %p741
    %p743 = scmp.ne.s32.totalorder %s735, %s737
    %p744 = scmp.eq.s32.totalorder %s78, 1
    %p745 = por %p743, %p744
    %p746 = scmp.ne.s32.totalorder %s737, %s738
    %p747 = scmp.eq.s32.totalorder %s78, 0
    %p748 = por %p746, %p747
    %p749 = scmp.ne.s32.totalorder %s737, %s738
    %p750 = scmp.eq.s32.totalorder %s79, 1
    %p751 = por %p749, %p750
    %p753 = scmp.ne.s32.totalorder %s738, %s752
    %p754 = scmp.eq.s32.totalorder %s79, 0
    %p755 = por %p753, %p754
    %s757 = sadd.s32 %s756, 1
    %p760 = scmp.eq.s32.totalorder %s73, 1
    %p761 = scmp.ne.s32.totalorder %s756, %s758
    %p762 = scmp.eq.s32.totalorder %s73, 0
    %p763 = por %p761, %p762
    %p764 = scmp.ne.s32.totalorder %s756, %s758
    %p765 = scmp.eq.s32.totalorder %s78, 1
    %p766 = por %p764, %p765
    %p767 = scmp.ne.s32.totalorder %s758, %s759
    %p768 = scmp.eq.s32.totalorder %s78, 0
    %p769 = por %p767, %p768
    %p770 = scmp.ne.s32.totalorder %s758, %s759
    %p771 = scmp.eq.s32.totalorder %s79, 1
    %p772 = por %p770, %p771
    %p774 = scmp.ne.s32.totalorder %s759, %s773
    %p775 = scmp.eq.s32.totalorder %s79, 0
    %p776 = por %p774, %p775
    %s778 = sadd.s32 %s777, 1
    %p781 = scmp.eq.s32.totalorder %s73, 1
    %p782 = scmp.ne.s32.totalorder %s777, %s779
    %p783 = scmp.eq.s32.totalorder %s73, 0
    %p784 = por %p782, %p783
    %p785 = scmp.ne.s32.totalorder %s777, %s779
    %p786 = scmp.eq.s32.totalorder %s78, 1
    %p787 = por %p785, %p786
    %p788 = scmp.ne.s32.totalorder %s779, %s780
    %p789 = scmp.eq.s32.totalorder %s78, 0
    %p790 = por %p788, %p789
    %p791 = scmp.ne.s32.totalorder %s779, %s780
    %p792 = scmp.eq.s32.totalorder %s79, 1
    %p793 = por %p791, %p792
    %p795 = scmp.ne.s32.totalorder %s780, %s794
    %p796 = scmp.eq.s32.totalorder %s79, 0
    %p797 = por %p795, %p796
    %s799 = sadd.s32 %s798, 1
    %p802 = scmp.eq.s32.totalorder %s73, 1
    %p803 = scmp.ne.s32.totalorder %s798, %s800
    %p804 = scmp.eq.s32.totalorder %s73, 0
    %p805 = por %p803, %p804
    %p806 = scmp.ne.s32.totalorder %s798, %s800
    %p807 = scmp.eq.s32.totalorder %s78, 1
    %p808 = por %p806, %p807
    %p809 = scmp.ne.s32.totalorder %s800, %s801
    %p810 = scmp.eq.s32.totalorder %s78, 0
    %p811 = por %p809, %p810
    %p812 = scmp.ne.s32.totalorder %s800, %s801
    %p813 = scmp.eq.s32.totalorder %s79, 1
    %p814 = por %p812, %p813
    %p816 = scmp.ne.s32.totalorder %s801, %s815
    %p817 = scmp.eq.s32.totalorder %s79, 0
    %p818 = por %p816, %p817
    %s820 = sadd.s32 %s819, 1
    %p823 = scmp.eq.s32.totalorder %s73, 1
    %p824 = scmp.ne.s32.totalorder %s819, %s821
    %p825 = scmp.eq.s32.totalorder %s73, 0
    %p826 = por %p824, %p825
    %p827 = scmp.ne.s32.totalorder %s819, %s821
    %p828 = scmp.eq.s32.totalorder %s78, 1
    %p829 = por %p827, %p828
    %p830 = scmp.ne.s32.totalorder %s821, %s822
    %p831 = scmp.eq.s32.totalorder %s78, 0
    %p832 = por %p830, %p831
    %p833 = scmp.ne.s32.totalorder %s821, %s822
    %p834 = scmp.eq.s32.totalorder %s79, 1
    %p835 = por %p833, %p834
    %p837 = scmp.ne.s32.totalorder %s822, %s836
    %p838 = scmp.eq.s32.totalorder %s79, 0
    %p839 = por %p837, %p838
    %s841 = sadd.s32 %s840, 1
    %p844 = scmp.eq.s32.totalorder %s73, 1
    %p845 = scmp.ne.s32.totalorder %s840, %s842
    %p846 = scmp.eq.s32.totalorder %s73, 0
    %p847 = por %p845, %p846
    %p848 = scmp.ne.s32.totalorder %s840, %s842
    %p849 = scmp.eq.s32.totalorder %s78, 1
    %p850 = por %p848, %p849
    %p851 = scmp.ne.s32.totalorder %s842, %s843
    %p852 = scmp.eq.s32.totalorder %s78, 0
    %p853 = por %p851, %p852
    %p854 = scmp.ne.s32.totalorder %s842, %s843
    %p855 = scmp.eq.s32.totalorder %s79, 1
    %p856 = por %p854, %p855
    %p858 = scmp.ne.s32.totalorder %s843, %s857
    %p859 = scmp.eq.s32.totalorder %s79, 0
    %p860 = por %p858, %p859
    %s861 = ssub.s32 %s80, %s92
    %p862 = scmp.eq.s32.totalorder %s861, 0
    %s864 = sadd.s32 %s863, 1
    %s865 = scalar_select %p862, %s863, %s864
    %p868 = pneg %p862
    %p869 = scmp.eq.s32.totalorder %s73, 1
    %p870 = por %p868, %p869
    %p871 = scmp.ne.s32.totalorder %s863, %s866
    %p872 = scmp.eq.s32.totalorder %s73, 0
    %p873 = por %p871, %p872
    %p874 = scmp.ne.s32.totalorder %s863, %s866
    %p875 = scmp.eq.s32.totalorder %s78, 1
    %p876 = por %p874, %p875
    %p877 = scmp.ne.s32.totalorder %s866, %s867
    %p878 = scmp.eq.s32.totalorder %s78, 0
    %p879 = por %p877, %p878
    %p880 = scmp.ne.s32.totalorder %s866, %s867
    %p881 = scmp.eq.s32.totalorder %s79, 1
    %p882 = por %p880, %p881
    %p884 = scmp.ne.s32.totalorder %s867, %s883
    %p885 = scmp.eq.s32.totalorder %s79, 0
    %p886 = por %p884, %p885
    %p887 = scmp.le.s32.totalorder 1, %s73
    %p888 = scmp.lt.s32.totalorder %s73, 3
    %p889 = pnand %p887, %p888
    %p890 = pneg %p889
    // Predicated region
    $region9: #{residual_group_forward.1} parent=5 // pred_check
      _
    $region10: #{residual_group_forward.1} parent=5 // pred_check_branch
      %892 = sbr.rel (%p889) target = $region12
    $region11: #{residual_group_forward.1} parent=5 // pred_region
      %s893 = ssub.s32 %s73, 1
      // Predicated region
      $region13: #{residual_group_forward.1} parent=11 // pred_check
        %p894 = pneg %p111
      $region14: #{residual_group_forward.1} parent=11 // pred_check_branch
        %896 = sbr.rel (%p894) target = $region16
      $region15: #{residual_group_forward.1} parent=11 // pred_region
        %s897 = smul.u32 2, %s82
        %p898 = scmp.lt.s32.totalorder %s897, 1
        %s899 = scalar_select %p898, %s897, 1
        %s900 = smul.addr %s899, 4
        %s901 = smul.addr %s900, 8
        %s902 = scalar_lea.vmem %s1, %s901
        %s903 = smul.u32 2, %s82
      $region16: #{residual_group_forward.1} parent=11 // pred_fallthru
        _
      // Predicated region
      $region17: #{residual_group_forward.1} parent=11 // pred_check
        %p904 = pneg %p496
      $region18: #{residual_group_forward.1} parent=11 // pred_check_branch
        %906 = sbr.rel (%p904) target = $region20
      $region19: #{residual_group_forward.1} parent=11 // pred_region
        _
      $region20: #{residual_group_forward.1} parent=11 // pred_fallthru
        _
      // Predicated region
      $region21: #{residual_group_forward.1} parent=11 // pred_check
        %p907 = pneg %p517
      $region22: #{residual_group_forward.1} parent=11 // pred_check_branch
        %909 = sbr.rel (%p907) target = $region24
      $region23: #{residual_group_forward.1} parent=11 // pred_region
        _
      $region24: #{residual_group_forward.1} parent=11 // pred_fallthru
        _
      // Predicated region
      $region25: #{residual_group_forward.1} parent=11 // pred_check
        %p910 = pneg %p538
      $region26: #{residual_group_forward.1} parent=11 // pred_check_branch
        %912 = sbr.rel (%p910) target = $region28
      $region27: #{residual_group_forward.1} parent=11 // pred_region
        _
      $region28: #{residual_group_forward.1} parent=11 // pred_fallthru
        _
      // Predicated region
      $region29: #{residual_group_forward.1} parent=11 // pred_check
        %p913 = pneg %p559
      $region30: #{residual_group_forward.1} parent=11 // pred_check_branch
        %915 = sbr.rel (%p913) target = $region32
      $region31: #{residual_group_forward.1} parent=11 // pred_region
        _
      $region32: #{residual_group_forward.1} parent=11 // pred_fallthru
        _
      // Predicated region
      $region33: #{residual_group_forward.1} parent=11 // pred_check
        %p916 = pneg %p580
      $region34: #{residual_group_forward.1} parent=11 // pred_check_branch
        %918 = sbr.rel (%p916) target = $region36
      $region35: #{residual_group_forward.1} parent=11 // pred_region
        _
      $region36: #{residual_group_forward.1} parent=11 // pred_fallthru
        _
      // Predicated region
      $region37: #{residual_group_forward.1} parent=11 // pred_check
        %p919 = pneg %p601
      $region38: #{residual_group_forward.1} parent=11 // pred_check_branch
        %921 = sbr.rel (%p919) target = $region40
      $region39: #{residual_group_forward.1} parent=11 // pred_region
        _
      $region40: #{residual_group_forward.1} parent=11 // pred_fallthru
        _
      // Predicated region
      $region41: #{residual_group_forward.1} parent=11 // pred_check
        %p922 = pneg %p622
      $region42: #{residual_group_forward.1} parent=11 // pred_check_branch
        %924 = sbr.rel (%p922) target = $region44
      $region43: #{residual_group_forward.1} parent=11 // pred_region
        _
      $region44: #{residual_group_forward.1} parent=11 // pred_fallthru
        _
      // Predicated region
      $region45: #{residual_group_forward.1} parent=11 // pred_check
        %p925 = pneg %p643
      $region46: #{residual_group_forward.1} parent=11 // pred_check_branch
        %927 = sbr.rel (%p925) target = $region48
      $region47: #{residual_group_forward.1} parent=11 // pred_region
        _
      $region48: #{residual_group_forward.1} parent=11 // pred_fallthru
        _
      // Predicated region
      $region49: #{residual_group_forward.1} parent=11 // pred_check
        %p928 = pneg %p664
      $region50: #{residual_group_forward.1} parent=11 // pred_check_branch
        %930 = sbr.rel (%p928) target = $region52
      $region51: #{residual_group_forward.1} parent=11 // pred_region
        _
      $region52: #{residual_group_forward.1} parent=11 // pred_fallthru
        _
      // Predicated region
      $region53: #{residual_group_forward.1} parent=11 // pred_check
        %p931 = pneg %p685
      $region54: #{residual_group_forward.1} parent=11 // pred_check_branch
        %933 = sbr.rel (%p931) target = $region56
      $region55: #{residual_group_forward.1} parent=11 // pred_region
        _
      $region56: #{residual_group_forward.1} parent=11 // pred_fallthru
        _
      // Predicated region
      $region57: #{residual_group_forward.1} parent=11 // pred_check
        %p934 = pneg %p706
      $region58: #{residual_group_forward.1} parent=11 // pred_check_branch
        %936 = sbr.rel (%p934) target = $region60
      $region59: #{residual_group_forward.1} parent=11 // pred_region
        _
      $region60: #{residual_group_forward.1} parent=11 // pred_fallthru
        _
      // Predicated region
      $region61: #{residual_group_forward.1} parent=11 // pred_check
        %p937 = pneg %p727
      $region62: #{residual_group_forward.1} parent=11 // pred_check_branch
        %939 = sbr.rel (%p937) target = $region64
      $region63: #{residual_group_forward.1} parent=11 // pred_region
        _
      $region64: #{residual_group_forward.1} parent=11 // pred_fallthru
        _
      // Predicated region
      $region65: #{residual_group_forward.1} parent=11 // pred_check
        %p940 = pneg %p748
      $region66: #{residual_group_forward.1} parent=11 // pred_check_branch
        %942 = sbr.rel (%p940) target = $region68
      $region67: #{residual_group_forward.1} parent=11 // pred_region
        _
      $region68: #{residual_group_forward.1} parent=11 // pred_fallthru
        _
      // Predicated region
      $region69: #{residual_group_forward.1} parent=11 // pred_check
        %p943 = pneg %p769
      $region70: #{residual_group_forward.1} parent=11 // pred_check_branch
        %945 = sbr.rel (%p943) target = $region72
      $region71: #{residual_group_forward.1} parent=11 // pred_region
        _
      $region72: #{residual_group_forward.1} parent=11 // pred_fallthru
        _
      // Predicated region
      $region73: #{residual_group_forward.1} parent=11 // pred_check
        %p946 = pneg %p790
      $region74: #{residual_group_forward.1} parent=11 // pred_check_branch
        %948 = sbr.rel (%p946) target = $region76
      $region75: #{residual_group_forward.1} parent=11 // pred_region
        _
      $region76: #{residual_group_forward.1} parent=11 // pred_fallthru
        _
      // Predicated region
      $region77: #{residual_group_forward.1} parent=11 // pred_check
        %p949 = pneg %p811
      $region78: #{residual_group_forward.1} parent=11 // pred_check_branch
        %951 = sbr.rel (%p949) target = $region80
      $region79: #{residual_group_forward.1} parent=11 // pred_region
        _
      $region80: #{residual_group_forward.1} parent=11 // pred_fallthru
        _
      // Predicated region
      $region81: #{residual_group_forward.1} parent=11 // pred_check
        %p952 = pneg %p832
      $region82: #{residual_group_forward.1} parent=11 // pred_check_branch
        %954 = sbr.rel (%p952) target = $region84
      $region83: #{residual_group_forward.1} parent=11 // pred_region
        _
      $region84: #{residual_group_forward.1} parent=11 // pred_fallthru
        _
      // Predicated region
      $region85: #{residual_group_forward.1} parent=11 // pred_check
        %p955 = pneg %p853
      $region86: #{residual_group_forward.1} parent=11 // pred_check_branch
        %957 = sbr.rel (%p955) target = $region88
      $region87: #{residual_group_forward.1} parent=11 // pred_region
        _
      $region88: #{residual_group_forward.1} parent=11 // pred_fallthru
        _
    $region12: #{residual_group_forward.1} parent=5 // pred_fallthru
      _
    %p958 = scmp.lt.s32.totalorder %s73, 2
    // Predicated region
    $region89: #{residual_group_forward.1} parent=5 // pred_check
      %p959 = pneg %p958
    $region90: #{residual_group_forward.1} parent=5 // pred_check_branch
      %961 = sbr.rel (%p959) target = $region92
    $region91: #{residual_group_forward.1} parent=5 // pred_region
      // Predicated region
      $region93: #{residual_group_forward.1} parent=91 // pred_check
        %p962 = pneg %p131
      $region94: #{residual_group_forward.1} parent=91 // pred_check_branch
        %964 = sbr.rel (%p962) target = $region96
      $region95: #{residual_group_forward.1} parent=91 // pred_region
        %p965 = scmp.lt.s32.totalorder %s81, 1
        %s966 = scalar_select %p965, %s81, 1
        %s967 = smul.addr %s966, 192
        %s968 = smul.addr %s967, 4
        %s969 = scalar_lea.vmem %s3, %s968
      $region96: #{residual_group_forward.1} parent=91 // pred_fallthru
        _
      // Predicated region
      $region97: #{residual_group_forward.1} parent=91 // pred_check
        %p970 = pneg %p157
      $region98: #{residual_group_forward.1} parent=91 // pred_check_branch
        %972 = sbr.rel (%p970) target = $region100
      $region99: #{residual_group_forward.1} parent=91 // pred_region
        %p973 = scmp.lt.s32.totalorder %s81, 1
        %s974 = scalar_select %p973, %s81, 1
        %s975 = smul.addr %s974, 2
        %s976 = scalar_lea.vmem %s5, %s975
      $region100: #{residual_group_forward.1} parent=91 // pred_fallthru
        _
      // Predicated region
      $region101: #{residual_group_forward.1} parent=91 // pred_check
        %p977 = pneg %p183
      $region102: #{residual_group_forward.1} parent=91 // pred_check_branch
        %979 = sbr.rel (%p977) target = $region104
      $region103: #{residual_group_forward.1} parent=91 // pred_region
        %p980 = scmp.lt.s32.totalorder %s81, 1
        %s981 = scalar_select %p980, %s81, 1
        %s982 = smul.addr %s981, 192
        %s983 = smul.addr %s982, 4
        %s984 = scalar_lea.vmem %s7, %s983
      $region104: #{residual_group_forward.1} parent=91 // pred_fallthru
        _
      // Predicated region
      $region105: #{residual_group_forward.1} parent=91 // pred_check
        %p985 = pneg %p209
      $region106: #{residual_group_forward.1} parent=91 // pred_check_branch
        %987 = sbr.rel (%p985) target = $region108
      $region107: #{residual_group_forward.1} parent=91 // pred_region
        %p988 = scmp.lt.s32.totalorder %s81, 1
        %s989 = scalar_select %p988, %s81, 1
        %s990 = smul.addr %s989, 2
        %s991 = scalar_lea.vmem %s9, %s990
      $region108: #{residual_group_forward.1} parent=91 // pred_fallthru
        _
      // Predicated region
      $region109: #{residual_group_forward.1} parent=91 // pred_check
        %p992 = pneg %p235
      $region110: #{residual_group_forward.1} parent=91 // pred_check_branch
        %994 = sbr.rel (%p992) target = $region112
      $region111: #{residual_group_forward.1} parent=91 // pred_region
        %p995 = scmp.lt.s32.totalorder %s81, 1
        %s996 = scalar_select %p995, %s81, 1
        %s997 = smul.addr %s996, 64
        %s998 = smul.addr %s997, 4
        %s999 = scalar_lea.vmem %s11, %s998
      $region112: #{residual_group_forward.1} parent=91 // pred_fallthru
        _
      // Predicated region
      $region113: #{residual_group_forward.1} parent=91 // pred_check
        %p1000 = pneg %p261
      $region114: #{residual_group_forward.1} parent=91 // pred_check_branch
        %1002 = sbr.rel (%p1000) target = $region116
      $region115: #{residual_group_forward.1} parent=91 // pred_region
        %p1003 = scmp.lt.s32.totalorder %s81, 1
        %s1004 = scalar_select %p1003, %s81, 1
        %s1005 = smul.addr %s1004, 2
        %s1006 = scalar_lea.vmem %s13, %s1005
      $region116: #{residual_group_forward.1} parent=91 // pred_fallthru
        _
      // Predicated region
      $region117: #{residual_group_forward.1} parent=91 // pred_check
        %p1007 = pneg %p287
      $region118: #{residual_group_forward.1} parent=91 // pred_check_branch
        %1009 = sbr.rel (%p1007) target = $region120
      $region119: #{residual_group_forward.1} parent=91 // pred_region
        %p1010 = scmp.lt.s32.totalorder %s81, 1
        %s1011 = scalar_select %p1010, %s81, 1
        %s1012 = smul.addr %s1011, 32
        %s1013 = smul.addr %s1012, 4
        %s1014 = scalar_lea.vmem %s15, %s1013
      $region120: #{residual_group_forward.1} parent=91 // pred_fallthru
        _
      // Predicated region
      $region121: #{residual_group_forward.1} parent=91 // pred_check
        %p1015 = pneg %p313
      $region122: #{residual_group_forward.1} parent=91 // pred_check_branch
        %1017 = sbr.rel (%p1015) target = $region124
      $region123: #{residual_group_forward.1} parent=91 // pred_region
        %p1018 = scmp.lt.s32.totalorder %s81, 1
        %s1019 = scalar_select %p1018, %s81, 1
        %s1020 = scalar_lea.vmem %s17, %s1019
      $region124: #{residual_group_forward.1} parent=91 // pred_fallthru
        _
      // Predicated region
      $region125: #{residual_group_forward.1} parent=91 // pred_check
        %p1021 = pneg %p339
      $region126: #{residual_group_forward.1} parent=91 // pred_check_branch
        %1023 = sbr.rel (%p1021) target = $region128
      $region127: #{residual_group_forward.1} parent=91 // pred_region
        %p1024 = scmp.lt.s32.totalorder %s81, 1
        %s1025 = scalar_select %p1024, %s81, 1
        %s1026 = smul.addr %s1025, 16
        %s1027 = smul.addr %s1026, 4
        %s1028 = scalar_lea.vmem %s19, %s1027
      $region128: #{residual_group_forward.1} parent=91 // pred_fallthru
        _
      // Predicated region
      $region129: #{residual_group_forward.1} parent=91 // pred_check
        %p1029 = pneg %p365
      $region130: #{residual_group_forward.1} parent=91 // pred_check_branch
        %1031 = sbr.rel (%p1029) target = $region132
      $region131: #{residual_group_forward.1} parent=91 // pred_region
        %p1032 = scmp.lt.s32.totalorder %s81, 1
        %s1033 = scalar_select %p1032, %s81, 1
        %s1034 = scalar_lea.vmem %s21, %s1033
      $region132: #{residual_group_forward.1} parent=91 // pred_fallthru
        _
      // Predicated region
      $region133: #{residual_group_forward.1} parent=91 // pred_check
        %p1035 = pneg %p391
      $region134: #{residual_group_forward.1} parent=91 // pred_check_branch
        %1037 = sbr.rel (%p1035) target = $region136
      $region135: #{residual_group_forward.1} parent=91 // pred_region
        %p1038 = scmp.lt.s32.totalorder %s81, 1
        %s1039 = scalar_select %p1038, %s81, 1
        %s1040 = smul.addr %s1039, 16
        %s1041 = smul.addr %s1040, 4
        %s1042 = scalar_lea.vmem %s23, %s1041
      $region136: #{residual_group_forward.1} parent=91 // pred_fallthru
        _
      // Predicated region
      $region137: #{residual_group_forward.1} parent=91 // pred_check
        %p1043 = pneg %p417
      $region138: #{residual_group_forward.1} parent=91 // pred_check_branch
        %1045 = sbr.rel (%p1043) target = $region140
      $region139: #{residual_group_forward.1} parent=91 // pred_region
        %p1046 = scmp.lt.s32.totalorder %s81, 1
        %s1047 = scalar_select %p1046, %s81, 1
        %s1048 = scalar_lea.vmem %s25, %s1047
      $region140: #{residual_group_forward.1} parent=91 // pred_fallthru
        _
      // Predicated region
      $region141: #{residual_group_forward.1} parent=91 // pred_check
        %p1049 = pneg %p443
      $region142: #{residual_group_forward.1} parent=91 // pred_check_branch
        %1051 = sbr.rel (%p1049) target = $region144
      $region143: #{residual_group_forward.1} parent=91 // pred_region
        %p1052 = scmp.lt.s32.totalorder %s81, 1
        %s1053 = scalar_select %p1052, %s81, 1
        %s1054 = smul.addr %s1053, 160
        %s1055 = smul.addr %s1054, 4
        %s1056 = scalar_lea.vmem %s27, %s1055
      $region144: #{residual_group_forward.1} parent=91 // pred_fallthru
        _
      // Predicated region
      $region145: #{residual_group_forward.1} parent=91 // pred_check
        %p1057 = pneg %p469
      $region146: #{residual_group_forward.1} parent=91 // pred_check_branch
        %1059 = sbr.rel (%p1057) target = $region148
      $region147: #{residual_group_forward.1} parent=91 // pred_region
        %p1060 = scmp.lt.s32.totalorder %s81, 1
        %s1061 = scalar_select %p1060, %s81, 1
        %s1062 = smul.addr %s1061, 2
        %s1063 = scalar_lea.vmem %s29, %s1062
      $region148: #{residual_group_forward.1} parent=91 // pred_fallthru
        _
    $region92: #{residual_group_forward.1} parent=5 // pred_fallthru
      _
    %p1064 = scmp.le.s32.totalorder 1, %s73
    %p1065 = scmp.lt.s32.totalorder %s73, 3
    %p1066 = pnand %p1064, %p1065
    %p1067 = pneg %p1066
    // Predicated region
    $region149: #{residual_group_forward.1} parent=5 // pred_check
      _
    $region150: #{residual_group_forward.1} parent=5 // pred_check_branch
      %1069 = sbr.rel (%p1066) target = $region152
    $region151: #{residual_group_forward.1} parent=5 // pred_region
      %s1070 = ssub.s32 %s73, 1
      %s1071 = smul.u32 2, %s82
      %p1072 = scmp.lt.s32.totalorder %s1071, 1
      %s1073 = scalar_select %p1072, %s1071, 1
      %s1074 = smul.addr %s1073, 4
      %s1075 = smul.addr %s1074, 8
      %s1076 = scalar_lea.vmem %s1, %s1075
      %p1077 = pneg %p111
      %p1078 = pneg %p108
      %p1079 = scmp.lt.s32.totalorder %s83, 1
      %s1080 = scalar_select %p1079, %s83, 1
      %s1081 = smul.addr %s1080, 192
      %s1082 = smul.addr %s1081, 4
      %s1083 = scalar_lea.vmem %s3, %s1082
      %p1084 = pneg %p137
      %p1085 = pneg %p134
      %p1086 = scmp.lt.s32.totalorder %s83, 1
      %s1087 = scalar_select %p1086, %s83, 1
      %s1088 = smul.addr %s1087, 2
      %s1089 = scalar_lea.vmem %s5, %s1088
      %p1090 = pneg %p163
      %p1091 = pneg %p160
      %p1092 = scmp.lt.s32.totalorder %s83, 1
      %s1093 = scalar_select %p1092, %s83, 1
      %s1094 = smul.addr %s1093, 192
      %s1095 = smul.addr %s1094, 4
      %s1096 = scalar_lea.vmem %s7, %s1095
      %p1097 = pneg %p189
      %p1098 = pneg %p186
      %p1099 = scmp.lt.s32.totalorder %s83, 1
      %s1100 = scalar_select %p1099, %s83, 1
      %s1101 = smul.addr %s1100, 2
      %s1102 = scalar_lea.vmem %s9, %s1101
      %p1103 = pneg %p215
      %p1104 = pneg %p212
      %p1105 = scmp.lt.s32.totalorder %s83, 1
      %s1106 = scalar_select %p1105, %s83, 1
      %s1107 = smul.addr %s1106, 64
      %s1108 = smul.addr %s1107, 4
      %s1109 = scalar_lea.vmem %s11, %s1108
      %p1110 = pneg %p241
      %p1111 = pneg %p238
      %p1112 = scmp.lt.s32.totalorder %s83, 1
      %s1113 = scalar_select %p1112, %s83, 1
      %s1114 = smul.addr %s1113, 2
      %s1115 = scalar_lea.vmem %s13, %s1114
      %p1116 = pneg %p267
      %p1117 = pneg %p264
      %p1118 = scmp.lt.s32.totalorder %s83, 1
      %s1119 = scalar_select %p1118, %s83, 1
      %s1120 = smul.addr %s1119, 32
      %s1121 = smul.addr %s1120, 4
      %s1122 = scalar_lea.vmem %s15, %s1121
      %p1123 = pneg %p293
      %p1124 = pneg %p290
      %p1125 = scmp.lt.s32.totalorder %s83, 1
      %s1126 = scalar_select %p1125, %s83, 1
      %s1127 = scalar_lea.vmem %s17, %s1126
      %p1128 = pneg %p319
      %p1129 = pneg %p316
      %p1130 = scmp.lt.s32.totalorder %s83, 1
      %s1131 = scalar_select %p1130, %s83, 1
      %s1132 = smul.addr %s1131, 16
      %s1133 = smul.addr %s1132, 4
      %s1134 = scalar_lea.vmem %s19, %s1133
      %p1135 = pneg %p345
      %p1136 = pneg %p342
      %p1137 = scmp.lt.s32.totalorder %s83, 1
      %s1138 = scalar_select %p1137, %s83, 1
      %s1139 = scalar_lea.vmem %s21, %s1138
      %p1140 = pneg %p371
      %p1141 = pneg %p368
      %p1142 = scmp.lt.s32.totalorder %s83, 1
      %s1143 = scalar_select %p1142, %s83, 1
      %s1144 = smul.addr %s1143, 16
      %s1145 = smul.addr %s1144, 4
      %s1146 = scalar_lea.vmem %s23, %s1145
      %p1147 = pneg %p397
      %p1148 = pneg %p394
      %p1149 = scmp.lt.s32.totalorder %s83, 1
      %s1150 = scalar_select %p1149, %s83, 1
      %s1151 = scalar_lea.vmem %s25, %s1150
      %p1152 = pneg %p423
      %p1153 = pneg %p420
      %p1154 = scmp.lt.s32.totalorder %s83, 1
      %s1155 = scalar_select %p1154, %s83, 1
      %s1156 = smul.addr %s1155, 160
      %s1157 = smul.addr %s1156, 4
      %s1158 = scalar_lea.vmem %s27, %s1157
      %p1159 = pneg %p449
      %p1160 = pneg %p446
      %p1161 = scmp.lt.s32.totalorder %s83, 1
      %s1162 = scalar_select %p1161, %s83, 1
      %s1163 = smul.addr %s1162, 2
      %s1164 = scalar_lea.vmem %s29, %s1163
      %p1165 = pneg %p475
      %p1166 = pneg %p472
      %p1167 = pneg %p496
      %p1168 = pneg %p493
      %p1169 = pneg %p517
      %p1170 = pneg %p514
      %p1171 = pneg %p538
      %p1172 = pneg %p535
      %p1173 = pneg %p559
      %p1174 = pneg %p556
      %p1175 = pneg %p580
      %p1176 = pneg %p577
      %p1177 = pneg %p601
      %p1178 = pneg %p598
      %p1179 = pneg %p622
      %p1180 = pneg %p619
      %p1181 = pneg %p643
      %p1182 = pneg %p640
      %p1183 = pneg %p664
      %p1184 = pneg %p661
      %p1185 = pneg %p685
      %p1186 = pneg %p682
      %p1187 = pneg %p706
      %p1188 = pneg %p703
      %p1189 = pneg %p727
      %p1190 = pneg %p724
      %p1191 = pneg %p748
      %p1192 = pneg %p745
      %p1193 = pneg %p769
      %p1194 = pneg %p766
      %p1195 = pneg %p790
      %p1196 = pneg %p787
      %p1197 = pneg %p811
      %p1198 = pneg %p808
      %p1199 = pneg %p832
      %p1200 = pneg %p829
      %p1201 = pneg %p853
      %p1202 = pneg %p850
      %p1203 = pneg %p879
      %p1204 = pneg %p876
      %s1205 = smul.u32 2, %s82
      %p1206 = scmp.lt.s32.totalorder %s1205, 1
      %s1207 = scalar_select %p1206, %s1205, 1
      %s1208 = smul.addr %s1207, 4
      %s1209 = smul.addr %s1208, 8
      %s1210 = scalar_lea.vmem %s67, %s1209
      %s1211 = smul.u32 2, %s82
      %p1212 = scmp.lt.s32.totalorder %s1211, 1
      %s1213 = scalar_select %p1212, %s1211, 1
      %s1214 = smul.addr %s1213, 4
      %s1215 = smul.addr %s1214, 8
      %s1216 = scalar_lea.vmem %s1, %s1215
      %s1217 = smul.u32 2, %s82
      %p1218 = scmp.lt.s32.totalorder %s83, 1
      %s1219 = scalar_select %p1218, %s83, 1
      %s1220 = smul.addr %s1219, 192
      %s1221 = smul.addr %s1220, 4
      %s1222 = scalar_lea.vmem %s3, %s1221
      %p1223 = scmp.lt.s32.totalorder %s83, 1
      %s1224 = scalar_select %p1223, %s83, 1
      %s1225 = smul.addr %s1224, 2
      %s1226 = scalar_lea.vmem %s5, %s1225
      %p1227 = scmp.lt.s32.totalorder %s83, 1
      %s1228 = scalar_select %p1227, %s83, 1
      %s1229 = smul.addr %s1228, 192
      %s1230 = smul.addr %s1229, 4
      %s1231 = scalar_lea.vmem %s7, %s1230
      %p1232 = scmp.lt.s32.totalorder %s83, 1
      %s1233 = scalar_select %p1232, %s83, 1
      %s1234 = smul.addr %s1233, 2
      %s1235 = scalar_lea.vmem %s9, %s1234
      %p1236 = scmp.lt.s32.totalorder %s83, 1
      %s1237 = scalar_select %p1236, %s83, 1
      %s1238 = smul.addr %s1237, 64
      %s1239 = smul.addr %s1238, 4
      %s1240 = scalar_lea.vmem %s11, %s1239
      %p1241 = scmp.lt.s32.totalorder %s83, 1
      %s1242 = scalar_select %p1241, %s83, 1
      %s1243 = smul.addr %s1242, 2
      %s1244 = scalar_lea.vmem %s13, %s1243
      %p1245 = scmp.lt.s32.totalorder %s83, 1
      %s1246 = scalar_select %p1245, %s83, 1
      %s1247 = smul.addr %s1246, 32
      %s1248 = smul.addr %s1247, 4
      %s1249 = scalar_lea.vmem %s15, %s1248
      %p1250 = scmp.lt.s32.totalorder %s83, 1
      %s1251 = scalar_select %p1250, %s83, 1
      %s1252 = scalar_lea.vmem %s17, %s1251
      %p1253 = scmp.lt.s32.totalorder %s83, 1
      %s1254 = scalar_select %p1253, %s83, 1
      %s1255 = smul.addr %s1254, 16
      %s1256 = smul.addr %s1255, 4
      %s1257 = scalar_lea.vmem %s19, %s1256
      %p1258 = scmp.lt.s32.totalorder %s83, 1
      %s1259 = scalar_select %p1258, %s83, 1
      %s1260 = scalar_lea.vmem %s21, %s1259
      %p1261 = scmp.lt.s32.totalorder %s83, 1
      %s1262 = scalar_select %p1261, %s83, 1
      %s1263 = smul.addr %s1262, 16
      %s1264 = smul.addr %s1263, 4
      %s1265 = scalar_lea.vmem %s23, %s1264
      %p1266 = scmp.lt.s32.totalorder %s83, 1
      %s1267 = scalar_select %p1266, %s83, 1
      %s1268 = scalar_lea.vmem %s25, %s1267
      %p1269 = scmp.lt.s32.totalorder %s83, 1
      %s1270 = scalar_select %p1269, %s83, 1
      %s1271 = smul.addr %s1270, 160
      %s1272 = smul.addr %s1271, 4
      %s1273 = scalar_lea.vmem %s27, %s1272
      %p1274 = scmp.lt.s32.totalorder %s83, 1
      %s1275 = scalar_select %p1274, %s83, 1
      %s1276 = smul.addr %s1275, 2
      %s1277 = scalar_lea.vmem %s29, %s1276
      %s1278 = smul.u32 2, %s82
      %p1279 = scmp.lt.s32.totalorder %s1278, 1
      %s1280 = scalar_select %p1279, %s1278, 1
      %s1281 = smul.addr %s1280, 4
      %s1282 = smul.addr %s1281, 8
      %s1283 = scalar_lea.vmem %s67, %s1282
      %s1284 = smul.u32 2, %s82
      %v1286 = vlaneseq
      %v1287 = vshrl.u32 %v1286, 7
      %v1288 = vadd.s32 %v1287, 8
      %v1289 = vadd.s32 %v1287, 16
      %v1290 = vadd.s32 %v1287, 24
      %vm1291 = vcmp.lt.s32.totalorder %v1287, 0
      %v1292 = vsub.s32 0, %v1287
      %v1293 = vsel %vm1291, %v1292, %v1287
      %v1294 = vshrl.u32 %v1293, 4
      %v1295 = vand.u32 %v1293, 15
      %v1296 = vsub.s32 0, %v1295
      %v1297 = vsel %vm1291, %v1296, %v1295
      %vm1298 = vcmp.lt.s32.totalorder %v1288, 0
      %v1299 = vsub.s32 0, %v1288
      %v1300 = vsel %vm1298, %v1299, %v1288
      %v1301 = vshrl.u32 %v1300, 4
      %v1302 = vand.u32 %v1300, 15
      %v1303 = vsub.s32 0, %v1302
      %v1304 = vsel %vm1298, %v1303, %v1302
      %vm1305 = vcmp.lt.s32.totalorder %v1289, 0
      %v1306 = vsub.s32 0, %v1289
      %v1307 = vsel %vm1305, %v1306, %v1289
      %v1308 = vshrl.u32 %v1307, 4
      %v1309 = vand.u32 %v1307, 15
      %v1310 = vsub.s32 0, %v1309
      %v1311 = vsel %vm1305, %v1310, %v1309
      %vm1312 = vcmp.lt.s32.totalorder %v1290, 0
      %v1313 = vsub.s32 0, %v1290
      %v1314 = vsel %vm1312, %v1313, %v1290
      %v1315 = vshrl.u32 %v1314, 4
      %v1316 = vand.u32 %v1314, 15
      %v1317 = vsub.s32 0, %v1316
      %v1318 = vsel %vm1312, %v1317, %v1316
      %vm1319 = vcmp.ne.s32.totalorder %v1297, 0
      %vm1320 = vcmp.ne.s32.totalorder %v1304, 0
      %vm1321 = vcmp.ne.s32.totalorder %v1311, 0
      %vm1322 = vcmp.ne.s32.totalorder %v1318, 0
      %vm1323 = vcmp.lt.s32.totalorder %v1297, 0
      %vm1324 = vcmp.lt.s32.totalorder %v1304, 0
      %vm1325 = vcmp.lt.s32.totalorder %v1311, 0
      %vm1326 = vcmp.lt.s32.totalorder %v1318, 0
      %vm1327 = vmand %vm1323, %vm1319
      %vm1328 = vmand %vm1324, %vm1320
      %vm1329 = vmand %vm1325, %vm1321
      %vm1330 = vmand %vm1326, %vm1322
      %v1331 = vadd.s32 %v1297, 16
      %v1332 = vadd.s32 %v1304, 16
      %v1333 = vadd.s32 %v1311, 16
      %v1334 = vadd.s32 %v1318, 16
      %v1335 = vsel %vm1327, %v1331, %v1297
      %v1336 = vsel %vm1328, %v1332, %v1304
      %v1337 = vsel %vm1329, %v1333, %v1311
      %v1338 = vsel %vm1330, %v1334, %v1318
      %vm1339 = vcmp.ne.s32.totalorder %v1335, 0
      %vm1340 = vcmp.ne.s32.totalorder %v1336, 0
      %vm1341 = vcmp.ne.s32.totalorder %v1337, 0
      %vm1342 = vcmp.ne.s32.totalorder %v1338, 0
      %v1343 = vsel %vm1339, 1, 0
      %v1344 = vsel %vm1340, 1, 0
      %v1345 = vsel %vm1341, 1, 0
      %v1346 = vsel %vm1342, 1, 0
      %v1347 = vcvt.s32.f32 %v1343
      %v1348 = vcvt.s32.f32 %v1344
      %v1349 = vcvt.s32.f32 %v1345
      %v1350 = vcvt.s32.f32 %v1346
      %vm1351 = vcmp.ne.s32.totalorder %v1335, 15
      %vm1352 = vcmp.ne.s32.totalorder %v1336, 15
      %vm1353 = vcmp.ne.s32.totalorder %v1337, 15
      %vm1354 = vcmp.ne.s32.totalorder %v1338, 15
      %v1355 = vsel %vm1351, 1, 0
      %v1356 = vsel %vm1352, 1, 0
      %v1357 = vsel %vm1353, 1, 0
      %v1358 = vsel %vm1354, 1, 0
      %v1359 = vcvt.s32.f32 %v1355
      %v1360 = vcvt.s32.f32 %v1356
      %v1361 = vcvt.s32.f32 %v1357
      %v1362 = vcvt.s32.f32 %v1358
      %p1363 = scmp.eq.s32.totalorder %s83, 0
      // Predicated region
      $region153: #{residual_group_forward.1} parent=151 // pred_check
        %p1364 = pneg %p1363
      $region154: #{residual_group_forward.1} parent=151 // pred_check_branch
        %1366 = sbr.rel (%p1364) target = $region156
      $region155: #{residual_group_forward.1} parent=151 // pred_region
        %v1367 = vld [vmem:[%s1216] sm:$0xff]
        %v1368 = vld [vmem:[%s1216 + $0x8] sm:$0xff]
        %v1369 = vld [vmem:[%s1216 + $0x10] sm:$0xff]
        %v1370 = vld [vmem:[%s1216 + $0x18] sm:$0xff]
        %v1371 = vld [vmem:[%s1216 + $0x20] sm:$0xff]
        %v1372 = vld [vmem:[%s1216 + $0x28] sm:$0xff]
        %v1373 = vld [vmem:[%s1216 + $0x30] sm:$0xff]
        %v1374 = vld [vmem:[%s1216 + $0x38] sm:$0xff]
        %1375 = vst [vmem:[#allocation2] sm:$0xff] %v1367
        %1376 = vst [vmem:[#allocation2 + $0x8] sm:$0xff] %v1368
        %1377 = vst [vmem:[#allocation2 + $0x10] sm:$0xff] %v1369
        %1378 = vst [vmem:[#allocation2 + $0x18] sm:$0xff] %v1370
        %1379 = vst [vmem:[#allocation2 + $0x20] sm:$0xff] %v1371
        %1380 = vst [vmem:[#allocation2 + $0x28] sm:$0xff] %v1372
        %1381 = vst [vmem:[#allocation2 + $0x30] sm:$0xff] %v1373
        %1382 = vst [vmem:[#allocation2 + $0x38] sm:$0xff] %v1374
      $region156: #{residual_group_forward.1} parent=151 // pred_fallthru
        _
      %v1383 = vld [vmem:[#allocation2] sm:$0xff]
      %v1384 = vld [vmem:[#allocation2 + $0x8] sm:$0xff]
      %v1385 = vld [vmem:[#allocation2 + $0x10] sm:$0xff]
      %v1386 = vld [vmem:[#allocation2 + $0x18] sm:$0xff]
      %v1387 = vld [vmem:[#allocation2 + $0x20] sm:$0xff]
      %v1388 = vld [vmem:[#allocation2 + $0x28] sm:$0xff]
      %v1389 = vld [vmem:[#allocation2 + $0x30] sm:$0xff]
      %v1390 = vld [vmem:[#allocation2 + $0x38] sm:$0xff]
      %v1391 = vld [vmem:[%s1222] sm:$0xff]
      %v1392 = vld [vmem:[%s1222 + $0x8] sm:$0xff]
      %v1393 = vld [vmem:[%s1222 + $0x10] sm:$0xff]
      %v1394 = vld [vmem:[%s1222 + $0x18] sm:$0xff]
      %v1395 = vld [vmem:[%s1222 + $0x20] sm:$0xff]
      %v1396 = vld [vmem:[%s1222 + $0x28] sm:$0xff]
      %v1397 = vld [vmem:[%s1222 + $0x30] sm:$0xff]
      %v1398 = vld [vmem:[%s1222 + $0x38] sm:$0xff]
      %v1399 = vld [vmem:[%s1222 + $0x40] sm:$0xff]
      %v1400 = vld [vmem:[%s1222 + $0x48] sm:$0xff]
      %v1401 = vld [vmem:[%s1222 + $0x50] sm:$0xff]
      %v1402 = vld [vmem:[%s1222 + $0x58] sm:$0xff]
      %v1403 = vld [vmem:[%s1222 + $0x60] sm:$0xff]
      %v1404 = vld [vmem:[%s1222 + $0x68] sm:$0xff]
      %v1405 = vld [vmem:[%s1222 + $0x70] sm:$0xff]
      %v1406 = vld [vmem:[%s1222 + $0x78] sm:$0xff]
      %v1407 = vld [vmem:[%s1222 + $0x80] sm:$0xff]
      %v1408 = vld [vmem:[%s1222 + $0x88] sm:$0xff]
      %v1409 = vld [vmem:[%s1222 + $0x90] sm:$0xff]
      %v1410 = vld [vmem:[%s1222 + $0x98] sm:$0xff]
      %v1411 = vld [vmem:[%s1222 + $0xa0] sm:$0xff]
      %v1412 = vld [vmem:[%s1222 + $0xa8] sm:$0xff]
      %v1413 = vld [vmem:[%s1222 + $0xb0] sm:$0xff]
      %v1414 = vld [vmem:[%s1222 + $0xb8] sm:$0xff]
      %v1415 = vld [vmem:[%s1222 + $0xc0] sm:$0xff]
      %v1416 = vld [vmem:[%s1222 + $0xc8] sm:$0xff]
      %v1417 = vld [vmem:[%s1222 + $0xd0] sm:$0xff]
      %v1418 = vld [vmem:[%s1222 + $0xd8] sm:$0xff]
      %v1419 = vld [vmem:[%s1222 + $0xe0] sm:$0xff]
      %v1420 = vld [vmem:[%s1222 + $0xe8] sm:$0xff]
      %v1421 = vld [vmem:[%s1222 + $0xf0] sm:$0xff]
      %v1422 = vld [vmem:[%s1222 + $0xf8] sm:$0xff]
      %s1423 = scalar_lea.vmem %s1222, 256
      %v1424 = vld [vmem:[%s1423] sm:$0xff]
      %v1425 = vld [vmem:[%s1423 + $0x8] sm:$0xff]
      %v1426 = vld [vmem:[%s1423 + $0x10] sm:$0xff]
      %v1427 = vld [vmem:[%s1423 + $0x18] sm:$0xff]
      %v1428 = vld [vmem:[%s1423 + $0x20] sm:$0xff]
      %v1429 = vld [vmem:[%s1423 + $0x28] sm:$0xff]
      %v1430 = vld [vmem:[%s1423 + $0x30] sm:$0xff]
      %v1431 = vld [vmem:[%s1423 + $0x38] sm:$0xff]
      %v1432 = vld [vmem:[%s1423 + $0x40] sm:$0xff]
      %v1433 = vld [vmem:[%s1423 + $0x48] sm:$0xff]
      %v1434 = vld [vmem:[%s1423 + $0x50] sm:$0xff]
      %v1435 = vld [vmem:[%s1423 + $0x58] sm:$0xff]
      %v1436 = vld [vmem:[%s1423 + $0x60] sm:$0xff]
      %v1437 = vld [vmem:[%s1423 + $0x68] sm:$0xff]
      %v1438 = vld [vmem:[%s1423 + $0x70] sm:$0xff]
      %v1439 = vld [vmem:[%s1423 + $0x78] sm:$0xff]
      %v1440 = vld [vmem:[%s1423 + $0x80] sm:$0xff]
      %v1441 = vld [vmem:[%s1423 + $0x88] sm:$0xff]
      %v1442 = vld [vmem:[%s1423 + $0x90] sm:$0xff]
      %v1443 = vld [vmem:[%s1423 + $0x98] sm:$0xff]
      %v1444 = vld [vmem:[%s1423 + $0xa0] sm:$0xff]
      %v1445 = vld [vmem:[%s1423 + $0xa8] sm:$0xff]
      %v1446 = vld [vmem:[%s1423 + $0xb0] sm:$0xff]
      %v1447 = vld [vmem:[%s1423 + $0xb8] sm:$0xff]
      %v1448 = vld [vmem:[%s1423 + $0xc0] sm:$0xff]
      %v1449 = vld [vmem:[%s1423 + $0xc8] sm:$0xff]
      %v1450 = vld [vmem:[%s1423 + $0xd0] sm:$0xff]
      %v1451 = vld [vmem:[%s1423 + $0xd8] sm:$0xff]
      %v1452 = vld [vmem:[%s1423 + $0xe0] sm:$0xff]
      %v1453 = vld [vmem:[%s1423 + $0xe8] sm:$0xff]
      %v1454 = vld [vmem:[%s1423 + $0xf0] sm:$0xff]
      %v1455 = vld [vmem:[%s1423 + $0xf8] sm:$0xff]
      %s1456 = scalar_lea.vmem %s1222, 512
      %v1457 = vld [vmem:[%s1456] sm:$0xff]
      %v1458 = vld [vmem:[%s1456 + $0x8] sm:$0xff]
      %v1459 = vld [vmem:[%s1456 + $0x10] sm:$0xff]
      %v1460 = vld [vmem:[%s1456 + $0x18] sm:$0xff]
      %v1461 = vld [vmem:[%s1456 + $0x20] sm:$0xff]
      %v1462 = vld [vmem:[%s1456 + $0x28] sm:$0xff]
      %v1463 = vld [vmem:[%s1456 + $0x30] sm:$0xff]
      %v1464 = vld [vmem:[%s1456 + $0x38] sm:$0xff]
      %v1465 = vld [vmem:[%s1456 + $0x40] sm:$0xff]
      %v1466 = vld [vmem:[%s1456 + $0x48] sm:$0xff]
      %v1467 = vld [vmem:[%s1456 + $0x50] sm:$0xff]
      %v1468 = vld [vmem:[%s1456 + $0x58] sm:$0xff]
      %v1469 = vld [vmem:[%s1456 + $0x60] sm:$0xff]
      %v1470 = vld [vmem:[%s1456 + $0x68] sm:$0xff]
      %v1471 = vld [vmem:[%s1456 + $0x70] sm:$0xff]
      %v1472 = vld [vmem:[%s1456 + $0x78] sm:$0xff]
      %v1473 = vld [vmem:[%s1456 + $0x80] sm:$0xff]
      %v1474 = vld [vmem:[%s1456 + $0x88] sm:$0xff]
      %v1475 = vld [vmem:[%s1456 + $0x90] sm:$0xff]
      %v1476 = vld [vmem:[%s1456 + $0x98] sm:$0xff]
      %v1477 = vld [vmem:[%s1456 + $0xa0] sm:$0xff]
      %v1478 = vld [vmem:[%s1456 + $0xa8] sm:$0xff]
      %v1479 = vld [vmem:[%s1456 + $0xb0] sm:$0xff]
      %v1480 = vld [vmem:[%s1456 + $0xb8] sm:$0xff]
      %v1481 = vld [vmem:[%s1456 + $0xc0] sm:$0xff]
      %v1482 = vld [vmem:[%s1456 + $0xc8] sm:$0xff]
      %v1483 = vld [vmem:[%s1456 + $0xd0] sm:$0xff]
      %v1484 = vld [vmem:[%s1456 + $0xd8] sm:$0xff]
      %v1485 = vld [vmem:[%s1456 + $0xe0] sm:$0xff]
      %v1486 = vld [vmem:[%s1456 + $0xe8] sm:$0xff]
      %v1487 = vld [vmem:[%s1456 + $0xf0] sm:$0xff]
      %v1488 = vld [vmem:[%s1456 + $0xf8] sm:$0xff]
      %v1489 = vld [vmem:[%s1226] sm:$0x3]
      %v1490 = vrot.slane %v1383, 7
      %v1491 = vrot.slane %v1384, 7
      %v1492 = vrot.slane %v1385, 7
      %v1493 = vrot.slane %v1386, 7
      %v1494 = vrot.slane %v1387, 7
      %v1495 = vrot.slane %v1388, 7
      %v1496 = vrot.slane %v1389, 7
      %v1497 = vrot.slane %v1390, 7
      %vm1498 = vcmp.lt.s32.totalorder %v1287, 1
      %v1499 = vsel %vm1498, %v1494, %v1496
      %v1500 = vsel %vm1498, %v1495, %v1497
      %v1501 = vsel %vm1498, %v1492, %v1494
      %v1502 = vsel %vm1498, %v1493, %v1495
      %v1503 = vsel %vm1498, %v1490, %v1492
      %v1504 = vsel %vm1498, %v1491, %v1493
      %v1505 = vsel %vm1498, %v1496, %v1490
      %v1506 = vsel %vm1498, %v1497, %v1491
      %v1507 = vmul.f32 %v1505, %v1347
      %v1508 = vmul.f32 %v1506, %v1347
      %v1509 = vmul.f32 %v1503, %v1348
      %v1510 = vmul.f32 %v1504, %v1348
      %v1511 = vmul.f32 %v1501, %v1349
      %v1512 = vmul.f32 %v1502, %v1349
      %v1513 = vmul.f32 %v1499, %v1350
      %v1514 = vmul.f32 %v1500, %v1350
      %v1515 = vpack.c.bf16 %v1509, %v1507
      %v1516 = vpack.c.bf16 %v1510, %v1508
      %v1517 = vpack.c.bf16 %v1513, %v1511
      %v1518 = vpack.c.bf16 %v1514, %v1512
      %v1519 = vrot.slane %v1383, 1
      %v1520 = vrot.slane %v1384, 1
      %v1521 = vrot.slane %v1385, 1
      %v1522 = vrot.slane %v1386, 1
      %v1523 = vrot.slane %v1387, 1
      %v1524 = vrot.slane %v1388, 1
      %v1525 = vrot.slane %v1389, 1
      %v1526 = vrot.slane %v1390, 1
      %vm1527 = vcmp.lt.s32.totalorder %v1287, 7
      %v1528 = vsel %vm1527, %v1523, %v1525
      %v1529 = vsel %vm1527, %v1524, %v1526
      %v1530 = vsel %vm1527, %v1521, %v1523
      %v1531 = vsel %vm1527, %v1522, %v1524
      %v1532 = vsel %vm1527, %v1519, %v1521
      %v1533 = vsel %vm1527, %v1520, %v1522
      %v1534 = vsel %vm1527, %v1525, %v1519
      %v1535 = vsel %vm1527, %v1526, %v1520
      %v1536 = vmul.f32 %v1532, %v1359
      %v1537 = vmul.f32 %v1533, %v1359
      %v1538 = vmul.f32 %v1530, %v1360
      %v1539 = vmul.f32 %v1531, %v1360
      %v1540 = vmul.f32 %v1528, %v1361
      %v1541 = vmul.f32 %v1529, %v1361
      %v1542 = vmul.f32 %v1534, %v1362
      %v1543 = vmul.f32 %v1535, %v1362
      %v1544 = vpack.c.bf16 %v1538, %v1536
      %v1545 = vpack.c.bf16 %v1539, %v1537
      %v1546 = vpack.c.bf16 %v1542, %v1540
      %v1547 = vpack.c.bf16 %v1543, %v1541
      %v1548 = vpack.c.bf16 %v1385, %v1383
      %v1549 = vpack.c.bf16 %v1386, %v1384
      %v1550 = vpack.c.bf16 %v1389, %v1387
      %v1551 = vpack.c.bf16 %v1390, %v1388
      %v1584 = vunpack.c.l.b16 %v1424
      %v1585 = vunpack.c.h.b16 %v1424
      %v1586 = vunpack.c.l.b16 %v1425
      %v1587 = vunpack.c.h.b16 %v1425
      %v1588 = vunpack.c.l.b16 %v1426
      %v1589 = vunpack.c.h.b16 %v1426
      %v1590 = vunpack.c.l.b16 %v1427
      %v1591 = vunpack.c.h.b16 %v1427
      %v1592 = vunpack.c.l.b16 %v1428
      %v1593 = vunpack.c.h.b16 %v1428
      %v1594 = vunpack.c.l.b16 %v1429
      %v1595 = vunpack.c.h.b16 %v1429
      %v1596 = vunpack.c.l.b16 %v1430
      %v1597 = vunpack.c.h.b16 %v1430
      %v1598 = vunpack.c.l.b16 %v1431
      %v1599 = vunpack.c.h.b16 %v1431
      %v1600 = vunpack.c.l.b16 %v1432
      %v1601 = vunpack.c.h.b16 %v1432
      %v1602 = vunpack.c.l.b16 %v1433
      %v1603 = vunpack.c.h.b16 %v1433
      %v1604 = vunpack.c.l.b16 %v1434
      %v1605 = vunpack.c.h.b16 %v1434
      %v1606 = vunpack.c.l.b16 %v1435
      %v1607 = vunpack.c.h.b16 %v1435
      %v1608 = vunpack.c.l.b16 %v1436
      %v1609 = vunpack.c.h.b16 %v1436
      %v1610 = vunpack.c.l.b16 %v1437
      %v1611 = vunpack.c.h.b16 %v1437
      %v1612 = vunpack.c.l.b16 %v1438
      %v1613 = vunpack.c.h.b16 %v1438
      %v1614 = vunpack.c.l.b16 %v1439
      %v1615 = vunpack.c.h.b16 %v1439
      %v1616 = vunpack.c.l.b16 %v1440
      %v1617 = vunpack.c.h.b16 %v1440
      %v1618 = vunpack.c.l.b16 %v1441
      %v1619 = vunpack.c.h.b16 %v1441
      %v1620 = vunpack.c.l.b16 %v1442
      %v1621 = vunpack.c.h.b16 %v1442
      %v1622 = vunpack.c.l.b16 %v1443
      %v1623 = vunpack.c.h.b16 %v1443
      %v1624 = vunpack.c.l.b16 %v1444
      %v1625 = vunpack.c.h.b16 %v1444
      %v1626 = vunpack.c.l.b16 %v1445
      %v1627 = vunpack.c.h.b16 %v1445
      %v1628 = vunpack.c.l.b16 %v1446
      %v1629 = vunpack.c.h.b16 %v1446
      %v1630 = vunpack.c.l.b16 %v1447
      %v1631 = vunpack.c.h.b16 %v1447
      %v1632 = vunpack.c.l.b16 %v1448
      %v1633 = vunpack.c.h.b16 %v1448
      %v1634 = vunpack.c.l.b16 %v1449
      %v1635 = vunpack.c.h.b16 %v1449
      %v1636 = vunpack.c.l.b16 %v1450
      %v1637 = vunpack.c.h.b16 %v1450
      %v1638 = vunpack.c.l.b16 %v1451
      %v1639 = vunpack.c.h.b16 %v1451
      %v1640 = vunpack.c.l.b16 %v1452
      %v1641 = vunpack.c.h.b16 %v1452
      %v1642 = vunpack.c.l.b16 %v1453
      %v1643 = vunpack.c.h.b16 %v1453
      %v1644 = vunpack.c.l.b16 %v1454
      %v1645 = vunpack.c.h.b16 %v1454
      %v1646 = vunpack.c.l.b16 %v1455
      %v1647 = vunpack.c.h.b16 %v1455
      %v1648 = vpack.c.b16 %v1586, %v1584
      %v1649 = vpack.c.b16 %v1587, %v1585
      %v1650 = vpack.c.b16 %v1590, %v1588
      %v1651 = vpack.c.b16 %v1591, %v1589
      %v1652 = vpack.c.b16 %v1594, %v1592
      %v1653 = vpack.c.b16 %v1595, %v1593
      %v1654 = vpack.c.b16 %v1598, %v1596
      %v1655 = vpack.c.b16 %v1599, %v1597
      %v1656 = vpack.c.b16 %v1602, %v1600
      %v1657 = vpack.c.b16 %v1603, %v1601
      %v1658 = vpack.c.b16 %v1606, %v1604
      %v1659 = vpack.c.b16 %v1607, %v1605
      %v1660 = vpack.c.b16 %v1610, %v1608
      %v1661 = vpack.c.b16 %v1611, %v1609
      %v1662 = vpack.c.b16 %v1614, %v1612
      %v1663 = vpack.c.b16 %v1615, %v1613
      %v1664 = vpack.c.b16 %v1618, %v1616
      %v1665 = vpack.c.b16 %v1619, %v1617
      %v1666 = vpack.c.b16 %v1622, %v1620
      %v1667 = vpack.c.b16 %v1623, %v1621
      %v1668 = vpack.c.b16 %v1626, %v1624
      %v1669 = vpack.c.b16 %v1627, %v1625
      %v1670 = vpack.c.b16 %v1630, %v1628
      %v1671 = vpack.c.b16 %v1631, %v1629
      %v1672 = vpack.c.b16 %v1634, %v1632
      %v1673 = vpack.c.b16 %v1635, %v1633
      %v1674 = vpack.c.b16 %v1638, %v1636
      %v1675 = vpack.c.b16 %v1639, %v1637
      %v1676 = vpack.c.b16 %v1642, %v1640
      %v1677 = vpack.c.b16 %v1643, %v1641
      %v1678 = vpack.c.b16 %v1646, %v1644
      %v1679 = vpack.c.b16 %v1647, %v1645
      %1712 = vmatpush.bf16.msra.mxu0 %v1662
      %1713 = vmatpush.bf16.msra.mxu0 %v1660
      %1714 = vmatpush.bf16.msra.mxu0 %v1658
      %1715 = vmatpush.bf16.msra.mxu0 %v1656
      %1716 = vmatpush.bf16.msra.mxu0 %v1654
      %1717 = vmatpush.bf16.msra.mxu0 %v1652
      %1718 = vmatpush.bf16.msra.mxu0 %v1650
      %1719 = vmatpush.bf16.msra.mxu0 %v1648
      %1720 = vmatmul.bf16.gmra.mxu0 %v1548
      %v1721 = vpop.f32.mrf.mxu0
      %v1722 = vadd.f32 0.0, %v1721
      %v1723 = vpop.f32.mrf.mxu0
      %v1724 = vadd.f32 0.0, %v1723
      %1725 = vmatmul.bf16.gmra.mxu0 %v1550
      %v1726 = vpop.f32.mrf.mxu0
      %v1727 = vadd.f32 0.0, %v1726
      %v1728 = vpop.f32.mrf.mxu0
      %v1729 = vadd.f32 0.0, %v1728
      %1730 = vdwg.mxu0
      %1731 = vmatpush.bf16.msra.mxu0 %v1678
      %1732 = vmatpush.bf16.msra.mxu0 %v1676
      %1733 = vmatpush.bf16.msra.mxu0 %v1674
      %1734 = vmatpush.bf16.msra.mxu0 %v1672
      %1735 = vmatpush.bf16.msra.mxu0 %v1670
      %1736 = vmatpush.bf16.msra.mxu0 %v1668
      %1737 = vmatpush.bf16.msra.mxu0 %v1666
      %1738 = vmatpush.bf16.msra.mxu0 %v1664
      %1739 = vmatmul.bf16.gmra.mxu0 %v1549
      %v1740 = vpop.f32.mrf.mxu0
      %v1741 = vadd.f32 %v1722, %v1740
      %v1742 = vpop.f32.mrf.mxu0
      %v1743 = vadd.f32 %v1724, %v1742
      %1744 = vmatmul.bf16.gmra.mxu0 %v1551
      %v1745 = vpop.f32.mrf.mxu0
      %v1746 = vadd.f32 %v1727, %v1745
      %v1747 = vpop.f32.mrf.mxu0
      %v1748 = vadd.f32 %v1729, %v1747
      %1749 = vdwg.mxu0
      %1750 = vmatpush.bf16.msra.mxu0 %v1663
      %1751 = vmatpush.bf16.msra.mxu0 %v1661
      %1752 = vmatpush.bf16.msra.mxu0 %v1659
      %1753 = vmatpush.bf16.msra.mxu0 %v1657
      %1754 = vmatpush.bf16.msra.mxu0 %v1655
      %1755 = vmatpush.bf16.msra.mxu0 %v1653
      %1756 = vmatpush.bf16.msra.mxu0 %v1651
      %1757 = vmatpush.bf16.msra.mxu0 %v1649
      %1758 = vmatmul.bf16.gmra.mxu0 %v1548
      %v1759 = vpop.f32.mrf.mxu0
      %v1760 = vadd.f32 0.0, %v1759
      %v1761 = vpop.f32.mrf.mxu0
      %v1762 = vadd.f32 0.0, %v1761
      %1763 = vmatmul.bf16.gmra.mxu0 %v1550
      %v1764 = vpop.f32.mrf.mxu0
      %v1765 = vadd.f32 0.0, %v1764
      %v1766 = vpop.f32.mrf.mxu0
      %v1767 = vadd.f32 0.0, %v1766
      %1768 = vdwg.mxu0
      %1769 = vmatpush.bf16.msra.mxu0 %v1679
      %1770 = vmatpush.bf16.msra.mxu0 %v1677
      %1771 = vmatpush.bf16.msra.mxu0 %v1675
      %1772 = vmatpush.bf16.msra.mxu0 %v1673
      %1773 = vmatpush.bf16.msra.mxu0 %v1671
      %1774 = vmatpush.bf16.msra.mxu0 %v1669
      %1775 = vmatpush.bf16.msra.mxu0 %v1667
      %1776 = vmatpush.bf16.msra.mxu0 %v1665
      %1777 = vmatmul.bf16.gmra.mxu0 %v1549
      %v1778 = vpop.f32.mrf.mxu0
      %v1779 = vadd.f32 %v1760, %v1778
      %v1780 = vpop.f32.mrf.mxu0
      %v1781 = vadd.f32 %v1762, %v1780
      %1782 = vmatmul.bf16.gmra.mxu0 %v1551
      %v1783 = vpop.f32.mrf.mxu0
      %v1784 = vadd.f32 %v1765, %v1783
      %v1785 = vpop.f32.mrf.mxu0
      %v1786 = vadd.f32 %v1767, %v1785
      %1787 = vdwg.mxu0
      %v1820 = vunpack.c.l.b16 %v1391
      %v1821 = vunpack.c.h.b16 %v1391
      %v1822 = vunpack.c.l.b16 %v1392
      %v1823 = vunpack.c.h.b16 %v1392
      %v1824 = vunpack.c.l.b16 %v1393
      %v1825 = vunpack.c.h.b16 %v1393
      %v1826 = vunpack.c.l.b16 %v1394
      %v1827 = vunpack.c.h.b16 %v1394
      %v1828 = vunpack.c.l.b16 %v1395
      %v1829 = vunpack.c.h.b16 %v1395
      %v1830 = vunpack.c.l.b16 %v1396
      %v1831 = vunpack.c.h.b16 %v1396
      %v1832 = vunpack.c.l.b16 %v1397
      %v1833 = vunpack.c.h.b16 %v1397
      %v1834 = vunpack.c.l.b16 %v1398
      %v1835 = vunpack.c.h.b16 %v1398
      %v1836 = vunpack.c.l.b16 %v1399
      %v1837 = vunpack.c.h.b16 %v1399
      %v1838 = vunpack.c.l.b16 %v1400
      %v1839 = vunpack.c.h.b16 %v1400
      %v1840 = vunpack.c.l.b16 %v1401
      %v1841 = vunpack.c.h.b16 %v1401
      %v1842 = vunpack.c.l.b16 %v1402
      %v1843 = vunpack.c.h.b16 %v1402
      %v1844 = vunpack.c.l.b16 %v1403
      %v1845 = vunpack.c.h.b16 %v1403
      %v1846 = vunpack.c.l.b16 %v1404
      %v1847 = vunpack.c.h.b16 %v1404
      %v1848 = vunpack.c.l.b16 %v1405
      %v1849 = vunpack.c.h.b16 %v1405
      %v1850 = vunpack.c.l.b16 %v1406
      %v1851 = vunpack.c.h.b16 %v1406
      %v1852 = vunpack.c.l.b16 %v1407
      %v1853 = vunpack.c.h.b16 %v1407
      %v1854 = vunpack.c.l.b16 %v1408
      %v1855 = vunpack.c.h.b16 %v1408
      %v1856 = vunpack.c.l.b16 %v1409
      %v1857 = vunpack.c.h.b16 %v1409
      %v1858 = vunpack.c.l.b16 %v1410
      %v1859 = vunpack.c.h.b16 %v1410
      %v1860 = vunpack.c.l.b16 %v1411
      %v1861 = vunpack.c.h.b16 %v1411
      %v1862 = vunpack.c.l.b16 %v1412
      %v1863 = vunpack.c.h.b16 %v1412
      %v1864 = vunpack.c.l.b16 %v1413
      %v1865 = vunpack.c.h.b16 %v1413
      %v1866 = vunpack.c.l.b16 %v1414
      %v1867 = vunpack.c.h.b16 %v1414
      %v1868 = vunpack.c.l.b16 %v1415
      %v1869 = vunpack.c.h.b16 %v1415
      %v1870 = vunpack.c.l.b16 %v1416
      %v1871 = vunpack.c.h.b16 %v1416
      %v1872 = vunpack.c.l.b16 %v1417
      %v1873 = vunpack.c.h.b16 %v1417
      %v1874 = vunpack.c.l.b16 %v1418
      %v1875 = vunpack.c.h.b16 %v1418
      %v1876 = vunpack.c.l.b16 %v1419
      %v1877 = vunpack.c.h.b16 %v1419
      %v1878 = vunpack.c.l.b16 %v1420
      %v1879 = vunpack.c.h.b16 %v1420
      %v1880 = vunpack.c.l.b16 %v1421
      %v1881 = vunpack.c.h.b16 %v1421
      %v1882 = vunpack.c.l.b16 %v1422
      %v1883 = vunpack.c.h.b16 %v1422
      %v1884 = vpack.c.b16 %v1822, %v1820
      %v1885 = vpack.c.b16 %v1823, %v1821
      %v1886 = vpack.c.b16 %v1826, %v1824
      %v1887 = vpack.c.b16 %v1827, %v1825
      %v1888 = vpack.c.b16 %v1830, %v1828
      %v1889 = vpack.c.b16 %v1831, %v1829
      %v1890 = vpack.c.b16 %v1834, %v1832
      %v1891 = vpack.c.b16 %v1835, %v1833
      %v1892 = vpack.c.b16 %v1838, %v1836
      %v1893 = vpack.c.b16 %v1839, %v1837
      %v1894 = vpack.c.b16 %v1842, %v1840
      %v1895 = vpack.c.b16 %v1843, %v1841
      %v1896 = vpack.c.b16 %v1846, %v1844
      %v1897 = vpack.c.b16 %v1847, %v1845
      %v1898 = vpack.c.b16 %v1850, %v1848
      %v1899 = vpack.c.b16 %v1851, %v1849
      %v1900 = vpack.c.b16 %v1854, %v1852
      %v1901 = vpack.c.b16 %v1855, %v1853
      %v1902 = vpack.c.b16 %v1858, %v1856
      %v1903 = vpack.c.b16 %v1859, %v1857
      %v1904 = vpack.c.b16 %v1862, %v1860
      %v1905 = vpack.c.b16 %v1863, %v1861
      %v1906 = vpack.c.b16 %v1866, %v1864
      %v1907 = vpack.c.b16 %v1867, %v1865
      %v1908 = vpack.c.b16 %v1870, %v1868
      %v1909 = vpack.c.b16 %v1871, %v1869
      %v1910 = vpack.c.b16 %v1874, %v1872
      %v1911 = vpack.c.b16 %v1875, %v1873
      %v1912 = vpack.c.b16 %v1878, %v1876
      %v1913 = vpack.c.b16 %v1879, %v1877
      %v1914 = vpack.c.b16 %v1882, %v1880
      %v1915 = vpack.c.b16 %v1883, %v1881
      %1948 = vmatpush.bf16.msra.mxu0 %v1898
      %1949 = vmatpush.bf16.msra.mxu0 %v1896
      %1950 = vmatpush.bf16.msra.mxu0 %v1894
      %1951 = vmatpush.bf16.msra.mxu0 %v1892
      %1952 = vmatpush.bf16.msra.mxu0 %v1890
      %1953 = vmatpush.bf16.msra.mxu0 %v1888
      %1954 = vmatpush.bf16.msra.mxu0 %v1886
      %1955 = vmatpush.bf16.msra.mxu0 %v1884
      %1956 = vmatmul.bf16.gmra.mxu0 %v1515
      %v1957 = vpop.f32.mrf.mxu0
      %v1958 = vadd.f32 %v1741, %v1957
      %v1959 = vpop.f32.mrf.mxu0
      %v1960 = vadd.f32 %v1743, %v1959
      %1961 = vmatmul.bf16.gmra.mxu0 %v1517
      %v1962 = vpop.f32.mrf.mxu0
      %v1963 = vadd.f32 %v1746, %v1962
      %v1964 = vpop.f32.mrf.mxu0
      %v1965 = vadd.f32 %v1748, %v1964
      %1966 = vdwg.mxu0
      %1967 = vmatpush.bf16.msra.mxu0 %v1914
      %1968 = vmatpush.bf16.msra.mxu0 %v1912
      %1969 = vmatpush.bf16.msra.mxu0 %v1910
      %1970 = vmatpush.bf16.msra.mxu0 %v1908
      %1971 = vmatpush.bf16.msra.mxu0 %v1906
      %1972 = vmatpush.bf16.msra.mxu0 %v1904
      %1973 = vmatpush.bf16.msra.mxu0 %v1902
      %1974 = vmatpush.bf16.msra.mxu0 %v1900
      %1975 = vmatmul.bf16.gmra.mxu0 %v1516
      %v1976 = vpop.f32.mrf.mxu0
      %v1977 = vadd.f32 %v1958, %v1976
      %v1978 = vpop.f32.mrf.mxu0
      %v1979 = vadd.f32 %v1960, %v1978
      %1980 = vmatmul.bf16.gmra.mxu0 %v1518
      %v1981 = vpop.f32.mrf.mxu0
      %v1982 = vadd.f32 %v1963, %v1981
      %v1983 = vpop.f32.mrf.mxu0
      %v1984 = vadd.f32 %v1965, %v1983
      %1985 = vdwg.mxu0
      %1986 = vmatpush.bf16.msra.mxu0 %v1899
      %1987 = vmatpush.bf16.msra.mxu0 %v1897
      %1988 = vmatpush.bf16.msra.mxu0 %v1895
      %1989 = vmatpush.bf16.msra.mxu0 %v1893
      %1990 = vmatpush.bf16.msra.mxu0 %v1891
      %1991 = vmatpush.bf16.msra.mxu0 %v1889
      %1992 = vmatpush.bf16.msra.mxu0 %v1887
      %1993 = vmatpush.bf16.msra.mxu0 %v1885
      %1994 = vmatmul.bf16.gmra.mxu0 %v1515
      %v1995 = vpop.f32.mrf.mxu0
      %v1996 = vadd.f32 %v1779, %v1995
      %v1997 = vpop.f32.mrf.mxu0
      %v1998 = vadd.f32 %v1781, %v1997
      %1999 = vmatmul.bf16.gmra.mxu0 %v1517
      %v2000 = vpop.f32.mrf.mxu0
      %v2001 = vadd.f32 %v1784, %v2000
      %v2002 = vpop.f32.mrf.mxu0
      %v2003 = vadd.f32 %v1786, %v2002
      %2004 = vdwg.mxu0
      %2005 = vmatpush.bf16.msra.mxu0 %v1915
      %2006 = vmatpush.bf16.msra.mxu0 %v1913
      %2007 = vmatpush.bf16.msra.mxu0 %v1911
      %2008 = vmatpush.bf16.msra.mxu0 %v1909
      %2009 = vmatpush.bf16.msra.mxu0 %v1907
      %2010 = vmatpush.bf16.msra.mxu0 %v1905
      %2011 = vmatpush.bf16.msra.mxu0 %v1903
      %2012 = vmatpush.bf16.msra.mxu0 %v1901
      %2013 = vmatmul.bf16.gmra.mxu0 %v1516
      %v2014 = vpop.f32.mrf.mxu0
      %v2015 = vadd.f32 %v1996, %v2014
      %v2016 = vpop.f32.mrf.mxu0
      %v2017 = vadd.f32 %v1998, %v2016
      %2018 = vmatmul.bf16.gmra.mxu0 %v1518
      %v2019 = vpop.f32.mrf.mxu0
      %v2020 = vadd.f32 %v2001, %v2019
      %v2021 = vpop.f32.mrf.mxu0
      %v2022 = vadd.f32 %v2003, %v2021
      %2023 = vdwg.mxu0
      %v2056 = vunpack.c.l.b16 %v1457
      %v2057 = vunpack.c.h.b16 %v1457
      %v2058 = vunpack.c.l.b16 %v1458
      %v2059 = vunpack.c.h.b16 %v1458
      %v2060 = vunpack.c.l.b16 %v1459
      %v2061 = vunpack.c.h.b16 %v1459
      %v2062 = vunpack.c.l.b16 %v1460
      %v2063 = vunpack.c.h.b16 %v1460
      %v2064 = vunpack.c.l.b16 %v1461
      %v2065 = vunpack.c.h.b16 %v1461
      %v2066 = vunpack.c.l.b16 %v1462
      %v2067 = vunpack.c.h.b16 %v1462
      %v2068 = vunpack.c.l.b16 %v1463
      %v2069 = vunpack.c.h.b16 %v1463
      %v2070 = vunpack.c.l.b16 %v1464
      %v2071 = vunpack.c.h.b16 %v1464
      %v2072 = vunpack.c.l.b16 %v1465
      %v2073 = vunpack.c.h.b16 %v1465
      %v2074 = vunpack.c.l.b16 %v1466
      %v2075 = vunpack.c.h.b16 %v1466
      %v2076 = vunpack.c.l.b16 %v1467
      %v2077 = vunpack.c.h.b16 %v1467
      %v2078 = vunpack.c.l.b16 %v1468
      %v2079 = vunpack.c.h.b16 %v1468
      %v2080 = vunpack.c.l.b16 %v1469
      %v2081 = vunpack.c.h.b16 %v1469
      %v2082 = vunpack.c.l.b16 %v1470
      %v2083 = vunpack.c.h.b16 %v1470
      %v2084 = vunpack.c.l.b16 %v1471
      %v2085 = vunpack.c.h.b16 %v1471
      %v2086 = vunpack.c.l.b16 %v1472
      %v2087 = vunpack.c.h.b16 %v1472
      %v2088 = vunpack.c.l.b16 %v1473
      %v2089 = vunpack.c.h.b16 %v1473
      %v2090 = vunpack.c.l.b16 %v1474
      %v2091 = vunpack.c.h.b16 %v1474
      %v2092 = vunpack.c.l.b16 %v1475
      %v2093 = vunpack.c.h.b16 %v1475
      %v2094 = vunpack.c.l.b16 %v1476
      %v2095 = vunpack.c.h.b16 %v1476
      %v2096 = vunpack.c.l.b16 %v1477
      %v2097 = vunpack.c.h.b16 %v1477
      %v2098 = vunpack.c.l.b16 %v1478
      %v2099 = vunpack.c.h.b16 %v1478
      %v2100 = vunpack.c.l.b16 %v1479
      %v2101 = vunpack.c.h.b16 %v1479
      %v2102 = vunpack.c.l.b16 %v1480
      %v2103 = vunpack.c.h.b16 %v1480
      %v2104 = vunpack.c.l.b16 %v1481
      %v2105 = vunpack.c.h.b16 %v1481
      %v2106 = vunpack.c.l.b16 %v1482
      %v2107 = vunpack.c.h.b16 %v1482
      %v2108 = vunpack.c.l.b16 %v1483
      %v2109 = vunpack.c.h.b16 %v1483
      %v2110 = vunpack.c.l.b16 %v1484
      %v2111 = vunpack.c.h.b16 %v1484
      %v2112 = vunpack.c.l.b16 %v1485
      %v2113 = vunpack.c.h.b16 %v1485
      %v2114 = vunpack.c.l.b16 %v1486
      %v2115 = vunpack.c.h.b16 %v1486
      %v2116 = vunpack.c.l.b16 %v1487
      %v2117 = vunpack.c.h.b16 %v1487
      %v2118 = vunpack.c.l.b16 %v1488
      %v2119 = vunpack.c.h.b16 %v1488
      %v2120 = vpack.c.b16 %v2058, %v2056
      %v2121 = vpack.c.b16 %v2059, %v2057
      %v2122 = vpack.c.b16 %v2062, %v2060
      %v2123 = vpack.c.b16 %v2063, %v2061
      %v2124 = vpack.c.b16 %v2066, %v2064
      %v2125 = vpack.c.b16 %v2067, %v2065
      %v2126 = vpack.c.b16 %v2070, %v2068
      %v2127 = vpack.c.b16 %v2071, %v2069
      %v2128 = vpack.c.b16 %v2074, %v2072
      %v2129 = vpack.c.b16 %v2075, %v2073
      %v2130 = vpack.c.b16 %v2078, %v2076
      %v2131 = vpack.c.b16 %v2079, %v2077
      %v2132 = vpack.c.b16 %v2082, %v2080
      %v2133 = vpack.c.b16 %v2083, %v2081
      %v2134 = vpack.c.b16 %v2086, %v2084
      %v2135 = vpack.c.b16 %v2087, %v2085
      %v2136 = vpack.c.b16 %v2090, %v2088
      %v2137 = vpack.c.b16 %v2091, %v2089
      %v2138 = vpack.c.b16 %v2094, %v2092
      %v2139 = vpack.c.b16 %v2095, %v2093
      %v2140 = vpack.c.b16 %v2098, %v2096
      %v2141 = vpack.c.b16 %v2099, %v2097
      %v2142 = vpack.c.b16 %v2102, %v2100
      %v2143 = vpack.c.b16 %v2103, %v2101
      %v2144 = vpack.c.b16 %v2106, %v2104
      %v2145 = vpack.c.b16 %v2107, %v2105
      %v2146 = vpack.c.b16 %v2110, %v2108
      %v2147 = vpack.c.b16 %v2111, %v2109
      %v2148 = vpack.c.b16 %v2114, %v2112
      %v2149 = vpack.c.b16 %v2115, %v2113
      %v2150 = vpack.c.b16 %v2118, %v2116
      %v2151 = vpack.c.b16 %v2119, %v2117
      %2184 = vmatpush.bf16.msra.mxu0 %v2134
      %2185 = vmatpush.bf16.msra.mxu0 %v2132
      %2186 = vmatpush.bf16.msra.mxu0 %v2130
      %2187 = vmatpush.bf16.msra.mxu0 %v2128
      %2188 = vmatpush.bf16.msra.mxu0 %v2126
      %2189 = vmatpush.bf16.msra.mxu0 %v2124
      %2190 = vmatpush.bf16.msra.mxu0 %v2122
      %2191 = vmatpush.bf16.msra.mxu0 %v2120
      %2192 = vmatmul.bf16.gmra.mxu0 %v1544
      %v2193 = vpop.f32.mrf.mxu0
      %v2194 = vadd.f32 0.0, %v2193
      %v2195 = vpop.f32.mrf.mxu0
      %v2196 = vadd.f32 0.0, %v2195
      %2197 = vmatmul.bf16.gmra.mxu0 %v1546
      %v2198 = vpop.f32.mrf.mxu0
      %v2199 = vadd.f32 0.0, %v2198
      %v2200 = vpop.f32.mrf.mxu0
      %v2201 = vadd.f32 0.0, %v2200
      %2202 = vdwg.mxu0
      %2203 = vmatpush.bf16.msra.mxu0 %v2150
      %2204 = vmatpush.bf16.msra.mxu0 %v2148
      %2205 = vmatpush.bf16.msra.mxu0 %v2146
      %2206 = vmatpush.bf16.msra.mxu0 %v2144
      %2207 = vmatpush.bf16.msra.mxu0 %v2142
      %2208 = vmatpush.bf16.msra.mxu0 %v2140
      %2209 = vmatpush.bf16.msra.mxu0 %v2138
      %2210 = vmatpush.bf16.msra.mxu0 %v2136
      %2211 = vmatmul.bf16.gmra.mxu0 %v1545
      %v2212 = vpop.f32.mrf.mxu0
      %v2213 = vadd.f32 %v2194, %v2212
      %v2214 = vpop.f32.mrf.mxu0
      %v2215 = vadd.f32 %v2196, %v2214
      %2216 = vmatmul.bf16.gmra.mxu0 %v1547
      %v2217 = vpop.f32.mrf.mxu0
      %v2218 = vadd.f32 %v2199, %v2217
      %v2219 = vpop.f32.mrf.mxu0
      %v2220 = vadd.f32 %v2201, %v2219
      %2221 = vdwg.mxu0
      %2222 = vmatpush.bf16.msra.mxu0 %v2135
      %2223 = vmatpush.bf16.msra.mxu0 %v2133
      %2224 = vmatpush.bf16.msra.mxu0 %v2131
      %2225 = vmatpush.bf16.msra.mxu0 %v2129
      %2226 = vmatpush.bf16.msra.mxu0 %v2127
      %2227 = vmatpush.bf16.msra.mxu0 %v2125
      %2228 = vmatpush.bf16.msra.mxu0 %v2123
      %2229 = vmatpush.bf16.msra.mxu0 %v2121
      %2230 = vmatmul.bf16.gmra.mxu0 %v1544
      %v2231 = vpop.f32.mrf.mxu0
      %v2232 = vadd.f32 0.0, %v2231
      %v2233 = vpop.f32.mrf.mxu0
      %v2234 = vadd.f32 0.0, %v2233
      %2235 = vmatmul.bf16.gmra.mxu0 %v1546
      %v2236 = vpop.f32.mrf.mxu0
      %v2237 = vadd.f32 0.0, %v2236
      %v2238 = vpop.f32.mrf.mxu0
      %v2239 = vadd.f32 0.0, %v2238
      %2240 = vdwg.mxu0
      %2241 = vmatpush.bf16.msra.mxu0 %v2151
      %2242 = vmatpush.bf16.msra.mxu0 %v2149
      %2243 = vmatpush.bf16.msra.mxu0 %v2147
      %2244 = vmatpush.bf16.msra.mxu0 %v2145
      %2245 = vmatpush.bf16.msra.mxu0 %v2143
      %2246 = vmatpush.bf16.msra.mxu0 %v2141
      %2247 = vmatpush.bf16.msra.mxu0 %v2139
      %2248 = vmatpush.bf16.msra.mxu0 %v2137
      %2249 = vmatmul.bf16.gmra.mxu0 %v1545
      %v2250 = vpop.f32.mrf.mxu0
      %v2251 = vadd.f32 %v2232, %v2250
      %v2252 = vpop.f32.mrf.mxu0
      %v2253 = vadd.f32 %v2234, %v2252
      %2254 = vmatmul.bf16.gmra.mxu0 %v1547
      %v2255 = vpop.f32.mrf.mxu0
      %v2256 = vadd.f32 %v2237, %v2255
      %v2257 = vpop.f32.mrf.mxu0
      %v2258 = vadd.f32 %v2239, %v2257
      %2259 = vdwg.mxu0
      %v2260 = vadd.f32 %v1977, %v2213
      %v2261 = vadd.f32 %v2015, %v2251
      %v2262 = vadd.f32 %v1979, %v2215
      %v2263 = vadd.f32 %v2017, %v2253
      %v2264 = vadd.f32 %v1982, %v2218
      %v2265 = vadd.f32 %v2020, %v2256
      %v2266 = vadd.f32 %v1984, %v2220
      %v2267 = vadd.f32 %v2022, %v2258
      %v2269 = vperm.slane %v1489, 0
      %v2270 = vperm.slane %v1489, 1
      %v2273 = vadd.f32 %v2260, %v2269
      %v2274 = vadd.f32 %v2261, %v2270
      %v2275 = vadd.f32 %v2262, %v2269
      %v2276 = vadd.f32 %v2263, %v2270
      %v2277 = vadd.f32 %v2264, %v2269
      %v2278 = vadd.f32 %v2265, %v2270
      %v2279 = vadd.f32 %v2266, %v2269
      %v2280 = vadd.f32 %v2267, %v2270
      %v2281 = vmax.f32 %v2273, 0.0
      %v2282 = vmax.f32 %v2274, 0.0
      %v2283 = vmax.f32 %v2275, 0.0
      %v2284 = vmax.f32 %v2276, 0.0
      %v2285 = vmax.f32 %v2277, 0.0
      %v2286 = vmax.f32 %v2278, 0.0
      %v2287 = vmax.f32 %v2279, 0.0
      %v2288 = vmax.f32 %v2280, 0.0
      %v2289 = vld [vmem:[%s1231] sm:$0xff]
      %v2290 = vld [vmem:[%s1231 + $0x8] sm:$0xff]
      %v2291 = vld [vmem:[%s1231 + $0x10] sm:$0xff]
      %v2292 = vld [vmem:[%s1231 + $0x18] sm:$0xff]
      %v2293 = vld [vmem:[%s1231 + $0x20] sm:$0xff]
      %v2294 = vld [vmem:[%s1231 + $0x28] sm:$0xff]
      %v2295 = vld [vmem:[%s1231 + $0x30] sm:$0xff]
      %v2296 = vld [vmem:[%s1231 + $0x38] sm:$0xff]
      %v2297 = vld [vmem:[%s1231 + $0x40] sm:$0xff]
      %v2298 = vld [vmem:[%s1231 + $0x48] sm:$0xff]
      %v2299 = vld [vmem:[%s1231 + $0x50] sm:$0xff]
      %v2300 = vld [vmem:[%s1231 + $0x58] sm:$0xff]
      %v2301 = vld [vmem:[%s1231 + $0x60] sm:$0xff]
      %v2302 = vld [vmem:[%s1231 + $0x68] sm:$0xff]
      %v2303 = vld [vmem:[%s1231 + $0x70] sm:$0xff]
      %v2304 = vld [vmem:[%s1231 + $0x78] sm:$0xff]
      %v2305 = vld [vmem:[%s1231 + $0x80] sm:$0xff]
      %v2306 = vld [vmem:[%s1231 + $0x88] sm:$0xff]
      %v2307 = vld [vmem:[%s1231 + $0x90] sm:$0xff]
      %v2308 = vld [vmem:[%s1231 + $0x98] sm:$0xff]
      %v2309 = vld [vmem:[%s1231 + $0xa0] sm:$0xff]
      %v2310 = vld [vmem:[%s1231 + $0xa8] sm:$0xff]
      %v2311 = vld [vmem:[%s1231 + $0xb0] sm:$0xff]
      %v2312 = vld [vmem:[%s1231 + $0xb8] sm:$0xff]
      %v2313 = vld [vmem:[%s1231 + $0xc0] sm:$0xff]
      %v2314 = vld [vmem:[%s1231 + $0xc8] sm:$0xff]
      %v2315 = vld [vmem:[%s1231 + $0xd0] sm:$0xff]
      %v2316 = vld [vmem:[%s1231 + $0xd8] sm:$0xff]
      %v2317 = vld [vmem:[%s1231 + $0xe0] sm:$0xff]
      %v2318 = vld [vmem:[%s1231 + $0xe8] sm:$0xff]
      %v2319 = vld [vmem:[%s1231 + $0xf0] sm:$0xff]
      %v2320 = vld [vmem:[%s1231 + $0xf8] sm:$0xff]
      %s2321 = scalar_lea.vmem %s1231, 256
      %v2322 = vld [vmem:[%s2321] sm:$0xff]
      %v2323 = vld [vmem:[%s2321 + $0x8] sm:$0xff]
      %v2324 = vld [vmem:[%s2321 + $0x10] sm:$0xff]
      %v2325 = vld [vmem:[%s2321 + $0x18] sm:$0xff]
      %v2326 = vld [vmem:[%s2321 + $0x20] sm:$0xff]
      %v2327 = vld [vmem:[%s2321 + $0x28] sm:$0xff]
      %v2328 = vld [vmem:[%s2321 + $0x30] sm:$0xff]
      %v2329 = vld [vmem:[%s2321 + $0x38] sm:$0xff]
      %v2330 = vld [vmem:[%s2321 + $0x40] sm:$0xff]
      %v2331 = vld [vmem:[%s2321 + $0x48] sm:$0xff]
      %v2332 = vld [vmem:[%s2321 + $0x50] sm:$0xff]
      %v2333 = vld [vmem:[%s2321 + $0x58] sm:$0xff]
      %v2334 = vld [vmem:[%s2321 + $0x60] sm:$0xff]
      %v2335 = vld [vmem:[%s2321 + $0x68] sm:$0xff]
      %v2336 = vld [vmem:[%s2321 + $0x70] sm:$0xff]
      %v2337 = vld [vmem:[%s2321 + $0x78] sm:$0xff]
      %v2338 = vld [vmem:[%s2321 + $0x80] sm:$0xff]
      %v2339 = vld [vmem:[%s2321 + $0x88] sm:$0xff]
      %v2340 = vld [vmem:[%s2321 + $0x90] sm:$0xff]
      %v2341 = vld [vmem:[%s2321 + $0x98] sm:$0xff]
      %v2342 = vld [vmem:[%s2321 + $0xa0] sm:$0xff]
      %v2343 = vld [vmem:[%s2321 + $0xa8] sm:$0xff]
      %v2344 = vld [vmem:[%s2321 + $0xb0] sm:$0xff]
      %v2345 = vld [vmem:[%s2321 + $0xb8] sm:$0xff]
      %v2346 = vld [vmem:[%s2321 + $0xc0] sm:$0xff]
      %v2347 = vld [vmem:[%s2321 + $0xc8] sm:$0xff]
      %v2348 = vld [vmem:[%s2321 + $0xd0] sm:$0xff]
      %v2349 = vld [vmem:[%s2321 + $0xd8] sm:$0xff]
      %v2350 = vld [vmem:[%s2321 + $0xe0] sm:$0xff]
      %v2351 = vld [vmem:[%s2321 + $0xe8] sm:$0xff]
      %v2352 = vld [vmem:[%s2321 + $0xf0] sm:$0xff]
      %v2353 = vld [vmem:[%s2321 + $0xf8] sm:$0xff]
      %s2354 = scalar_lea.vmem %s1231, 512
      %v2355 = vld [vmem:[%s2354] sm:$0xff]
      %v2356 = vld [vmem:[%s2354 + $0x8] sm:$0xff]
      %v2357 = vld [vmem:[%s2354 + $0x10] sm:$0xff]
      %v2358 = vld [vmem:[%s2354 + $0x18] sm:$0xff]
      %v2359 = vld [vmem:[%s2354 + $0x20] sm:$0xff]
      %v2360 = vld [vmem:[%s2354 + $0x28] sm:$0xff]
      %v2361 = vld [vmem:[%s2354 + $0x30] sm:$0xff]
      %v2362 = vld [vmem:[%s2354 + $0x38] sm:$0xff]
      %v2363 = vld [vmem:[%s2354 + $0x40] sm:$0xff]
      %v2364 = vld [vmem:[%s2354 + $0x48] sm:$0xff]
      %v2365 = vld [vmem:[%s2354 + $0x50] sm:$0xff]
      %v2366 = vld [vmem:[%s2354 + $0x58] sm:$0xff]
      %v2367 = vld [vmem:[%s2354 + $0x60] sm:$0xff]
      %v2368 = vld [vmem:[%s2354 + $0x68] sm:$0xff]
      %v2369 = vld [vmem:[%s2354 + $0x70] sm:$0xff]
      %v2370 = vld [vmem:[%s2354 + $0x78] sm:$0xff]
      %v2371 = vld [vmem:[%s2354 + $0x80] sm:$0xff]
      %v2372 = vld [vmem:[%s2354 + $0x88] sm:$0xff]
      %v2373 = vld [vmem:[%s2354 + $0x90] sm:$0xff]
      %v2374 = vld [vmem:[%s2354 + $0x98] sm:$0xff]
      %v2375 = vld [vmem:[%s2354 + $0xa0] sm:$0xff]
      %v2376 = vld [vmem:[%s2354 + $0xa8] sm:$0xff]
      %v2377 = vld [vmem:[%s2354 + $0xb0] sm:$0xff]
      %v2378 = vld [vmem:[%s2354 + $0xb8] sm:$0xff]
      %v2379 = vld [vmem:[%s2354 + $0xc0] sm:$0xff]
      %v2380 = vld [vmem:[%s2354 + $0xc8] sm:$0xff]
      %v2381 = vld [vmem:[%s2354 + $0xd0] sm:$0xff]
      %v2382 = vld [vmem:[%s2354 + $0xd8] sm:$0xff]
      %v2383 = vld [vmem:[%s2354 + $0xe0] sm:$0xff]
      %v2384 = vld [vmem:[%s2354 + $0xe8] sm:$0xff]
      %v2385 = vld [vmem:[%s2354 + $0xf0] sm:$0xff]
      %v2386 = vld [vmem:[%s2354 + $0xf8] sm:$0xff]
      %v2387 = vld [vmem:[%s1235] sm:$0x3]
      %v2388 = vrot.slane %v2281, 7
      %v2389 = vrot.slane %v2282, 7
      %v2390 = vrot.slane %v2283, 7
      %v2391 = vrot.slane %v2284, 7
      %v2392 = vrot.slane %v2285, 7
      %v2393 = vrot.slane %v2286, 7
      %v2394 = vrot.slane %v2287, 7
      %v2395 = vrot.slane %v2288, 7
      %v2396 = vsel %vm1498, %v2392, %v2394
      %v2397 = vsel %vm1498, %v2393, %v2395
      %v2398 = vsel %vm1498, %v2390, %v2392
      %v2399 = vsel %vm1498, %v2391, %v2393
      %v2400 = vsel %vm1498, %v2388, %v2390
      %v2401 = vsel %vm1498, %v2389, %v2391
      %v2402 = vsel %vm1498, %v2394, %v2388
      %v2403 = vsel %vm1498, %v2395, %v2389
      %v2404 = vmul.f32 %v2402, %v1347
      %v2405 = vmul.f32 %v2403, %v1347
      %v2406 = vmul.f32 %v2400, %v1348
      %v2407 = vmul.f32 %v2401, %v1348
      %v2408 = vmul.f32 %v2398, %v1349
      %v2409 = vmul.f32 %v2399, %v1349
      %v2410 = vmul.f32 %v2396, %v1350
      %v2411 = vmul.f32 %v2397, %v1350
      %v2412 = vpack.c.bf16 %v2406, %v2404
      %v2413 = vpack.c.bf16 %v2407, %v2405
      %v2414 = vpack.c.bf16 %v2410, %v2408
      %v2415 = vpack.c.bf16 %v2411, %v2409
      %v2416 = vrot.slane %v2281, 1
      %v2417 = vrot.slane %v2282, 1
      %v2418 = vrot.slane %v2283, 1
      %v2419 = vrot.slane %v2284, 1
      %v2420 = vrot.slane %v2285, 1
      %v2421 = vrot.slane %v2286, 1
      %v2422 = vrot.slane %v2287, 1
      %v2423 = vrot.slane %v2288, 1
      %v2424 = vsel %vm1527, %v2420, %v2422
      %v2425 = vsel %vm1527, %v2421, %v2423
      %v2426 = vsel %vm1527, %v2418, %v2420
      %v2427 = vsel %vm1527, %v2419, %v2421
      %v2428 = vsel %vm1527, %v2416, %v2418
      %v2429 = vsel %vm1527, %v2417, %v2419
      %v2430 = vsel %vm1527, %v2422, %v2416
      %v2431 = vsel %vm1527, %v2423, %v2417
      %v2432 = vmul.f32 %v2428, %v1359
      %v2433 = vmul.f32 %v2429, %v1359
      %v2434 = vmul.f32 %v2426, %v1360
      %v2435 = vmul.f32 %v2427, %v1360
      %v2436 = vmul.f32 %v2424, %v1361
      %v2437 = vmul.f32 %v2425, %v1361
      %v2438 = vmul.f32 %v2430, %v1362
      %v2439 = vmul.f32 %v2431, %v1362
      %v2440 = vpack.c.bf16 %v2434, %v2432
      %v2441 = vpack.c.bf16 %v2435, %v2433
      %v2442 = vpack.c.bf16 %v2438, %v2436
      %v2443 = vpack.c.bf16 %v2439, %v2437
      %v2444 = vpack.c.bf16 %v2283, %v2281
      %v2445 = vpack.c.bf16 %v2284, %v2282
      %v2446 = vpack.c.bf16 %v2287, %v2285
      %v2447 = vpack.c.bf16 %v2288, %v2286
      %v2480 = vunpack.c.l.b16 %v2322
      %v2481 = vunpack.c.h.b16 %v2322
      %v2482 = vunpack.c.l.b16 %v2323
      %v2483 = vunpack.c.h.b16 %v2323
      %v2484 = vunpack.c.l.b16 %v2324
      %v2485 = vunpack.c.h.b16 %v2324
      %v2486 = vunpack.c.l.b16 %v2325
      %v2487 = vunpack.c.h.b16 %v2325
      %v2488 = vunpack.c.l.b16 %v2326
      %v2489 = vunpack.c.h.b16 %v2326
      %v2490 = vunpack.c.l.b16 %v2327
      %v2491 = vunpack.c.h.b16 %v2327
      %v2492 = vunpack.c.l.b16 %v2328
      %v2493 = vunpack.c.h.b16 %v2328
      %v2494 = vunpack.c.l.b16 %v2329
      %v2495 = vunpack.c.h.b16 %v2329
      %v2496 = vunpack.c.l.b16 %v2330
      %v2497 = vunpack.c.h.b16 %v2330
      %v2498 = vunpack.c.l.b16 %v2331
      %v2499 = vunpack.c.h.b16 %v2331
      %v2500 = vunpack.c.l.b16 %v2332
      %v2501 = vunpack.c.h.b16 %v2332
      %v2502 = vunpack.c.l.b16 %v2333
      %v2503 = vunpack.c.h.b16 %v2333
      %v2504 = vunpack.c.l.b16 %v2334
      %v2505 = vunpack.c.h.b16 %v2334
      %v2506 = vunpack.c.l.b16 %v2335
      %v2507 = vunpack.c.h.b16 %v2335
      %v2508 = vunpack.c.l.b16 %v2336
      %v2509 = vunpack.c.h.b16 %v2336
      %v2510 = vunpack.c.l.b16 %v2337
      %v2511 = vunpack.c.h.b16 %v2337
      %v2512 = vunpack.c.l.b16 %v2338
      %v2513 = vunpack.c.h.b16 %v2338
      %v2514 = vunpack.c.l.b16 %v2339
      %v2515 = vunpack.c.h.b16 %v2339
      %v2516 = vunpack.c.l.b16 %v2340
      %v2517 = vunpack.c.h.b16 %v2340
      %v2518 = vunpack.c.l.b16 %v2341
      %v2519 = vunpack.c.h.b16 %v2341
      %v2520 = vunpack.c.l.b16 %v2342
      %v2521 = vunpack.c.h.b16 %v2342
      %v2522 = vunpack.c.l.b16 %v2343
      %v2523 = vunpack.c.h.b16 %v2343
      %v2524 = vunpack.c.l.b16 %v2344
      %v2525 = vunpack.c.h.b16 %v2344
      %v2526 = vunpack.c.l.b16 %v2345
      %v2527 = vunpack.c.h.b16 %v2345
      %v2528 = vunpack.c.l.b16 %v2346
      %v2529 = vunpack.c.h.b16 %v2346
      %v2530 = vunpack.c.l.b16 %v2347
      %v2531 = vunpack.c.h.b16 %v2347
      %v2532 = vunpack.c.l.b16 %v2348
      %v2533 = vunpack.c.h.b16 %v2348
      %v2534 = vunpack.c.l.b16 %v2349
      %v2535 = vunpack.c.h.b16 %v2349
      %v2536 = vunpack.c.l.b16 %v2350
      %v2537 = vunpack.c.h.b16 %v2350
      %v2538 = vunpack.c.l.b16 %v2351
      %v2539 = vunpack.c.h.b16 %v2351
      %v2540 = vunpack.c.l.b16 %v2352
      %v2541 = vunpack.c.h.b16 %v2352
      %v2542 = vunpack.c.l.b16 %v2353
      %v2543 = vunpack.c.h.b16 %v2353
      %v2544 = vpack.c.b16 %v2482, %v2480
      %v2545 = vpack.c.b16 %v2483, %v2481
      %v2546 = vpack.c.b16 %v2486, %v2484
      %v2547 = vpack.c.b16 %v2487, %v2485
      %v2548 = vpack.c.b16 %v2490, %v2488
      %v2549 = vpack.c.b16 %v2491, %v2489
      %v2550 = vpack.c.b16 %v2494, %v2492
      %v2551 = vpack.c.b16 %v2495, %v2493
      %v2552 = vpack.c.b16 %v2498, %v2496
      %v2553 = vpack.c.b16 %v2499, %v2497
      %v2554 = vpack.c.b16 %v2502, %v2500
      %v2555 = vpack.c.b16 %v2503, %v2501
      %v2556 = vpack.c.b16 %v2506, %v2504
      %v2557 = vpack.c.b16 %v2507, %v2505
      %v2558 = vpack.c.b16 %v2510, %v2508
      %v2559 = vpack.c.b16 %v2511, %v2509
      %v2560 = vpack.c.b16 %v2514, %v2512
      %v2561 = vpack.c.b16 %v2515, %v2513
      %v2562 = vpack.c.b16 %v2518, %v2516
      %v2563 = vpack.c.b16 %v2519, %v2517
      %v2564 = vpack.c.b16 %v2522, %v2520
      %v2565 = vpack.c.b16 %v2523, %v2521
      %v2566 = vpack.c.b16 %v2526, %v2524
      %v2567 = vpack.c.b16 %v2527, %v2525
      %v2568 = vpack.c.b16 %v2530, %v2528
      %v2569 = vpack.c.b16 %v2531, %v2529
      %v2570 = vpack.c.b16 %v2534, %v2532
      %v2571 = vpack.c.b16 %v2535, %v2533
      %v2572 = vpack.c.b16 %v2538, %v2536
      %v2573 = vpack.c.b16 %v2539, %v2537
      %v2574 = vpack.c.b16 %v2542, %v2540
      %v2575 = vpack.c.b16 %v2543, %v2541
      %2608 = vmatpush.bf16.msra.mxu0 %v2558
      %2609 = vmatpush.bf16.msra.mxu0 %v2556
      %2610 = vmatpush.bf16.msra.mxu0 %v2554
      %2611 = vmatpush.bf16.msra.mxu0 %v2552
      %2612 = vmatpush.bf16.msra.mxu0 %v2550
      %2613 = vmatpush.bf16.msra.mxu0 %v2548
      %2614 = vmatpush.bf16.msra.mxu0 %v2546
      %2615 = vmatpush.bf16.msra.mxu0 %v2544
      %2616 = vmatmul.bf16.gmra.mxu0 %v2444
      %v2617 = vpop.f32.mrf.mxu0
      %v2618 = vadd.f32 0.0, %v2617
      %v2619 = vpop.f32.mrf.mxu0
      %v2620 = vadd.f32 0.0, %v2619
      %2621 = vmatmul.bf16.gmra.mxu0 %v2446
      %v2622 = vpop.f32.mrf.mxu0
      %v2623 = vadd.f32 0.0, %v2622
      %v2624 = vpop.f32.mrf.mxu0
      %v2625 = vadd.f32 0.0, %v2624
      %2626 = vdwg.mxu0
      %2627 = vmatpush.bf16.msra.mxu0 %v2574
      %2628 = vmatpush.bf16.msra.mxu0 %v2572
      %2629 = vmatpush.bf16.msra.mxu0 %v2570
      %2630 = vmatpush.bf16.msra.mxu0 %v2568
      %2631 = vmatpush.bf16.msra.mxu0 %v2566
      %2632 = vmatpush.bf16.msra.mxu0 %v2564
      %2633 = vmatpush.bf16.msra.mxu0 %v2562
      %2634 = vmatpush.bf16.msra.mxu0 %v2560
      %2635 = vmatmul.bf16.gmra.mxu0 %v2445
      %v2636 = vpop.f32.mrf.mxu0
      %v2637 = vadd.f32 %v2618, %v2636
      %v2638 = vpop.f32.mrf.mxu0
      %v2639 = vadd.f32 %v2620, %v2638
      %2640 = vmatmul.bf16.gmra.mxu0 %v2447
      %v2641 = vpop.f32.mrf.mxu0
      %v2642 = vadd.f32 %v2623, %v2641
      %v2643 = vpop.f32.mrf.mxu0
      %v2644 = vadd.f32 %v2625, %v2643
      %2645 = vdwg.mxu0
      %2646 = vmatpush.bf16.msra.mxu0 %v2559
      %2647 = vmatpush.bf16.msra.mxu0 %v2557
      %2648 = vmatpush.bf16.msra.mxu0 %v2555
      %2649 = vmatpush.bf16.msra.mxu0 %v2553
      %2650 = vmatpush.bf16.msra.mxu0 %v2551
      %2651 = vmatpush.bf16.msra.mxu0 %v2549
      %2652 = vmatpush.bf16.msra.mxu0 %v2547
      %2653 = vmatpush.bf16.msra.mxu0 %v2545
      %2654 = vmatmul.bf16.gmra.mxu0 %v2444
      %v2655 = vpop.f32.mrf.mxu0
      %v2656 = vadd.f32 0.0, %v2655
      %v2657 = vpop.f32.mrf.mxu0
      %v2658 = vadd.f32 0.0, %v2657
      %2659 = vmatmul.bf16.gmra.mxu0 %v2446
      %v2660 = vpop.f32.mrf.mxu0
      %v2661 = vadd.f32 0.0, %v2660
      %v2662 = vpop.f32.mrf.mxu0
      %v2663 = vadd.f32 0.0, %v2662
      %2664 = vdwg.mxu0
      %2665 = vmatpush.bf16.msra.mxu0 %v2575
      %2666 = vmatpush.bf16.msra.mxu0 %v2573
      %2667 = vmatpush.bf16.msra.mxu0 %v2571
      %2668 = vmatpush.bf16.msra.mxu0 %v2569
      %2669 = vmatpush.bf16.msra.mxu0 %v2567
      %2670 = vmatpush.bf16.msra.mxu0 %v2565
      %2671 = vmatpush.bf16.msra.mxu0 %v2563
      %2672 = vmatpush.bf16.msra.mxu0 %v2561
      %2673 = vmatmul.bf16.gmra.mxu0 %v2445
      %v2674 = vpop.f32.mrf.mxu0
      %v2675 = vadd.f32 %v2656, %v2674
      %v2676 = vpop.f32.mrf.mxu0
      %v2677 = vadd.f32 %v2658, %v2676
      %2678 = vmatmul.bf16.gmra.mxu0 %v2447
      %v2679 = vpop.f32.mrf.mxu0
      %v2680 = vadd.f32 %v2661, %v2679
      %v2681 = vpop.f32.mrf.mxu0
      %v2682 = vadd.f32 %v2663, %v2681
      %2683 = vdwg.mxu0
      %v2716 = vunpack.c.l.b16 %v2289
      %v2717 = vunpack.c.h.b16 %v2289
      %v2718 = vunpack.c.l.b16 %v2290
      %v2719 = vunpack.c.h.b16 %v2290
      %v2720 = vunpack.c.l.b16 %v2291
      %v2721 = vunpack.c.h.b16 %v2291
      %v2722 = vunpack.c.l.b16 %v2292
      %v2723 = vunpack.c.h.b16 %v2292
      %v2724 = vunpack.c.l.b16 %v2293
      %v2725 = vunpack.c.h.b16 %v2293
      %v2726 = vunpack.c.l.b16 %v2294
      %v2727 = vunpack.c.h.b16 %v2294
      %v2728 = vunpack.c.l.b16 %v2295
      %v2729 = vunpack.c.h.b16 %v2295
      %v2730 = vunpack.c.l.b16 %v2296
      %v2731 = vunpack.c.h.b16 %v2296
      %v2732 = vunpack.c.l.b16 %v2297
      %v2733 = vunpack.c.h.b16 %v2297
      %v2734 = vunpack.c.l.b16 %v2298
      %v2735 = vunpack.c.h.b16 %v2298
      %v2736 = vunpack.c.l.b16 %v2299
      %v2737 = vunpack.c.h.b16 %v2299
      %v2738 = vunpack.c.l.b16 %v2300
      %v2739 = vunpack.c.h.b16 %v2300
      %v2740 = vunpack.c.l.b16 %v2301
      %v2741 = vunpack.c.h.b16 %v2301
      %v2742 = vunpack.c.l.b16 %v2302
      %v2743 = vunpack.c.h.b16 %v2302
      %v2744 = vunpack.c.l.b16 %v2303
      %v2745 = vunpack.c.h.b16 %v2303
      %v2746 = vunpack.c.l.b16 %v2304
      %v2747 = vunpack.c.h.b16 %v2304
      %v2748 = vunpack.c.l.b16 %v2305
      %v2749 = vunpack.c.h.b16 %v2305
      %v2750 = vunpack.c.l.b16 %v2306
      %v2751 = vunpack.c.h.b16 %v2306
      %v2752 = vunpack.c.l.b16 %v2307
      %v2753 = vunpack.c.h.b16 %v2307
      %v2754 = vunpack.c.l.b16 %v2308
      %v2755 = vunpack.c.h.b16 %v2308
      %v2756 = vunpack.c.l.b16 %v2309
      %v2757 = vunpack.c.h.b16 %v2309
      %v2758 = vunpack.c.l.b16 %v2310
      %v2759 = vunpack.c.h.b16 %v2310
      %v2760 = vunpack.c.l.b16 %v2311
      %v2761 = vunpack.c.h.b16 %v2311
      %v2762 = vunpack.c.l.b16 %v2312
      %v2763 = vunpack.c.h.b16 %v2312
      %v2764 = vunpack.c.l.b16 %v2313
      %v2765 = vunpack.c.h.b16 %v2313
      %v2766 = vunpack.c.l.b16 %v2314
      %v2767 = vunpack.c.h.b16 %v2314
      %v2768 = vunpack.c.l.b16 %v2315
      %v2769 = vunpack.c.h.b16 %v2315
      %v2770 = vunpack.c.l.b16 %v2316
      %v2771 = vunpack.c.h.b16 %v2316
      %v2772 = vunpack.c.l.b16 %v2317
      %v2773 = vunpack.c.h.b16 %v2317
      %v2774 = vunpack.c.l.b16 %v2318
      %v2775 = vunpack.c.h.b16 %v2318
      %v2776 = vunpack.c.l.b16 %v2319
      %v2777 = vunpack.c.h.b16 %v2319
      %v2778 = vunpack.c.l.b16 %v2320
      %v2779 = vunpack.c.h.b16 %v2320
      %v2780 = vpack.c.b16 %v2718, %v2716
      %v2781 = vpack.c.b16 %v2719, %v2717
      %v2782 = vpack.c.b16 %v2722, %v2720
      %v2783 = vpack.c.b16 %v2723, %v2721
      %v2784 = vpack.c.b16 %v2726, %v2724
      %v2785 = vpack.c.b16 %v2727, %v2725
      %v2786 = vpack.c.b16 %v2730, %v2728
      %v2787 = vpack.c.b16 %v2731, %v2729
      %v2788 = vpack.c.b16 %v2734, %v2732
      %v2789 = vpack.c.b16 %v2735, %v2733
      %v2790 = vpack.c.b16 %v2738, %v2736
      %v2791 = vpack.c.b16 %v2739, %v2737
      %v2792 = vpack.c.b16 %v2742, %v2740
      %v2793 = vpack.c.b16 %v2743, %v2741
      %v2794 = vpack.c.b16 %v2746, %v2744
      %v2795 = vpack.c.b16 %v2747, %v2745
      %v2796 = vpack.c.b16 %v2750, %v2748
      %v2797 = vpack.c.b16 %v2751, %v2749
      %v2798 = vpack.c.b16 %v2754, %v2752
      %v2799 = vpack.c.b16 %v2755, %v2753
      %v2800 = vpack.c.b16 %v2758, %v2756
      %v2801 = vpack.c.b16 %v2759, %v2757
      %v2802 = vpack.c.b16 %v2762, %v2760
      %v2803 = vpack.c.b16 %v2763, %v2761
      %v2804 = vpack.c.b16 %v2766, %v2764
      %v2805 = vpack.c.b16 %v2767, %v2765
      %v2806 = vpack.c.b16 %v2770, %v2768
      %v2807 = vpack.c.b16 %v2771, %v2769
      %v2808 = vpack.c.b16 %v2774, %v2772
      %v2809 = vpack.c.b16 %v2775, %v2773
      %v2810 = vpack.c.b16 %v2778, %v2776
      %v2811 = vpack.c.b16 %v2779, %v2777
      %2844 = vmatpush.bf16.msra.mxu0 %v2794
      %2845 = vmatpush.bf16.msra.mxu0 %v2792
      %2846 = vmatpush.bf16.msra.mxu0 %v2790
      %2847 = vmatpush.bf16.msra.mxu0 %v2788
      %2848 = vmatpush.bf16.msra.mxu0 %v2786
      %2849 = vmatpush.bf16.msra.mxu0 %v2784
      %2850 = vmatpush.bf16.msra.mxu0 %v2782
      %2851 = vmatpush.bf16.msra.mxu0 %v2780
      %2852 = vmatmul.bf16.gmra.mxu0 %v2412
      %v2853 = vpop.f32.mrf.mxu0
      %v2854 = vadd.f32 %v2637, %v2853
      %v2855 = vpop.f32.mrf.mxu0
      %v2856 = vadd.f32 %v2639, %v2855
      %2857 = vmatmul.bf16.gmra.mxu0 %v2414
      %v2858 = vpop.f32.mrf.mxu0
      %v2859 = vadd.f32 %v2642, %v2858
      %v2860 = vpop.f32.mrf.mxu0
      %v2861 = vadd.f32 %v2644, %v2860
      %2862 = vdwg.mxu0
      %2863 = vmatpush.bf16.msra.mxu0 %v2810
      %2864 = vmatpush.bf16.msra.mxu0 %v2808
      %2865 = vmatpush.bf16.msra.mxu0 %v2806
      %2866 = vmatpush.bf16.msra.mxu0 %v2804
      %2867 = vmatpush.bf16.msra.mxu0 %v2802
      %2868 = vmatpush.bf16.msra.mxu0 %v2800
      %2869 = vmatpush.bf16.msra.mxu0 %v2798
      %2870 = vmatpush.bf16.msra.mxu0 %v2796
      %2871 = vmatmul.bf16.gmra.mxu0 %v2413
      %v2872 = vpop.f32.mrf.mxu0
      %v2873 = vadd.f32 %v2854, %v2872
      %v2874 = vpop.f32.mrf.mxu0
      %v2875 = vadd.f32 %v2856, %v2874
      %2876 = vmatmul.bf16.gmra.mxu0 %v2415
      %v2877 = vpop.f32.mrf.mxu0
      %v2878 = vadd.f32 %v2859, %v2877
      %v2879 = vpop.f32.mrf.mxu0
      %v2880 = vadd.f32 %v2861, %v2879
      %2881 = vdwg.mxu0
      %2882 = vmatpush.bf16.msra.mxu0 %v2795
      %2883 = vmatpush.bf16.msra.mxu0 %v2793
      %2884 = vmatpush.bf16.msra.mxu0 %v2791
      %2885 = vmatpush.bf16.msra.mxu0 %v2789
      %2886 = vmatpush.bf16.msra.mxu0 %v2787
      %2887 = vmatpush.bf16.msra.mxu0 %v2785
      %2888 = vmatpush.bf16.msra.mxu0 %v2783
      %2889 = vmatpush.bf16.msra.mxu0 %v2781
      %2890 = vmatmul.bf16.gmra.mxu0 %v2412
      %v2891 = vpop.f32.mrf.mxu0
      %v2892 = vadd.f32 %v2675, %v2891
      %v2893 = vpop.f32.mrf.mxu0
      %v2894 = vadd.f32 %v2677, %v2893
      %2895 = vmatmul.bf16.gmra.mxu0 %v2414
      %v2896 = vpop.f32.mrf.mxu0
      %v2897 = vadd.f32 %v2680, %v2896
      %v2898 = vpop.f32.mrf.mxu0
      %v2899 = vadd.f32 %v2682, %v2898
      %2900 = vdwg.mxu0
      %2901 = vmatpush.bf16.msra.mxu0 %v2811
      %2902 = vmatpush.bf16.msra.mxu0 %v2809
      %2903 = vmatpush.bf16.msra.mxu0 %v2807
      %2904 = vmatpush.bf16.msra.mxu0 %v2805
      %2905 = vmatpush.bf16.msra.mxu0 %v2803
      %2906 = vmatpush.bf16.msra.mxu0 %v2801
      %2907 = vmatpush.bf16.msra.mxu0 %v2799
      %2908 = vmatpush.bf16.msra.mxu0 %v2797
      %2909 = vmatmul.bf16.gmra.mxu0 %v2413
      %v2910 = vpop.f32.mrf.mxu0
      %v2911 = vadd.f32 %v2892, %v2910
      %v2912 = vpop.f32.mrf.mxu0
      %v2913 = vadd.f32 %v2894, %v2912
      %2914 = vmatmul.bf16.gmra.mxu0 %v2415
      %v2915 = vpop.f32.mrf.mxu0
      %v2916 = vadd.f32 %v2897, %v2915
      %v2917 = vpop.f32.mrf.mxu0
      %v2918 = vadd.f32 %v2899, %v2917
      %2919 = vdwg.mxu0
      %v2952 = vunpack.c.l.b16 %v2355
      %v2953 = vunpack.c.h.b16 %v2355
      %v2954 = vunpack.c.l.b16 %v2356
      %v2955 = vunpack.c.h.b16 %v2356
      %v2956 = vunpack.c.l.b16 %v2357
      %v2957 = vunpack.c.h.b16 %v2357
      %v2958 = vunpack.c.l.b16 %v2358
      %v2959 = vunpack.c.h.b16 %v2358
      %v2960 = vunpack.c.l.b16 %v2359
      %v2961 = vunpack.c.h.b16 %v2359
      %v2962 = vunpack.c.l.b16 %v2360
      %v2963 = vunpack.c.h.b16 %v2360
      %v2964 = vunpack.c.l.b16 %v2361
      %v2965 = vunpack.c.h.b16 %v2361
      %v2966 = vunpack.c.l.b16 %v2362
      %v2967 = vunpack.c.h.b16 %v2362
      %v2968 = vunpack.c.l.b16 %v2363
      %v2969 = vunpack.c.h.b16 %v2363
      %v2970 = vunpack.c.l.b16 %v2364
      %v2971 = vunpack.c.h.b16 %v2364
      %v2972 = vunpack.c.l.b16 %v2365
      %v2973 = vunpack.c.h.b16 %v2365
      %v2974 = vunpack.c.l.b16 %v2366
      %v2975 = vunpack.c.h.b16 %v2366
      %v2976 = vunpack.c.l.b16 %v2367
      %v2977 = vunpack.c.h.b16 %v2367
      %v2978 = vunpack.c.l.b16 %v2368
      %v2979 = vunpack.c.h.b16 %v2368
      %v2980 = vunpack.c.l.b16 %v2369
      %v2981 = vunpack.c.h.b16 %v2369
      %v2982 = vunpack.c.l.b16 %v2370
      %v2983 = vunpack.c.h.b16 %v2370
      %v2984 = vunpack.c.l.b16 %v2371
      %v2985 = vunpack.c.h.b16 %v2371
      %v2986 = vunpack.c.l.b16 %v2372
      %v2987 = vunpack.c.h.b16 %v2372
      %v2988 = vunpack.c.l.b16 %v2373
      %v2989 = vunpack.c.h.b16 %v2373
      %v2990 = vunpack.c.l.b16 %v2374
      %v2991 = vunpack.c.h.b16 %v2374
      %v2992 = vunpack.c.l.b16 %v2375
      %v2993 = vunpack.c.h.b16 %v2375
      %v2994 = vunpack.c.l.b16 %v2376
      %v2995 = vunpack.c.h.b16 %v2376
      %v2996 = vunpack.c.l.b16 %v2377
      %v2997 = vunpack.c.h.b16 %v2377
      %v2998 = vunpack.c.l.b16 %v2378
      %v2999 = vunpack.c.h.b16 %v2378
      %v3000 = vunpack.c.l.b16 %v2379
      %v3001 = vunpack.c.h.b16 %v2379
      %v3002 = vunpack.c.l.b16 %v2380
      %v3003 = vunpack.c.h.b16 %v2380
      %v3004 = vunpack.c.l.b16 %v2381
      %v3005 = vunpack.c.h.b16 %v2381
      %v3006 = vunpack.c.l.b16 %v2382
      %v3007 = vunpack.c.h.b16 %v2382
      %v3008 = vunpack.c.l.b16 %v2383
      %v3009 = vunpack.c.h.b16 %v2383
      %v3010 = vunpack.c.l.b16 %v2384
      %v3011 = vunpack.c.h.b16 %v2384
      %v3012 = vunpack.c.l.b16 %v2385
      %v3013 = vunpack.c.h.b16 %v2385
      %v3014 = vunpack.c.l.b16 %v2386
      %v3015 = vunpack.c.h.b16 %v2386
      %v3016 = vpack.c.b16 %v2954, %v2952
      %v3017 = vpack.c.b16 %v2955, %v2953
      %v3018 = vpack.c.b16 %v2958, %v2956
      %v3019 = vpack.c.b16 %v2959, %v2957
      %v3020 = vpack.c.b16 %v2962, %v2960
      %v3021 = vpack.c.b16 %v2963, %v2961
      %v3022 = vpack.c.b16 %v2966, %v2964
      %v3023 = vpack.c.b16 %v2967, %v2965
      %v3024 = vpack.c.b16 %v2970, %v2968
      %v3025 = vpack.c.b16 %v2971, %v2969
      %v3026 = vpack.c.b16 %v2974, %v2972
      %v3027 = vpack.c.b16 %v2975, %v2973
      %v3028 = vpack.c.b16 %v2978, %v2976
      %v3029 = vpack.c.b16 %v2979, %v2977
      %v3030 = vpack.c.b16 %v2982, %v2980
      %v3031 = vpack.c.b16 %v2983, %v2981
      %v3032 = vpack.c.b16 %v2986, %v2984
      %v3033 = vpack.c.b16 %v2987, %v2985
      %v3034 = vpack.c.b16 %v2990, %v2988
      %v3035 = vpack.c.b16 %v2991, %v2989
      %v3036 = vpack.c.b16 %v2994, %v2992
      %v3037 = vpack.c.b16 %v2995, %v2993
      %v3038 = vpack.c.b16 %v2998, %v2996
      %v3039 = vpack.c.b16 %v2999, %v2997
      %v3040 = vpack.c.b16 %v3002, %v3000
      %v3041 = vpack.c.b16 %v3003, %v3001
      %v3042 = vpack.c.b16 %v3006, %v3004
      %v3043 = vpack.c.b16 %v3007, %v3005
      %v3044 = vpack.c.b16 %v3010, %v3008
      %v3045 = vpack.c.b16 %v3011, %v3009
      %v3046 = vpack.c.b16 %v3014, %v3012
      %v3047 = vpack.c.b16 %v3015, %v3013
      %3080 = vmatpush.bf16.msra.mxu0 %v3030
      %3081 = vmatpush.bf16.msra.mxu0 %v3028
      %3082 = vmatpush.bf16.msra.mxu0 %v3026
      %3083 = vmatpush.bf16.msra.mxu0 %v3024
      %3084 = vmatpush.bf16.msra.mxu0 %v3022
      %3085 = vmatpush.bf16.msra.mxu0 %v3020
      %3086 = vmatpush.bf16.msra.mxu0 %v3018
      %3087 = vmatpush.bf16.msra.mxu0 %v3016
      %3088 = vmatmul.bf16.gmra.mxu0 %v2440
      %v3089 = vpop.f32.mrf.mxu0
      %v3090 = vadd.f32 0.0, %v3089
      %v3091 = vpop.f32.mrf.mxu0
      %v3092 = vadd.f32 0.0, %v3091
      %3093 = vmatmul.bf16.gmra.mxu0 %v2442
      %v3094 = vpop.f32.mrf.mxu0
      %v3095 = vadd.f32 0.0, %v3094
      %v3096 = vpop.f32.mrf.mxu0
      %v3097 = vadd.f32 0.0, %v3096
      %3098 = vdwg.mxu0
      %3099 = vmatpush.bf16.msra.mxu0 %v3046
      %3100 = vmatpush.bf16.msra.mxu0 %v3044
      %3101 = vmatpush.bf16.msra.mxu0 %v3042
      %3102 = vmatpush.bf16.msra.mxu0 %v3040
      %3103 = vmatpush.bf16.msra.mxu0 %v3038
      %3104 = vmatpush.bf16.msra.mxu0 %v3036
      %3105 = vmatpush.bf16.msra.mxu0 %v3034
      %3106 = vmatpush.bf16.msra.mxu0 %v3032
      %3107 = vmatmul.bf16.gmra.mxu0 %v2441
      %v3108 = vpop.f32.mrf.mxu0
      %v3109 = vadd.f32 %v3090, %v3108
      %v3110 = vpop.f32.mrf.mxu0
      %v3111 = vadd.f32 %v3092, %v3110
      %3112 = vmatmul.bf16.gmra.mxu0 %v2443
      %v3113 = vpop.f32.mrf.mxu0
      %v3114 = vadd.f32 %v3095, %v3113
      %v3115 = vpop.f32.mrf.mxu0
      %v3116 = vadd.f32 %v3097, %v3115
      %3117 = vdwg.mxu0
      %3118 = vmatpush.bf16.msra.mxu0 %v3031
      %3119 = vmatpush.bf16.msra.mxu0 %v3029
      %3120 = vmatpush.bf16.msra.mxu0 %v3027
      %3121 = vmatpush.bf16.msra.mxu0 %v3025
      %3122 = vmatpush.bf16.msra.mxu0 %v3023
      %3123 = vmatpush.bf16.msra.mxu0 %v3021
      %3124 = vmatpush.bf16.msra.mxu0 %v3019
      %3125 = vmatpush.bf16.msra.mxu0 %v3017
      %3126 = vmatmul.bf16.gmra.mxu0 %v2440
      %v3127 = vpop.f32.mrf.mxu0
      %v3128 = vadd.f32 0.0, %v3127
      %v3129 = vpop.f32.mrf.mxu0
      %v3130 = vadd.f32 0.0, %v3129
      %3131 = vmatmul.bf16.gmra.mxu0 %v2442
      %v3132 = vpop.f32.mrf.mxu0
      %v3133 = vadd.f32 0.0, %v3132
      %v3134 = vpop.f32.mrf.mxu0
      %v3135 = vadd.f32 0.0, %v3134
      %3136 = vdwg.mxu0
      %3137 = vmatpush.bf16.msra.mxu0 %v3047
      %3138 = vmatpush.bf16.msra.mxu0 %v3045
      %3139 = vmatpush.bf16.msra.mxu0 %v3043
      %3140 = vmatpush.bf16.msra.mxu0 %v3041
      %3141 = vmatpush.bf16.msra.mxu0 %v3039
      %3142 = vmatpush.bf16.msra.mxu0 %v3037
      %3143 = vmatpush.bf16.msra.mxu0 %v3035
      %3144 = vmatpush.bf16.msra.mxu0 %v3033
      %3145 = vmatmul.bf16.gmra.mxu0 %v2441
      %v3146 = vpop.f32.mrf.mxu0
      %v3147 = vadd.f32 %v3128, %v3146
      %v3148 = vpop.f32.mrf.mxu0
      %v3149 = vadd.f32 %v3130, %v3148
      %3150 = vmatmul.bf16.gmra.mxu0 %v2443
      %v3151 = vpop.f32.mrf.mxu0
      %v3152 = vadd.f32 %v3133, %v3151
      %v3153 = vpop.f32.mrf.mxu0
      %v3154 = vadd.f32 %v3135, %v3153
      %3155 = vdwg.mxu0
      %v3156 = vadd.f32 %v2873, %v3109
      %v3157 = vadd.f32 %v2911, %v3147
      %v3158 = vadd.f32 %v2875, %v3111
      %v3159 = vadd.f32 %v2913, %v3149
      %v3160 = vadd.f32 %v2878, %v3114
      %v3161 = vadd.f32 %v2916, %v3152
      %v3162 = vadd.f32 %v2880, %v3116
      %v3163 = vadd.f32 %v2918, %v3154
      %v3165 = vperm.slane %v2387, 0
      %v3166 = vperm.slane %v2387, 1
      %v3169 = vadd.f32 %v3156, %v3165
      %v3170 = vadd.f32 %v3157, %v3166
      %v3171 = vadd.f32 %v3158, %v3165
      %v3172 = vadd.f32 %v3159, %v3166
      %v3173 = vadd.f32 %v3160, %v3165
      %v3174 = vadd.f32 %v3161, %v3166
      %v3175 = vadd.f32 %v3162, %v3165
      %v3176 = vadd.f32 %v3163, %v3166
      %v3177 = vpack.c.bf16 %v3171, %v3169
      %v3178 = vpack.c.bf16 %v3172, %v3170
      %v3179 = vpack.c.bf16 %v3175, %v3173
      %v3180 = vpack.c.bf16 %v3176, %v3174
      %v3181 = vld [vmem:[%s31] sm:$0xff]
      %v3182 = vld [vmem:[%s31 + $0x8] sm:$0xff]
      %v3183 = vld [vmem:[%s31 + $0x10] sm:$0xff]
      %v3184 = vld [vmem:[%s31 + $0x18] sm:$0xff]
      %v3185 = vld [vmem:[%s31 + $0x20] sm:$0xff]
      %v3186 = vld [vmem:[%s31 + $0x28] sm:$0xff]
      %v3187 = vld [vmem:[%s31 + $0x30] sm:$0xff]
      %v3188 = vld [vmem:[%s31 + $0x38] sm:$0xff]
      %v3189 = vld [vmem:[%s31 + $0x40] sm:$0xff]
      %v3190 = vld [vmem:[%s31 + $0x48] sm:$0xff]
      %v3191 = vld [vmem:[%s31 + $0x50] sm:$0xff]
      %v3192 = vld [vmem:[%s31 + $0x58] sm:$0xff]
      %v3193 = vld [vmem:[%s31 + $0x60] sm:$0xff]
      %v3194 = vld [vmem:[%s31 + $0x68] sm:$0xff]
      %v3195 = vld [vmem:[%s31 + $0x70] sm:$0xff]
      %v3196 = vld [vmem:[%s31 + $0x78] sm:$0xff]
      %v3197 = vld [vmem:[%s31 + $0x80] sm:$0xff]
      %v3198 = vld [vmem:[%s31 + $0x88] sm:$0xff]
      %v3199 = vld [vmem:[%s31 + $0x90] sm:$0xff]
      %v3200 = vld [vmem:[%s31 + $0x98] sm:$0xff]
      %v3201 = vld [vmem:[%s31 + $0xa0] sm:$0xff]
      %v3202 = vld [vmem:[%s31 + $0xa8] sm:$0xff]
      %v3203 = vld [vmem:[%s31 + $0xb0] sm:$0xff]
      %v3204 = vld [vmem:[%s31 + $0xb8] sm:$0xff]
      %v3205 = vld [vmem:[%s31 + $0xc0] sm:$0xff]
      %v3206 = vld [vmem:[%s31 + $0xc8] sm:$0xff]
      %v3207 = vld [vmem:[%s31 + $0xd0] sm:$0xff]
      %v3208 = vld [vmem:[%s31 + $0xd8] sm:$0xff]
      %v3209 = vld [vmem:[%s31 + $0xe0] sm:$0xff]
      %v3210 = vld [vmem:[%s31 + $0xe8] sm:$0xff]
      %v3211 = vld [vmem:[%s31 + $0xf0] sm:$0xff]
      %v3212 = vld [vmem:[%s31 + $0xf8] sm:$0xff]
      %v3213 = vld [vmem:[%s33] sm:$0x3]
      %v3215 = vperm.slane %v3213, 0
      %v3216 = vperm.slane %v3213, 1
      %v3251 = vunpack.c.l.b16 %v3181
      %v3252 = vunpack.c.h.b16 %v3181
      %v3253 = vunpack.c.l.b16 %v3182
      %v3254 = vunpack.c.h.b16 %v3182
      %v3255 = vunpack.c.l.b16 %v3183
      %v3256 = vunpack.c.h.b16 %v3183
      %v3257 = vunpack.c.l.b16 %v3184
      %v3258 = vunpack.c.h.b16 %v3184
      %v3259 = vunpack.c.l.b16 %v3185
      %v3260 = vunpack.c.h.b16 %v3185
      %v3261 = vunpack.c.l.b16 %v3186
      %v3262 = vunpack.c.h.b16 %v3186
      %v3263 = vunpack.c.l.b16 %v3187
      %v3264 = vunpack.c.h.b16 %v3187
      %v3265 = vunpack.c.l.b16 %v3188
      %v3266 = vunpack.c.h.b16 %v3188
      %v3267 = vunpack.c.l.b16 %v3189
      %v3268 = vunpack.c.h.b16 %v3189
      %v3269 = vunpack.c.l.b16 %v3190
      %v3270 = vunpack.c.h.b16 %v3190
      %v3271 = vunpack.c.l.b16 %v3191
      %v3272 = vunpack.c.h.b16 %v3191
      %v3273 = vunpack.c.l.b16 %v3192
      %v3274 = vunpack.c.h.b16 %v3192
      %v3275 = vunpack.c.l.b16 %v3193
      %v3276 = vunpack.c.h.b16 %v3193
      %v3277 = vunpack.c.l.b16 %v3194
      %v3278 = vunpack.c.h.b16 %v3194
      %v3279 = vunpack.c.l.b16 %v3195
      %v3280 = vunpack.c.h.b16 %v3195
      %v3281 = vunpack.c.l.b16 %v3196
      %v3282 = vunpack.c.h.b16 %v3196
      %v3283 = vunpack.c.l.b16 %v3197
      %v3284 = vunpack.c.h.b16 %v3197
      %v3285 = vunpack.c.l.b16 %v3198
      %v3286 = vunpack.c.h.b16 %v3198
      %v3287 = vunpack.c.l.b16 %v3199
      %v3288 = vunpack.c.h.b16 %v3199
      %v3289 = vunpack.c.l.b16 %v3200
      %v3290 = vunpack.c.h.b16 %v3200
      %v3291 = vunpack.c.l.b16 %v3201
      %v3292 = vunpack.c.h.b16 %v3201
      %v3293 = vunpack.c.l.b16 %v3202
      %v3294 = vunpack.c.h.b16 %v3202
      %v3295 = vunpack.c.l.b16 %v3203
      %v3296 = vunpack.c.h.b16 %v3203
      %v3297 = vunpack.c.l.b16 %v3204
      %v3298 = vunpack.c.h.b16 %v3204
      %v3299 = vunpack.c.l.b16 %v3205
      %v3300 = vunpack.c.h.b16 %v3205
      %v3301 = vunpack.c.l.b16 %v3206
      %v3302 = vunpack.c.h.b16 %v3206
      %v3303 = vunpack.c.l.b16 %v3207
      %v3304 = vunpack.c.h.b16 %v3207
      %v3305 = vunpack.c.l.b16 %v3208
      %v3306 = vunpack.c.h.b16 %v3208
      %v3307 = vunpack.c.l.b16 %v3209
      %v3308 = vunpack.c.h.b16 %v3209
      %v3309 = vunpack.c.l.b16 %v3210
      %v3310 = vunpack.c.h.b16 %v3210
      %v3311 = vunpack.c.l.b16 %v3211
      %v3312 = vunpack.c.h.b16 %v3211
      %v3313 = vunpack.c.l.b16 %v3212
      %v3314 = vunpack.c.h.b16 %v3212
      %v3315 = vpack.c.b16 %v3253, %v3251
      %v3316 = vpack.c.b16 %v3254, %v3252
      %v3317 = vpack.c.b16 %v3257, %v3255
      %v3318 = vpack.c.b16 %v3258, %v3256
      %v3319 = vpack.c.b16 %v3261, %v3259
      %v3320 = vpack.c.b16 %v3262, %v3260
      %v3321 = vpack.c.b16 %v3265, %v3263
      %v3322 = vpack.c.b16 %v3266, %v3264
      %v3323 = vpack.c.b16 %v3269, %v3267
      %v3324 = vpack.c.b16 %v3270, %v3268
      %v3325 = vpack.c.b16 %v3273, %v3271
      %v3326 = vpack.c.b16 %v3274, %v3272
      %v3327 = vpack.c.b16 %v3277, %v3275
      %v3328 = vpack.c.b16 %v3278, %v3276
      %v3329 = vpack.c.b16 %v3281, %v3279
      %v3330 = vpack.c.b16 %v3282, %v3280
      %v3331 = vpack.c.b16 %v3285, %v3283
      %v3332 = vpack.c.b16 %v3286, %v3284
      %v3333 = vpack.c.b16 %v3289, %v3287
      %v3334 = vpack.c.b16 %v3290, %v3288
      %v3335 = vpack.c.b16 %v3293, %v3291
      %v3336 = vpack.c.b16 %v3294, %v3292
      %v3337 = vpack.c.b16 %v3297, %v3295
      %v3338 = vpack.c.b16 %v3298, %v3296
      %v3339 = vpack.c.b16 %v3301, %v3299
      %v3340 = vpack.c.b16 %v3302, %v3300
      %v3341 = vpack.c.b16 %v3305, %v3303
      %v3342 = vpack.c.b16 %v3306, %v3304
      %v3343 = vpack.c.b16 %v3309, %v3307
      %v3344 = vpack.c.b16 %v3310, %v3308
      %v3345 = vpack.c.b16 %v3313, %v3311
      %v3346 = vpack.c.b16 %v3314, %v3312
      %3379 = vmatpush.bf16.msra.mxu0 %v3329
      %3380 = vmatpush.bf16.msra.mxu0 %v3327
      %3381 = vmatpush.bf16.msra.mxu0 %v3325
      %3382 = vmatpush.bf16.msra.mxu0 %v3323
      %3383 = vmatpush.bf16.msra.mxu0 %v3321
      %3384 = vmatpush.bf16.msra.mxu0 %v3319
      %3385 = vmatpush.bf16.msra.mxu0 %v3317
      %3386 = vmatpush.bf16.msra.mxu0 %v3315
      %3387 = vmatmul.bf16.gmra.mxu0 %v3177
      %v3388 = vpop.f32.mrf.mxu0
      %v3389 = vadd.f32 %v3215, %v3388
      %v3390 = vpop.f32.mrf.mxu0
      %v3391 = vadd.f32 %v3215, %v3390
      %3392 = vmatmul.bf16.gmra.mxu0 %v3179
      %v3393 = vpop.f32.mrf.mxu0
      %v3394 = vadd.f32 %v3215, %v3393
      %v3395 = vpop.f32.mrf.mxu0
      %v3396 = vadd.f32 %v3215, %v3395
      %3397 = vdwg.mxu0
      %3398 = vmatpush.bf16.msra.mxu0 %v3345
      %3399 = vmatpush.bf16.msra.mxu0 %v3343
      %3400 = vmatpush.bf16.msra.mxu0 %v3341
      %3401 = vmatpush.bf16.msra.mxu0 %v3339
      %3402 = vmatpush.bf16.msra.mxu0 %v3337
      %3403 = vmatpush.bf16.msra.mxu0 %v3335
      %3404 = vmatpush.bf16.msra.mxu0 %v3333
      %3405 = vmatpush.bf16.msra.mxu0 %v3331
      %3406 = vmatmul.bf16.gmra.mxu0 %v3178
      %v3407 = vpop.f32.mrf.mxu0
      %v3408 = vadd.f32 %v3389, %v3407
      %v3409 = vpop.f32.mrf.mxu0
      %v3410 = vadd.f32 %v3391, %v3409
      %3411 = vmatmul.bf16.gmra.mxu0 %v3180
      %v3412 = vpop.f32.mrf.mxu0
      %v3413 = vadd.f32 %v3394, %v3412
      %v3414 = vpop.f32.mrf.mxu0
      %v3415 = vadd.f32 %v3396, %v3414
      %3416 = vdwg.mxu0
      %3417 = vmatpush.bf16.msra.mxu0 %v3330
      %3418 = vmatpush.bf16.msra.mxu0 %v3328
      %3419 = vmatpush.bf16.msra.mxu0 %v3326
      %3420 = vmatpush.bf16.msra.mxu0 %v3324
      %3421 = vmatpush.bf16.msra.mxu0 %v3322
      %3422 = vmatpush.bf16.msra.mxu0 %v3320
      %3423 = vmatpush.bf16.msra.mxu0 %v3318
      %3424 = vmatpush.bf16.msra.mxu0 %v3316
      %3425 = vmatmul.bf16.gmra.mxu0 %v3177
      %v3426 = vpop.f32.mrf.mxu0
      %v3427 = vadd.f32 %v3216, %v3426
      %v3428 = vpop.f32.mrf.mxu0
      %v3429 = vadd.f32 %v3216, %v3428
      %3430 = vmatmul.bf16.gmra.mxu0 %v3179
      %v3431 = vpop.f32.mrf.mxu0
      %v3432 = vadd.f32 %v3216, %v3431
      %v3433 = vpop.f32.mrf.mxu0
      %v3434 = vadd.f32 %v3216, %v3433
      %3435 = vdwg.mxu0
      %3436 = vmatpush.bf16.msra.mxu0 %v3346
      %3437 = vmatpush.bf16.msra.mxu0 %v3344
      %3438 = vmatpush.bf16.msra.mxu0 %v3342
      %3439 = vmatpush.bf16.msra.mxu0 %v3340
      %3440 = vmatpush.bf16.msra.mxu0 %v3338
      %3441 = vmatpush.bf16.msra.mxu0 %v3336
      %3442 = vmatpush.bf16.msra.mxu0 %v3334
      %3443 = vmatpush.bf16.msra.mxu0 %v3332
      %3444 = vmatmul.bf16.gmra.mxu0 %v3178
      %v3445 = vpop.f32.mrf.mxu0
      %v3446 = vadd.f32 %v3427, %v3445
      %v3447 = vpop.f32.mrf.mxu0
      %v3448 = vadd.f32 %v3429, %v3447
      %3449 = vmatmul.bf16.gmra.mxu0 %v3180
      %v3450 = vpop.f32.mrf.mxu0
      %v3451 = vadd.f32 %v3432, %v3450
      %v3452 = vpop.f32.mrf.mxu0
      %v3453 = vadd.f32 %v3434, %v3452
      %3454 = vdwg.mxu0
      %v3455 = vmax.f32 %v3408, 0.0
      %v3456 = vmax.f32 %v3446, 0.0
      %v3457 = vmax.f32 %v3410, 0.0
      %v3458 = vmax.f32 %v3448, 0.0
      %v3459 = vmax.f32 %v3413, 0.0
      %v3460 = vmax.f32 %v3451, 0.0
      %v3461 = vmax.f32 %v3415, 0.0
      %v3462 = vmax.f32 %v3453, 0.0
      %v3463 = vld [vmem:[%s47] sm:$0xf]
      %v3464 = vld [vmem:[%s47 + $0x4] sm:$0xf]
      %v3465 = vpack.c.bf16 %v3457, %v3455
      %v3466 = vpack.c.bf16 %v3458, %v3456
      %v3467 = vpack.c.bf16 %v3461, %v3459
      %v3468 = vpack.c.bf16 %v3462, %v3460
      %v3471 = vunpack.c.l.b16 %v3463
      %v3472 = vunpack.c.l.b16 %v3464
      %v3473 = vpack.c.b16 %v3472, %v3471
      %vm3474 = vcmask 261120
      %v3476 = vsel %vm3474, %v3473, 0
      %3478 = vmatpush.bf16.msra.mxu0 0
      %3479 = vmatpush.bf16.msra.mxu0 0
      %3480 = vmatpush.bf16.msra.mxu0 0
      %3481 = vmatpush.bf16.msra.mxu0 0
      %3482 = vmatpush.bf16.msra.mxu0 0
      %3483 = vmatpush.bf16.msra.mxu0 0
      %3484 = vmatpush.bf16.msra.mxu0 %v3467
      %3485 = vmatpush.bf16.msra.mxu0 %v3465
      %3486 = vmatmul.bf16.gmra.mxu0 %v3476
      %v3487 = vpop.f32.mrf.mxu0
      %v3488 = vadd.f32 0.0, %v3487
      %v3489 = vpop.f32.mrf.mxu0
      %v3490 = vadd.f32 0.0, %v3489
      %3491 = vdwg.mxu0
      %3492 = vmatpush.bf16.msra.mxu0 0
      %3493 = vmatpush.bf16.msra.mxu0 0
      %3494 = vmatpush.bf16.msra.mxu0 0
      %3495 = vmatpush.bf16.msra.mxu0 0
      %3496 = vmatpush.bf16.msra.mxu0 0
      %3497 = vmatpush.bf16.msra.mxu0 0
      %3498 = vmatpush.bf16.msra.mxu0 %v3468
      %3499 = vmatpush.bf16.msra.mxu0 %v3466
      %3500 = vmatmul.bf16.gmra.mxu0 %v3476
      %v3501 = vpop.f32.mrf.mxu0
      %v3502 = vadd.f32 0.0, %v3501
      %v3503 = vpop.f32.mrf.mxu0
      %v3504 = vadd.f32 0.0, %v3503
      %3505 = vdwg.mxu0
      %v3506 = vpack.c.bf16 %v3490, %v3488
      %v3507 = vpack.c.bf16 %v3504, %v3502
      %v3508 = vld [vmem:[%s35] sm:$0xff]
      %v3509 = vld [vmem:[%s35 + $0x8] sm:$0xff]
      %v3510 = vld [vmem:[%s35 + $0x10] sm:$0xff]
      %v3511 = vld [vmem:[%s35 + $0x18] sm:$0xff]
      %v3512 = vld [vmem:[%s35 + $0x20] sm:$0xff]
      %v3513 = vld [vmem:[%s35 + $0x28] sm:$0xff]
      %v3514 = vld [vmem:[%s35 + $0x30] sm:$0xff]
      %v3515 = vld [vmem:[%s35 + $0x38] sm:$0xff]
      %v3516 = vld [vmem:[%s35 + $0x40] sm:$0xff]
      %v3517 = vld [vmem:[%s35 + $0x48] sm:$0xff]
      %v3518 = vld [vmem:[%s35 + $0x50] sm:$0xff]
      %v3519 = vld [vmem:[%s35 + $0x58] sm:$0xff]
      %v3520 = vld [vmem:[%s35 + $0x60] sm:$0xff]
      %v3521 = vld [vmem:[%s35 + $0x68] sm:$0xff]
      %v3522 = vld [vmem:[%s35 + $0x70] sm:$0xff]
      %v3523 = vld [vmem:[%s35 + $0x78] sm:$0xff]
      %v3524 = vld [vmem:[%s35 + $0x80] sm:$0xff]
      %v3525 = vld [vmem:[%s35 + $0x88] sm:$0xff]
      %v3526 = vld [vmem:[%s35 + $0x90] sm:$0xff]
      %v3527 = vld [vmem:[%s35 + $0x98] sm:$0xff]
      %v3528 = vld [vmem:[%s35 + $0xa0] sm:$0xff]
      %v3529 = vld [vmem:[%s35 + $0xa8] sm:$0xff]
      %v3530 = vld [vmem:[%s35 + $0xb0] sm:$0xff]
      %v3531 = vld [vmem:[%s35 + $0xb8] sm:$0xff]
      %v3532 = vld [vmem:[%s35 + $0xc0] sm:$0xff]
      %v3533 = vld [vmem:[%s35 + $0xc8] sm:$0xff]
      %v3534 = vld [vmem:[%s35 + $0xd0] sm:$0xff]
      %v3535 = vld [vmem:[%s35 + $0xd8] sm:$0xff]
      %v3536 = vld [vmem:[%s35 + $0xe0] sm:$0xff]
      %v3537 = vld [vmem:[%s35 + $0xe8] sm:$0xff]
      %v3538 = vld [vmem:[%s35 + $0xf0] sm:$0xff]
      %v3539 = vld [vmem:[%s35 + $0xf8] sm:$0xff]
      %v3540 = vld [vmem:[%s37] sm:$0x3]
      %v3542 = vperm.slane %v3540, 0
      %v3543 = vperm.slane %v3540, 1
      %v3578 = vunpack.c.l.b16 %v3508
      %v3579 = vunpack.c.h.b16 %v3508
      %v3580 = vunpack.c.l.b16 %v3509
      %v3581 = vunpack.c.h.b16 %v3509
      %v3582 = vunpack.c.l.b16 %v3510
      %v3583 = vunpack.c.h.b16 %v3510
      %v3584 = vunpack.c.l.b16 %v3511
      %v3585 = vunpack.c.h.b16 %v3511
      %v3586 = vunpack.c.l.b16 %v3512
      %v3587 = vunpack.c.h.b16 %v3512
      %v3588 = vunpack.c.l.b16 %v3513
      %v3589 = vunpack.c.h.b16 %v3513
      %v3590 = vunpack.c.l.b16 %v3514
      %v3591 = vunpack.c.h.b16 %v3514
      %v3592 = vunpack.c.l.b16 %v3515
      %v3593 = vunpack.c.h.b16 %v3515
      %v3594 = vunpack.c.l.b16 %v3516
      %v3595 = vunpack.c.h.b16 %v3516
      %v3596 = vunpack.c.l.b16 %v3517
      %v3597 = vunpack.c.h.b16 %v3517
      %v3598 = vunpack.c.l.b16 %v3518
      %v3599 = vunpack.c.h.b16 %v3518
      %v3600 = vunpack.c.l.b16 %v3519
      %v3601 = vunpack.c.h.b16 %v3519
      %v3602 = vunpack.c.l.b16 %v3520
      %v3603 = vunpack.c.h.b16 %v3520
      %v3604 = vunpack.c.l.b16 %v3521
      %v3605 = vunpack.c.h.b16 %v3521
      %v3606 = vunpack.c.l.b16 %v3522
      %v3607 = vunpack.c.h.b16 %v3522
      %v3608 = vunpack.c.l.b16 %v3523
      %v3609 = vunpack.c.h.b16 %v3523
      %v3610 = vunpack.c.l.b16 %v3524
      %v3611 = vunpack.c.h.b16 %v3524
      %v3612 = vunpack.c.l.b16 %v3525
      %v3613 = vunpack.c.h.b16 %v3525
      %v3614 = vunpack.c.l.b16 %v3526
      %v3615 = vunpack.c.h.b16 %v3526
      %v3616 = vunpack.c.l.b16 %v3527
      %v3617 = vunpack.c.h.b16 %v3527
      %v3618 = vunpack.c.l.b16 %v3528
      %v3619 = vunpack.c.h.b16 %v3528
      %v3620 = vunpack.c.l.b16 %v3529
      %v3621 = vunpack.c.h.b16 %v3529
      %v3622 = vunpack.c.l.b16 %v3530
      %v3623 = vunpack.c.h.b16 %v3530
      %v3624 = vunpack.c.l.b16 %v3531
      %v3625 = vunpack.c.h.b16 %v3531
      %v3626 = vunpack.c.l.b16 %v3532
      %v3627 = vunpack.c.h.b16 %v3532
      %v3628 = vunpack.c.l.b16 %v3533
      %v3629 = vunpack.c.h.b16 %v3533
      %v3630 = vunpack.c.l.b16 %v3534
      %v3631 = vunpack.c.h.b16 %v3534
      %v3632 = vunpack.c.l.b16 %v3535
      %v3633 = vunpack.c.h.b16 %v3535
      %v3634 = vunpack.c.l.b16 %v3536
      %v3635 = vunpack.c.h.b16 %v3536
      %v3636 = vunpack.c.l.b16 %v3537
      %v3637 = vunpack.c.h.b16 %v3537
      %v3638 = vunpack.c.l.b16 %v3538
      %v3639 = vunpack.c.h.b16 %v3538
      %v3640 = vunpack.c.l.b16 %v3539
      %v3641 = vunpack.c.h.b16 %v3539
      %v3642 = vpack.c.b16 %v3580, %v3578
      %v3643 = vpack.c.b16 %v3581, %v3579
      %v3644 = vpack.c.b16 %v3584, %v3582
      %v3645 = vpack.c.b16 %v3585, %v3583
      %v3646 = vpack.c.b16 %v3588, %v3586
      %v3647 = vpack.c.b16 %v3589, %v3587
      %v3648 = vpack.c.b16 %v3592, %v3590
      %v3649 = vpack.c.b16 %v3593, %v3591
      %v3650 = vpack.c.b16 %v3596, %v3594
      %v3651 = vpack.c.b16 %v3597, %v3595
      %v3652 = vpack.c.b16 %v3600, %v3598
      %v3653 = vpack.c.b16 %v3601, %v3599
      %v3654 = vpack.c.b16 %v3604, %v3602
      %v3655 = vpack.c.b16 %v3605, %v3603
      %v3656 = vpack.c.b16 %v3608, %v3606
      %v3657 = vpack.c.b16 %v3609, %v3607
      %v3658 = vpack.c.b16 %v3612, %v3610
      %v3659 = vpack.c.b16 %v3613, %v3611
      %v3660 = vpack.c.b16 %v3616, %v3614
      %v3661 = vpack.c.b16 %v3617, %v3615
      %v3662 = vpack.c.b16 %v3620, %v3618
      %v3663 = vpack.c.b16 %v3621, %v3619
      %v3664 = vpack.c.b16 %v3624, %v3622
      %v3665 = vpack.c.b16 %v3625, %v3623
      %v3666 = vpack.c.b16 %v3628, %v3626
      %v3667 = vpack.c.b16 %v3629, %v3627
      %v3668 = vpack.c.b16 %v3632, %v3630
      %v3669 = vpack.c.b16 %v3633, %v3631
      %v3670 = vpack.c.b16 %v3636, %v3634
      %v3671 = vpack.c.b16 %v3637, %v3635
      %v3672 = vpack.c.b16 %v3640, %v3638
      %v3673 = vpack.c.b16 %v3641, %v3639
      %3706 = vmatpush.bf16.msra.mxu0 %v3656
      %3707 = vmatpush.bf16.msra.mxu0 %v3654
      %3708 = vmatpush.bf16.msra.mxu0 %v3652
      %3709 = vmatpush.bf16.msra.mxu0 %v3650
      %3710 = vmatpush.bf16.msra.mxu0 %v3648
      %3711 = vmatpush.bf16.msra.mxu0 %v3646
      %3712 = vmatpush.bf16.msra.mxu0 %v3644
      %3713 = vmatpush.bf16.msra.mxu0 %v3642
      %3714 = vmatmul.bf16.gmra.mxu0 %v3506
      %v3715 = vpop.f32.mrf.mxu0
      %v3716 = vadd.f32 %v3542, %v3715
      %v3717 = vpop.f32.mrf.mxu0
      %v3718 = vadd.f32 %v3542, %v3717
      %3719 = vdwg.mxu0
      %3720 = vmatpush.bf16.msra.mxu0 %v3672
      %3721 = vmatpush.bf16.msra.mxu0 %v3670
      %3722 = vmatpush.bf16.msra.mxu0 %v3668
      %3723 = vmatpush.bf16.msra.mxu0 %v3666
      %3724 = vmatpush.bf16.msra.mxu0 %v3664
      %3725 = vmatpush.bf16.msra.mxu0 %v3662
      %3726 = vmatpush.bf16.msra.mxu0 %v3660
      %3727 = vmatpush.bf16.msra.mxu0 %v3658
      %3728 = vmatmul.bf16.gmra.mxu0 %v3507
      %v3729 = vpop.f32.mrf.mxu0
      %v3730 = vadd.f32 %v3716, %v3729
      %v3731 = vpop.f32.mrf.mxu0
      %v3732 = vadd.f32 %v3718, %v3731
      %3733 = vdwg.mxu0
      %3734 = vmatpush.bf16.msra.mxu0 %v3657
      %3735 = vmatpush.bf16.msra.mxu0 %v3655
      %3736 = vmatpush.bf16.msra.mxu0 %v3653
      %3737 = vmatpush.bf16.msra.mxu0 %v3651
      %3738 = vmatpush.bf16.msra.mxu0 %v3649
      %3739 = vmatpush.bf16.msra.mxu0 %v3647
      %3740 = vmatpush.bf16.msra.mxu0 %v3645
      %3741 = vmatpush.bf16.msra.mxu0 %v3643
      %3742 = vmatmul.bf16.gmra.mxu0 %v3506
      %v3743 = vpop.f32.mrf.mxu0
      %v3744 = vadd.f32 %v3543, %v3743
      %v3745 = vpop.f32.mrf.mxu0
      %v3746 = vadd.f32 %v3543, %v3745
      %3747 = vdwg.mxu0
      %3748 = vmatpush.bf16.msra.mxu0 %v3673
      %3749 = vmatpush.bf16.msra.mxu0 %v3671
      %3750 = vmatpush.bf16.msra.mxu0 %v3669
      %3751 = vmatpush.bf16.msra.mxu0 %v3667
      %3752 = vmatpush.bf16.msra.mxu0 %v3665
      %3753 = vmatpush.bf16.msra.mxu0 %v3663
      %3754 = vmatpush.bf16.msra.mxu0 %v3661
      %3755 = vmatpush.bf16.msra.mxu0 %v3659
      %3756 = vmatmul.bf16.gmra.mxu0 %v3507
      %v3757 = vpop.f32.mrf.mxu0
      %v3758 = vadd.f32 %v3744, %v3757
      %v3759 = vpop.f32.mrf.mxu0
      %v3760 = vadd.f32 %v3746, %v3759
      %3761 = vdwg.mxu0
      %v3762 = vmax.f32 %v3730, 0.0
      %v3763 = vmax.f32 %v3758, 0.0
      %v3764 = vmax.f32 %v3732, 0.0
      %v3765 = vmax.f32 %v3760, 0.0
      %v3766 = vld [vmem:[%s49] sm:$0xf]
      %v3767 = vpack.c.bf16 %v3764, %v3762
      %v3768 = vpack.c.bf16 %v3765, %v3763
      %vm3769 = vcmask 130048
      %v3771 = vsel %vm3769, %v3766, 0
      %3773 = vmatpush.bf16.msra.mxu0 0
      %3774 = vmatpush.bf16.msra.mxu0 0
      %3775 = vmatpush.bf16.msra.mxu0 0
      %3776 = vmatpush.bf16.msra.mxu0 0
      %3777 = vmatpush.bf16.msra.mxu0 0
      %3778 = vmatpush.bf16.msra.mxu0 0
      %3779 = vmatpush.bf16.msra.mxu0 0
      %3780 = vmatpush.bf16.msra.mxu0 %v3767
      %3781 = vmatmul.bf16.gmra.mxu0 %v3771
      %v3782 = vpop.f32.mrf.mxu0
      %v3783 = vadd.f32 0.0, %v3782
      %v3784 = vpop.f32.mrf.mxu0
      %3785 = vdwg.mxu0
      %3786 = vmatpush.bf16.msra.mxu0 0
      %3787 = vmatpush.bf16.msra.mxu0 0
      %3788 = vmatpush.bf16.msra.mxu0 0
      %3789 = vmatpush.bf16.msra.mxu0 0
      %3790 = vmatpush.bf16.msra.mxu0 0
      %3791 = vmatpush.bf16.msra.mxu0 0
      %3792 = vmatpush.bf16.msra.mxu0 0
      %3793 = vmatpush.bf16.msra.mxu0 %v3768
      %3794 = vmatmul.bf16.gmra.mxu0 %v3771
      %v3795 = vpop.f32.mrf.mxu0
      %v3796 = vadd.f32 0.0, %v3795
      %v3797 = vpop.f32.mrf.mxu0
      %3798 = vdwg.mxu0
      %v3799 = vpack.c.bf16 %v3783, %v3783
      %v3800 = vpack.c.bf16 %v3796, %v3796
      %v3801 = vld [vmem:[%s39] sm:$0xf]
      %v3802 = vld [vmem:[%s39 + $0x4] sm:$0xf]
      %v3803 = vld [vmem:[%s39 + $0x8] sm:$0xf]
      %v3804 = vld [vmem:[%s39 + $0xc] sm:$0xf]
      %v3805 = vld [vmem:[%s39 + $0x10] sm:$0xf]
      %v3806 = vld [vmem:[%s39 + $0x14] sm:$0xf]
      %v3807 = vld [vmem:[%s39 + $0x18] sm:$0xf]
      %v3808 = vld [vmem:[%s39 + $0x1c] sm:$0xf]
      %v3809 = vld [vmem:[%s39 + $0x20] sm:$0xf]
      %v3810 = vld [vmem:[%s39 + $0x24] sm:$0xf]
      %v3811 = vld [vmem:[%s39 + $0x28] sm:$0xf]
      %v3812 = vld [vmem:[%s39 + $0x2c] sm:$0xf]
      %v3813 = vld [vmem:[%s39 + $0x30] sm:$0xf]
      %v3814 = vld [vmem:[%s39 + $0x34] sm:$0xf]
      %v3815 = vld [vmem:[%s39 + $0x38] sm:$0xf]
      %v3816 = vld [vmem:[%s39 + $0x3c] sm:$0xf]
      %v3817 = vld [vmem:[%s39 + $0x40] sm:$0xf]
      %v3818 = vld [vmem:[%s39 + $0x44] sm:$0xf]
      %v3819 = vld [vmem:[%s39 + $0x48] sm:$0xf]
      %v3820 = vld [vmem:[%s39 + $0x4c] sm:$0xf]
      %v3821 = vld [vmem:[%s39 + $0x50] sm:$0xf]
      %v3822 = vld [vmem:[%s39 + $0x54] sm:$0xf]
      %v3823 = vld [vmem:[%s39 + $0x58] sm:$0xf]
      %v3824 = vld [vmem:[%s39 + $0x5c] sm:$0xf]
      %v3825 = vld [vmem:[%s39 + $0x60] sm:$0xf]
      %v3826 = vld [vmem:[%s39 + $0x64] sm:$0xf]
      %v3827 = vld [vmem:[%s39 + $0x68] sm:$0xf]
      %v3828 = vld [vmem:[%s39 + $0x6c] sm:$0xf]
      %v3829 = vld [vmem:[%s39 + $0x70] sm:$0xf]
      %v3830 = vld [vmem:[%s39 + $0x74] sm:$0xf]
      %v3831 = vld [vmem:[%s39 + $0x78] sm:$0xf]
      %v3832 = vld [vmem:[%s39 + $0x7c] sm:$0xf]
      %v3833 = vld [vmem:[%s41] sm:$0x1]
      %v3835 = vperm.slane %v3833, 0
      %v3869 = vunpack.c.l.b16 %v3801
      %v3870 = vunpack.c.l.b16 %v3802
      %v3871 = vunpack.c.l.b16 %v3803
      %v3872 = vunpack.c.l.b16 %v3804
      %v3873 = vunpack.c.l.b16 %v3805
      %v3874 = vunpack.c.l.b16 %v3806
      %v3875 = vunpack.c.l.b16 %v3807
      %v3876 = vunpack.c.l.b16 %v3808
      %v3877 = vunpack.c.l.b16 %v3809
      %v3878 = vunpack.c.l.b16 %v3810
      %v3879 = vunpack.c.l.b16 %v3811
      %v3880 = vunpack.c.l.b16 %v3812
      %v3881 = vunpack.c.l.b16 %v3813
      %v3882 = vunpack.c.l.b16 %v3814
      %v3883 = vunpack.c.l.b16 %v3815
      %v3884 = vunpack.c.l.b16 %v3816
      %v3885 = vunpack.c.l.b16 %v3817
      %v3886 = vunpack.c.l.b16 %v3818
      %v3887 = vunpack.c.l.b16 %v3819
      %v3888 = vunpack.c.l.b16 %v3820
      %v3889 = vunpack.c.l.b16 %v3821
      %v3890 = vunpack.c.l.b16 %v3822
      %v3891 = vunpack.c.l.b16 %v3823
      %v3892 = vunpack.c.l.b16 %v3824
      %v3893 = vunpack.c.l.b16 %v3825
      %v3894 = vunpack.c.l.b16 %v3826
      %v3895 = vunpack.c.l.b16 %v3827
      %v3896 = vunpack.c.l.b16 %v3828
      %v3897 = vunpack.c.l.b16 %v3829
      %v3898 = vunpack.c.l.b16 %v3830
      %v3899 = vunpack.c.l.b16 %v3831
      %v3900 = vunpack.c.l.b16 %v3832
      %v3901 = vpack.c.b16 %v3870, %v3869
      %v3902 = vpack.c.b16 %v3872, %v3871
      %v3903 = vpack.c.b16 %v3874, %v3873
      %v3904 = vpack.c.b16 %v3876, %v3875
      %v3905 = vpack.c.b16 %v3878, %v3877
      %v3906 = vpack.c.b16 %v3880, %v3879
      %v3907 = vpack.c.b16 %v3882, %v3881
      %v3908 = vpack.c.b16 %v3884, %v3883
      %v3909 = vpack.c.b16 %v3886, %v3885
      %v3910 = vpack.c.b16 %v3888, %v3887
      %v3911 = vpack.c.b16 %v3890, %v3889
      %v3912 = vpack.c.b16 %v3892, %v3891
      %v3913 = vpack.c.b16 %v3894, %v3893
      %v3914 = vpack.c.b16 %v3896, %v3895
      %v3915 = vpack.c.b16 %v3898, %v3897
      %v3916 = vpack.c.b16 %v3900, %v3899
      %3933 = vmatpush.bf16.msra.mxu0 %v3908
      %3934 = vmatpush.bf16.msra.mxu0 %v3907
      %3935 = vmatpush.bf16.msra.mxu0 %v3906
      %3936 = vmatpush.bf16.msra.mxu0 %v3905
      %3937 = vmatpush.bf16.msra.mxu0 %v3904
      %3938 = vmatpush.bf16.msra.mxu0 %v3903
      %3939 = vmatpush.bf16.msra.mxu0 %v3902
      %3940 = vmatpush.bf16.msra.mxu0 %v3901
      %3941 = vmatmul.bf16.gmra.mxu0 %v3799
      %v3942 = vpop.f32.mrf.mxu0
      %v3943 = vadd.f32 %v3835, %v3942
      %v3944 = vpop.f32.mrf.mxu0
      %3945 = vdwg.mxu0
      %3946 = vmatpush.bf16.msra.mxu0 %v3916
      %3947 = vmatpush.bf16.msra.mxu0 %v3915
      %3948 = vmatpush.bf16.msra.mxu0 %v3914
      %3949 = vmatpush.bf16.msra.mxu0 %v3913
      %3950 = vmatpush.bf16.msra.mxu0 %v3912
      %3951 = vmatpush.bf16.msra.mxu0 %v3911
      %3952 = vmatpush.bf16.msra.mxu0 %v3910
      %3953 = vmatpush.bf16.msra.mxu0 %v3909
      %3954 = vmatmul.bf16.gmra.mxu0 %v3800
      %v3955 = vpop.f32.mrf.mxu0
      %v3956 = vadd.f32 %v3943, %v3955
      %v3957 = vpop.f32.mrf.mxu0
      %3958 = vdwg.mxu0
      %v3959 = vmax.f32 %v3956, 0.0
      %v3960 = vld [vmem:[%s51] sm:$0x3]
      %v3961 = vpack.c.bf16 %v3959, %v3959
      %vm3962 = vcmask 64512
      %v3964 = vsel %vm3962, %v3960, 0
      %vm3966 = vcmask 1043456
      %v3968 = vsel %vm3966, %v3961, 0
      %3970 = vmatpush.bf16.msra.mxu0 0
      %3971 = vmatpush.bf16.msra.mxu0 0
      %3972 = vmatpush.bf16.msra.mxu0 0
      %3973 = vmatpush.bf16.msra.mxu0 0
      %3974 = vmatpush.bf16.msra.mxu0 0
      %3975 = vmatpush.bf16.msra.mxu0 0
      %3976 = vmatpush.bf16.msra.mxu0 0
      %3977 = vmatpush.bf16.msra.mxu0 %v3968
      %3978 = vmatmul.bf16.gmra.mxu0 %v3964
      %v3979 = vpop.f32.mrf.mxu0
      %v3980 = vadd.f32 0.0, %v3979
      %v3981 = vpop.f32.mrf.mxu0
      %3982 = vdwg.mxu0
      %v3983 = vpack.c.bf16 %v3980, %v3980
      %v3984 = vld [vmem:[%s43] sm:$0xf]
      %v3985 = vld [vmem:[%s43 + $0x4] sm:$0xf]
      %v3986 = vld [vmem:[%s43 + $0x8] sm:$0xf]
      %v3987 = vld [vmem:[%s43 + $0xc] sm:$0xf]
      %v3988 = vld [vmem:[%s43 + $0x10] sm:$0xf]
      %v3989 = vld [vmem:[%s43 + $0x14] sm:$0xf]
      %v3990 = vld [vmem:[%s43 + $0x18] sm:$0xf]
      %v3991 = vld [vmem:[%s43 + $0x1c] sm:$0xf]
      %v3992 = vld [vmem:[%s43 + $0x20] sm:$0xf]
      %v3993 = vld [vmem:[%s43 + $0x24] sm:$0xf]
      %v3994 = vld [vmem:[%s43 + $0x28] sm:$0xf]
      %v3995 = vld [vmem:[%s43 + $0x2c] sm:$0xf]
      %v3996 = vld [vmem:[%s43 + $0x30] sm:$0xf]
      %v3997 = vld [vmem:[%s43 + $0x34] sm:$0xf]
      %v3998 = vld [vmem:[%s43 + $0x38] sm:$0xf]
      %v3999 = vld [vmem:[%s43 + $0x3c] sm:$0xf]
      %v4000 = vld [vmem:[%s45] sm:$0x1]
      %v4002 = vperm.slane %v4000, 0
      %v4020 = vunpack.c.l.b16 %v3984
      %v4021 = vunpack.c.l.b16 %v3985
      %v4022 = vunpack.c.l.b16 %v3986
      %v4023 = vunpack.c.l.b16 %v3987
      %v4024 = vunpack.c.l.b16 %v3988
      %v4025 = vunpack.c.l.b16 %v3989
      %v4026 = vunpack.c.l.b16 %v3990
      %v4027 = vunpack.c.l.b16 %v3991
      %v4028 = vunpack.c.l.b16 %v3992
      %v4029 = vunpack.c.l.b16 %v3993
      %v4030 = vunpack.c.l.b16 %v3994
      %v4031 = vunpack.c.l.b16 %v3995
      %v4032 = vunpack.c.l.b16 %v3996
      %v4033 = vunpack.c.l.b16 %v3997
      %v4034 = vunpack.c.l.b16 %v3998
      %v4035 = vunpack.c.l.b16 %v3999
      %v4036 = vpack.c.b16 %v4021, %v4020
      %v4037 = vpack.c.b16 %v4023, %v4022
      %v4038 = vpack.c.b16 %v4025, %v4024
      %v4039 = vpack.c.b16 %v4027, %v4026
      %v4040 = vpack.c.b16 %v4029, %v4028
      %v4041 = vpack.c.b16 %v4031, %v4030
      %v4042 = vpack.c.b16 %v4033, %v4032
      %v4043 = vpack.c.b16 %v4035, %v4034
      %4052 = vmatpush.bf16.msra.mxu0 %v4043
      %4053 = vmatpush.bf16.msra.mxu0 %v4042
      %4054 = vmatpush.bf16.msra.mxu0 %v4041
      %4055 = vmatpush.bf16.msra.mxu0 %v4040
      %4056 = vmatpush.bf16.msra.mxu0 %v4039
      %4057 = vmatpush.bf16.msra.mxu0 %v4038
      %4058 = vmatpush.bf16.msra.mxu0 %v4037
      %4059 = vmatpush.bf16.msra.mxu0 %v4036
      %4060 = vmatmul.bf16.gmra.mxu0 %v3983
      %v4061 = vpop.f32.mrf.mxu0
      %v4062 = vadd.f32 %v4002, %v4061
      %v4063 = vpop.f32.mrf.mxu0
      %4064 = vdwg.mxu0
      %v4065 = vmax.f32 %v4062, 0.0
      %v4066 = vld [vmem:[%s1240] sm:$0xff]
      %v4067 = vld [vmem:[%s1240 + $0x8] sm:$0xff]
      %v4068 = vld [vmem:[%s1240 + $0x10] sm:$0xff]
      %v4069 = vld [vmem:[%s1240 + $0x18] sm:$0xff]
      %v4070 = vld [vmem:[%s1240 + $0x20] sm:$0xff]
      %v4071 = vld [vmem:[%s1240 + $0x28] sm:$0xff]
      %v4072 = vld [vmem:[%s1240 + $0x30] sm:$0xff]
      %v4073 = vld [vmem:[%s1240 + $0x38] sm:$0xff]
      %v4074 = vld [vmem:[%s1240 + $0x40] sm:$0xff]
      %v4075 = vld [vmem:[%s1240 + $0x48] sm:$0xff]
      %v4076 = vld [vmem:[%s1240 + $0x50] sm:$0xff]
      %v4077 = vld [vmem:[%s1240 + $0x58] sm:$0xff]
      %v4078 = vld [vmem:[%s1240 + $0x60] sm:$0xff]
      %v4079 = vld [vmem:[%s1240 + $0x68] sm:$0xff]
      %v4080 = vld [vmem:[%s1240 + $0x70] sm:$0xff]
      %v4081 = vld [vmem:[%s1240 + $0x78] sm:$0xff]
      %v4082 = vld [vmem:[%s1240 + $0x80] sm:$0xff]
      %v4083 = vld [vmem:[%s1240 + $0x88] sm:$0xff]
      %v4084 = vld [vmem:[%s1240 + $0x90] sm:$0xff]
      %v4085 = vld [vmem:[%s1240 + $0x98] sm:$0xff]
      %v4086 = vld [vmem:[%s1240 + $0xa0] sm:$0xff]
      %v4087 = vld [vmem:[%s1240 + $0xa8] sm:$0xff]
      %v4088 = vld [vmem:[%s1240 + $0xb0] sm:$0xff]
      %v4089 = vld [vmem:[%s1240 + $0xb8] sm:$0xff]
      %v4090 = vld [vmem:[%s1240 + $0xc0] sm:$0xff]
      %v4091 = vld [vmem:[%s1240 + $0xc8] sm:$0xff]
      %v4092 = vld [vmem:[%s1240 + $0xd0] sm:$0xff]
      %v4093 = vld [vmem:[%s1240 + $0xd8] sm:$0xff]
      %v4094 = vld [vmem:[%s1240 + $0xe0] sm:$0xff]
      %v4095 = vld [vmem:[%s1240 + $0xe8] sm:$0xff]
      %v4096 = vld [vmem:[%s1240 + $0xf0] sm:$0xff]
      %v4097 = vld [vmem:[%s1240 + $0xf8] sm:$0xff]
      %v4098 = vld [vmem:[%s1244] sm:$0x3]
      %v4100 = vperm.slane %v4098, 0
      %v4101 = vperm.slane %v4098, 1
      %v4136 = vunpack.c.l.b16 %v4066
      %v4137 = vunpack.c.h.b16 %v4066
      %v4138 = vunpack.c.l.b16 %v4067
      %v4139 = vunpack.c.h.b16 %v4067
      %v4140 = vunpack.c.l.b16 %v4068
      %v4141 = vunpack.c.h.b16 %v4068
      %v4142 = vunpack.c.l.b16 %v4069
      %v4143 = vunpack.c.h.b16 %v4069
      %v4144 = vunpack.c.l.b16 %v4070
      %v4145 = vunpack.c.h.b16 %v4070
      %v4146 = vunpack.c.l.b16 %v4071
      %v4147 = vunpack.c.h.b16 %v4071
      %v4148 = vunpack.c.l.b16 %v4072
      %v4149 = vunpack.c.h.b16 %v4072
      %v4150 = vunpack.c.l.b16 %v4073
      %v4151 = vunpack.c.h.b16 %v4073
      %v4152 = vunpack.c.l.b16 %v4074
      %v4153 = vunpack.c.h.b16 %v4074
      %v4154 = vunpack.c.l.b16 %v4075
      %v4155 = vunpack.c.h.b16 %v4075
      %v4156 = vunpack.c.l.b16 %v4076
      %v4157 = vunpack.c.h.b16 %v4076
      %v4158 = vunpack.c.l.b16 %v4077
      %v4159 = vunpack.c.h.b16 %v4077
      %v4160 = vunpack.c.l.b16 %v4078
      %v4161 = vunpack.c.h.b16 %v4078
      %v4162 = vunpack.c.l.b16 %v4079
      %v4163 = vunpack.c.h.b16 %v4079
      %v4164 = vunpack.c.l.b16 %v4080
      %v4165 = vunpack.c.h.b16 %v4080
      %v4166 = vunpack.c.l.b16 %v4081
      %v4167 = vunpack.c.h.b16 %v4081
      %v4168 = vunpack.c.l.b16 %v4082
      %v4169 = vunpack.c.h.b16 %v4082
      %v4170 = vunpack.c.l.b16 %v4083
      %v4171 = vunpack.c.h.b16 %v4083
      %v4172 = vunpack.c.l.b16 %v4084
      %v4173 = vunpack.c.h.b16 %v4084
      %v4174 = vunpack.c.l.b16 %v4085
      %v4175 = vunpack.c.h.b16 %v4085
      %v4176 = vunpack.c.l.b16 %v4086
      %v4177 = vunpack.c.h.b16 %v4086
      %v4178 = vunpack.c.l.b16 %v4087
      %v4179 = vunpack.c.h.b16 %v4087
      %v4180 = vunpack.c.l.b16 %v4088
      %v4181 = vunpack.c.h.b16 %v4088
      %v4182 = vunpack.c.l.b16 %v4089
      %v4183 = vunpack.c.h.b16 %v4089
      %v4184 = vunpack.c.l.b16 %v4090
      %v4185 = vunpack.c.h.b16 %v4090
      %v4186 = vunpack.c.l.b16 %v4091
      %v4187 = vunpack.c.h.b16 %v4091
      %v4188 = vunpack.c.l.b16 %v4092
      %v4189 = vunpack.c.h.b16 %v4092
      %v4190 = vunpack.c.l.b16 %v4093
      %v4191 = vunpack.c.h.b16 %v4093
      %v4192 = vunpack.c.l.b16 %v4094
      %v4193 = vunpack.c.h.b16 %v4094
      %v4194 = vunpack.c.l.b16 %v4095
      %v4195 = vunpack.c.h.b16 %v4095
      %v4196 = vunpack.c.l.b16 %v4096
      %v4197 = vunpack.c.h.b16 %v4096
      %v4198 = vunpack.c.l.b16 %v4097
      %v4199 = vunpack.c.h.b16 %v4097
      %v4200 = vpack.c.b16 %v4138, %v4136
      %v4201 = vpack.c.b16 %v4139, %v4137
      %v4202 = vpack.c.b16 %v4142, %v4140
      %v4203 = vpack.c.b16 %v4143, %v4141
      %v4204 = vpack.c.b16 %v4146, %v4144
      %v4205 = vpack.c.b16 %v4147, %v4145
      %v4206 = vpack.c.b16 %v4150, %v4148
      %v4207 = vpack.c.b16 %v4151, %v4149
      %v4208 = vpack.c.b16 %v4154, %v4152
      %v4209 = vpack.c.b16 %v4155, %v4153
      %v4210 = vpack.c.b16 %v4158, %v4156
      %v4211 = vpack.c.b16 %v4159, %v4157
      %v4212 = vpack.c.b16 %v4162, %v4160
      %v4213 = vpack.c.b16 %v4163, %v4161
      %v4214 = vpack.c.b16 %v4166, %v4164
      %v4215 = vpack.c.b16 %v4167, %v4165
      %v4216 = vpack.c.b16 %v4170, %v4168
      %v4217 = vpack.c.b16 %v4171, %v4169
      %v4218 = vpack.c.b16 %v4174, %v4172
      %v4219 = vpack.c.b16 %v4175, %v4173
      %v4220 = vpack.c.b16 %v4178, %v4176
      %v4221 = vpack.c.b16 %v4179, %v4177
      %v4222 = vpack.c.b16 %v4182, %v4180
      %v4223 = vpack.c.b16 %v4183, %v4181
      %v4224 = vpack.c.b16 %v4186, %v4184
      %v4225 = vpack.c.b16 %v4187, %v4185
      %v4226 = vpack.c.b16 %v4190, %v4188
      %v4227 = vpack.c.b16 %v4191, %v4189
      %v4228 = vpack.c.b16 %v4194, %v4192
      %v4229 = vpack.c.b16 %v4195, %v4193
      %v4230 = vpack.c.b16 %v4198, %v4196
      %v4231 = vpack.c.b16 %v4199, %v4197
      %4264 = vmatpush.bf16.msra.mxu0 %v4214
      %4265 = vmatpush.bf16.msra.mxu0 %v4212
      %4266 = vmatpush.bf16.msra.mxu0 %v4210
      %4267 = vmatpush.bf16.msra.mxu0 %v4208
      %4268 = vmatpush.bf16.msra.mxu0 %v4206
      %4269 = vmatpush.bf16.msra.mxu0 %v4204
      %4270 = vmatpush.bf16.msra.mxu0 %v4202
      %4271 = vmatpush.bf16.msra.mxu0 %v4200
      %4272 = vmatmul.bf16.gmra.mxu0 %v3465
      %v4273 = vpop.f32.mrf.mxu0
      %v4274 = vadd.f32 %v4100, %v4273
      %v4275 = vpop.f32.mrf.mxu0
      %v4276 = vadd.f32 %v4100, %v4275
      %4277 = vmatmul.bf16.gmra.mxu0 %v3467
      %v4278 = vpop.f32.mrf.mxu0
      %v4279 = vadd.f32 %v4100, %v4278
      %v4280 = vpop.f32.mrf.mxu0
      %v4281 = vadd.f32 %v4100, %v4280
      %4282 = vdwg.mxu0
      %4283 = vmatpush.bf16.msra.mxu0 %v4230
      %4284 = vmatpush.bf16.msra.mxu0 %v4228
      %4285 = vmatpush.bf16.msra.mxu0 %v4226
      %4286 = vmatpush.bf16.msra.mxu0 %v4224
      %4287 = vmatpush.bf16.msra.mxu0 %v4222
      %4288 = vmatpush.bf16.msra.mxu0 %v4220
      %4289 = vmatpush.bf16.msra.mxu0 %v4218
      %4290 = vmatpush.bf16.msra.mxu0 %v4216
      %4291 = vmatmul.bf16.gmra.mxu0 %v3466
      %v4292 = vpop.f32.mrf.mxu0
      %v4293 = vadd.f32 %v4274, %v4292
      %v4294 = vpop.f32.mrf.mxu0
      %v4295 = vadd.f32 %v4276, %v4294
      %4296 = vmatmul.bf16.gmra.mxu0 %v3468
      %v4297 = vpop.f32.mrf.mxu0
      %v4298 = vadd.f32 %v4279, %v4297
      %v4299 = vpop.f32.mrf.mxu0
      %v4300 = vadd.f32 %v4281, %v4299
      %4301 = vdwg.mxu0
      %4302 = vmatpush.bf16.msra.mxu0 %v4215
      %4303 = vmatpush.bf16.msra.mxu0 %v4213
      %4304 = vmatpush.bf16.msra.mxu0 %v4211
      %4305 = vmatpush.bf16.msra.mxu0 %v4209
      %4306 = vmatpush.bf16.msra.mxu0 %v4207
      %4307 = vmatpush.bf16.msra.mxu0 %v4205
      %4308 = vmatpush.bf16.msra.mxu0 %v4203
      %4309 = vmatpush.bf16.msra.mxu0 %v4201
      %4310 = vmatmul.bf16.gmra.mxu0 %v3465
      %v4311 = vpop.f32.mrf.mxu0
      %v4312 = vadd.f32 %v4101, %v4311
      %v4313 = vpop.f32.mrf.mxu0
      %v4314 = vadd.f32 %v4101, %v4313
      %4315 = vmatmul.bf16.gmra.mxu0 %v3467
      %v4316 = vpop.f32.mrf.mxu0
      %v4317 = vadd.f32 %v4101, %v4316
      %v4318 = vpop.f32.mrf.mxu0
      %v4319 = vadd.f32 %v4101, %v4318
      %4320 = vdwg.mxu0
      %4321 = vmatpush.bf16.msra.mxu0 %v4231
      %4322 = vmatpush.bf16.msra.mxu0 %v4229
      %4323 = vmatpush.bf16.msra.mxu0 %v4227
      %4324 = vmatpush.bf16.msra.mxu0 %v4225
      %4325 = vmatpush.bf16.msra.mxu0 %v4223
      %4326 = vmatpush.bf16.msra.mxu0 %v4221
      %4327 = vmatpush.bf16.msra.mxu0 %v4219
      %4328 = vmatpush.bf16.msra.mxu0 %v4217
      %4329 = vmatmul.bf16.gmra.mxu0 %v3466
      %v4330 = vpop.f32.mrf.mxu0
      %v4331 = vadd.f32 %v4312, %v4330
      %v4332 = vpop.f32.mrf.mxu0
      %v4333 = vadd.f32 %v4314, %v4332
      %4334 = vmatmul.bf16.gmra.mxu0 %v3468
      %v4335 = vpop.f32.mrf.mxu0
      %v4336 = vadd.f32 %v4317, %v4335
      %v4337 = vpop.f32.mrf.mxu0
      %v4338 = vadd.f32 %v4319, %v4337
      %4339 = vdwg.mxu0
      %v4340 = vmax.f32 %v4293, 0.0
      %v4341 = vmax.f32 %v4331, 0.0
      %v4342 = vmax.f32 %v4295, 0.0
      %v4343 = vmax.f32 %v4333, 0.0
      %v4344 = vmax.f32 %v4298, 0.0
      %v4345 = vmax.f32 %v4336, 0.0
      %v4346 = vmax.f32 %v4300, 0.0
      %v4347 = vmax.f32 %v4338, 0.0
      %v4348 = vld [vmem:[%s53] sm:$0x1]
      %v4349 = vpack.c.bf16 %v4342, %v4340
      %v4350 = vpack.c.bf16 %v4343, %v4341
      %v4351 = vpack.c.bf16 %v4346, %v4344
      %v4352 = vpack.c.bf16 %v4347, %v4345
      %v4354 = vsel %vm3474, %v4348, 0
      %4356 = vmatpush.bf16.msra.mxu0 0
      %4357 = vmatpush.bf16.msra.mxu0 0
      %4358 = vmatpush.bf16.msra.mxu0 0
      %4359 = vmatpush.bf16.msra.mxu0 0
      %4360 = vmatpush.bf16.msra.mxu0 0
      %4361 = vmatpush.bf16.msra.mxu0 0
      %4362 = vmatpush.bf16.msra.mxu0 %v4351
      %4363 = vmatpush.bf16.msra.mxu0 %v4349
      %4364 = vmatmul.bf16.gmra.mxu0 %v4354
      %v4365 = vpop.f32.mrf.mxu0
      %v4366 = vadd.f32 0.0, %v4365
      %v4367 = vpop.f32.mrf.mxu0
      %4368 = vdwg.mxu0
      %4369 = vmatpush.bf16.msra.mxu0 0
      %4370 = vmatpush.bf16.msra.mxu0 0
      %4371 = vmatpush.bf16.msra.mxu0 0
      %4372 = vmatpush.bf16.msra.mxu0 0
      %4373 = vmatpush.bf16.msra.mxu0 0
      %4374 = vmatpush.bf16.msra.mxu0 0
      %4375 = vmatpush.bf16.msra.mxu0 %v4352
      %4376 = vmatpush.bf16.msra.mxu0 %v4350
      %4377 = vmatmul.bf16.gmra.mxu0 %v4354
      %v4378 = vpop.f32.mrf.mxu0
      %v4379 = vadd.f32 0.0, %v4378
      %v4380 = vpop.f32.mrf.mxu0
      %4381 = vdwg.mxu0
      %v4382 = vld [vmem:[%s1249] sm:$0xf]
      %v4383 = vld [vmem:[%s1249 + $0x4] sm:$0xf]
      %v4384 = vld [vmem:[%s1249 + $0x8] sm:$0xf]
      %v4385 = vld [vmem:[%s1249 + $0xc] sm:$0xf]
      %v4386 = vld [vmem:[%s1249 + $0x10] sm:$0xf]
      %v4387 = vld [vmem:[%s1249 + $0x14] sm:$0xf]
      %v4388 = vld [vmem:[%s1249 + $0x18] sm:$0xf]
      %v4389 = vld [vmem:[%s1249 + $0x1c] sm:$0xf]
      %v4390 = vld [vmem:[%s1249 + $0x20] sm:$0xf]
      %v4391 = vld [vmem:[%s1249 + $0x24] sm:$0xf]
      %v4392 = vld [vmem:[%s1249 + $0x28] sm:$0xf]
      %v4393 = vld [vmem:[%s1249 + $0x2c] sm:$0xf]
      %v4394 = vld [vmem:[%s1249 + $0x30] sm:$0xf]
      %v4395 = vld [vmem:[%s1249 + $0x34] sm:$0xf]
      %v4396 = vld [vmem:[%s1249 + $0x38] sm:$0xf]
      %v4397 = vld [vmem:[%s1249 + $0x3c] sm:$0xf]
      %v4398 = vld [vmem:[%s1249 + $0x40] sm:$0xf]
      %v4399 = vld [vmem:[%s1249 + $0x44] sm:$0xf]
      %v4400 = vld [vmem:[%s1249 + $0x48] sm:$0xf]
      %v4401 = vld [vmem:[%s1249 + $0x4c] sm:$0xf]
      %v4402 = vld [vmem:[%s1249 + $0x50] sm:$0xf]
      %v4403 = vld [vmem:[%s1249 + $0x54] sm:$0xf]
      %v4404 = vld [vmem:[%s1249 + $0x58] sm:$0xf]
      %v4405 = vld [vmem:[%s1249 + $0x5c] sm:$0xf]
      %v4406 = vld [vmem:[%s1249 + $0x60] sm:$0xf]
      %v4407 = vld [vmem:[%s1249 + $0x64] sm:$0xf]
      %v4408 = vld [vmem:[%s1249 + $0x68] sm:$0xf]
      %v4409 = vld [vmem:[%s1249 + $0x6c] sm:$0xf]
      %v4410 = vld [vmem:[%s1249 + $0x70] sm:$0xf]
      %v4411 = vld [vmem:[%s1249 + $0x74] sm:$0xf]
      %v4412 = vld [vmem:[%s1249 + $0x78] sm:$0xf]
      %v4413 = vld [vmem:[%s1249 + $0x7c] sm:$0xf]
      %v4414 = vld [vmem:[%s1252] sm:$0x1]
      %v4416 = vperm.slane %v4414, 0
      %v4450 = vunpack.c.l.b16 %v4382
      %v4451 = vunpack.c.l.b16 %v4383
      %v4452 = vunpack.c.l.b16 %v4384
      %v4453 = vunpack.c.l.b16 %v4385
      %v4454 = vunpack.c.l.b16 %v4386
      %v4455 = vunpack.c.l.b16 %v4387
      %v4456 = vunpack.c.l.b16 %v4388
      %v4457 = vunpack.c.l.b16 %v4389
      %v4458 = vunpack.c.l.b16 %v4390
      %v4459 = vunpack.c.l.b16 %v4391
      %v4460 = vunpack.c.l.b16 %v4392
      %v4461 = vunpack.c.l.b16 %v4393
      %v4462 = vunpack.c.l.b16 %v4394
      %v4463 = vunpack.c.l.b16 %v4395
      %v4464 = vunpack.c.l.b16 %v4396
      %v4465 = vunpack.c.l.b16 %v4397
      %v4466 = vunpack.c.l.b16 %v4398
      %v4467 = vunpack.c.l.b16 %v4399
      %v4468 = vunpack.c.l.b16 %v4400
      %v4469 = vunpack.c.l.b16 %v4401
      %v4470 = vunpack.c.l.b16 %v4402
      %v4471 = vunpack.c.l.b16 %v4403
      %v4472 = vunpack.c.l.b16 %v4404
      %v4473 = vunpack.c.l.b16 %v4405
      %v4474 = vunpack.c.l.b16 %v4406
      %v4475 = vunpack.c.l.b16 %v4407
      %v4476 = vunpack.c.l.b16 %v4408
      %v4477 = vunpack.c.l.b16 %v4409
      %v4478 = vunpack.c.l.b16 %v4410
      %v4479 = vunpack.c.l.b16 %v4411
      %v4480 = vunpack.c.l.b16 %v4412
      %v4481 = vunpack.c.l.b16 %v4413
      %v4482 = vpack.c.b16 %v4451, %v4450
      %v4483 = vpack.c.b16 %v4453, %v4452
      %v4484 = vpack.c.b16 %v4455, %v4454
      %v4485 = vpack.c.b16 %v4457, %v4456
      %v4486 = vpack.c.b16 %v4459, %v4458
      %v4487 = vpack.c.b16 %v4461, %v4460
      %v4488 = vpack.c.b16 %v4463, %v4462
      %v4489 = vpack.c.b16 %v4465, %v4464
      %v4490 = vpack.c.b16 %v4467, %v4466
      %v4491 = vpack.c.b16 %v4469, %v4468
      %v4492 = vpack.c.b16 %v4471, %v4470
      %v4493 = vpack.c.b16 %v4473, %v4472
      %v4494 = vpack.c.b16 %v4475, %v4474
      %v4495 = vpack.c.b16 %v4477, %v4476
      %v4496 = vpack.c.b16 %v4479, %v4478
      %v4497 = vpack.c.b16 %v4481, %v4480
      %4514 = vmatpush.bf16.msra.mxu0 %v4489
      %4515 = vmatpush.bf16.msra.mxu0 %v4488
      %4516 = vmatpush.bf16.msra.mxu0 %v4487
      %4517 = vmatpush.bf16.msra.mxu0 %v4486
      %4518 = vmatpush.bf16.msra.mxu0 %v4485
      %4519 = vmatpush.bf16.msra.mxu0 %v4484
      %4520 = vmatpush.bf16.msra.mxu0 %v4483
      %4521 = vmatpush.bf16.msra.mxu0 %v4482
      %4522 = vmatmul.bf16.gmra.mxu0 %v3767
      %v4523 = vpop.f32.mrf.mxu0
      %v4524 = vadd.f32 %v4416, %v4523
      %v4525 = vpop.f32.mrf.mxu0
      %v4526 = vadd.f32 %v4416, %v4525
      %4527 = vdwg.mxu0
      %4528 = vmatpush.bf16.msra.mxu0 %v4497
      %4529 = vmatpush.bf16.msra.mxu0 %v4496
      %4530 = vmatpush.bf16.msra.mxu0 %v4495
      %4531 = vmatpush.bf16.msra.mxu0 %v4494
      %4532 = vmatpush.bf16.msra.mxu0 %v4493
      %4533 = vmatpush.bf16.msra.mxu0 %v4492
      %4534 = vmatpush.bf16.msra.mxu0 %v4491
      %4535 = vmatpush.bf16.msra.mxu0 %v4490
      %4536 = vmatmul.bf16.gmra.mxu0 %v3768
      %v4537 = vpop.f32.mrf.mxu0
      %v4538 = vadd.f32 %v4524, %v4537
      %v4539 = vpop.f32.mrf.mxu0
      %v4540 = vadd.f32 %v4526, %v4539
      %4541 = vdwg.mxu0
      %v4542 = vmax.f32 %v4538, 0.0
      %v4543 = vmax.f32 %v4540, 0.0
      %v4544 = vld [vmem:[%s55] sm:$0x1]
      %v4545 = vpack.c.bf16 %v4543, %v4542
      %v4547 = vsel %vm3769, %v4544, 0
      %4549 = vmatpush.bf16.msra.mxu0 0
      %4550 = vmatpush.bf16.msra.mxu0 0
      %4551 = vmatpush.bf16.msra.mxu0 0
      %4552 = vmatpush.bf16.msra.mxu0 0
      %4553 = vmatpush.bf16.msra.mxu0 0
      %4554 = vmatpush.bf16.msra.mxu0 0
      %4555 = vmatpush.bf16.msra.mxu0 0
      %4556 = vmatpush.bf16.msra.mxu0 %v4545
      %4557 = vmatmul.bf16.gmra.mxu0 %v4547
      %v4558 = vpop.f32.mrf.mxu0
      %v4559 = vadd.f32 0.0, %v4558
      %v4560 = vpop.f32.mrf.mxu0
      %4561 = vdwg.mxu0
      %v4562 = vld [vmem:[%s1257] sm:$0xf]
      %v4563 = vld [vmem:[%s1257 + $0x4] sm:$0xf]
      %v4564 = vld [vmem:[%s1257 + $0x8] sm:$0xf]
      %v4565 = vld [vmem:[%s1257 + $0xc] sm:$0xf]
      %v4566 = vld [vmem:[%s1257 + $0x10] sm:$0xf]
      %v4567 = vld [vmem:[%s1257 + $0x14] sm:$0xf]
      %v4568 = vld [vmem:[%s1257 + $0x18] sm:$0xf]
      %v4569 = vld [vmem:[%s1257 + $0x1c] sm:$0xf]
      %v4570 = vld [vmem:[%s1257 + $0x20] sm:$0xf]
      %v4571 = vld [vmem:[%s1257 + $0x24] sm:$0xf]
      %v4572 = vld [vmem:[%s1257 + $0x28] sm:$0xf]
      %v4573 = vld [vmem:[%s1257 + $0x2c] sm:$0xf]
      %v4574 = vld [vmem:[%s1257 + $0x30] sm:$0xf]
      %v4575 = vld [vmem:[%s1257 + $0x34] sm:$0xf]
      %v4576 = vld [vmem:[%s1257 + $0x38] sm:$0xf]
      %v4577 = vld [vmem:[%s1257 + $0x3c] sm:$0xf]
      %v4578 = vld [vmem:[%s1260] sm:$0x1]
      %v4580 = vperm.slane %v4578, 0
      %v4598 = vunpack.c.l.b16 %v4562
      %v4599 = vunpack.c.l.b16 %v4563
      %v4600 = vunpack.c.l.b16 %v4564
      %v4601 = vunpack.c.l.b16 %v4565
      %v4602 = vunpack.c.l.b16 %v4566
      %v4603 = vunpack.c.l.b16 %v4567
      %v4604 = vunpack.c.l.b16 %v4568
      %v4605 = vunpack.c.l.b16 %v4569
      %v4606 = vunpack.c.l.b16 %v4570
      %v4607 = vunpack.c.l.b16 %v4571
      %v4608 = vunpack.c.l.b16 %v4572
      %v4609 = vunpack.c.l.b16 %v4573
      %v4610 = vunpack.c.l.b16 %v4574
      %v4611 = vunpack.c.l.b16 %v4575
      %v4612 = vunpack.c.l.b16 %v4576
      %v4613 = vunpack.c.l.b16 %v4577
      %v4614 = vpack.c.b16 %v4599, %v4598
      %v4615 = vpack.c.b16 %v4601, %v4600
      %v4616 = vpack.c.b16 %v4603, %v4602
      %v4617 = vpack.c.b16 %v4605, %v4604
      %v4618 = vpack.c.b16 %v4607, %v4606
      %v4619 = vpack.c.b16 %v4609, %v4608
      %v4620 = vpack.c.b16 %v4611, %v4610
      %v4621 = vpack.c.b16 %v4613, %v4612
      %4630 = vmatpush.bf16.msra.mxu0 %v4621
      %4631 = vmatpush.bf16.msra.mxu0 %v4620
      %4632 = vmatpush.bf16.msra.mxu0 %v4619
      %4633 = vmatpush.bf16.msra.mxu0 %v4618
      %4634 = vmatpush.bf16.msra.mxu0 %v4617
      %4635 = vmatpush.bf16.msra.mxu0 %v4616
      %4636 = vmatpush.bf16.msra.mxu0 %v4615
      %4637 = vmatpush.bf16.msra.mxu0 %v4614
      %4638 = vmatmul.bf16.gmra.mxu0 %v3961
      %v4639 = vpop.f32.mrf.mxu0
      %v4640 = vadd.f32 %v4580, %v4639
      %v4641 = vpop.f32.mrf.mxu0
      %4642 = vdwg.mxu0
      %v4643 = vmax.f32 %v4640, 0.0
      %v4644 = vld [vmem:[%s57] sm:$0x1]
      %v4645 = vpack.c.bf16 %v4643, %v4643
      %v4647 = vsel %vm3962, %v4644, 0
      %v4650 = vsel %vm3966, %v4645, 0
      %4652 = vmatpush.bf16.msra.mxu0 0
      %4653 = vmatpush.bf16.msra.mxu0 0
      %4654 = vmatpush.bf16.msra.mxu0 0
      %4655 = vmatpush.bf16.msra.mxu0 0
      %4656 = vmatpush.bf16.msra.mxu0 0
      %4657 = vmatpush.bf16.msra.mxu0 0
      %4658 = vmatpush.bf16.msra.mxu0 0
      %4659 = vmatpush.bf16.msra.mxu0 %v4650
      %4660 = vmatmul.bf16.gmra.mxu0 %v4647
      %v4661 = vpop.f32.mrf.mxu0
      %v4662 = vadd.f32 0.0, %v4661
      %v4663 = vpop.f32.mrf.mxu0
      %4664 = vdwg.mxu0
      %v4665 = vpack.c.bf16 %v4065, %v4065
      %v4666 = vld [vmem:[%s1265] sm:$0xf]
      %v4667 = vld [vmem:[%s1265 + $0x4] sm:$0xf]
      %v4668 = vld [vmem:[%s1265 + $0x8] sm:$0xf]
      %v4669 = vld [vmem:[%s1265 + $0xc] sm:$0xf]
      %v4670 = vld [vmem:[%s1265 + $0x10] sm:$0xf]
      %v4671 = vld [vmem:[%s1265 + $0x14] sm:$0xf]
      %v4672 = vld [vmem:[%s1265 + $0x18] sm:$0xf]
      %v4673 = vld [vmem:[%s1265 + $0x1c] sm:$0xf]
      %v4674 = vld [vmem:[%s1265 + $0x20] sm:$0xf]
      %v4675 = vld [vmem:[%s1265 + $0x24] sm:$0xf]
      %v4676 = vld [vmem:[%s1265 + $0x28] sm:$0xf]
      %v4677 = vld [vmem:[%s1265 + $0x2c] sm:$0xf]
      %v4678 = vld [vmem:[%s1265 + $0x30] sm:$0xf]
      %v4679 = vld [vmem:[%s1265 + $0x34] sm:$0xf]
      %v4680 = vld [vmem:[%s1265 + $0x38] sm:$0xf]
      %v4681 = vld [vmem:[%s1265 + $0x3c] sm:$0xf]
      %v4682 = vld [vmem:[%s1268] sm:$0x1]
      %v4684 = vperm.slane %v4682, 0
      %v4702 = vunpack.c.l.b16 %v4666
      %v4703 = vunpack.c.l.b16 %v4667
      %v4704 = vunpack.c.l.b16 %v4668
      %v4705 = vunpack.c.l.b16 %v4669
      %v4706 = vunpack.c.l.b16 %v4670
      %v4707 = vunpack.c.l.b16 %v4671
      %v4708 = vunpack.c.l.b16 %v4672
      %v4709 = vunpack.c.l.b16 %v4673
      %v4710 = vunpack.c.l.b16 %v4674
      %v4711 = vunpack.c.l.b16 %v4675
      %v4712 = vunpack.c.l.b16 %v4676
      %v4713 = vunpack.c.l.b16 %v4677
      %v4714 = vunpack.c.l.b16 %v4678
      %v4715 = vunpack.c.l.b16 %v4679
      %v4716 = vunpack.c.l.b16 %v4680
      %v4717 = vunpack.c.l.b16 %v4681
      %v4718 = vpack.c.b16 %v4703, %v4702
      %v4719 = vpack.c.b16 %v4705, %v4704
      %v4720 = vpack.c.b16 %v4707, %v4706
      %v4721 = vpack.c.b16 %v4709, %v4708
      %v4722 = vpack.c.b16 %v4711, %v4710
      %v4723 = vpack.c.b16 %v4713, %v4712
      %v4724 = vpack.c.b16 %v4715, %v4714
      %v4725 = vpack.c.b16 %v4717, %v4716
      %4734 = vmatpush.bf16.msra.mxu0 %v4725
      %4735 = vmatpush.bf16.msra.mxu0 %v4724
      %4736 = vmatpush.bf16.msra.mxu0 %v4723
      %4737 = vmatpush.bf16.msra.mxu0 %v4722
      %4738 = vmatpush.bf16.msra.mxu0 %v4721
      %4739 = vmatpush.bf16.msra.mxu0 %v4720
      %4740 = vmatpush.bf16.msra.mxu0 %v4719
      %4741 = vmatpush.bf16.msra.mxu0 %v4718
      %4742 = vmatmul.bf16.gmra.mxu0 %v4665
      %v4743 = vpop.f32.mrf.mxu0
      %v4744 = vadd.f32 %v4684, %v4743
      %v4745 = vpop.f32.mrf.mxu0
      %4746 = vdwg.mxu0
      %v4747 = vmax.f32 %v4744, 0.0
      %v4748 = vld [vmem:[%s59] sm:$0x1]
      %v4749 = vpack.c.bf16 %v4747, %v4747
      %vm4750 = vcmask 31744
      %v4752 = vsel %vm4750, %v4748, 0
      %vm4754 = vcmask 1041408
      %v4756 = vsel %vm4754, %v4749, 0
      %4758 = vmatpush.bf16.msra.mxu0 0
      %4759 = vmatpush.bf16.msra.mxu0 0
      %4760 = vmatpush.bf16.msra.mxu0 0
      %4761 = vmatpush.bf16.msra.mxu0 0
      %4762 = vmatpush.bf16.msra.mxu0 0
      %4763 = vmatpush.bf16.msra.mxu0 0
      %4764 = vmatpush.bf16.msra.mxu0 0
      %4765 = vmatpush.bf16.msra.mxu0 %v4756
      %4766 = vmatmul.bf16.gmra.mxu0 %v4752
      %v4767 = vpop.f32.mrf.mxu0
      %v4768 = vadd.f32 0.0, %v4767
      %v4769 = vpop.f32.mrf.mxu0
      %4770 = vdwg.mxu0
      %v4771 = vpack.c.bf16 %v4366, %v4366
      %v4772 = vpack.c.bf16 %v4379, %v4379
      %v4773 = vpack.c.bf16 %v4559, %v4559
      %v4774 = vpack.c.bf16 %v4662, %v4662
      %v4775 = vpack.c.bf16 %v4768, %v4768
      %v4776 = vld [vmem:[%s1273] sm:$0xff]
      %v4777 = vld [vmem:[%s1273 + $0x8] sm:$0xff]
      %v4778 = vld [vmem:[%s1273 + $0x10] sm:$0xff]
      %v4779 = vld [vmem:[%s1273 + $0x18] sm:$0xff]
      %v4780 = vld [vmem:[%s1273 + $0x20] sm:$0xff]
      %v4781 = vld [vmem:[%s1273 + $0x28] sm:$0xff]
      %v4782 = vld [vmem:[%s1273 + $0x30] sm:$0xff]
      %v4783 = vld [vmem:[%s1273 + $0x38] sm:$0xff]
      %v4784 = vld [vmem:[%s1273 + $0x40] sm:$0xff]
      %v4785 = vld [vmem:[%s1273 + $0x48] sm:$0xff]
      %v4786 = vld [vmem:[%s1273 + $0x50] sm:$0xff]
      %v4787 = vld [vmem:[%s1273 + $0x58] sm:$0xff]
      %v4788 = vld [vmem:[%s1273 + $0x60] sm:$0xff]
      %v4789 = vld [vmem:[%s1273 + $0x68] sm:$0xff]
      %v4790 = vld [vmem:[%s1273 + $0x70] sm:$0xff]
      %v4791 = vld [vmem:[%s1273 + $0x78] sm:$0xff]
      %v4792 = vld [vmem:[%s1273 + $0x80] sm:$0xff]
      %v4793 = vld [vmem:[%s1273 + $0x88] sm:$0xff]
      %v4794 = vld [vmem:[%s1273 + $0x90] sm:$0xff]
      %v4795 = vld [vmem:[%s1273 + $0x98] sm:$0xff]
      %v4796 = vld [vmem:[%s1273 + $0xa0] sm:$0xff]
      %v4797 = vld [vmem:[%s1273 + $0xa8] sm:$0xff]
      %v4798 = vld [vmem:[%s1273 + $0xb0] sm:$0xff]
      %v4799 = vld [vmem:[%s1273 + $0xb8] sm:$0xff]
      %v4800 = vld [vmem:[%s1273 + $0xc0] sm:$0xff]
      %v4801 = vld [vmem:[%s1273 + $0xc8] sm:$0xff]
      %v4802 = vld [vmem:[%s1273 + $0xd0] sm:$0xff]
      %v4803 = vld [vmem:[%s1273 + $0xd8] sm:$0xff]
      %v4804 = vld [vmem:[%s1273 + $0xe0] sm:$0xff]
      %v4805 = vld [vmem:[%s1273 + $0xe8] sm:$0xff]
      %v4806 = vld [vmem:[%s1273 + $0xf0] sm:$0xff]
      %v4807 = vld [vmem:[%s1273 + $0xf8] sm:$0xff]
      %v4808 = vld [vmem:[%s1273 + $0x100] sm:$0xff]
      %v4809 = vld [vmem:[%s1273 + $0x108] sm:$0xff]
      %v4810 = vld [vmem:[%s1273 + $0x110] sm:$0xff]
      %v4811 = vld [vmem:[%s1273 + $0x118] sm:$0xff]
      %v4812 = vld [vmem:[%s1273 + $0x120] sm:$0xff]
      %v4813 = vld [vmem:[%s1273 + $0x128] sm:$0xff]
      %v4814 = vld [vmem:[%s1273 + $0x130] sm:$0xff]
      %v4815 = vld [vmem:[%s1273 + $0x138] sm:$0xff]
      %v4816 = vld [vmem:[%s1273 + $0x140] sm:$0xff]
      %v4817 = vld [vmem:[%s1273 + $0x148] sm:$0xff]
      %v4818 = vld [vmem:[%s1273 + $0x150] sm:$0xff]
      %v4819 = vld [vmem:[%s1273 + $0x158] sm:$0xff]
      %v4820 = vld [vmem:[%s1273 + $0x160] sm:$0xff]
      %v4821 = vld [vmem:[%s1273 + $0x168] sm:$0xff]
      %v4822 = vld [vmem:[%s1273 + $0x170] sm:$0xff]
      %v4823 = vld [vmem:[%s1273 + $0x178] sm:$0xff]
      %v4824 = vld [vmem:[%s1273 + $0x180] sm:$0xff]
      %v4825 = vld [vmem:[%s1273 + $0x188] sm:$0xff]
      %v4826 = vld [vmem:[%s1273 + $0x190] sm:$0xff]
      %v4827 = vld [vmem:[%s1273 + $0x198] sm:$0xff]
      %v4828 = vld [vmem:[%s1273 + $0x1a0] sm:$0xff]
      %v4829 = vld [vmem:[%s1273 + $0x1a8] sm:$0xff]
      %v4830 = vld [vmem:[%s1273 + $0x1b0] sm:$0xff]
      %v4831 = vld [vmem:[%s1273 + $0x1b8] sm:$0xff]
      %v4832 = vld [vmem:[%s1273 + $0x1c0] sm:$0xff]
      %v4833 = vld [vmem:[%s1273 + $0x1c8] sm:$0xff]
      %v4834 = vld [vmem:[%s1273 + $0x1d0] sm:$0xff]
      %v4835 = vld [vmem:[%s1273 + $0x1d8] sm:$0xff]
      %v4836 = vld [vmem:[%s1273 + $0x1e0] sm:$0xff]
      %v4837 = vld [vmem:[%s1273 + $0x1e8] sm:$0xff]
      %v4838 = vld [vmem:[%s1273 + $0x1f0] sm:$0xff]
      %v4839 = vld [vmem:[%s1273 + $0x1f8] sm:$0xff]
      %v4840 = vld [vmem:[%s1273 + $0x200] sm:$0xff]
      %v4841 = vld [vmem:[%s1273 + $0x208] sm:$0xff]
      %v4842 = vld [vmem:[%s1273 + $0x210] sm:$0xff]
      %v4843 = vld [vmem:[%s1273 + $0x218] sm:$0xff]
      %v4844 = vld [vmem:[%s1273 + $0x220] sm:$0xff]
      %v4845 = vld [vmem:[%s1273 + $0x228] sm:$0xff]
      %v4846 = vld [vmem:[%s1273 + $0x230] sm:$0xff]
      %v4847 = vld [vmem:[%s1273 + $0x238] sm:$0xff]
      %v4848 = vld [vmem:[%s1273 + $0x240] sm:$0xff]
      %v4849 = vld [vmem:[%s1273 + $0x248] sm:$0xff]
      %v4850 = vld [vmem:[%s1273 + $0x250] sm:$0xff]
      %v4851 = vld [vmem:[%s1273 + $0x258] sm:$0xff]
      %v4852 = vld [vmem:[%s1273 + $0x260] sm:$0xff]
      %v4853 = vld [vmem:[%s1273 + $0x268] sm:$0xff]
      %v4854 = vld [vmem:[%s1273 + $0x270] sm:$0xff]
      %v4855 = vld [vmem:[%s1273 + $0x278] sm:$0xff]
      %v4856 = vld [vmem:[%s1277] sm:$0x3]
      %v4858 = vperm.slane %v4856, 0
      %v4859 = vperm.slane %v4856, 1
      %v4942 = vunpack.c.l.b16 %v4776
      %v4943 = vunpack.c.h.b16 %v4776
      %v4944 = vunpack.c.l.b16 %v4777
      %v4945 = vunpack.c.h.b16 %v4777
      %v4946 = vunpack.c.l.b16 %v4778
      %v4947 = vunpack.c.h.b16 %v4778
      %v4948 = vunpack.c.l.b16 %v4779
      %v4949 = vunpack.c.h.b16 %v4779
      %v4950 = vunpack.c.l.b16 %v4780
      %v4951 = vunpack.c.h.b16 %v4780
      %v4952 = vunpack.c.l.b16 %v4781
      %v4953 = vunpack.c.h.b16 %v4781
      %v4954 = vunpack.c.l.b16 %v4782
      %v4955 = vunpack.c.h.b16 %v4782
      %v4956 = vunpack.c.l.b16 %v4783
      %v4957 = vunpack.c.h.b16 %v4783
      %v4958 = vunpack.c.l.b16 %v4784
      %v4959 = vunpack.c.h.b16 %v4784
      %v4960 = vunpack.c.l.b16 %v4785
      %v4961 = vunpack.c.h.b16 %v4785
      %v4962 = vunpack.c.l.b16 %v4786
      %v4963 = vunpack.c.h.b16 %v4786
      %v4964 = vunpack.c.l.b16 %v4787
      %v4965 = vunpack.c.h.b16 %v4787
      %v4966 = vunpack.c.l.b16 %v4788
      %v4967 = vunpack.c.h.b16 %v4788
      %v4968 = vunpack.c.l.b16 %v4789
      %v4969 = vunpack.c.h.b16 %v4789
      %v4970 = vunpack.c.l.b16 %v4790
      %v4971 = vunpack.c.h.b16 %v4790
      %v4972 = vunpack.c.l.b16 %v4791
      %v4973 = vunpack.c.h.b16 %v4791
      %v4974 = vunpack.c.l.b16 %v4792
      %v4975 = vunpack.c.h.b16 %v4792
      %v4976 = vunpack.c.l.b16 %v4793
      %v4977 = vunpack.c.h.b16 %v4793
      %v4978 = vunpack.c.l.b16 %v4794
      %v4979 = vunpack.c.h.b16 %v4794
      %v4980 = vunpack.c.l.b16 %v4795
      %v4981 = vunpack.c.h.b16 %v4795
      %v4982 = vunpack.c.l.b16 %v4796
      %v4983 = vunpack.c.h.b16 %v4796
      %v4984 = vunpack.c.l.b16 %v4797
      %v4985 = vunpack.c.h.b16 %v4797
      %v4986 = vunpack.c.l.b16 %v4798
      %v4987 = vunpack.c.h.b16 %v4798
      %v4988 = vunpack.c.l.b16 %v4799
      %v4989 = vunpack.c.h.b16 %v4799
      %v4990 = vunpack.c.l.b16 %v4800
      %v4991 = vunpack.c.h.b16 %v4800
      %v4992 = vunpack.c.l.b16 %v4801
      %v4993 = vunpack.c.h.b16 %v4801
      %v4994 = vunpack.c.l.b16 %v4802
      %v4995 = vunpack.c.h.b16 %v4802
      %v4996 = vunpack.c.l.b16 %v4803
      %v4997 = vunpack.c.h.b16 %v4803
      %v4998 = vunpack.c.l.b16 %v4804
      %v4999 = vunpack.c.h.b16 %v4804
      %v5000 = vunpack.c.l.b16 %v4805
      %v5001 = vunpack.c.h.b16 %v4805
      %v5002 = vunpack.c.l.b16 %v4806
      %v5003 = vunpack.c.h.b16 %v4806
      %v5004 = vunpack.c.l.b16 %v4807
      %v5005 = vunpack.c.h.b16 %v4807
      %v5006 = vunpack.c.l.b16 %v4808
      %v5007 = vunpack.c.h.b16 %v4808
      %v5008 = vunpack.c.l.b16 %v4809
      %v5009 = vunpack.c.h.b16 %v4809
      %v5010 = vunpack.c.l.b16 %v4810
      %v5011 = vunpack.c.h.b16 %v4810
      %v5012 = vunpack.c.l.b16 %v4811
      %v5013 = vunpack.c.h.b16 %v4811
      %v5014 = vunpack.c.l.b16 %v4812
      %v5015 = vunpack.c.h.b16 %v4812
      %v5016 = vunpack.c.l.b16 %v4813
      %v5017 = vunpack.c.h.b16 %v4813
      %v5018 = vunpack.c.l.b16 %v4814
      %v5019 = vunpack.c.h.b16 %v4814
      %v5020 = vunpack.c.l.b16 %v4815
      %v5021 = vunpack.c.h.b16 %v4815
      %v5022 = vunpack.c.l.b16 %v4816
      %v5023 = vunpack.c.h.b16 %v4816
      %v5024 = vunpack.c.l.b16 %v4817
      %v5025 = vunpack.c.h.b16 %v4817
      %v5026 = vunpack.c.l.b16 %v4818
      %v5027 = vunpack.c.h.b16 %v4818
      %v5028 = vunpack.c.l.b16 %v4819
      %v5029 = vunpack.c.h.b16 %v4819
      %v5030 = vunpack.c.l.b16 %v4820
      %v5031 = vunpack.c.h.b16 %v4820
      %v5032 = vunpack.c.l.b16 %v4821
      %v5033 = vunpack.c.h.b16 %v4821
      %v5034 = vunpack.c.l.b16 %v4822
      %v5035 = vunpack.c.h.b16 %v4822
      %v5036 = vunpack.c.l.b16 %v4823
      %v5037 = vunpack.c.h.b16 %v4823
      %v5038 = vunpack.c.l.b16 %v4824
      %v5039 = vunpack.c.h.b16 %v4824
      %v5040 = vunpack.c.l.b16 %v4825
      %v5041 = vunpack.c.h.b16 %v4825
      %v5042 = vunpack.c.l.b16 %v4826
      %v5043 = vunpack.c.h.b16 %v4826
      %v5044 = vunpack.c.l.b16 %v4827
      %v5045 = vunpack.c.h.b16 %v4827
      %v5046 = vunpack.c.l.b16 %v4828
      %v5047 = vunpack.c.h.b16 %v4828
      %v5048 = vunpack.c.l.b16 %v4829
      %v5049 = vunpack.c.h.b16 %v4829
      %v5050 = vunpack.c.l.b16 %v4830
      %v5051 = vunpack.c.h.b16 %v4830
      %v5052 = vunpack.c.l.b16 %v4831
      %v5053 = vunpack.c.h.b16 %v4831
      %v5054 = vunpack.c.l.b16 %v4832
      %v5055 = vunpack.c.h.b16 %v4832
      %v5056 = vunpack.c.l.b16 %v4833
      %v5057 = vunpack.c.h.b16 %v4833
      %v5058 = vunpack.c.l.b16 %v4834
      %v5059 = vunpack.c.h.b16 %v4834
      %v5060 = vunpack.c.l.b16 %v4835
      %v5061 = vunpack.c.h.b16 %v4835
      %v5062 = vunpack.c.l.b16 %v4836
      %v5063 = vunpack.c.h.b16 %v4836
      %v5064 = vunpack.c.l.b16 %v4837
      %v5065 = vunpack.c.h.b16 %v4837
      %v5066 = vunpack.c.l.b16 %v4838
      %v5067 = vunpack.c.h.b16 %v4838
      %v5068 = vunpack.c.l.b16 %v4839
      %v5069 = vunpack.c.h.b16 %v4839
      %v5070 = vunpack.c.l.b16 %v4840
      %v5071 = vunpack.c.h.b16 %v4840
      %v5072 = vunpack.c.l.b16 %v4841
      %v5073 = vunpack.c.h.b16 %v4841
      %v5074 = vunpack.c.l.b16 %v4842
      %v5075 = vunpack.c.h.b16 %v4842
      %v5076 = vunpack.c.l.b16 %v4843
      %v5077 = vunpack.c.h.b16 %v4843
      %v5078 = vunpack.c.l.b16 %v4844
      %v5079 = vunpack.c.h.b16 %v4844
      %v5080 = vunpack.c.l.b16 %v4845
      %v5081 = vunpack.c.h.b16 %v4845
      %v5082 = vunpack.c.l.b16 %v4846
      %v5083 = vunpack.c.h.b16 %v4846
      %v5084 = vunpack.c.l.b16 %v4847
      %v5085 = vunpack.c.h.b16 %v4847
      %v5086 = vunpack.c.l.b16 %v4848
      %v5087 = vunpack.c.h.b16 %v4848
      %v5088 = vunpack.c.l.b16 %v4849
      %v5089 = vunpack.c.h.b16 %v4849
      %v5090 = vunpack.c.l.b16 %v4850
      %v5091 = vunpack.c.h.b16 %v4850
      %v5092 = vunpack.c.l.b16 %v4851
      %v5093 = vunpack.c.h.b16 %v4851
      %v5094 = vunpack.c.l.b16 %v4852
      %v5095 = vunpack.c.h.b16 %v4852
      %v5096 = vunpack.c.l.b16 %v4853
      %v5097 = vunpack.c.h.b16 %v4853
      %v5098 = vunpack.c.l.b16 %v4854
      %v5099 = vunpack.c.h.b16 %v4854
      %v5100 = vunpack.c.l.b16 %v4855
      %v5101 = vunpack.c.h.b16 %v4855
      %v5102 = vpack.c.b16 %v4944, %v4942
      %v5103 = vpack.c.b16 %v4945, %v4943
      %v5104 = vpack.c.b16 %v4948, %v4946
      %v5105 = vpack.c.b16 %v4949, %v4947
      %v5106 = vpack.c.b16 %v4952, %v4950
      %v5107 = vpack.c.b16 %v4953, %v4951
      %v5108 = vpack.c.b16 %v4956, %v4954
      %v5109 = vpack.c.b16 %v4957, %v4955
      %v5110 = vpack.c.b16 %v4960, %v4958
      %v5111 = vpack.c.b16 %v4961, %v4959
      %v5112 = vpack.c.b16 %v4964, %v4962
      %v5113 = vpack.c.b16 %v4965, %v4963
      %v5114 = vpack.c.b16 %v4968, %v4966
      %v5115 = vpack.c.b16 %v4969, %v4967
      %v5116 = vpack.c.b16 %v4972, %v4970
      %v5117 = vpack.c.b16 %v4973, %v4971
      %v5118 = vpack.c.b16 %v4976, %v4974
      %v5119 = vpack.c.b16 %v4977, %v4975
      %v5120 = vpack.c.b16 %v4980, %v4978
      %v5121 = vpack.c.b16 %v4981, %v4979
      %v5122 = vpack.c.b16 %v4984, %v4982
      %v5123 = vpack.c.b16 %v4985, %v4983
      %v5124 = vpack.c.b16 %v4988, %v4986
      %v5125 = vpack.c.b16 %v4989, %v4987
      %v5126 = vpack.c.b16 %v4992, %v4990
      %v5127 = vpack.c.b16 %v4993, %v4991
      %v5128 = vpack.c.b16 %v4996, %v4994
      %v5129 = vpack.c.b16 %v4997, %v4995
      %v5130 = vpack.c.b16 %v5000, %v4998
      %v5131 = vpack.c.b16 %v5001, %v4999
      %v5132 = vpack.c.b16 %v5004, %v5002
      %v5133 = vpack.c.b16 %v5005, %v5003
      %v5134 = vpack.c.b16 %v5008, %v5006
      %v5135 = vpack.c.b16 %v5009, %v5007
      %v5136 = vpack.c.b16 %v5012, %v5010
      %v5137 = vpack.c.b16 %v5013, %v5011
      %v5138 = vpack.c.b16 %v5016, %v5014
      %v5139 = vpack.c.b16 %v5017, %v5015
      %v5140 = vpack.c.b16 %v5020, %v5018
      %v5141 = vpack.c.b16 %v5021, %v5019
      %v5142 = vpack.c.b16 %v5024, %v5022
      %v5143 = vpack.c.b16 %v5025, %v5023
      %v5144 = vpack.c.b16 %v5028, %v5026
      %v5145 = vpack.c.b16 %v5029, %v5027
      %v5146 = vpack.c.b16 %v5032, %v5030
      %v5147 = vpack.c.b16 %v5033, %v5031
      %v5148 = vpack.c.b16 %v5036, %v5034
      %v5149 = vpack.c.b16 %v5037, %v5035
      %v5150 = vpack.c.b16 %v5040, %v5038
      %v5151 = vpack.c.b16 %v5041, %v5039
      %v5152 = vpack.c.b16 %v5044, %v5042
      %v5153 = vpack.c.b16 %v5045, %v5043
      %v5154 = vpack.c.b16 %v5048, %v5046
      %v5155 = vpack.c.b16 %v5049, %v5047
      %v5156 = vpack.c.b16 %v5052, %v5050
      %v5157 = vpack.c.b16 %v5053, %v5051
      %v5158 = vpack.c.b16 %v5056, %v5054
      %v5159 = vpack.c.b16 %v5057, %v5055
      %v5160 = vpack.c.b16 %v5060, %v5058
      %v5161 = vpack.c.b16 %v5061, %v5059
      %v5162 = vpack.c.b16 %v5064, %v5062
      %v5163 = vpack.c.b16 %v5065, %v5063
      %v5164 = vpack.c.b16 %v5068, %v5066
      %v5165 = vpack.c.b16 %v5069, %v5067
      %v5166 = vpack.c.b16 %v5072, %v5070
      %v5167 = vpack.c.b16 %v5073, %v5071
      %v5168 = vpack.c.b16 %v5076, %v5074
      %v5169 = vpack.c.b16 %v5077, %v5075
      %v5170 = vpack.c.b16 %v5080, %v5078
      %v5171 = vpack.c.b16 %v5081, %v5079
      %v5172 = vpack.c.b16 %v5084, %v5082
      %v5173 = vpack.c.b16 %v5085, %v5083
      %v5174 = vpack.c.b16 %v5088, %v5086
      %v5175 = vpack.c.b16 %v5089, %v5087
      %v5176 = vpack.c.b16 %v5092, %v5090
      %v5177 = vpack.c.b16 %v5093, %v5091
      %v5178 = vpack.c.b16 %v5096, %v5094
      %v5179 = vpack.c.b16 %v5097, %v5095
      %v5180 = vpack.c.b16 %v5100, %v5098
      %v5181 = vpack.c.b16 %v5101, %v5099
      %5262 = vmatpush.bf16.msra.mxu0 %v5116
      %5263 = vmatpush.bf16.msra.mxu0 %v5114
      %5264 = vmatpush.bf16.msra.mxu0 %v5112
      %5265 = vmatpush.bf16.msra.mxu0 %v5110
      %5266 = vmatpush.bf16.msra.mxu0 %v5108
      %5267 = vmatpush.bf16.msra.mxu0 %v5106
      %5268 = vmatpush.bf16.msra.mxu0 %v5104
      %5269 = vmatpush.bf16.msra.mxu0 %v5102
      %5270 = vmatmul.bf16.gmra.mxu0 %v4771
      %v5271 = vpop.f32.mrf.mxu0
      %v5272 = vadd.f32 %v4858, %v5271
      %v5273 = vpop.f32.mrf.mxu0
      %5274 = vdwg.mxu0
      %5275 = vmatpush.bf16.msra.mxu0 %v5132
      %5276 = vmatpush.bf16.msra.mxu0 %v5130
      %5277 = vmatpush.bf16.msra.mxu0 %v5128
      %5278 = vmatpush.bf16.msra.mxu0 %v5126
      %5279 = vmatpush.bf16.msra.mxu0 %v5124
      %5280 = vmatpush.bf16.msra.mxu0 %v5122
      %5281 = vmatpush.bf16.msra.mxu0 %v5120
      %5282 = vmatpush.bf16.msra.mxu0 %v5118
      %5283 = vmatmul.bf16.gmra.mxu0 %v4772
      %v5284 = vpop.f32.mrf.mxu0
      %v5285 = vadd.f32 %v5272, %v5284
      %v5286 = vpop.f32.mrf.mxu0
      %5287 = vdwg.mxu0
      %5288 = vmatpush.bf16.msra.mxu0 %v5148
      %5289 = vmatpush.bf16.msra.mxu0 %v5146
      %5290 = vmatpush.bf16.msra.mxu0 %v5144
      %5291 = vmatpush.bf16.msra.mxu0 %v5142
      %5292 = vmatpush.bf16.msra.mxu0 %v5140
      %5293 = vmatpush.bf16.msra.mxu0 %v5138
      %5294 = vmatpush.bf16.msra.mxu0 %v5136
      %5295 = vmatpush.bf16.msra.mxu0 %v5134
      %5296 = vmatmul.bf16.gmra.mxu0 %v4773
      %v5297 = vpop.f32.mrf.mxu0
      %v5298 = vadd.f32 %v5285, %v5297
      %v5299 = vpop.f32.mrf.mxu0
      %5300 = vdwg.mxu0
      %5301 = vmatpush.bf16.msra.mxu0 %v5164
      %5302 = vmatpush.bf16.msra.mxu0 %v5162
      %5303 = vmatpush.bf16.msra.mxu0 %v5160
      %5304 = vmatpush.bf16.msra.mxu0 %v5158
      %5305 = vmatpush.bf16.msra.mxu0 %v5156
      %5306 = vmatpush.bf16.msra.mxu0 %v5154
      %5307 = vmatpush.bf16.msra.mxu0 %v5152
      %5308 = vmatpush.bf16.msra.mxu0 %v5150
      %5309 = vmatmul.bf16.gmra.mxu0 %v4774
      %v5310 = vpop.f32.mrf.mxu0
      %v5311 = vadd.f32 %v5298, %v5310
      %v5312 = vpop.f32.mrf.mxu0
      %5313 = vdwg.mxu0
      %5314 = vmatpush.bf16.msra.mxu0 %v5180
      %5315 = vmatpush.bf16.msra.mxu0 %v5178
      %5316 = vmatpush.bf16.msra.mxu0 %v5176
      %5317 = vmatpush.bf16.msra.mxu0 %v5174
      %5318 = vmatpush.bf16.msra.mxu0 %v5172
      %5319 = vmatpush.bf16.msra.mxu0 %v5170
      %5320 = vmatpush.bf16.msra.mxu0 %v5168
      %5321 = vmatpush.bf16.msra.mxu0 %v5166
      %5322 = vmatmul.bf16.gmra.mxu0 %v4775
      %v5323 = vpop.f32.mrf.mxu0
      %v5324 = vadd.f32 %v5311, %v5323
      %v5325 = vpop.f32.mrf.mxu0
      %5326 = vdwg.mxu0
      %5327 = vmatpush.bf16.msra.mxu0 %v5117
      %5328 = vmatpush.bf16.msra.mxu0 %v5115
      %5329 = vmatpush.bf16.msra.mxu0 %v5113
      %5330 = vmatpush.bf16.msra.mxu0 %v5111
      %5331 = vmatpush.bf16.msra.mxu0 %v5109
      %5332 = vmatpush.bf16.msra.mxu0 %v5107
      %5333 = vmatpush.bf16.msra.mxu0 %v5105
      %5334 = vmatpush.bf16.msra.mxu0 %v5103
      %5335 = vmatmul.bf16.gmra.mxu0 %v4771
      %v5336 = vpop.f32.mrf.mxu0
      %v5337 = vadd.f32 %v4859, %v5336
      %v5338 = vpop.f32.mrf.mxu0
      %5339 = vdwg.mxu0
      %5340 = vmatpush.bf16.msra.mxu0 %v5133
      %5341 = vmatpush.bf16.msra.mxu0 %v5131
      %5342 = vmatpush.bf16.msra.mxu0 %v5129
      %5343 = vmatpush.bf16.msra.mxu0 %v5127
      %5344 = vmatpush.bf16.msra.mxu0 %v5125
      %5345 = vmatpush.bf16.msra.mxu0 %v5123
      %5346 = vmatpush.bf16.msra.mxu0 %v5121
      %5347 = vmatpush.bf16.msra.mxu0 %v5119
      %5348 = vmatmul.bf16.gmra.mxu0 %v4772
      %v5349 = vpop.f32.mrf.mxu0
      %v5350 = vadd.f32 %v5337, %v5349
      %v5351 = vpop.f32.mrf.mxu0
      %5352 = vdwg.mxu0
      %5353 = vmatpush.bf16.msra.mxu0 %v5149
      %5354 = vmatpush.bf16.msra.mxu0 %v5147
      %5355 = vmatpush.bf16.msra.mxu0 %v5145
      %5356 = vmatpush.bf16.msra.mxu0 %v5143
      %5357 = vmatpush.bf16.msra.mxu0 %v5141
      %5358 = vmatpush.bf16.msra.mxu0 %v5139
      %5359 = vmatpush.bf16.msra.mxu0 %v5137
      %5360 = vmatpush.bf16.msra.mxu0 %v5135
      %5361 = vmatmul.bf16.gmra.mxu0 %v4773
      %v5362 = vpop.f32.mrf.mxu0
      %v5363 = vadd.f32 %v5350, %v5362
      %v5364 = vpop.f32.mrf.mxu0
      %5365 = vdwg.mxu0
      %5366 = vmatpush.bf16.msra.mxu0 %v5165
      %5367 = vmatpush.bf16.msra.mxu0 %v5163
      %5368 = vmatpush.bf16.msra.mxu0 %v5161
      %5369 = vmatpush.bf16.msra.mxu0 %v5159
      %5370 = vmatpush.bf16.msra.mxu0 %v5157
      %5371 = vmatpush.bf16.msra.mxu0 %v5155
      %5372 = vmatpush.bf16.msra.mxu0 %v5153
      %5373 = vmatpush.bf16.msra.mxu0 %v5151
      %5374 = vmatmul.bf16.gmra.mxu0 %v4774
      %v5375 = vpop.f32.mrf.mxu0
      %v5376 = vadd.f32 %v5363, %v5375
      %v5377 = vpop.f32.mrf.mxu0
      %5378 = vdwg.mxu0
      %5379 = vmatpush.bf16.msra.mxu0 %v5181
      %5380 = vmatpush.bf16.msra.mxu0 %v5179
      %5381 = vmatpush.bf16.msra.mxu0 %v5177
      %5382 = vmatpush.bf16.msra.mxu0 %v5175
      %5383 = vmatpush.bf16.msra.mxu0 %v5173
      %5384 = vmatpush.bf16.msra.mxu0 %v5171
      %5385 = vmatpush.bf16.msra.mxu0 %v5169
      %5386 = vmatpush.bf16.msra.mxu0 %v5167
      %5387 = vmatmul.bf16.gmra.mxu0 %v4775
      %v5388 = vpop.f32.mrf.mxu0
      %v5389 = vadd.f32 %v5376, %v5388
      %v5390 = vpop.f32.mrf.mxu0
      %5391 = vdwg.mxu0
      %v5392 = vld [vmem:[%s61] sm:$0xf]
      %v5393 = vld [vmem:[%s61 + $0x4] sm:$0xf]
      %v5394 = vld [vmem:[%s61 + $0x8] sm:$0xf]
      %v5395 = vld [vmem:[%s61 + $0xc] sm:$0xf]
      %v5396 = vpack.c.bf16 %v5324, %v5324
      %v5397 = vpack.c.bf16 %v5389, %v5389
      %v5402 = vunpack.c.l.b16 %v5392
      %v5403 = vunpack.c.l.b16 %v5393
      %v5404 = vunpack.c.l.b16 %v5394
      %v5405 = vunpack.c.l.b16 %v5395
      %v5406 = vpack.c.b16 %v5403, %v5402
      %v5407 = vpack.c.b16 %v5405, %v5404
      %vm5408 = vcmask 15360
      %v5410 = vsel %vm5408, %v5406, 0
      %v5413 = vsel %vm5408, %v5407, 0
      %vm5415 = vcmask 1040384
      %v5417 = vsel %vm5415, %v5396, 0
      %v5420 = vsel %vm5415, %v5397, 0
      %5422 = vmatpush.bf16.msra.mxu0 0
      %5423 = vmatpush.bf16.msra.mxu0 0
      %5424 = vmatpush.bf16.msra.mxu0 0
      %5425 = vmatpush.bf16.msra.mxu0 0
      %5426 = vmatpush.bf16.msra.mxu0 0
      %5427 = vmatpush.bf16.msra.mxu0 0
      %5428 = vmatpush.bf16.msra.mxu0 0
      %5429 = vmatpush.bf16.msra.mxu0 %v5417
      %5430 = vmatmul.bf16.gmra.mxu0 %v5410
      %v5431 = vpop.f32.mrf.mxu0
      %v5432 = vadd.f32 0.0, %v5431
      %v5433 = vpop.f32.mrf.mxu0
      %v5434 = vadd.f32 0.0, %v5433
      %5435 = vmatmul.bf16.gmra.mxu0 %v5413
      %v5436 = vpop.f32.mrf.mxu0
      %v5437 = vadd.f32 0.0, %v5436
      %v5438 = vpop.f32.mrf.mxu0
      %v5439 = vadd.f32 0.0, %v5438
      %5440 = vdwg.mxu0
      %5441 = vmatpush.bf16.msra.mxu0 0
      %5442 = vmatpush.bf16.msra.mxu0 0
      %5443 = vmatpush.bf16.msra.mxu0 0
      %5444 = vmatpush.bf16.msra.mxu0 0
      %5445 = vmatpush.bf16.msra.mxu0 0
      %5446 = vmatpush.bf16.msra.mxu0 0
      %5447 = vmatpush.bf16.msra.mxu0 0
      %5448 = vmatpush.bf16.msra.mxu0 %v5420
      %5449 = vmatmul.bf16.gmra.mxu0 %v5410
      %v5450 = vpop.f32.mrf.mxu0
      %v5451 = vadd.f32 0.0, %v5450
      %v5452 = vpop.f32.mrf.mxu0
      %v5453 = vadd.f32 0.0, %v5452
      %5454 = vmatmul.bf16.gmra.mxu0 %v5413
      %v5455 = vpop.f32.mrf.mxu0
      %v5456 = vadd.f32 0.0, %v5455
      %v5457 = vpop.f32.mrf.mxu0
      %v5458 = vadd.f32 0.0, %v5457
      %5459 = vdwg.mxu0
      %v5460 = vmul.f32 %v3169, %v5432
      %v5461 = vmul.f32 %v3170, %v5451
      %v5462 = vmul.f32 %v3171, %v5434
      %v5463 = vmul.f32 %v3172, %v5453
      %v5464 = vmul.f32 %v3173, %v5437
      %v5465 = vmul.f32 %v3174, %v5456
      %v5466 = vmul.f32 %v3175, %v5439
      %v5467 = vmul.f32 %v3176, %v5458
      %v5468 = vadd.f32 %v1383, %v5460
      %v5469 = vadd.f32 %v1384, %v5461
      %v5470 = vadd.f32 %v1385, %v5462
      %v5471 = vadd.f32 %v1386, %v5463
      %v5472 = vadd.f32 %v1387, %v5464
      %v5473 = vadd.f32 %v1388, %v5465
      %v5474 = vadd.f32 %v1389, %v5466
      %v5475 = vadd.f32 %v1390, %v5467
      %5476 = vst [vmem:[#allocation2] sm:$0xff] %v5468
      %5477 = vst [vmem:[#allocation2 + $0x8] sm:$0xff] %v5469
      %5478 = vst [vmem:[#allocation2 + $0x10] sm:$0xff] %v5470
      %5479 = vst [vmem:[#allocation2 + $0x18] sm:$0xff] %v5471
      %5480 = vst [vmem:[#allocation2 + $0x20] sm:$0xff] %v5472
      %5481 = vst [vmem:[#allocation2 + $0x28] sm:$0xff] %v5473
      %5482 = vst [vmem:[#allocation2 + $0x30] sm:$0xff] %v5474
      %5483 = vst [vmem:[#allocation2 + $0x38] sm:$0xff] %v5475
      %p5484 = scmp.eq.s32.totalorder %s83, 1
      // Predicated region
      $region157: #{residual_group_forward.1} parent=151 // pred_check
        %p5485 = pneg %p5484
      $region158: #{residual_group_forward.1} parent=151 // pred_check_branch
        %5487 = sbr.rel (%p5485) target = $region160
      $region159: #{residual_group_forward.1} parent=151 // pred_region
        %v5488 = vld [vmem:[%s63] sm:$0xff]
        %v5489 = vld [vmem:[%s63 + $0x8] sm:$0xff]
        %v5490 = vld [vmem:[%s63 + $0x10] sm:$0xff]
        %v5491 = vld [vmem:[%s63 + $0x18] sm:$0xff]
        %v5492 = vld [vmem:[%s63 + $0x20] sm:$0xff]
        %v5493 = vld [vmem:[%s63 + $0x28] sm:$0xff]
        %v5494 = vld [vmem:[%s63 + $0x30] sm:$0xff]
        %v5495 = vld [vmem:[%s63 + $0x38] sm:$0xff]
        %v5496 = vld [vmem:[%s63 + $0x40] sm:$0xff]
        %v5497 = vld [vmem:[%s63 + $0x48] sm:$0xff]
        %v5498 = vld [vmem:[%s63 + $0x50] sm:$0xff]
        %v5499 = vld [vmem:[%s63 + $0x58] sm:$0xff]
        %v5500 = vld [vmem:[%s63 + $0x60] sm:$0xff]
        %v5501 = vld [vmem:[%s63 + $0x68] sm:$0xff]
        %v5502 = vld [vmem:[%s63 + $0x70] sm:$0xff]
        %v5503 = vld [vmem:[%s63 + $0x78] sm:$0xff]
        %v5504 = vld [vmem:[%s63 + $0x80] sm:$0xff]
        %v5505 = vld [vmem:[%s63 + $0x88] sm:$0xff]
        %v5506 = vld [vmem:[%s63 + $0x90] sm:$0xff]
        %v5507 = vld [vmem:[%s63 + $0x98] sm:$0xff]
        %v5508 = vld [vmem:[%s63 + $0xa0] sm:$0xff]
        %v5509 = vld [vmem:[%s63 + $0xa8] sm:$0xff]
        %v5510 = vld [vmem:[%s63 + $0xb0] sm:$0xff]
        %v5511 = vld [vmem:[%s63 + $0xb8] sm:$0xff]
        %v5512 = vld [vmem:[%s63 + $0xc0] sm:$0xff]
        %v5513 = vld [vmem:[%s63 + $0xc8] sm:$0xff]
        %v5514 = vld [vmem:[%s63 + $0xd0] sm:$0xff]
        %v5515 = vld [vmem:[%s63 + $0xd8] sm:$0xff]
        %v5516 = vld [vmem:[%s63 + $0xe0] sm:$0xff]
        %v5517 = vld [vmem:[%s63 + $0xe8] sm:$0xff]
        %v5518 = vld [vmem:[%s63 + $0xf0] sm:$0xff]
        %v5519 = vld [vmem:[%s63 + $0xf8] sm:$0xff]
        %s5520 = scalar_lea.vmem %s63, 256
        %v5521 = vld [vmem:[%s5520] sm:$0xff]
        %v5522 = vld [vmem:[%s5520 + $0x8] sm:$0xff]
        %v5523 = vld [vmem:[%s5520 + $0x10] sm:$0xff]
        %v5524 = vld [vmem:[%s5520 + $0x18] sm:$0xff]
        %v5525 = vld [vmem:[%s5520 + $0x20] sm:$0xff]
        %v5526 = vld [vmem:[%s5520 + $0x28] sm:$0xff]
        %v5527 = vld [vmem:[%s5520 + $0x30] sm:$0xff]
        %v5528 = vld [vmem:[%s5520 + $0x38] sm:$0xff]
        %v5529 = vld [vmem:[%s5520 + $0x40] sm:$0xff]
        %v5530 = vld [vmem:[%s5520 + $0x48] sm:$0xff]
        %v5531 = vld [vmem:[%s5520 + $0x50] sm:$0xff]
        %v5532 = vld [vmem:[%s5520 + $0x58] sm:$0xff]
        %v5533 = vld [vmem:[%s5520 + $0x60] sm:$0xff]
        %v5534 = vld [vmem:[%s5520 + $0x68] sm:$0xff]
        %v5535 = vld [vmem:[%s5520 + $0x70] sm:$0xff]
        %v5536 = vld [vmem:[%s5520 + $0x78] sm:$0xff]
        %v5537 = vld [vmem:[%s5520 + $0x80] sm:$0xff]
        %v5538 = vld [vmem:[%s5520 + $0x88] sm:$0xff]
        %v5539 = vld [vmem:[%s5520 + $0x90] sm:$0xff]
        %v5540 = vld [vmem:[%s5520 + $0x98] sm:$0xff]
        %v5541 = vld [vmem:[%s5520 + $0xa0] sm:$0xff]
        %v5542 = vld [vmem:[%s5520 + $0xa8] sm:$0xff]
        %v5543 = vld [vmem:[%s5520 + $0xb0] sm:$0xff]
        %v5544 = vld [vmem:[%s5520 + $0xb8] sm:$0xff]
        %v5545 = vld [vmem:[%s5520 + $0xc0] sm:$0xff]
        %v5546 = vld [vmem:[%s5520 + $0xc8] sm:$0xff]
        %v5547 = vld [vmem:[%s5520 + $0xd0] sm:$0xff]
        %v5548 = vld [vmem:[%s5520 + $0xd8] sm:$0xff]
        %v5549 = vld [vmem:[%s5520 + $0xe0] sm:$0xff]
        %v5550 = vld [vmem:[%s5520 + $0xe8] sm:$0xff]
        %v5551 = vld [vmem:[%s5520 + $0xf0] sm:$0xff]
        %v5552 = vld [vmem:[%s5520 + $0xf8] sm:$0xff]
        %s5553 = scalar_lea.vmem %s63, 512
        %v5554 = vld [vmem:[%s5553] sm:$0xff]
        %v5555 = vld [vmem:[%s5553 + $0x8] sm:$0xff]
        %v5556 = vld [vmem:[%s5553 + $0x10] sm:$0xff]
        %v5557 = vld [vmem:[%s5553 + $0x18] sm:$0xff]
        %v5558 = vld [vmem:[%s5553 + $0x20] sm:$0xff]
        %v5559 = vld [vmem:[%s5553 + $0x28] sm:$0xff]
        %v5560 = vld [vmem:[%s5553 + $0x30] sm:$0xff]
        %v5561 = vld [vmem:[%s5553 + $0x38] sm:$0xff]
        %v5562 = vld [vmem:[%s5553 + $0x40] sm:$0xff]
        %v5563 = vld [vmem:[%s5553 + $0x48] sm:$0xff]
        %v5564 = vld [vmem:[%s5553 + $0x50] sm:$0xff]
        %v5565 = vld [vmem:[%s5553 + $0x58] sm:$0xff]
        %v5566 = vld [vmem:[%s5553 + $0x60] sm:$0xff]
        %v5567 = vld [vmem:[%s5553 + $0x68] sm:$0xff]
        %v5568 = vld [vmem:[%s5553 + $0x70] sm:$0xff]
        %v5569 = vld [vmem:[%s5553 + $0x78] sm:$0xff]
        %v5570 = vld [vmem:[%s5553 + $0x80] sm:$0xff]
        %v5571 = vld [vmem:[%s5553 + $0x88] sm:$0xff]
        %v5572 = vld [vmem:[%s5553 + $0x90] sm:$0xff]
        %v5573 = vld [vmem:[%s5553 + $0x98] sm:$0xff]
        %v5574 = vld [vmem:[%s5553 + $0xa0] sm:$0xff]
        %v5575 = vld [vmem:[%s5553 + $0xa8] sm:$0xff]
        %v5576 = vld [vmem:[%s5553 + $0xb0] sm:$0xff]
        %v5577 = vld [vmem:[%s5553 + $0xb8] sm:$0xff]
        %v5578 = vld [vmem:[%s5553 + $0xc0] sm:$0xff]
        %v5579 = vld [vmem:[%s5553 + $0xc8] sm:$0xff]
        %v5580 = vld [vmem:[%s5553 + $0xd0] sm:$0xff]
        %v5581 = vld [vmem:[%s5553 + $0xd8] sm:$0xff]
        %v5582 = vld [vmem:[%s5553 + $0xe0] sm:$0xff]
        %v5583 = vld [vmem:[%s5553 + $0xe8] sm:$0xff]
        %v5584 = vld [vmem:[%s5553 + $0xf0] sm:$0xff]
        %v5585 = vld [vmem:[%s5553 + $0xf8] sm:$0xff]
        %v5586 = vld [vmem:[%s65] sm:$0x3]
        %v5587 = vrot.slane %v5468, 7
        %v5588 = vrot.slane %v5469, 7
        %v5589 = vrot.slane %v5470, 7
        %v5590 = vrot.slane %v5471, 7
        %v5591 = vrot.slane %v5472, 7
        %v5592 = vrot.slane %v5473, 7
        %v5593 = vrot.slane %v5474, 7
        %v5594 = vrot.slane %v5475, 7
        %v5595 = vsel %vm1498, %v5591, %v5593
        %v5596 = vsel %vm1498, %v5592, %v5594
        %v5597 = vsel %vm1498, %v5589, %v5591
        %v5598 = vsel %vm1498, %v5590, %v5592
        %v5599 = vsel %vm1498, %v5587, %v5589
        %v5600 = vsel %vm1498, %v5588, %v5590
        %v5601 = vsel %vm1498, %v5593, %v5587
        %v5602 = vsel %vm1498, %v5594, %v5588
        %v5603 = vmul.f32 %v5601, %v1347
        %v5604 = vmul.f32 %v5602, %v1347
        %v5605 = vmul.f32 %v5599, %v1348
        %v5606 = vmul.f32 %v5600, %v1348
        %v5607 = vmul.f32 %v5597, %v1349
        %v5608 = vmul.f32 %v5598, %v1349
        %v5609 = vmul.f32 %v5595, %v1350
        %v5610 = vmul.f32 %v5596, %v1350
        %v5611 = vpack.c.bf16 %v5605, %v5603
        %v5612 = vpack.c.bf16 %v5606, %v5604
        %v5613 = vpack.c.bf16 %v5609, %v5607
        %v5614 = vpack.c.bf16 %v5610, %v5608
        %v5615 = vrot.slane %v5468, 1
        %v5616 = vrot.slane %v5469, 1
        %v5617 = vrot.slane %v5470, 1
        %v5618 = vrot.slane %v5471, 1
        %v5619 = vrot.slane %v5472, 1
        %v5620 = vrot.slane %v5473, 1
        %v5621 = vrot.slane %v5474, 1
        %v5622 = vrot.slane %v5475, 1
        %v5623 = vsel %vm1527, %v5619, %v5621
        %v5624 = vsel %vm1527, %v5620, %v5622
        %v5625 = vsel %vm1527, %v5617, %v5619
        %v5626 = vsel %vm1527, %v5618, %v5620
        %v5627 = vsel %vm1527, %v5615, %v5617
        %v5628 = vsel %vm1527, %v5616, %v5618
        %v5629 = vsel %vm1527, %v5621, %v5615
        %v5630 = vsel %vm1527, %v5622, %v5616
        %v5631 = vmul.f32 %v5627, %v1359
        %v5632 = vmul.f32 %v5628, %v1359
        %v5633 = vmul.f32 %v5625, %v1360
        %v5634 = vmul.f32 %v5626, %v1360
        %v5635 = vmul.f32 %v5623, %v1361
        %v5636 = vmul.f32 %v5624, %v1361
        %v5637 = vmul.f32 %v5629, %v1362
        %v5638 = vmul.f32 %v5630, %v1362
        %v5639 = vpack.c.bf16 %v5633, %v5631
        %v5640 = vpack.c.bf16 %v5634, %v5632
        %v5641 = vpack.c.bf16 %v5637, %v5635
        %v5642 = vpack.c.bf16 %v5638, %v5636
        %v5643 = vpack.c.bf16 %v5470, %v5468
        %v5644 = vpack.c.bf16 %v5471, %v5469
        %v5645 = vpack.c.bf16 %v5474, %v5472
        %v5646 = vpack.c.bf16 %v5475, %v5473
        %v5679 = vunpack.c.l.b16 %v5521
        %v5680 = vunpack.c.h.b16 %v5521
        %v5681 = vunpack.c.l.b16 %v5522
        %v5682 = vunpack.c.h.b16 %v5522
        %v5683 = vunpack.c.l.b16 %v5523
        %v5684 = vunpack.c.h.b16 %v5523
        %v5685 = vunpack.c.l.b16 %v5524
        %v5686 = vunpack.c.h.b16 %v5524
        %v5687 = vunpack.c.l.b16 %v5525
        %v5688 = vunpack.c.h.b16 %v5525
        %v5689 = vunpack.c.l.b16 %v5526
        %v5690 = vunpack.c.h.b16 %v5526
        %v5691 = vunpack.c.l.b16 %v5527
        %v5692 = vunpack.c.h.b16 %v5527
        %v5693 = vunpack.c.l.b16 %v5528
        %v5694 = vunpack.c.h.b16 %v5528
        %v5695 = vunpack.c.l.b16 %v5529
        %v5696 = vunpack.c.h.b16 %v5529
        %v5697 = vunpack.c.l.b16 %v5530
        %v5698 = vunpack.c.h.b16 %v5530
        %v5699 = vunpack.c.l.b16 %v5531
        %v5700 = vunpack.c.h.b16 %v5531
        %v5701 = vunpack.c.l.b16 %v5532
        %v5702 = vunpack.c.h.b16 %v5532
        %v5703 = vunpack.c.l.b16 %v5533
        %v5704 = vunpack.c.h.b16 %v5533
        %v5705 = vunpack.c.l.b16 %v5534
        %v5706 = vunpack.c.h.b16 %v5534
        %v5707 = vunpack.c.l.b16 %v5535
        %v5708 = vunpack.c.h.b16 %v5535
        %v5709 = vunpack.c.l.b16 %v5536
        %v5710 = vunpack.c.h.b16 %v5536
        %v5711 = vunpack.c.l.b16 %v5537
        %v5712 = vunpack.c.h.b16 %v5537
        %v5713 = vunpack.c.l.b16 %v5538
        %v5714 = vunpack.c.h.b16 %v5538
        %v5715 = vunpack.c.l.b16 %v5539
        %v5716 = vunpack.c.h.b16 %v5539
        %v5717 = vunpack.c.l.b16 %v5540
        %v5718 = vunpack.c.h.b16 %v5540
        %v5719 = vunpack.c.l.b16 %v5541
        %v5720 = vunpack.c.h.b16 %v5541
        %v5721 = vunpack.c.l.b16 %v5542
        %v5722 = vunpack.c.h.b16 %v5542
        %v5723 = vunpack.c.l.b16 %v5543
        %v5724 = vunpack.c.h.b16 %v5543
        %v5725 = vunpack.c.l.b16 %v5544
        %v5726 = vunpack.c.h.b16 %v5544
        %v5727 = vunpack.c.l.b16 %v5545
        %v5728 = vunpack.c.h.b16 %v5545
        %v5729 = vunpack.c.l.b16 %v5546
        %v5730 = vunpack.c.h.b16 %v5546
        %v5731 = vunpack.c.l.b16 %v5547
        %v5732 = vunpack.c.h.b16 %v5547
        %v5733 = vunpack.c.l.b16 %v5548
        %v5734 = vunpack.c.h.b16 %v5548
        %v5735 = vunpack.c.l.b16 %v5549
        %v5736 = vunpack.c.h.b16 %v5549
        %v5737 = vunpack.c.l.b16 %v5550
        %v5738 = vunpack.c.h.b16 %v5550
        %v5739 = vunpack.c.l.b16 %v5551
        %v5740 = vunpack.c.h.b16 %v5551
        %v5741 = vunpack.c.l.b16 %v5552
        %v5742 = vunpack.c.h.b16 %v5552
        %v5743 = vpack.c.b16 %v5681, %v5679
        %v5744 = vpack.c.b16 %v5682, %v5680
        %v5745 = vpack.c.b16 %v5685, %v5683
        %v5746 = vpack.c.b16 %v5686, %v5684
        %v5747 = vpack.c.b16 %v5689, %v5687
        %v5748 = vpack.c.b16 %v5690, %v5688
        %v5749 = vpack.c.b16 %v5693, %v5691
        %v5750 = vpack.c.b16 %v5694, %v5692
        %v5751 = vpack.c.b16 %v5697, %v5695
        %v5752 = vpack.c.b16 %v5698, %v5696
        %v5753 = vpack.c.b16 %v5701, %v5699
        %v5754 = vpack.c.b16 %v5702, %v5700
        %v5755 = vpack.c.b16 %v5705, %v5703
        %v5756 = vpack.c.b16 %v5706, %v5704
        %v5757 = vpack.c.b16 %v5709, %v5707
        %v5758 = vpack.c.b16 %v5710, %v5708
        %v5759 = vpack.c.b16 %v5713, %v5711
        %v5760 = vpack.c.b16 %v5714, %v5712
        %v5761 = vpack.c.b16 %v5717, %v5715
        %v5762 = vpack.c.b16 %v5718, %v5716
        %v5763 = vpack.c.b16 %v5721, %v5719
        %v5764 = vpack.c.b16 %v5722, %v5720
        %v5765 = vpack.c.b16 %v5725, %v5723
        %v5766 = vpack.c.b16 %v5726, %v5724
        %v5767 = vpack.c.b16 %v5729, %v5727
        %v5768 = vpack.c.b16 %v5730, %v5728
        %v5769 = vpack.c.b16 %v5733, %v5731
        %v5770 = vpack.c.b16 %v5734, %v5732
        %v5771 = vpack.c.b16 %v5737, %v5735
        %v5772 = vpack.c.b16 %v5738, %v5736
        %v5773 = vpack.c.b16 %v5741, %v5739
        %v5774 = vpack.c.b16 %v5742, %v5740
        %5807 = vmatpush.bf16.msra.mxu0 %v5757
        %5808 = vmatpush.bf16.msra.mxu0 %v5755
        %5809 = vmatpush.bf16.msra.mxu0 %v5753
        %5810 = vmatpush.bf16.msra.mxu0 %v5751
        %5811 = vmatpush.bf16.msra.mxu0 %v5749
        %5812 = vmatpush.bf16.msra.mxu0 %v5747
        %5813 = vmatpush.bf16.msra.mxu0 %v5745
        %5814 = vmatpush.bf16.msra.mxu0 %v5743
        %5815 = vmatmul.bf16.gmra.mxu0 %v5643
        %v5816 = vpop.f32.mrf.mxu0
        %v5817 = vadd.f32 0.0, %v5816
        %v5818 = vpop.f32.mrf.mxu0
        %v5819 = vadd.f32 0.0, %v5818
        %5820 = vmatmul.bf16.gmra.mxu0 %v5645
        %v5821 = vpop.f32.mrf.mxu0
        %v5822 = vadd.f32 0.0, %v5821
        %v5823 = vpop.f32.mrf.mxu0
        %v5824 = vadd.f32 0.0, %v5823
        %5825 = vdwg.mxu0
        %5826 = vmatpush.bf16.msra.mxu0 %v5773
        %5827 = vmatpush.bf16.msra.mxu0 %v5771
        %5828 = vmatpush.bf16.msra.mxu0 %v5769
        %5829 = vmatpush.bf16.msra.mxu0 %v5767
        %5830 = vmatpush.bf16.msra.mxu0 %v5765
        %5831 = vmatpush.bf16.msra.mxu0 %v5763
        %5832 = vmatpush.bf16.msra.mxu0 %v5761
        %5833 = vmatpush.bf16.msra.mxu0 %v5759
        %5834 = vmatmul.bf16.gmra.mxu0 %v5644
        %v5835 = vpop.f32.mrf.mxu0
        %v5836 = vadd.f32 %v5817, %v5835
        %v5837 = vpop.f32.mrf.mxu0
        %v5838 = vadd.f32 %v5819, %v5837
        %5839 = vmatmul.bf16.gmra.mxu0 %v5646
        %v5840 = vpop.f32.mrf.mxu0
        %v5841 = vadd.f32 %v5822, %v5840
        %v5842 = vpop.f32.mrf.mxu0
        %v5843 = vadd.f32 %v5824, %v5842
        %5844 = vdwg.mxu0
        %5845 = vmatpush.bf16.msra.mxu0 %v5758
        %5846 = vmatpush.bf16.msra.mxu0 %v5756
        %5847 = vmatpush.bf16.msra.mxu0 %v5754
        %5848 = vmatpush.bf16.msra.mxu0 %v5752
        %5849 = vmatpush.bf16.msra.mxu0 %v5750
        %5850 = vmatpush.bf16.msra.mxu0 %v5748
        %5851 = vmatpush.bf16.msra.mxu0 %v5746
        %5852 = vmatpush.bf16.msra.mxu0 %v5744
        %5853 = vmatmul.bf16.gmra.mxu0 %v5643
        %v5854 = vpop.f32.mrf.mxu0
        %v5855 = vadd.f32 0.0, %v5854
        %v5856 = vpop.f32.mrf.mxu0
        %v5857 = vadd.f32 0.0, %v5856
        %5858 = vmatmul.bf16.gmra.mxu0 %v5645
        %v5859 = vpop.f32.mrf.mxu0
        %v5860 = vadd.f32 0.0, %v5859
        %v5861 = vpop.f32.mrf.mxu0
        %v5862 = vadd.f32 0.0, %v5861
        %5863 = vdwg.mxu0
        %5864 = vmatpush.bf16.msra.mxu0 %v5774
        %5865 = vmatpush.bf16.msra.mxu0 %v5772
        %5866 = vmatpush.bf16.msra.mxu0 %v5770
        %5867 = vmatpush.bf16.msra.mxu0 %v5768
        %5868 = vmatpush.bf16.msra.mxu0 %v5766
        %5869 = vmatpush.bf16.msra.mxu0 %v5764
        %5870 = vmatpush.bf16.msra.mxu0 %v5762
        %5871 = vmatpush.bf16.msra.mxu0 %v5760
        %5872 = vmatmul.bf16.gmra.mxu0 %v5644
        %v5873 = vpop.f32.mrf.mxu0
        %v5874 = vadd.f32 %v5855, %v5873
        %v5875 = vpop.f32.mrf.mxu0
        %v5876 = vadd.f32 %v5857, %v5875
        %5877 = vmatmul.bf16.gmra.mxu0 %v5646
        %v5878 = vpop.f32.mrf.mxu0
        %v5879 = vadd.f32 %v5860, %v5878
        %v5880 = vpop.f32.mrf.mxu0
        %v5881 = vadd.f32 %v5862, %v5880
        %5882 = vdwg.mxu0
        %v5915 = vunpack.c.l.b16 %v5488
        %v5916 = vunpack.c.h.b16 %v5488
        %v5917 = vunpack.c.l.b16 %v5489
        %v5918 = vunpack.c.h.b16 %v5489
        %v5919 = vunpack.c.l.b16 %v5490
        %v5920 = vunpack.c.h.b16 %v5490
        %v5921 = vunpack.c.l.b16 %v5491
        %v5922 = vunpack.c.h.b16 %v5491
        %v5923 = vunpack.c.l.b16 %v5492
        %v5924 = vunpack.c.h.b16 %v5492
        %v5925 = vunpack.c.l.b16 %v5493
        %v5926 = vunpack.c.h.b16 %v5493
        %v5927 = vunpack.c.l.b16 %v5494
        %v5928 = vunpack.c.h.b16 %v5494
        %v5929 = vunpack.c.l.b16 %v5495
        %v5930 = vunpack.c.h.b16 %v5495
        %v5931 = vunpack.c.l.b16 %v5496
        %v5932 = vunpack.c.h.b16 %v5496
        %v5933 = vunpack.c.l.b16 %v5497
        %v5934 = vunpack.c.h.b16 %v5497
        %v5935 = vunpack.c.l.b16 %v5498
        %v5936 = vunpack.c.h.b16 %v5498
        %v5937 = vunpack.c.l.b16 %v5499
        %v5938 = vunpack.c.h.b16 %v5499
        %v5939 = vunpack.c.l.b16 %v5500
        %v5940 = vunpack.c.h.b16 %v5500
        %v5941 = vunpack.c.l.b16 %v5501
        %v5942 = vunpack.c.h.b16 %v5501
        %v5943 = vunpack.c.l.b16 %v5502
        %v5944 = vunpack.c.h.b16 %v5502
        %v5945 = vunpack.c.l.b16 %v5503
        %v5946 = vunpack.c.h.b16 %v5503
        %v5947 = vunpack.c.l.b16 %v5504
        %v5948 = vunpack.c.h.b16 %v5504
        %v5949 = vunpack.c.l.b16 %v5505
        %v5950 = vunpack.c.h.b16 %v5505
        %v5951 = vunpack.c.l.b16 %v5506
        %v5952 = vunpack.c.h.b16 %v5506
        %v5953 = vunpack.c.l.b16 %v5507
        %v5954 = vunpack.c.h.b16 %v5507
        %v5955 = vunpack.c.l.b16 %v5508
        %v5956 = vunpack.c.h.b16 %v5508
        %v5957 = vunpack.c.l.b16 %v5509
        %v5958 = vunpack.c.h.b16 %v5509
        %v5959 = vunpack.c.l.b16 %v5510
        %v5960 = vunpack.c.h.b16 %v5510
        %v5961 = vunpack.c.l.b16 %v5511
        %v5962 = vunpack.c.h.b16 %v5511
        %v5963 = vunpack.c.l.b16 %v5512
        %v5964 = vunpack.c.h.b16 %v5512
        %v5965 = vunpack.c.l.b16 %v5513
        %v5966 = vunpack.c.h.b16 %v5513
        %v5967 = vunpack.c.l.b16 %v5514
        %v5968 = vunpack.c.h.b16 %v5514
        %v5969 = vunpack.c.l.b16 %v5515
        %v5970 = vunpack.c.h.b16 %v5515
        %v5971 = vunpack.c.l.b16 %v5516
        %v5972 = vunpack.c.h.b16 %v5516
        %v5973 = vunpack.c.l.b16 %v5517
        %v5974 = vunpack.c.h.b16 %v5517
        %v5975 = vunpack.c.l.b16 %v5518
        %v5976 = vunpack.c.h.b16 %v5518
        %v5977 = vunpack.c.l.b16 %v5519
        %v5978 = vunpack.c.h.b16 %v5519
        %v5979 = vpack.c.b16 %v5917, %v5915
        %v5980 = vpack.c.b16 %v5918, %v5916
        %v5981 = vpack.c.b16 %v5921, %v5919
        %v5982 = vpack.c.b16 %v5922, %v5920
        %v5983 = vpack.c.b16 %v5925, %v5923
        %v5984 = vpack.c.b16 %v5926, %v5924
        %v5985 = vpack.c.b16 %v5929, %v5927
        %v5986 = vpack.c.b16 %v5930, %v5928
        %v5987 = vpack.c.b16 %v5933, %v5931
        %v5988 = vpack.c.b16 %v5934, %v5932
        %v5989 = vpack.c.b16 %v5937, %v5935
        %v5990 = vpack.c.b16 %v5938, %v5936
        %v5991 = vpack.c.b16 %v5941, %v5939
        %v5992 = vpack.c.b16 %v5942, %v5940
        %v5993 = vpack.c.b16 %v5945, %v5943
        %v5994 = vpack.c.b16 %v5946, %v5944
        %v5995 = vpack.c.b16 %v5949, %v5947
        %v5996 = vpack.c.b16 %v5950, %v5948
        %v5997 = vpack.c.b16 %v5953, %v5951
        %v5998 = vpack.c.b16 %v5954, %v5952
        %v5999 = vpack.c.b16 %v5957, %v5955
        %v6000 = vpack.c.b16 %v5958, %v5956
        %v6001 = vpack.c.b16 %v5961, %v5959
        %v6002 = vpack.c.b16 %v5962, %v5960
        %v6003 = vpack.c.b16 %v5965, %v5963
        %v6004 = vpack.c.b16 %v5966, %v5964
        %v6005 = vpack.c.b16 %v5969, %v5967
        %v6006 = vpack.c.b16 %v5970, %v5968
        %v6007 = vpack.c.b16 %v5973, %v5971
        %v6008 = vpack.c.b16 %v5974, %v5972
        %v6009 = vpack.c.b16 %v5977, %v5975
        %v6010 = vpack.c.b16 %v5978, %v5976
        %6043 = vmatpush.bf16.msra.mxu0 %v5993
        %6044 = vmatpush.bf16.msra.mxu0 %v5991
        %6045 = vmatpush.bf16.msra.mxu0 %v5989
        %6046 = vmatpush.bf16.msra.mxu0 %v5987
        %6047 = vmatpush.bf16.msra.mxu0 %v5985
        %6048 = vmatpush.bf16.msra.mxu0 %v5983
        %6049 = vmatpush.bf16.msra.mxu0 %v5981
        %6050 = vmatpush.bf16.msra.mxu0 %v5979
        %6051 = vmatmul.bf16.gmra.mxu0 %v5611
        %v6052 = vpop.f32.mrf.mxu0
        %v6053 = vadd.f32 %v5836, %v6052
        %v6054 = vpop.f32.mrf.mxu0
        %v6055 = vadd.f32 %v5838, %v6054
        %6056 = vmatmul.bf16.gmra.mxu0 %v5613
        %v6057 = vpop.f32.mrf.mxu0
        %v6058 = vadd.f32 %v5841, %v6057
        %v6059 = vpop.f32.mrf.mxu0
        %v6060 = vadd.f32 %v5843, %v6059
        %6061 = vdwg.mxu0
        %6062 = vmatpush.bf16.msra.mxu0 %v6009
        %6063 = vmatpush.bf16.msra.mxu0 %v6007
        %6064 = vmatpush.bf16.msra.mxu0 %v6005
        %6065 = vmatpush.bf16.msra.mxu0 %v6003
        %6066 = vmatpush.bf16.msra.mxu0 %v6001
        %6067 = vmatpush.bf16.msra.mxu0 %v5999
        %6068 = vmatpush.bf16.msra.mxu0 %v5997
        %6069 = vmatpush.bf16.msra.mxu0 %v5995
        %6070 = vmatmul.bf16.gmra.mxu0 %v5612
        %v6071 = vpop.f32.mrf.mxu0
        %v6072 = vadd.f32 %v6053, %v6071
        %v6073 = vpop.f32.mrf.mxu0
        %v6074 = vadd.f32 %v6055, %v6073
        %6075 = vmatmul.bf16.gmra.mxu0 %v5614
        %v6076 = vpop.f32.mrf.mxu0
        %v6077 = vadd.f32 %v6058, %v6076
        %v6078 = vpop.f32.mrf.mxu0
        %v6079 = vadd.f32 %v6060, %v6078
        %6080 = vdwg.mxu0
        %6081 = vmatpush.bf16.msra.mxu0 %v5994
        %6082 = vmatpush.bf16.msra.mxu0 %v5992
        %6083 = vmatpush.bf16.msra.mxu0 %v5990
        %6084 = vmatpush.bf16.msra.mxu0 %v5988
        %6085 = vmatpush.bf16.msra.mxu0 %v5986
        %6086 = vmatpush.bf16.msra.mxu0 %v5984
        %6087 = vmatpush.bf16.msra.mxu0 %v5982
        %6088 = vmatpush.bf16.msra.mxu0 %v5980
        %6089 = vmatmul.bf16.gmra.mxu0 %v5611
        %v6090 = vpop.f32.mrf.mxu0
        %v6091 = vadd.f32 %v5874, %v6090
        %v6092 = vpop.f32.mrf.mxu0
        %v6093 = vadd.f32 %v5876, %v6092
        %6094 = vmatmul.bf16.gmra.mxu0 %v5613
        %v6095 = vpop.f32.mrf.mxu0
        %v6096 = vadd.f32 %v5879, %v6095
        %v6097 = vpop.f32.mrf.mxu0
        %v6098 = vadd.f32 %v5881, %v6097
        %6099 = vdwg.mxu0
        %6100 = vmatpush.bf16.msra.mxu0 %v6010
        %6101 = vmatpush.bf16.msra.mxu0 %v6008
        %6102 = vmatpush.bf16.msra.mxu0 %v6006
        %6103 = vmatpush.bf16.msra.mxu0 %v6004
        %6104 = vmatpush.bf16.msra.mxu0 %v6002
        %6105 = vmatpush.bf16.msra.mxu0 %v6000
        %6106 = vmatpush.bf16.msra.mxu0 %v5998
        %6107 = vmatpush.bf16.msra.mxu0 %v5996
        %6108 = vmatmul.bf16.gmra.mxu0 %v5612
        %v6109 = vpop.f32.mrf.mxu0
        %v6110 = vadd.f32 %v6091, %v6109
        %v6111 = vpop.f32.mrf.mxu0
        %v6112 = vadd.f32 %v6093, %v6111
        %6113 = vmatmul.bf16.gmra.mxu0 %v5614
        %v6114 = vpop.f32.mrf.mxu0
        %v6115 = vadd.f32 %v6096, %v6114
        %v6116 = vpop.f32.mrf.mxu0
        %v6117 = vadd.f32 %v6098, %v6116
        %6118 = vdwg.mxu0
        %v6151 = vunpack.c.l.b16 %v5554
        %v6152 = vunpack.c.h.b16 %v5554
        %v6153 = vunpack.c.l.b16 %v5555
        %v6154 = vunpack.c.h.b16 %v5555
        %v6155 = vunpack.c.l.b16 %v5556
        %v6156 = vunpack.c.h.b16 %v5556
        %v6157 = vunpack.c.l.b16 %v5557
        %v6158 = vunpack.c.h.b16 %v5557
        %v6159 = vunpack.c.l.b16 %v5558
        %v6160 = vunpack.c.h.b16 %v5558
        %v6161 = vunpack.c.l.b16 %v5559
        %v6162 = vunpack.c.h.b16 %v5559
        %v6163 = vunpack.c.l.b16 %v5560
        %v6164 = vunpack.c.h.b16 %v5560
        %v6165 = vunpack.c.l.b16 %v5561
        %v6166 = vunpack.c.h.b16 %v5561
        %v6167 = vunpack.c.l.b16 %v5562
        %v6168 = vunpack.c.h.b16 %v5562
        %v6169 = vunpack.c.l.b16 %v5563
        %v6170 = vunpack.c.h.b16 %v5563
        %v6171 = vunpack.c.l.b16 %v5564
        %v6172 = vunpack.c.h.b16 %v5564
        %v6173 = vunpack.c.l.b16 %v5565
        %v6174 = vunpack.c.h.b16 %v5565
        %v6175 = vunpack.c.l.b16 %v5566
        %v6176 = vunpack.c.h.b16 %v5566
        %v6177 = vunpack.c.l.b16 %v5567
        %v6178 = vunpack.c.h.b16 %v5567
        %v6179 = vunpack.c.l.b16 %v5568
        %v6180 = vunpack.c.h.b16 %v5568
        %v6181 = vunpack.c.l.b16 %v5569
        %v6182 = vunpack.c.h.b16 %v5569
        %v6183 = vunpack.c.l.b16 %v5570
        %v6184 = vunpack.c.h.b16 %v5570
        %v6185 = vunpack.c.l.b16 %v5571
        %v6186 = vunpack.c.h.b16 %v5571
        %v6187 = vunpack.c.l.b16 %v5572
        %v6188 = vunpack.c.h.b16 %v5572
        %v6189 = vunpack.c.l.b16 %v5573
        %v6190 = vunpack.c.h.b16 %v5573
        %v6191 = vunpack.c.l.b16 %v5574
        %v6192 = vunpack.c.h.b16 %v5574
        %v6193 = vunpack.c.l.b16 %v5575
        %v6194 = vunpack.c.h.b16 %v5575
        %v6195 = vunpack.c.l.b16 %v5576
        %v6196 = vunpack.c.h.b16 %v5576
        %v6197 = vunpack.c.l.b16 %v5577
        %v6198 = vunpack.c.h.b16 %v5577
        %v6199 = vunpack.c.l.b16 %v5578
        %v6200 = vunpack.c.h.b16 %v5578
        %v6201 = vunpack.c.l.b16 %v5579
        %v6202 = vunpack.c.h.b16 %v5579
        %v6203 = vunpack.c.l.b16 %v5580
        %v6204 = vunpack.c.h.b16 %v5580
        %v6205 = vunpack.c.l.b16 %v5581
        %v6206 = vunpack.c.h.b16 %v5581
        %v6207 = vunpack.c.l.b16 %v5582
        %v6208 = vunpack.c.h.b16 %v5582
        %v6209 = vunpack.c.l.b16 %v5583
        %v6210 = vunpack.c.h.b16 %v5583
        %v6211 = vunpack.c.l.b16 %v5584
        %v6212 = vunpack.c.h.b16 %v5584
        %v6213 = vunpack.c.l.b16 %v5585
        %v6214 = vunpack.c.h.b16 %v5585
        %v6215 = vpack.c.b16 %v6153, %v6151
        %v6216 = vpack.c.b16 %v6154, %v6152
        %v6217 = vpack.c.b16 %v6157, %v6155
        %v6218 = vpack.c.b16 %v6158, %v6156
        %v6219 = vpack.c.b16 %v6161, %v6159
        %v6220 = vpack.c.b16 %v6162, %v6160
        %v6221 = vpack.c.b16 %v6165, %v6163
        %v6222 = vpack.c.b16 %v6166, %v6164
        %v6223 = vpack.c.b16 %v6169, %v6167
        %v6224 = vpack.c.b16 %v6170, %v6168
        %v6225 = vpack.c.b16 %v6173, %v6171
        %v6226 = vpack.c.b16 %v6174, %v6172
        %v6227 = vpack.c.b16 %v6177, %v6175
        %v6228 = vpack.c.b16 %v6178, %v6176
        %v6229 = vpack.c.b16 %v6181, %v6179
        %v6230 = vpack.c.b16 %v6182, %v6180
        %v6231 = vpack.c.b16 %v6185, %v6183
        %v6232 = vpack.c.b16 %v6186, %v6184
        %v6233 = vpack.c.b16 %v6189, %v6187
        %v6234 = vpack.c.b16 %v6190, %v6188
        %v6235 = vpack.c.b16 %v6193, %v6191
        %v6236 = vpack.c.b16 %v6194, %v6192
        %v6237 = vpack.c.b16 %v6197, %v6195
        %v6238 = vpack.c.b16 %v6198, %v6196
        %v6239 = vpack.c.b16 %v6201, %v6199
        %v6240 = vpack.c.b16 %v6202, %v6200
        %v6241 = vpack.c.b16 %v6205, %v6203
        %v6242 = vpack.c.b16 %v6206, %v6204
        %v6243 = vpack.c.b16 %v6209, %v6207
        %v6244 = vpack.c.b16 %v6210, %v6208
        %v6245 = vpack.c.b16 %v6213, %v6211
        %v6246 = vpack.c.b16 %v6214, %v6212
        %6279 = vmatpush.bf16.msra.mxu0 %v6229
        %6280 = vmatpush.bf16.msra.mxu0 %v6227
        %6281 = vmatpush.bf16.msra.mxu0 %v6225
        %6282 = vmatpush.bf16.msra.mxu0 %v6223
        %6283 = vmatpush.bf16.msra.mxu0 %v6221
        %6284 = vmatpush.bf16.msra.mxu0 %v6219
        %6285 = vmatpush.bf16.msra.mxu0 %v6217
        %6286 = vmatpush.bf16.msra.mxu0 %v6215
        %6287 = vmatmul.bf16.gmra.mxu0 %v5639
        %v6288 = vpop.f32.mrf.mxu0
        %v6289 = vadd.f32 0.0, %v6288
        %v6290 = vpop.f32.mrf.mxu0
        %v6291 = vadd.f32 0.0, %v6290
        %6292 = vmatmul.bf16.gmra.mxu0 %v5641
        %v6293 = vpop.f32.mrf.mxu0
        %v6294 = vadd.f32 0.0, %v6293
        %v6295 = vpop.f32.mrf.mxu0
        %v6296 = vadd.f32 0.0, %v6295
        %6297 = vdwg.mxu0
        %6298 = vmatpush.bf16.msra.mxu0 %v6245
        %6299 = vmatpush.bf16.msra.mxu0 %v6243
        %6300 = vmatpush.bf16.msra.mxu0 %v6241
        %6301 = vmatpush.bf16.msra.mxu0 %v6239
        %6302 = vmatpush.bf16.msra.mxu0 %v6237
        %6303 = vmatpush.bf16.msra.mxu0 %v6235
        %6304 = vmatpush.bf16.msra.mxu0 %v6233
        %6305 = vmatpush.bf16.msra.mxu0 %v6231
        %6306 = vmatmul.bf16.gmra.mxu0 %v5640
        %v6307 = vpop.f32.mrf.mxu0
        %v6308 = vadd.f32 %v6289, %v6307
        %v6309 = vpop.f32.mrf.mxu0
        %v6310 = vadd.f32 %v6291, %v6309
        %6311 = vmatmul.bf16.gmra.mxu0 %v5642
        %v6312 = vpop.f32.mrf.mxu0
        %v6313 = vadd.f32 %v6294, %v6312
        %v6314 = vpop.f32.mrf.mxu0
        %v6315 = vadd.f32 %v6296, %v6314
        %6316 = vdwg.mxu0
        %6317 = vmatpush.bf16.msra.mxu0 %v6230
        %6318 = vmatpush.bf16.msra.mxu0 %v6228
        %6319 = vmatpush.bf16.msra.mxu0 %v6226
        %6320 = vmatpush.bf16.msra.mxu0 %v6224
        %6321 = vmatpush.bf16.msra.mxu0 %v6222
        %6322 = vmatpush.bf16.msra.mxu0 %v6220
        %6323 = vmatpush.bf16.msra.mxu0 %v6218
        %6324 = vmatpush.bf16.msra.mxu0 %v6216
        %6325 = vmatmul.bf16.gmra.mxu0 %v5639
        %v6326 = vpop.f32.mrf.mxu0
        %v6327 = vadd.f32 0.0, %v6326
        %v6328 = vpop.f32.mrf.mxu0
        %v6329 = vadd.f32 0.0, %v6328
        %6330 = vmatmul.bf16.gmra.mxu0 %v5641
        %v6331 = vpop.f32.mrf.mxu0
        %v6332 = vadd.f32 0.0, %v6331
        %v6333 = vpop.f32.mrf.mxu0
        %v6334 = vadd.f32 0.0, %v6333
        %6335 = vdwg.mxu0
        %6336 = vmatpush.bf16.msra.mxu0 %v6246
        %6337 = vmatpush.bf16.msra.mxu0 %v6244
        %6338 = vmatpush.bf16.msra.mxu0 %v6242
        %6339 = vmatpush.bf16.msra.mxu0 %v6240
        %6340 = vmatpush.bf16.msra.mxu0 %v6238
        %6341 = vmatpush.bf16.msra.mxu0 %v6236
        %6342 = vmatpush.bf16.msra.mxu0 %v6234
        %6343 = vmatpush.bf16.msra.mxu0 %v6232
        %6344 = vmatmul.bf16.gmra.mxu0 %v5640
        %v6345 = vpop.f32.mrf.mxu0
        %v6346 = vadd.f32 %v6327, %v6345
        %v6347 = vpop.f32.mrf.mxu0
        %v6348 = vadd.f32 %v6329, %v6347
        %6349 = vmatmul.bf16.gmra.mxu0 %v5642
        %v6350 = vpop.f32.mrf.mxu0
        %v6351 = vadd.f32 %v6332, %v6350
        %v6352 = vpop.f32.mrf.mxu0
        %v6353 = vadd.f32 %v6334, %v6352
        %6354 = vdwg.mxu0
        %v6355 = vadd.f32 %v6072, %v6308
        %v6356 = vadd.f32 %v6110, %v6346
        %v6357 = vadd.f32 %v6074, %v6310
        %v6358 = vadd.f32 %v6112, %v6348
        %v6359 = vadd.f32 %v6077, %v6313
        %v6360 = vadd.f32 %v6115, %v6351
        %v6361 = vadd.f32 %v6079, %v6315
        %v6362 = vadd.f32 %v6117, %v6353
        %v6364 = vperm.slane %v5586, 0
        %v6365 = vperm.slane %v5586, 1
        %v6368 = vadd.f32 %v6355, %v6364
        %v6369 = vadd.f32 %v6356, %v6365
        %v6370 = vadd.f32 %v6357, %v6364
        %v6371 = vadd.f32 %v6358, %v6365
        %v6372 = vadd.f32 %v6359, %v6364
        %v6373 = vadd.f32 %v6360, %v6365
        %v6374 = vadd.f32 %v6361, %v6364
        %v6375 = vadd.f32 %v6362, %v6365
        %v6376 = vld [vmem:[%s1216] sm:$0xff]
        %v6377 = vld [vmem:[%s1216 + $0x8] sm:$0xff]
        %v6378 = vld [vmem:[%s1216 + $0x10] sm:$0xff]
        %v6379 = vld [vmem:[%s1216 + $0x18] sm:$0xff]
        %v6380 = vld [vmem:[%s1216 + $0x20] sm:$0xff]
        %v6381 = vld [vmem:[%s1216 + $0x28] sm:$0xff]
        %v6382 = vld [vmem:[%s1216 + $0x30] sm:$0xff]
        %v6383 = vld [vmem:[%s1216 + $0x38] sm:$0xff]
        %v6384 = vadd.f32 %v6368, %v6376
        %v6385 = vadd.f32 %v6369, %v6377
        %v6386 = vadd.f32 %v6370, %v6378
        %v6387 = vadd.f32 %v6371, %v6379
        %v6388 = vadd.f32 %v6372, %v6380
        %v6389 = vadd.f32 %v6373, %v6381
        %v6390 = vadd.f32 %v6374, %v6382
        %v6391 = vadd.f32 %v6375, %v6383
        %6392 = vst [vmem:[%s1283] sm:$0xff] %v6384
        %6393 = vst [vmem:[%s1283 + $0x8] sm:$0xff] %v6385
        %6394 = vst [vmem:[%s1283 + $0x10] sm:$0xff] %v6386
        %6395 = vst [vmem:[%s1283 + $0x18] sm:$0xff] %v6387
        %6396 = vst [vmem:[%s1283 + $0x20] sm:$0xff] %v6388
        %6397 = vst [vmem:[%s1283 + $0x28] sm:$0xff] %v6389
        %6398 = vst [vmem:[%s1283 + $0x30] sm:$0xff] %v6390
        %6399 = vst [vmem:[%s1283 + $0x38] sm:$0xff] %v6391
      $region160: #{residual_group_forward.1} parent=151 // pred_fallthru
        _
      %s6400 = smul.u32 2, %s82
      %p6401 = scmp.lt.s32.totalorder %s6400, 1
      %s6402 = scalar_select %p6401, %s6400, 1
      %s6403 = smul.addr %s6402, 4
      %s6404 = smul.addr %s6403, 8
      %s6405 = scalar_lea.vmem %s67, %s6404
      // Predicated region
      $region161: #{residual_group_forward.1} parent=151 // pred_check
        %p6406 = pneg %p876
      $region162: #{residual_group_forward.1} parent=151 // pred_check_branch
        %6408 = sbr.rel (%p6406) target = $region164
      $region163: #{residual_group_forward.1} parent=151 // pred_region
        %s6409 = smul.u32 2, %s82
      $region164: #{residual_group_forward.1} parent=151 // pred_fallthru
        _
      // Predicated region
      $region165: #{residual_group_forward.1} parent=151 // pred_check
        %p6410 = pneg %p876
      $region166: #{residual_group_forward.1} parent=151 // pred_check_branch
        %6412 = sbr.rel (%p6410) target = $region168
      $region167: #{residual_group_forward.1} parent=151 // pred_region
        %s6413 = smul.u32 2, %s82
        %p6414 = scmp.lt.s32.totalorder %s6413, 1
        %s6415 = scalar_select %p6414, %s6413, 1
        %s6416 = smul.addr %s6415, 4
        %s6417 = smul.addr %s6416, 8
        %s6418 = scalar_lea.vmem %s67, %s6417
      $region168: #{residual_group_forward.1} parent=151 // pred_fallthru
        _
    $region152: #{residual_group_forward.1} parent=5 // pred_fallthru
      _
    %p6419 = scmp.le.s32.totalorder 2, %s73
    // Predicated region
    $region169: #{residual_group_forward.1} parent=5 // pred_check
      %p6420 = pneg %p6419
    $region170: #{residual_group_forward.1} parent=5 // pred_check_branch
      %6422 = sbr.rel (%p6420) target = $region172
    $region171: #{residual_group_forward.1} parent=5 // pred_region
      %s6423 = ssub.s32 %s73, 2
    $region172: #{residual_group_forward.1} parent=5 // pred_fallthru
      _
  $region6: #{residual_group_forward.1} parent=0 // loop_footer
    %s77 = sadd.s32 1, %s73
  $region7: #{residual_group_forward.1} parent=0 // loop_footer_branch
    %72 = sbr.rel target = $region3
  $region8: #{residual_group_forward.1} parent=0 // loop_exit
    _

</llo_original>
